<compile_context>
chip_gen: v5e
topology: v5e:2x2
jax: 0.10.0
libtpu: 0.0.40
codegen_flags: <defaults>
</compile_context>

<pallas_src>
import numpy as np

import jax
import jax.numpy as jnp
from jax.experimental import pallas as pl
from jax.experimental.pallas import tpu as pltpu


_WB_ORDER = ('hc1', 'c11', 'c12', 'cca1', 'c21', 'c22', 'cca2',
             'c31', 'c32', 'cca3', 'c1', 'c3', 'cca', 'last1', 'last3')
_K3 = frozenset({'c11', 'c12', 'c21', 'c22', 'c31', 'c32', 'c1', 'c3', 'last3'})


def _tap_mask_stacks(N, H, W, cins):
    """Per-Cin (N*H*W, 9*Cin) 0/1 masks matching the rolled-tap concat layout."""
    HW = H * W
    h = np.arange(HW) // W
    w = np.arange(HW) % W
    cols = []
    for dy in (-1, 0, 1):
        for dx in (-1, 0, 1):
            cols.append(((h + dy >= 0) & (h + dy < H) &
                         (w + dx >= 0) & (w + dx < W)).astype(np.float32))
    m9 = np.tile(np.stack(cols, axis=1), (N, 1))                    # (R, 9)
    return {c: jnp.asarray(np.repeat(m9, c, axis=1)) for c in cins}


# ------------------------------ fused forward --------------------------------

@jax.jit
def imd_forward(x_nchw, params):
    N, C, H, W = x_nchw.shape
    HW, R = H * W, N * H * W
    inv_hw = 1.0 / HW
    deltas = tuple(dy * W + dx for dy in (-1, 0, 1) for dx in (-1, 0, 1))

    # static per-conv metadata: name -> (cin, cout, packed-bias row)
    conv_dims = {}
    for row, name in enumerate(_WB_ORDER):
        w = params[name + '_w']
        cin, cout = ((int(w.shape[1]), int(w.shape[2])) if name in _K3
                     else (int(w.shape[0]), int(w.shape[1])))
        conv_dims[name] = (cin, cout, row)
    mask_cins = tuple(sorted({conv_dims[n][0] for n in _K3}))

    # operands: flattened input, packed biases, tap masks, weights
    x_flat = jnp.transpose(x_nchw, (0, 2, 3, 1)).reshape(R, C)     # NCHW -> (R, C)
    max_cout = max(d[1] for d in conv_dims.values())
    bias_pack = jnp.zeros((len(_WB_ORDER), max_cout), jnp.float32)
    for name, (_, cout, row) in conv_dims.items():
        bias_pack = bias_pack.at[row, :cout].set(params[name + '_b'])
    mask_stacks = _tap_mask_stacks(N, H, W, mask_cins)
    weights = []
    for name in _WB_ORDER:
        w = params[name + '_w']
        if name in _K3:
            w = w.reshape(-1, w.shape[-1]).astype(jnp.bfloat16)    # (9*cin, cout)
        elif name in ('hc1', 'last1'):
            w = w.astype(jnp.bfloat16)                             # big 1x1 convs
        weights.append(w)                                          # cca* stay f32

    # --------------------------- the kernel ----------------------------------
    def kernel(x_ref, bias_ref, *refs):
        mask_refs = {c: refs[i] for i, c in enumerate(mask_cins)}
        w_refs = {n: refs[len(mask_cins) + i] for i, n in enumerate(_WB_ORDER)}
        o_ref = refs[-1]

        def bias(name):
            _, cout, row = conv_dims[name]
            return bias_ref[row:row + 1, :cout]                    # (1, cout) f32

        def conv1x1(t, name, relu=False):
            w = w_refs[name][...]
            out = jnp.dot(t.astype(w.dtype), w,
                          preferred_element_type=jnp.float32) + bias(name)
            return jnp.maximum(out, 0.0) if relu else out

        def conv3x3(t, name, relu=False):
            cin = conv_dims[name][0]
            # 9 spatial taps via XLU rolls; out-of-image rows zeroed by the mask
            # (masks also kill rows that wrapped across image/batch boundaries).
            parts = [t if d == 0 else pltpu.roll(t, (-d) % R, axis=0)
                     for d in deltas]
            stack = jnp.concatenate(parts, axis=-1)                # (R, 9*cin)
            stack = (stack * mask_refs[cin][...]).astype(jnp.bfloat16)
            out = jnp.dot(stack, w_refs[name][...],
                          preferred_element_type=jnp.float32) + bias(name)
            return jnp.maximum(out, 0.0) if relu else out

        def cca(t, name):
            ch = t.shape[-1]
            t3 = t.reshape(N, HW, ch)                              # per-image stats
            mean = jnp.sum(t3, axis=1, keepdims=True) * inv_hw
            var = jnp.sum((t3 - mean) ** 2, axis=1, keepdims=True) * inv_hw
            y = (jnp.sqrt(var) + mean).reshape(N, ch)
            y = jnp.dot(y, w_refs[name][...],
                        preferred_element_type=jnp.float32) + bias(name)
            gate = pl.reciprocal(1.0 + jnp.exp(-y), approx=True)   # sigmoid on EUP
            gate = gate.reshape(N, 1, ch)
            return (t3 * gate + t3).reshape(R, ch)

        x = x_ref[...]                                             # (R, C) f32

        outh = conv1x1(x, 'hc1')
        out12 = conv3x3(conv3x3(outh, 'c11', relu=True), 'c12') + outh
        out13 = cca(out12, 'cca1')

        out2 = jnp.concatenate([outh, out12], axis=-1)
        out22 = conv3x3(conv3x3(out2, 'c21', relu=True), 'c22') + out2
        out23 = cca(out22, 'cca2')

        out3 = jnp.concatenate([outh, out22], axis=-1)
        out32 = conv3x3(conv3x3(out3, 'c31', relu=True), 'c32') + out3
        out33 = cca(out32, 'cca3')

        out4 = jnp.concatenate([outh, out32], axis=-1)
        out42 = conv3x3(conv3x3(out4, 'c1', relu=True), 'c3') + out4
        out43 = cca(out42, 'cca')

        out5 = jnp.concatenate([out13, out23, out33, out43, out22], axis=-1)
        out51 = conv3x3(conv1x1(out5, 'last1'), 'last3', relu=True)
        out52 = cca(out51, 'cca')                                  # ccaLayer reused

        o_ref[...] = (out52 + x).astype(o_ref.dtype)               # + input residual

    out = pl.pallas_call(
        kernel,
        out_shape=jax.ShapeDtypeStruct((R, C), jnp.float32),
    )(x_flat, bias_pack, *[mask_stacks[c] for c in mask_cins], *weights)

    return jnp.transpose(out.reshape(N, H, W, C), (0, 3, 1, 2))    # back to NCHW


# ------------------------- pure-JAX reference path ---------------------------

def _ref_conv(x, w, b, relu=False):
    w4 = w[None, None] if w.ndim == 2 else w.reshape(3, 3, w.shape[1], w.shape[2])
    out = jax.lax.conv_general_dilated(
        x, w4, window_strides=(1, 1), padding='SAME',
        dimension_numbers=('NHWC', 'HWIO', 'NHWC'),
        precision=jax.lax.Precision.HIGHEST) + b
    return jnp.maximum(out, 0.0) if relu else out


def _ref_cca(x, w, b):
    mean = jnp.mean(x, axis=(1, 2), keepdims=True)
    var = jnp.mean((x - mean) ** 2, axis=(1, 2), keepdims=True)
    y = jnp.sqrt(var) + mean
    y = jax.nn.sigmoid(
        jnp.einsum('nhwc,cd->nhwd', y, w, precision=jax.lax.Precision.HIGHEST) + b)
    return x * y + x


@jax.jit
def imd_reference(x_nchw, params):
    p = params
    conv = lambda t, n, relu=False: _ref_conv(t, p[n + '_w'], p[n + '_b'], relu)
    cca = lambda t, n: _ref_cca(t, p[n + '_w'], p[n + '_b'])

    x = jnp.transpose(x_nchw, (0, 2, 3, 1))
    outh = conv(x, 'hc1')
    out12 = conv(conv(outh, 'c11', True), 'c12') + outh
    out13 = cca(out12, 'cca1')
    out2 = jnp.concatenate([outh, out12], axis=-1)
    out22 = conv(conv(out2, 'c21', True), 'c22') + out2
    out23 = cca(out22, 'cca2')
    out3 = jnp.concatenate([outh, out22], axis=-1)
    out32 = conv(conv(out3, 'c31', True), 'c32') + out3
    out33 = cca(out32, 'cca3')
    out4 = jnp.concatenate([outh, out32], axis=-1)
    out42 = conv(conv(out4, 'c1', True), 'c3') + out4
    out43 = cca(out42, 'cca')
    out5 = jnp.concatenate([out13, out23, out33, out43, out22], axis=-1)
    out51 = conv(conv(out5, 'last1'), 'last3', True)
    out52 = cca(out51, 'cca')
    return jnp.transpose(out52 + x, (0, 3, 1, 2))


# ------------------------------ parameter init -------------------------------

def init_params(key, C):
    dc1, dc2, dc3 = C // 4, C // 2, 3 * C // 4
    specs = {
        'hc1': (1, C, dc1),
        'c11': (3, dc1, dc1), 'c12': (3, dc1, dc1), 'cca1': (1, dc1, dc1),
        'c21': (3, dc2, dc2), 'c22': (3, dc2, dc2), 'cca2': (1, dc2, dc2),
        'c31': (3, dc3, dc3), 'c32': (3, dc3, dc3), 'cca3': (1, dc3, dc3),
        'c1': (3, C, C), 'c3': (3, C, C), 'cca': (1, C, C),
        'last1': (1, 3 * C, C), 'last3': (3, C, C),
    }
    params = {}
    keys = jax.random.split(key, len(specs))
    for (name, (k, cin, cout)), kk in zip(specs.items(), keys):
        kw, kb = jax.random.split(kk)
        fan_in = float(k * k * cin)
        shape = (cin, cout) if k == 1 else (k * k, cin, cout)   # taps = ky*3+kx
        params[name + '_w'] = (jax.random.normal(kw, shape, jnp.float32)
                               / (fan_in ** 0.5))
        params[name + '_b'] = jax.random.normal(kb, (cout,), jnp.float32) * 0.01
    return params


# ----------------------------------- main ------------------------------------

if __name__ == "__main__":
    key = jax.random.PRNGKey(0)
    kx, kp = jax.random.split(key)
    N, C, H, W = 2, 16, 8, 8                                    # NCHW input
    x = jax.random.normal(kx, (N, C, H, W), jnp.float32)
    params = init_params(kp, C)

    out = jax.block_until_ready(imd_forward(x, params))
    assert out.shape == (N, C, H, W) and out.dtype == jnp.float32
    assert bool(jnp.all(jnp.isfinite(out)))

    ref = jax.block_until_ready(imd_reference(x, params))
    rel_err = float(jnp.max(jnp.abs(out - ref)) / (jnp.max(jnp.abs(ref)) + 1e-6))
    assert rel_err < 5e-2, f"normalized max error vs reference: {rel_err}"

    print("KERNEL_OK")
</pallas_src>

<mosaic_0001>
module attributes {stable_mosaic.version = 11 : i64} {
  func.func @kernel(%arg0: memref<128x16xf32, #tpu.memory_space<vmem>>, %arg1: memref<15x16xf32, #tpu.memory_space<vmem>>, %arg2: memref<128x36xf32, #tpu.memory_space<vmem>>, %arg3: memref<128x72xf32, #tpu.memory_space<vmem>>, %arg4: memref<128x108xf32, #tpu.memory_space<vmem>>, %arg5: memref<128x144xf32, #tpu.memory_space<vmem>>, %arg6: memref<16x4xbf16, #tpu.memory_space<vmem>>, %arg7: memref<36x4xbf16, #tpu.memory_space<vmem>>, %arg8: memref<36x4xbf16, #tpu.memory_space<vmem>>, %arg9: memref<4x4xf32, #tpu.memory_space<vmem>>, %arg10: memref<72x8xbf16, #tpu.memory_space<vmem>>, %arg11: memref<72x8xbf16, #tpu.memory_space<vmem>>, %arg12: memref<8x8xf32, #tpu.memory_space<vmem>>, %arg13: memref<108x12xbf16, #tpu.memory_space<vmem>>, %arg14: memref<108x12xbf16, #tpu.memory_space<vmem>>, %arg15: memref<12x12xf32, #tpu.memory_space<vmem>>, %arg16: memref<144x16xbf16, #tpu.memory_space<vmem>>, %arg17: memref<144x16xbf16, #tpu.memory_space<vmem>>, %arg18: memref<16x16xf32, #tpu.memory_space<vmem>>, %arg19: memref<48x16xbf16, #tpu.memory_space<vmem>>, %arg20: memref<144x16xbf16, #tpu.memory_space<vmem>>, %arg21: memref<128x16xf32, #tpu.memory_space<vmem>>) attributes {dimension_semantics = [], scalar_prefetch = 0 : i64, scratch_operands = 0 : i64, tpu.core_type = #tpu.core_type<tc>} {
    %c0 = arith.constant 0 : index
    %c0_0 = arith.constant 0 : index
    %0 = vector.load %arg0[%c0, %c0_0] : memref<128x16xf32, #tpu.memory_space<vmem>>, vector<128x16xf32>
    %c0_1 = arith.constant 0 : index
    %c0_2 = arith.constant 0 : index
    %1 = vector.load %arg6[%c0_1, %c0_2] : memref<16x4xbf16, #tpu.memory_space<vmem>>, vector<16x4xbf16>
    %2 = arith.truncf %0 : vector<128x16xf32> to vector<128x16xbf16>
    %cst = arith.constant dense<0.000000e+00> : vector<128x4xf32>
    %3 = tpu.matmul %2, %1, %cst {dimension_numbers = #tpu.dot_dimension_numbers<[1], [0], [0], [1], [0, 0, 1, 1], [], []>} : vector<128x16xbf16>, vector<16x4xbf16>, vector<128x4xf32> -> vector<128x4xf32>
    %c0_3 = arith.constant 0 : index
    %c0_4 = arith.constant 0 : index
    %4 = vector.load %arg1[%c0_3, %c0_4] : memref<15x16xf32, #tpu.memory_space<vmem>>, vector<1x4xf32>
    %5 = vector.broadcast %4 : vector<1x4xf32> to vector<128x4xf32>
    %6 = arith.addf %3, %5 : vector<128x4xf32>
    %c9_i32 = arith.constant 9 : i32
    %7 = tpu.dynamic_rotate %6 by %c9_i32 dim 0 : vector<128x4xf32>, i32 -> vector<128x4xf32>
    %c8_i32 = arith.constant 8 : i32
    %8 = tpu.dynamic_rotate %6 by %c8_i32 dim 0 : vector<128x4xf32>, i32 -> vector<128x4xf32>
    %c7_i32 = arith.constant 7 : i32
    %9 = tpu.dynamic_rotate %6 by %c7_i32 dim 0 : vector<128x4xf32>, i32 -> vector<128x4xf32>
    %c1_i32 = arith.constant 1 : i32
    %10 = tpu.dynamic_rotate %6 by %c1_i32 dim 0 : vector<128x4xf32>, i32 -> vector<128x4xf32>
    %c127_i32 = arith.constant 127 : i32
    %11 = tpu.dynamic_rotate %6 by %c127_i32 dim 0 : vector<128x4xf32>, i32 -> vector<128x4xf32>
    %c121_i32 = arith.constant 121 : i32
    %12 = tpu.dynamic_rotate %6 by %c121_i32 dim 0 : vector<128x4xf32>, i32 -> vector<128x4xf32>
    %c120_i32 = arith.constant 120 : i32
    %13 = tpu.dynamic_rotate %6 by %c120_i32 dim 0 : vector<128x4xf32>, i32 -> vector<128x4xf32>
    %c119_i32 = arith.constant 119 : i32
    %14 = tpu.dynamic_rotate %6 by %c119_i32 dim 0 : vector<128x4xf32>, i32 -> vector<128x4xf32>
    %15 = tpu.concatenate %7, %8, %9, %10, %6, %11, %12, %13, %14 in 1 : vector<128x4xf32>, vector<128x4xf32>, vector<128x4xf32>, vector<128x4xf32>, vector<128x4xf32>, vector<128x4xf32>, vector<128x4xf32>, vector<128x4xf32>, vector<128x4xf32> -> vector<128x36xf32>
    %c0_5 = arith.constant 0 : index
    %c0_6 = arith.constant 0 : index
    %16 = vector.load %arg2[%c0_5, %c0_6] : memref<128x36xf32, #tpu.memory_space<vmem>>, vector<128x36xf32>
    %17 = arith.mulf %15, %16 : vector<128x36xf32>
    %18 = arith.truncf %17 : vector<128x36xf32> to vector<128x36xbf16>
    %c0_7 = arith.constant 0 : index
    %c0_8 = arith.constant 0 : index
    %19 = vector.load %arg7[%c0_7, %c0_8] : memref<36x4xbf16, #tpu.memory_space<vmem>>, vector<36x4xbf16>
    %cst_9 = arith.constant dense<0.000000e+00> : vector<128x4xf32>
    %20 = tpu.matmul %18, %19, %cst_9 {dimension_numbers = #tpu.dot_dimension_numbers<[1], [0], [0], [1], [0, 0, 1, 1], [], []>} : vector<128x36xbf16>, vector<36x4xbf16>, vector<128x4xf32> -> vector<128x4xf32>
    %c1 = arith.constant 1 : index
    %c0_10 = arith.constant 0 : index
    %21 = vector.load %arg1[%c1, %c0_10] : memref<15x16xf32, #tpu.memory_space<vmem>>, vector<1x4xf32>
    %22 = vector.broadcast %21 : vector<1x4xf32> to vector<128x4xf32>
    %23 = arith.addf %20, %22 : vector<128x4xf32>
    %cst_11 = arith.constant 0.000000e+00 : f32
    %24 = vector.broadcast %cst_11 : f32 to vector<128x4xf32>
    %25 = arith.maximumf %23, %24 : vector<128x4xf32>
    %c9_i32_12 = arith.constant 9 : i32
    %26 = tpu.dynamic_rotate %25 by %c9_i32_12 dim 0 : vector<128x4xf32>, i32 -> vector<128x4xf32>
    %c8_i32_13 = arith.constant 8 : i32
    %27 = tpu.dynamic_rotate %25 by %c8_i32_13 dim 0 : vector<128x4xf32>, i32 -> vector<128x4xf32>
    %c7_i32_14 = arith.constant 7 : i32
    %28 = tpu.dynamic_rotate %25 by %c7_i32_14 dim 0 : vector<128x4xf32>, i32 -> vector<128x4xf32>
    %c1_i32_15 = arith.constant 1 : i32
    %29 = tpu.dynamic_rotate %25 by %c1_i32_15 dim 0 : vector<128x4xf32>, i32 -> vector<128x4xf32>
    %c127_i32_16 = arith.constant 127 : i32
    %30 = tpu.dynamic_rotate %25 by %c127_i32_16 dim 0 : vector<128x4xf32>, i32 -> vector<128x4xf32>
    %c121_i32_17 = arith.constant 121 : i32
    %31 = tpu.dynamic_rotate %25 by %c121_i32_17 dim 0 : vector<128x4xf32>, i32 -> vector<128x4xf32>
    %c120_i32_18 = arith.constant 120 : i32
    %32 = tpu.dynamic_rotate %25 by %c120_i32_18 dim 0 : vector<128x4xf32>, i32 -> vector<128x4xf32>
    %c119_i32_19 = arith.constant 119 : i32
    %33 = tpu.dynamic_rotate %25 by %c119_i32_19 dim 0 : vector<128x4xf32>, i32 -> vector<128x4xf32>
    %34 = tpu.concatenate %26, %27, %28, %29, %25, %30, %31, %32, %33 in 1 : vector<128x4xf32>, vector<128x4xf32>, vector<128x4xf32>, vector<128x4xf32>, vector<128x4xf32>, vector<128x4xf32>, vector<128x4xf32>, vector<128x4xf32>, vector<128x4xf32> -> vector<128x36xf32>
    %c0_20 = arith.constant 0 : index
    %c0_21 = arith.constant 0 : index
    %35 = vector.load %arg2[%c0_20, %c0_21] : memref<128x36xf32, #tpu.memory_space<vmem>>, vector<128x36xf32>
    %36 = arith.mulf %34, %35 : vector<128x36xf32>
    %37 = arith.truncf %36 : vector<128x36xf32> to vector<128x36xbf16>
    %c0_22 = arith.constant 0 : index
    %c0_23 = arith.constant 0 : index
    %38 = vector.load %arg8[%c0_22, %c0_23] : memref<36x4xbf16, #tpu.memory_space<vmem>>, vector<36x4xbf16>
    %cst_24 = arith.constant dense<0.000000e+00> : vector<128x4xf32>
    %39 = tpu.matmul %37, %38, %cst_24 {dimension_numbers = #tpu.dot_dimension_numbers<[1], [0], [0], [1], [0, 0, 1, 1], [], []>} : vector<128x36xbf16>, vector<36x4xbf16>, vector<128x4xf32> -> vector<128x4xf32>
    %c2 = arith.constant 2 : index
    %c0_25 = arith.constant 0 : index
    %40 = vector.load %arg1[%c2, %c0_25] : memref<15x16xf32, #tpu.memory_space<vmem>>, vector<1x4xf32>
    %41 = vector.broadcast %40 : vector<1x4xf32> to vector<128x4xf32>
    %42 = arith.addf %39, %41 : vector<128x4xf32>
    %43 = arith.addf %42, %6 : vector<128x4xf32>
    %44 = vector.shape_cast %43 : vector<128x4xf32> to vector<2x64x4xf32>
    %cst_26 = arith.constant dense<0.000000e+00> : vector<2x4xf32>
    %45 = vector.multi_reduction <add>, %44, %cst_26 [1] : vector<2x64x4xf32> to vector<2x4xf32>
    %46 = vector.shape_cast %45 : vector<2x4xf32> to vector<2x1x4xf32>
    %cst_27 = arith.constant 1.562500e-02 : f32
    %47 = vector.broadcast %cst_27 : f32 to vector<2x1x4xf32>
    %48 = arith.mulf %46, %47 : vector<2x1x4xf32>
    %49 = vector.broadcast %48 : vector<2x1x4xf32> to vector<2x64x4xf32>
    %50 = arith.subf %44, %49 : vector<2x64x4xf32>
    %51 = arith.mulf %50, %50 : vector<2x64x4xf32>
    %cst_28 = arith.constant dense<0.000000e+00> : vector<2x4xf32>
    %52 = vector.multi_reduction <add>, %51, %cst_28 [1] : vector<2x64x4xf32> to vector<2x4xf32>
    %53 = vector.shape_cast %52 : vector<2x4xf32> to vector<2x1x4xf32>
    %cst_29 = arith.constant 1.562500e-02 : f32
    %54 = vector.broadcast %cst_29 : f32 to vector<2x1x4xf32>
    %55 = arith.mulf %53, %54 : vector<2x1x4xf32>
    %56 = math.sqrt %55 : vector<2x1x4xf32>
    %57 = arith.addf %56, %48 : vector<2x1x4xf32>
    %58 = vector.shape_cast %57 : vector<2x1x4xf32> to vector<2x4xf32>
    %c0_30 = arith.constant 0 : index
    %c0_31 = arith.constant 0 : index
    %59 = vector.load %arg9[%c0_30, %c0_31] : memref<4x4xf32, #tpu.memory_space<vmem>>, vector<4x4xf32>
    %cst_32 = arith.constant dense<0.000000e+00> : vector<2x4xf32>
    %60 = tpu.matmul %58, %59, %cst_32 {dimension_numbers = #tpu.dot_dimension_numbers<[1], [0], [0], [1], [0, 0, 1, 1], [], []>} : vector<2x4xf32>, vector<4x4xf32>, vector<2x4xf32> -> vector<2x4xf32>
    %c3 = arith.constant 3 : index
    %c0_33 = arith.constant 0 : index
    %61 = vector.load %arg1[%c3, %c0_33] : memref<15x16xf32, #tpu.memory_space<vmem>>, vector<1x4xf32>
    %62 = vector.broadcast %61 : vector<1x4xf32> to vector<2x4xf32>
    %63 = arith.addf %60, %62 : vector<2x4xf32>
    %cst_34 = arith.constant 0.000000e+00 : f32
    %64 = vector.broadcast %cst_34 : f32 to vector<2x4xf32>
    %65 = arith.subf %64, %63 : vector<2x4xf32>
    %66 = math.exp %65 : vector<2x4xf32>
    %cst_35 = arith.constant 1.000000e+00 : f32
    %67 = vector.broadcast %cst_35 : f32 to vector<2x4xf32>
    %68 = arith.addf %67, %66 : vector<2x4xf32>
    %69 = tpu.reciprocal %68 {approx = true} : vector<2x4xf32> -> vector<2x4xf32>
    %70 = vector.shape_cast %69 : vector<2x4xf32> to vector<2x1x4xf32>
    %71 = vector.broadcast %70 : vector<2x1x4xf32> to vector<2x64x4xf32>
    %72 = arith.mulf %44, %71 : vector<2x64x4xf32>
    %73 = arith.addf %72, %44 : vector<2x64x4xf32>
    %74 = vector.shape_cast %73 : vector<2x64x4xf32> to vector<128x4xf32>
    %75 = tpu.concatenate %6, %43 in 1 : vector<128x4xf32>, vector<128x4xf32> -> vector<128x8xf32>
    %c9_i32_36 = arith.constant 9 : i32
    %76 = tpu.dynamic_rotate %75 by %c9_i32_36 dim 0 : vector<128x8xf32>, i32 -> vector<128x8xf32>
    %c8_i32_37 = arith.constant 8 : i32
    %77 = tpu.dynamic_rotate %75 by %c8_i32_37 dim 0 : vector<128x8xf32>, i32 -> vector<128x8xf32>
    %c7_i32_38 = arith.constant 7 : i32
    %78 = tpu.dynamic_rotate %75 by %c7_i32_38 dim 0 : vector<128x8xf32>, i32 -> vector<128x8xf32>
    %c1_i32_39 = arith.constant 1 : i32
    %79 = tpu.dynamic_rotate %75 by %c1_i32_39 dim 0 : vector<128x8xf32>, i32 -> vector<128x8xf32>
    %c127_i32_40 = arith.constant 127 : i32
    %80 = tpu.dynamic_rotate %75 by %c127_i32_40 dim 0 : vector<128x8xf32>, i32 -> vector<128x8xf32>
    %c121_i32_41 = arith.constant 121 : i32
    %81 = tpu.dynamic_rotate %75 by %c121_i32_41 dim 0 : vector<128x8xf32>, i32 -> vector<128x8xf32>
    %c120_i32_42 = arith.constant 120 : i32
    %82 = tpu.dynamic_rotate %75 by %c120_i32_42 dim 0 : vector<128x8xf32>, i32 -> vector<128x8xf32>
    %c119_i32_43 = arith.constant 119 : i32
    %83 = tpu.dynamic_rotate %75 by %c119_i32_43 dim 0 : vector<128x8xf32>, i32 -> vector<128x8xf32>
    %84 = tpu.concatenate %76, %77, %78, %79, %75, %80, %81, %82, %83 in 1 : vector<128x8xf32>, vector<128x8xf32>, vector<128x8xf32>, vector<128x8xf32>, vector<128x8xf32>, vector<128x8xf32>, vector<128x8xf32>, vector<128x8xf32>, vector<128x8xf32> -> vector<128x72xf32>
    %c0_44 = arith.constant 0 : index
    %c0_45 = arith.constant 0 : index
    %85 = vector.load %arg3[%c0_44, %c0_45] : memref<128x72xf32, #tpu.memory_space<vmem>>, vector<128x72xf32>
    %86 = arith.mulf %84, %85 : vector<128x72xf32>
    %87 = arith.truncf %86 : vector<128x72xf32> to vector<128x72xbf16>
    %c0_46 = arith.constant 0 : index
    %c0_47 = arith.constant 0 : index
    %88 = vector.load %arg10[%c0_46, %c0_47] : memref<72x8xbf16, #tpu.memory_space<vmem>>, vector<72x8xbf16>
    %cst_48 = arith.constant dense<0.000000e+00> : vector<128x8xf32>
    %89 = tpu.matmul %87, %88, %cst_48 {dimension_numbers = #tpu.dot_dimension_numbers<[1], [0], [0], [1], [0, 0, 1, 1], [], []>} : vector<128x72xbf16>, vector<72x8xbf16>, vector<128x8xf32> -> vector<128x8xf32>
    %c4 = arith.constant 4 : index
    %c0_49 = arith.constant 0 : index
    %90 = vector.load %arg1[%c4, %c0_49] : memref<15x16xf32, #tpu.memory_space<vmem>>, vector<1x8xf32>
    %91 = vector.broadcast %90 : vector<1x8xf32> to vector<128x8xf32>
    %92 = arith.addf %89, %91 : vector<128x8xf32>
    %cst_50 = arith.constant 0.000000e+00 : f32
    %93 = vector.broadcast %cst_50 : f32 to vector<128x8xf32>
    %94 = arith.maximumf %92, %93 : vector<128x8xf32>
    %c9_i32_51 = arith.constant 9 : i32
    %95 = tpu.dynamic_rotate %94 by %c9_i32_51 dim 0 : vector<128x8xf32>, i32 -> vector<128x8xf32>
    %c8_i32_52 = arith.constant 8 : i32
    %96 = tpu.dynamic_rotate %94 by %c8_i32_52 dim 0 : vector<128x8xf32>, i32 -> vector<128x8xf32>
    %c7_i32_53 = arith.constant 7 : i32
    %97 = tpu.dynamic_rotate %94 by %c7_i32_53 dim 0 : vector<128x8xf32>, i32 -> vector<128x8xf32>
    %c1_i32_54 = arith.constant 1 : i32
    %98 = tpu.dynamic_rotate %94 by %c1_i32_54 dim 0 : vector<128x8xf32>, i32 -> vector<128x8xf32>
    %c127_i32_55 = arith.constant 127 : i32
    %99 = tpu.dynamic_rotate %94 by %c127_i32_55 dim 0 : vector<128x8xf32>, i32 -> vector<128x8xf32>
    %c121_i32_56 = arith.constant 121 : i32
    %100 = tpu.dynamic_rotate %94 by %c121_i32_56 dim 0 : vector<128x8xf32>, i32 -> vector<128x8xf32>
    %c120_i32_57 = arith.constant 120 : i32
    %101 = tpu.dynamic_rotate %94 by %c120_i32_57 dim 0 : vector<128x8xf32>, i32 -> vector<128x8xf32>
    %c119_i32_58 = arith.constant 119 : i32
    %102 = tpu.dynamic_rotate %94 by %c119_i32_58 dim 0 : vector<128x8xf32>, i32 -> vector<128x8xf32>
    %103 = tpu.concatenate %95, %96, %97, %98, %94, %99, %100, %101, %102 in 1 : vector<128x8xf32>, vector<128x8xf32>, vector<128x8xf32>, vector<128x8xf32>, vector<128x8xf32>, vector<128x8xf32>, vector<128x8xf32>, vector<128x8xf32>, vector<128x8xf32> -> vector<128x72xf32>
    %c0_59 = arith.constant 0 : index
    %c0_60 = arith.constant 0 : index
    %104 = vector.load %arg3[%c0_59, %c0_60] : memref<128x72xf32, #tpu.memory_space<vmem>>, vector<128x72xf32>
    %105 = arith.mulf %103, %104 : vector<128x72xf32>
    %106 = arith.truncf %105 : vector<128x72xf32> to vector<128x72xbf16>
    %c0_61 = arith.constant 0 : index
    %c0_62 = arith.constant 0 : index
    %107 = vector.load %arg11[%c0_61, %c0_62] : memref<72x8xbf16, #tpu.memory_space<vmem>>, vector<72x8xbf16>
    %cst_63 = arith.constant dense<0.000000e+00> : vector<128x8xf32>
    %108 = tpu.matmul %106, %107, %cst_63 {dimension_numbers = #tpu.dot_dimension_numbers<[1], [0], [0], [1], [0, 0, 1, 1], [], []>} : vector<128x72xbf16>, vector<72x8xbf16>, vector<128x8xf32> -> vector<128x8xf32>
    %c5 = arith.constant 5 : index
    %c0_64 = arith.constant 0 : index
    %109 = vector.load %arg1[%c5, %c0_64] : memref<15x16xf32, #tpu.memory_space<vmem>>, vector<1x8xf32>
    %110 = vector.broadcast %109 : vector<1x8xf32> to vector<128x8xf32>
    %111 = arith.addf %108, %110 : vector<128x8xf32>
    %112 = arith.addf %111, %75 : vector<128x8xf32>
    %113 = vector.shape_cast %112 : vector<128x8xf32> to vector<2x64x8xf32>
    %cst_65 = arith.constant dense<0.000000e+00> : vector<2x8xf32>
    %114 = vector.multi_reduction <add>, %113, %cst_65 [1] : vector<2x64x8xf32> to vector<2x8xf32>
    %115 = vector.shape_cast %114 : vector<2x8xf32> to vector<2x1x8xf32>
    %cst_66 = arith.constant 1.562500e-02 : f32
    %116 = vector.broadcast %cst_66 : f32 to vector<2x1x8xf32>
    %117 = arith.mulf %115, %116 : vector<2x1x8xf32>
    %118 = vector.broadcast %117 : vector<2x1x8xf32> to vector<2x64x8xf32>
    %119 = arith.subf %113, %118 : vector<2x64x8xf32>
    %120 = arith.mulf %119, %119 : vector<2x64x8xf32>
    %cst_67 = arith.constant dense<0.000000e+00> : vector<2x8xf32>
    %121 = vector.multi_reduction <add>, %120, %cst_67 [1] : vector<2x64x8xf32> to vector<2x8xf32>
    %122 = vector.shape_cast %121 : vector<2x8xf32> to vector<2x1x8xf32>
    %cst_68 = arith.constant 1.562500e-02 : f32
    %123 = vector.broadcast %cst_68 : f32 to vector<2x1x8xf32>
    %124 = arith.mulf %122, %123 : vector<2x1x8xf32>
    %125 = math.sqrt %124 : vector<2x1x8xf32>
    %126 = arith.addf %125, %117 : vector<2x1x8xf32>
    %127 = vector.shape_cast %126 : vector<2x1x8xf32> to vector<2x8xf32>
    %c0_69 = arith.constant 0 : index
    %c0_70 = arith.constant 0 : index
    %128 = vector.load %arg12[%c0_69, %c0_70] : memref<8x8xf32, #tpu.memory_space<vmem>>, vector<8x8xf32>
    %cst_71 = arith.constant dense<0.000000e+00> : vector<2x8xf32>
    %129 = tpu.matmul %127, %128, %cst_71 {dimension_numbers = #tpu.dot_dimension_numbers<[1], [0], [0], [1], [0, 0, 1, 1], [], []>} : vector<2x8xf32>, vector<8x8xf32>, vector<2x8xf32> -> vector<2x8xf32>
    %c6 = arith.constant 6 : index
    %c0_72 = arith.constant 0 : index
    %130 = vector.load %arg1[%c6, %c0_72] : memref<15x16xf32, #tpu.memory_space<vmem>>, vector<1x8xf32>
    %131 = vector.broadcast %130 : vector<1x8xf32> to vector<2x8xf32>
    %132 = arith.addf %129, %131 : vector<2x8xf32>
    %cst_73 = arith.constant 0.000000e+00 : f32
    %133 = vector.broadcast %cst_73 : f32 to vector<2x8xf32>
    %134 = arith.subf %133, %132 : vector<2x8xf32>
    %135 = math.exp %134 : vector<2x8xf32>
    %cst_74 = arith.constant 1.000000e+00 : f32
    %136 = vector.broadcast %cst_74 : f32 to vector<2x8xf32>
    %137 = arith.addf %136, %135 : vector<2x8xf32>
    %138 = tpu.reciprocal %137 {approx = true} : vector<2x8xf32> -> vector<2x8xf32>
    %139 = vector.shape_cast %138 : vector<2x8xf32> to vector<2x1x8xf32>
    %140 = vector.broadcast %139 : vector<2x1x8xf32> to vector<2x64x8xf32>
    %141 = arith.mulf %113, %140 : vector<2x64x8xf32>
    %142 = arith.addf %141, %113 : vector<2x64x8xf32>
    %143 = vector.shape_cast %142 : vector<2x64x8xf32> to vector<128x8xf32>
    %144 = tpu.concatenate %6, %112 in 1 : vector<128x4xf32>, vector<128x8xf32> -> vector<128x12xf32>
    %c9_i32_75 = arith.constant 9 : i32
    %145 = tpu.dynamic_rotate %144 by %c9_i32_75 dim 0 : vector<128x12xf32>, i32 -> vector<128x12xf32>
    %c8_i32_76 = arith.constant 8 : i32
    %146 = tpu.dynamic_rotate %144 by %c8_i32_76 dim 0 : vector<128x12xf32>, i32 -> vector<128x12xf32>
    %c7_i32_77 = arith.constant 7 : i32
    %147 = tpu.dynamic_rotate %144 by %c7_i32_77 dim 0 : vector<128x12xf32>, i32 -> vector<128x12xf32>
    %c1_i32_78 = arith.constant 1 : i32
    %148 = tpu.dynamic_rotate %144 by %c1_i32_78 dim 0 : vector<128x12xf32>, i32 -> vector<128x12xf32>
    %c127_i32_79 = arith.constant 127 : i32
    %149 = tpu.dynamic_rotate %144 by %c127_i32_79 dim 0 : vector<128x12xf32>, i32 -> vector<128x12xf32>
    %c121_i32_80 = arith.constant 121 : i32
    %150 = tpu.dynamic_rotate %144 by %c121_i32_80 dim 0 : vector<128x12xf32>, i32 -> vector<128x12xf32>
    %c120_i32_81 = arith.constant 120 : i32
    %151 = tpu.dynamic_rotate %144 by %c120_i32_81 dim 0 : vector<128x12xf32>, i32 -> vector<128x12xf32>
    %c119_i32_82 = arith.constant 119 : i32
    %152 = tpu.dynamic_rotate %144 by %c119_i32_82 dim 0 : vector<128x12xf32>, i32 -> vector<128x12xf32>
    %153 = tpu.concatenate %145, %146, %147, %148, %144, %149, %150, %151, %152 in 1 : vector<128x12xf32>, vector<128x12xf32>, vector<128x12xf32>, vector<128x12xf32>, vector<128x12xf32>, vector<128x12xf32>, vector<128x12xf32>, vector<128x12xf32>, vector<128x12xf32> -> vector<128x108xf32>
    %c0_83 = arith.constant 0 : index
    %c0_84 = arith.constant 0 : index
    %154 = vector.load %arg4[%c0_83, %c0_84] : memref<128x108xf32, #tpu.memory_space<vmem>>, vector<128x108xf32>
    %155 = arith.mulf %153, %154 : vector<128x108xf32>
    %156 = arith.truncf %155 : vector<128x108xf32> to vector<128x108xbf16>
    %c0_85 = arith.constant 0 : index
    %c0_86 = arith.constant 0 : index
    %157 = vector.load %arg13[%c0_85, %c0_86] : memref<108x12xbf16, #tpu.memory_space<vmem>>, vector<108x12xbf16>
    %cst_87 = arith.constant dense<0.000000e+00> : vector<128x12xf32>
    %158 = tpu.matmul %156, %157, %cst_87 {dimension_numbers = #tpu.dot_dimension_numbers<[1], [0], [0], [1], [0, 0, 1, 1], [], []>} : vector<128x108xbf16>, vector<108x12xbf16>, vector<128x12xf32> -> vector<128x12xf32>
    %c7 = arith.constant 7 : index
    %c0_88 = arith.constant 0 : index
    %159 = vector.load %arg1[%c7, %c0_88] : memref<15x16xf32, #tpu.memory_space<vmem>>, vector<1x12xf32>
    %160 = vector.broadcast %159 : vector<1x12xf32> to vector<128x12xf32>
    %161 = arith.addf %158, %160 : vector<128x12xf32>
    %cst_89 = arith.constant 0.000000e+00 : f32
    %162 = vector.broadcast %cst_89 : f32 to vector<128x12xf32>
    %163 = arith.maximumf %161, %162 : vector<128x12xf32>
    %c9_i32_90 = arith.constant 9 : i32
    %164 = tpu.dynamic_rotate %163 by %c9_i32_90 dim 0 : vector<128x12xf32>, i32 -> vector<128x12xf32>
    %c8_i32_91 = arith.constant 8 : i32
    %165 = tpu.dynamic_rotate %163 by %c8_i32_91 dim 0 : vector<128x12xf32>, i32 -> vector<128x12xf32>
    %c7_i32_92 = arith.constant 7 : i32
    %166 = tpu.dynamic_rotate %163 by %c7_i32_92 dim 0 : vector<128x12xf32>, i32 -> vector<128x12xf32>
    %c1_i32_93 = arith.constant 1 : i32
    %167 = tpu.dynamic_rotate %163 by %c1_i32_93 dim 0 : vector<128x12xf32>, i32 -> vector<128x12xf32>
    %c127_i32_94 = arith.constant 127 : i32
    %168 = tpu.dynamic_rotate %163 by %c127_i32_94 dim 0 : vector<128x12xf32>, i32 -> vector<128x12xf32>
    %c121_i32_95 = arith.constant 121 : i32
    %169 = tpu.dynamic_rotate %163 by %c121_i32_95 dim 0 : vector<128x12xf32>, i32 -> vector<128x12xf32>
    %c120_i32_96 = arith.constant 120 : i32
    %170 = tpu.dynamic_rotate %163 by %c120_i32_96 dim 0 : vector<128x12xf32>, i32 -> vector<128x12xf32>
    %c119_i32_97 = arith.constant 119 : i32
    %171 = tpu.dynamic_rotate %163 by %c119_i32_97 dim 0 : vector<128x12xf32>, i32 -> vector<128x12xf32>
    %172 = tpu.concatenate %164, %165, %166, %167, %163, %168, %169, %170, %171 in 1 : vector<128x12xf32>, vector<128x12xf32>, vector<128x12xf32>, vector<128x12xf32>, vector<128x12xf32>, vector<128x12xf32>, vector<128x12xf32>, vector<128x12xf32>, vector<128x12xf32> -> vector<128x108xf32>
    %c0_98 = arith.constant 0 : index
    %c0_99 = arith.constant 0 : index
    %173 = vector.load %arg4[%c0_98, %c0_99] : memref<128x108xf32, #tpu.memory_space<vmem>>, vector<128x108xf32>
    %174 = arith.mulf %172, %173 : vector<128x108xf32>
    %175 = arith.truncf %174 : vector<128x108xf32> to vector<128x108xbf16>
    %c0_100 = arith.constant 0 : index
    %c0_101 = arith.constant 0 : index
    %176 = vector.load %arg14[%c0_100, %c0_101] : memref<108x12xbf16, #tpu.memory_space<vmem>>, vector<108x12xbf16>
    %cst_102 = arith.constant dense<0.000000e+00> : vector<128x12xf32>
    %177 = tpu.matmul %175, %176, %cst_102 {dimension_numbers = #tpu.dot_dimension_numbers<[1], [0], [0], [1], [0, 0, 1, 1], [], []>} : vector<128x108xbf16>, vector<108x12xbf16>, vector<128x12xf32> -> vector<128x12xf32>
    %c8 = arith.constant 8 : index
    %c0_103 = arith.constant 0 : index
    %178 = vector.load %arg1[%c8, %c0_103] : memref<15x16xf32, #tpu.memory_space<vmem>>, vector<1x12xf32>
    %179 = vector.broadcast %178 : vector<1x12xf32> to vector<128x12xf32>
    %180 = arith.addf %177, %179 : vector<128x12xf32>
    %181 = arith.addf %180, %144 : vector<128x12xf32>
    %182 = vector.shape_cast %181 : vector<128x12xf32> to vector<2x64x12xf32>
    %cst_104 = arith.constant dense<0.000000e+00> : vector<2x12xf32>
    %183 = vector.multi_reduction <add>, %182, %cst_104 [1] : vector<2x64x12xf32> to vector<2x12xf32>
    %184 = vector.shape_cast %183 : vector<2x12xf32> to vector<2x1x12xf32>
    %cst_105 = arith.constant 1.562500e-02 : f32
    %185 = vector.broadcast %cst_105 : f32 to vector<2x1x12xf32>
    %186 = arith.mulf %184, %185 : vector<2x1x12xf32>
    %187 = vector.broadcast %186 : vector<2x1x12xf32> to vector<2x64x12xf32>
    %188 = arith.subf %182, %187 : vector<2x64x12xf32>
    %189 = arith.mulf %188, %188 : vector<2x64x12xf32>
    %cst_106 = arith.constant dense<0.000000e+00> : vector<2x12xf32>
    %190 = vector.multi_reduction <add>, %189, %cst_106 [1] : vector<2x64x12xf32> to vector<2x12xf32>
    %191 = vector.shape_cast %190 : vector<2x12xf32> to vector<2x1x12xf32>
    %cst_107 = arith.constant 1.562500e-02 : f32
    %192 = vector.broadcast %cst_107 : f32 to vector<2x1x12xf32>
    %193 = arith.mulf %191, %192 : vector<2x1x12xf32>
    %194 = math.sqrt %193 : vector<2x1x12xf32>
    %195 = arith.addf %194, %186 : vector<2x1x12xf32>
    %196 = vector.shape_cast %195 : vector<2x1x12xf32> to vector<2x12xf32>
    %c0_108 = arith.constant 0 : index
    %c0_109 = arith.constant 0 : index
    %197 = vector.load %arg15[%c0_108, %c0_109] : memref<12x12xf32, #tpu.memory_space<vmem>>, vector<12x12xf32>
    %cst_110 = arith.constant dense<0.000000e+00> : vector<2x12xf32>
    %198 = tpu.matmul %196, %197, %cst_110 {dimension_numbers = #tpu.dot_dimension_numbers<[1], [0], [0], [1], [0, 0, 1, 1], [], []>} : vector<2x12xf32>, vector<12x12xf32>, vector<2x12xf32> -> vector<2x12xf32>
    %c9 = arith.constant 9 : index
    %c0_111 = arith.constant 0 : index
    %199 = vector.load %arg1[%c9, %c0_111] : memref<15x16xf32, #tpu.memory_space<vmem>>, vector<1x12xf32>
    %200 = vector.broadcast %199 : vector<1x12xf32> to vector<2x12xf32>
    %201 = arith.addf %198, %200 : vector<2x12xf32>
    %cst_112 = arith.constant 0.000000e+00 : f32
    %202 = vector.broadcast %cst_112 : f32 to vector<2x12xf32>
    %203 = arith.subf %202, %201 : vector<2x12xf32>
    %204 = math.exp %203 : vector<2x12xf32>
    %cst_113 = arith.constant 1.000000e+00 : f32
    %205 = vector.broadcast %cst_113 : f32 to vector<2x12xf32>
    %206 = arith.addf %205, %204 : vector<2x12xf32>
    %207 = tpu.reciprocal %206 {approx = true} : vector<2x12xf32> -> vector<2x12xf32>
    %208 = vector.shape_cast %207 : vector<2x12xf32> to vector<2x1x12xf32>
    %209 = vector.broadcast %208 : vector<2x1x12xf32> to vector<2x64x12xf32>
    %210 = arith.mulf %182, %209 : vector<2x64x12xf32>
    %211 = arith.addf %210, %182 : vector<2x64x12xf32>
    %212 = vector.shape_cast %211 : vector<2x64x12xf32> to vector<128x12xf32>
    %213 = tpu.concatenate %6, %181 in 1 : vector<128x4xf32>, vector<128x12xf32> -> vector<128x16xf32>
    %c9_i32_114 = arith.constant 9 : i32
    %214 = tpu.dynamic_rotate %213 by %c9_i32_114 dim 0 : vector<128x16xf32>, i32 -> vector<128x16xf32>
    %c8_i32_115 = arith.constant 8 : i32
    %215 = tpu.dynamic_rotate %213 by %c8_i32_115 dim 0 : vector<128x16xf32>, i32 -> vector<128x16xf32>
    %c7_i32_116 = arith.constant 7 : i32
    %216 = tpu.dynamic_rotate %213 by %c7_i32_116 dim 0 : vector<128x16xf32>, i32 -> vector<128x16xf32>
    %c1_i32_117 = arith.constant 1 : i32
    %217 = tpu.dynamic_rotate %213 by %c1_i32_117 dim 0 : vector<128x16xf32>, i32 -> vector<128x16xf32>
    %c127_i32_118 = arith.constant 127 : i32
    %218 = tpu.dynamic_rotate %213 by %c127_i32_118 dim 0 : vector<128x16xf32>, i32 -> vector<128x16xf32>
    %c121_i32_119 = arith.constant 121 : i32
    %219 = tpu.dynamic_rotate %213 by %c121_i32_119 dim 0 : vector<128x16xf32>, i32 -> vector<128x16xf32>
    %c120_i32_120 = arith.constant 120 : i32
    %220 = tpu.dynamic_rotate %213 by %c120_i32_120 dim 0 : vector<128x16xf32>, i32 -> vector<128x16xf32>
    %c119_i32_121 = arith.constant 119 : i32
    %221 = tpu.dynamic_rotate %213 by %c119_i32_121 dim 0 : vector<128x16xf32>, i32 -> vector<128x16xf32>
    %222 = tpu.concatenate %214, %215, %216, %217, %213, %218, %219, %220, %221 in 1 : vector<128x16xf32>, vector<128x16xf32>, vector<128x16xf32>, vector<128x16xf32>, vector<128x16xf32>, vector<128x16xf32>, vector<128x16xf32>, vector<128x16xf32>, vector<128x16xf32> -> vector<128x144xf32>
    %c0_122 = arith.constant 0 : index
    %c0_123 = arith.constant 0 : index
    %223 = vector.load %arg5[%c0_122, %c0_123] : memref<128x144xf32, #tpu.memory_space<vmem>>, vector<128x144xf32>
    %224 = arith.mulf %222, %223 : vector<128x144xf32>
    %225 = arith.truncf %224 : vector<128x144xf32> to vector<128x144xbf16>
    %c0_124 = arith.constant 0 : index
    %c0_125 = arith.constant 0 : index
    %226 = vector.load %arg16[%c0_124, %c0_125] : memref<144x16xbf16, #tpu.memory_space<vmem>>, vector<144x16xbf16>
    %cst_126 = arith.constant dense<0.000000e+00> : vector<128x16xf32>
    %227 = tpu.matmul %225, %226, %cst_126 {dimension_numbers = #tpu.dot_dimension_numbers<[1], [0], [0], [1], [0, 0, 1, 1], [], []>} : vector<128x144xbf16>, vector<144x16xbf16>, vector<128x16xf32> -> vector<128x16xf32>
    %c10 = arith.constant 10 : index
    %c0_127 = arith.constant 0 : index
    %228 = vector.load %arg1[%c10, %c0_127] : memref<15x16xf32, #tpu.memory_space<vmem>>, vector<1x16xf32>
    %229 = vector.broadcast %228 : vector<1x16xf32> to vector<128x16xf32>
    %230 = arith.addf %227, %229 : vector<128x16xf32>
    %cst_128 = arith.constant 0.000000e+00 : f32
    %231 = vector.broadcast %cst_128 : f32 to vector<128x16xf32>
    %232 = arith.maximumf %230, %231 : vector<128x16xf32>
    %c9_i32_129 = arith.constant 9 : i32
    %233 = tpu.dynamic_rotate %232 by %c9_i32_129 dim 0 : vector<128x16xf32>, i32 -> vector<128x16xf32>
    %c8_i32_130 = arith.constant 8 : i32
    %234 = tpu.dynamic_rotate %232 by %c8_i32_130 dim 0 : vector<128x16xf32>, i32 -> vector<128x16xf32>
    %c7_i32_131 = arith.constant 7 : i32
    %235 = tpu.dynamic_rotate %232 by %c7_i32_131 dim 0 : vector<128x16xf32>, i32 -> vector<128x16xf32>
    %c1_i32_132 = arith.constant 1 : i32
    %236 = tpu.dynamic_rotate %232 by %c1_i32_132 dim 0 : vector<128x16xf32>, i32 -> vector<128x16xf32>
    %c127_i32_133 = arith.constant 127 : i32
    %237 = tpu.dynamic_rotate %232 by %c127_i32_133 dim 0 : vector<128x16xf32>, i32 -> vector<128x16xf32>
    %c121_i32_134 = arith.constant 121 : i32
    %238 = tpu.dynamic_rotate %232 by %c121_i32_134 dim 0 : vector<128x16xf32>, i32 -> vector<128x16xf32>
    %c120_i32_135 = arith.constant 120 : i32
    %239 = tpu.dynamic_rotate %232 by %c120_i32_135 dim 0 : vector<128x16xf32>, i32 -> vector<128x16xf32>
    %c119_i32_136 = arith.constant 119 : i32
    %240 = tpu.dynamic_rotate %232 by %c119_i32_136 dim 0 : vector<128x16xf32>, i32 -> vector<128x16xf32>
    %241 = tpu.concatenate %233, %234, %235, %236, %232, %237, %238, %239, %240 in 1 : vector<128x16xf32>, vector<128x16xf32>, vector<128x16xf32>, vector<128x16xf32>, vector<128x16xf32>, vector<128x16xf32>, vector<128x16xf32>, vector<128x16xf32>, vector<128x16xf32> -> vector<128x144xf32>
    %c0_137 = arith.constant 0 : index
    %c0_138 = arith.constant 0 : index
    %242 = vector.load %arg5[%c0_137, %c0_138] : memref<128x144xf32, #tpu.memory_space<vmem>>, vector<128x144xf32>
    %243 = arith.mulf %241, %242 : vector<128x144xf32>
    %244 = arith.truncf %243 : vector<128x144xf32> to vector<128x144xbf16>
    %c0_139 = arith.constant 0 : index
    %c0_140 = arith.constant 0 : index
    %245 = vector.load %arg17[%c0_139, %c0_140] : memref<144x16xbf16, #tpu.memory_space<vmem>>, vector<144x16xbf16>
    %cst_141 = arith.constant dense<0.000000e+00> : vector<128x16xf32>
    %246 = tpu.matmul %244, %245, %cst_141 {dimension_numbers = #tpu.dot_dimension_numbers<[1], [0], [0], [1], [0, 0, 1, 1], [], []>} : vector<128x144xbf16>, vector<144x16xbf16>, vector<128x16xf32> -> vector<128x16xf32>
    %c11 = arith.constant 11 : index
    %c0_142 = arith.constant 0 : index
    %247 = vector.load %arg1[%c11, %c0_142] : memref<15x16xf32, #tpu.memory_space<vmem>>, vector<1x16xf32>
    %248 = vector.broadcast %247 : vector<1x16xf32> to vector<128x16xf32>
    %249 = arith.addf %246, %248 : vector<128x16xf32>
    %250 = arith.addf %249, %213 : vector<128x16xf32>
    %251 = vector.shape_cast %250 : vector<128x16xf32> to vector<2x64x16xf32>
    %cst_143 = arith.constant dense<0.000000e+00> : vector<2x16xf32>
    %252 = vector.multi_reduction <add>, %251, %cst_143 [1] : vector<2x64x16xf32> to vector<2x16xf32>
    %253 = vector.shape_cast %252 : vector<2x16xf32> to vector<2x1x16xf32>
    %cst_144 = arith.constant 1.562500e-02 : f32
    %254 = vector.broadcast %cst_144 : f32 to vector<2x1x16xf32>
    %255 = arith.mulf %253, %254 : vector<2x1x16xf32>
    %256 = vector.broadcast %255 : vector<2x1x16xf32> to vector<2x64x16xf32>
    %257 = arith.subf %251, %256 : vector<2x64x16xf32>
    %258 = arith.mulf %257, %257 : vector<2x64x16xf32>
    %cst_145 = arith.constant dense<0.000000e+00> : vector<2x16xf32>
    %259 = vector.multi_reduction <add>, %258, %cst_145 [1] : vector<2x64x16xf32> to vector<2x16xf32>
    %260 = vector.shape_cast %259 : vector<2x16xf32> to vector<2x1x16xf32>
    %cst_146 = arith.constant 1.562500e-02 : f32
    %261 = vector.broadcast %cst_146 : f32 to vector<2x1x16xf32>
    %262 = arith.mulf %260, %261 : vector<2x1x16xf32>
    %263 = math.sqrt %262 : vector<2x1x16xf32>
    %264 = arith.addf %263, %255 : vector<2x1x16xf32>
    %265 = vector.shape_cast %264 : vector<2x1x16xf32> to vector<2x16xf32>
    %c0_147 = arith.constant 0 : index
    %c0_148 = arith.constant 0 : index
    %266 = vector.load %arg18[%c0_147, %c0_148] : memref<16x16xf32, #tpu.memory_space<vmem>>, vector<16x16xf32>
    %cst_149 = arith.constant dense<0.000000e+00> : vector<2x16xf32>
    %267 = tpu.matmul %265, %266, %cst_149 {dimension_numbers = #tpu.dot_dimension_numbers<[1], [0], [0], [1], [0, 0, 1, 1], [], []>} : vector<2x16xf32>, vector<16x16xf32>, vector<2x16xf32> -> vector<2x16xf32>
    %c12 = arith.constant 12 : index
    %c0_150 = arith.constant 0 : index
    %268 = vector.load %arg1[%c12, %c0_150] : memref<15x16xf32, #tpu.memory_space<vmem>>, vector<1x16xf32>
    %269 = vector.broadcast %268 : vector<1x16xf32> to vector<2x16xf32>
    %270 = arith.addf %267, %269 : vector<2x16xf32>
    %cst_151 = arith.constant 0.000000e+00 : f32
    %271 = vector.broadcast %cst_151 : f32 to vector<2x16xf32>
    %272 = arith.subf %271, %270 : vector<2x16xf32>
    %273 = math.exp %272 : vector<2x16xf32>
    %cst_152 = arith.constant 1.000000e+00 : f32
    %274 = vector.broadcast %cst_152 : f32 to vector<2x16xf32>
    %275 = arith.addf %274, %273 : vector<2x16xf32>
    %276 = tpu.reciprocal %275 {approx = true} : vector<2x16xf32> -> vector<2x16xf32>
    %277 = vector.shape_cast %276 : vector<2x16xf32> to vector<2x1x16xf32>
    %278 = vector.broadcast %277 : vector<2x1x16xf32> to vector<2x64x16xf32>
    %279 = arith.mulf %251, %278 : vector<2x64x16xf32>
    %280 = arith.addf %279, %251 : vector<2x64x16xf32>
    %281 = vector.shape_cast %280 : vector<2x64x16xf32> to vector<128x16xf32>
    %282 = tpu.concatenate %74, %143, %212, %281, %112 in 1 : vector<128x4xf32>, vector<128x8xf32>, vector<128x12xf32>, vector<128x16xf32>, vector<128x8xf32> -> vector<128x48xf32>
    %c0_153 = arith.constant 0 : index
    %c0_154 = arith.constant 0 : index
    %283 = vector.load %arg19[%c0_153, %c0_154] : memref<48x16xbf16, #tpu.memory_space<vmem>>, vector<48x16xbf16>
    %284 = arith.truncf %282 : vector<128x48xf32> to vector<128x48xbf16>
    %cst_155 = arith.constant dense<0.000000e+00> : vector<128x16xf32>
    %285 = tpu.matmul %284, %283, %cst_155 {dimension_numbers = #tpu.dot_dimension_numbers<[1], [0], [0], [1], [0, 0, 1, 1], [], []>} : vector<128x48xbf16>, vector<48x16xbf16>, vector<128x16xf32> -> vector<128x16xf32>
    %c13 = arith.constant 13 : index
    %c0_156 = arith.constant 0 : index
    %286 = vector.load %arg1[%c13, %c0_156] : memref<15x16xf32, #tpu.memory_space<vmem>>, vector<1x16xf32>
    %287 = vector.broadcast %286 : vector<1x16xf32> to vector<128x16xf32>
    %288 = arith.addf %285, %287 : vector<128x16xf32>
    %c9_i32_157 = arith.constant 9 : i32
    %289 = tpu.dynamic_rotate %288 by %c9_i32_157 dim 0 : vector<128x16xf32>, i32 -> vector<128x16xf32>
    %c8_i32_158 = arith.constant 8 : i32
    %290 = tpu.dynamic_rotate %288 by %c8_i32_158 dim 0 : vector<128x16xf32>, i32 -> vector<128x16xf32>
    %c7_i32_159 = arith.constant 7 : i32
    %291 = tpu.dynamic_rotate %288 by %c7_i32_159 dim 0 : vector<128x16xf32>, i32 -> vector<128x16xf32>
    %c1_i32_160 = arith.constant 1 : i32
    %292 = tpu.dynamic_rotate %288 by %c1_i32_160 dim 0 : vector<128x16xf32>, i32 -> vector<128x16xf32>
    %c127_i32_161 = arith.constant 127 : i32
    %293 = tpu.dynamic_rotate %288 by %c127_i32_161 dim 0 : vector<128x16xf32>, i32 -> vector<128x16xf32>
    %c121_i32_162 = arith.constant 121 : i32
    %294 = tpu.dynamic_rotate %288 by %c121_i32_162 dim 0 : vector<128x16xf32>, i32 -> vector<128x16xf32>
    %c120_i32_163 = arith.constant 120 : i32
    %295 = tpu.dynamic_rotate %288 by %c120_i32_163 dim 0 : vector<128x16xf32>, i32 -> vector<128x16xf32>
    %c119_i32_164 = arith.constant 119 : i32
    %296 = tpu.dynamic_rotate %288 by %c119_i32_164 dim 0 : vector<128x16xf32>, i32 -> vector<128x16xf32>
    %297 = tpu.concatenate %289, %290, %291, %292, %288, %293, %294, %295, %296 in 1 : vector<128x16xf32>, vector<128x16xf32>, vector<128x16xf32>, vector<128x16xf32>, vector<128x16xf32>, vector<128x16xf32>, vector<128x16xf32>, vector<128x16xf32>, vector<128x16xf32> -> vector<128x144xf32>
    %c0_165 = arith.constant 0 : index
    %c0_166 = arith.constant 0 : index
    %298 = vector.load %arg5[%c0_165, %c0_166] : memref<128x144xf32, #tpu.memory_space<vmem>>, vector<128x144xf32>
    %299 = arith.mulf %297, %298 : vector<128x144xf32>
    %300 = arith.truncf %299 : vector<128x144xf32> to vector<128x144xbf16>
    %c0_167 = arith.constant 0 : index
    %c0_168 = arith.constant 0 : index
    %301 = vector.load %arg20[%c0_167, %c0_168] : memref<144x16xbf16, #tpu.memory_space<vmem>>, vector<144x16xbf16>
    %cst_169 = arith.constant dense<0.000000e+00> : vector<128x16xf32>
    %302 = tpu.matmul %300, %301, %cst_169 {dimension_numbers = #tpu.dot_dimension_numbers<[1], [0], [0], [1], [0, 0, 1, 1], [], []>} : vector<128x144xbf16>, vector<144x16xbf16>, vector<128x16xf32> -> vector<128x16xf32>
    %c14 = arith.constant 14 : index
    %c0_170 = arith.constant 0 : index
    %303 = vector.load %arg1[%c14, %c0_170] : memref<15x16xf32, #tpu.memory_space<vmem>>, vector<1x16xf32>
    %304 = vector.broadcast %303 : vector<1x16xf32> to vector<128x16xf32>
    %305 = arith.addf %302, %304 : vector<128x16xf32>
    %cst_171 = arith.constant 0.000000e+00 : f32
    %306 = vector.broadcast %cst_171 : f32 to vector<128x16xf32>
    %307 = arith.maximumf %305, %306 : vector<128x16xf32>
    %308 = vector.shape_cast %307 : vector<128x16xf32> to vector<2x64x16xf32>
    %cst_172 = arith.constant dense<0.000000e+00> : vector<2x16xf32>
    %309 = vector.multi_reduction <add>, %308, %cst_172 [1] : vector<2x64x16xf32> to vector<2x16xf32>
    %310 = vector.shape_cast %309 : vector<2x16xf32> to vector<2x1x16xf32>
    %cst_173 = arith.constant 1.562500e-02 : f32
    %311 = vector.broadcast %cst_173 : f32 to vector<2x1x16xf32>
    %312 = arith.mulf %310, %311 : vector<2x1x16xf32>
    %313 = vector.broadcast %312 : vector<2x1x16xf32> to vector<2x64x16xf32>
    %314 = arith.subf %308, %313 : vector<2x64x16xf32>
    %315 = arith.mulf %314, %314 : vector<2x64x16xf32>
    %cst_174 = arith.constant dense<0.000000e+00> : vector<2x16xf32>
    %316 = vector.multi_reduction <add>, %315, %cst_174 [1] : vector<2x64x16xf32> to vector<2x16xf32>
    %317 = vector.shape_cast %316 : vector<2x16xf32> to vector<2x1x16xf32>
    %cst_175 = arith.constant 1.562500e-02 : f32
    %318 = vector.broadcast %cst_175 : f32 to vector<2x1x16xf32>
    %319 = arith.mulf %317, %318 : vector<2x1x16xf32>
    %320 = math.sqrt %319 : vector<2x1x16xf32>
    %321 = arith.addf %320, %312 : vector<2x1x16xf32>
    %322 = vector.shape_cast %321 : vector<2x1x16xf32> to vector<2x16xf32>
    %c0_176 = arith.constant 0 : index
    %c0_177 = arith.constant 0 : index
    %323 = vector.load %arg18[%c0_176, %c0_177] : memref<16x16xf32, #tpu.memory_space<vmem>>, vector<16x16xf32>
    %cst_178 = arith.constant dense<0.000000e+00> : vector<2x16xf32>
    %324 = tpu.matmul %322, %323, %cst_178 {dimension_numbers = #tpu.dot_dimension_numbers<[1], [0], [0], [1], [0, 0, 1, 1], [], []>} : vector<2x16xf32>, vector<16x16xf32>, vector<2x16xf32> -> vector<2x16xf32>
    %c12_179 = arith.constant 12 : index
    %c0_180 = arith.constant 0 : index
    %325 = vector.load %arg1[%c12_179, %c0_180] : memref<15x16xf32, #tpu.memory_space<vmem>>, vector<1x16xf32>
    %326 = vector.broadcast %325 : vector<1x16xf32> to vector<2x16xf32>
    %327 = arith.addf %324, %326 : vector<2x16xf32>
    %cst_181 = arith.constant 0.000000e+00 : f32
    %328 = vector.broadcast %cst_181 : f32 to vector<2x16xf32>
    %329 = arith.subf %328, %327 : vector<2x16xf32>
    %330 = math.exp %329 : vector<2x16xf32>
    %cst_182 = arith.constant 1.000000e+00 : f32
    %331 = vector.broadcast %cst_182 : f32 to vector<2x16xf32>
    %332 = arith.addf %331, %330 : vector<2x16xf32>
    %333 = tpu.reciprocal %332 {approx = true} : vector<2x16xf32> -> vector<2x16xf32>
    %334 = vector.shape_cast %333 : vector<2x16xf32> to vector<2x1x16xf32>
    %335 = vector.broadcast %334 : vector<2x1x16xf32> to vector<2x64x16xf32>
    %336 = arith.mulf %308, %335 : vector<2x64x16xf32>
    %337 = arith.addf %336, %308 : vector<2x64x16xf32>
    %338 = vector.shape_cast %337 : vector<2x64x16xf32> to vector<128x16xf32>
    %339 = arith.addf %338, %0 : vector<128x16xf32>
    %c0_183 = arith.constant 0 : index
    %c0_184 = arith.constant 0 : index
    %340 = vector.load %arg21[%c0_183, %c0_184] : memref<128x16xf32, #tpu.memory_space<vmem>>, vector<128x16xf32>
    tpu.vector_store %arg21[%c0_183, %c0_184], %339 {strides = array<i32>} : memref<128x16xf32, #tpu.memory_space<vmem>>, vector<128x16xf32>,
    return
  }
}

</mosaic_0001>

<llo_original>
// kernel: imd_forward.1
$region0: #{imd_forward.1}
  #allocation0 [shape = 'u32[]', space=smem, size = 0x4, offset = 0x4, fixed_abs, tag = 'smem constant byte address 0x4 - core index']
  #allocation1 [shape = 'u32[72,128]{1,0:T(1,128)}', space=vmem, size = 0x9000, scoped, tag = 'internal scratch']
  %s0 = inlined_call_operand.vmem [shape: f32[128,16], index: 0, kind: input, shape index: {}]
  %s1 = inlined_call_operand.vmem [shape: f32[15,16], index: 1, kind: input, shape index: {}]
  %s2 = inlined_call_operand.vmem [shape: f32[128,36], index: 2, kind: input, shape index: {}]
  %s3 = inlined_call_operand.vmem [shape: f32[128,72], index: 3, kind: input, shape index: {}]
  %s4 = inlined_call_operand.vmem [shape: f32[128,108], index: 4, kind: input, shape index: {}]
  %s5 = inlined_call_operand.vmem [shape: f32[128,144], index: 5, kind: input, shape index: {}]
  %s6 = inlined_call_operand.vmem [shape: bf16[16,4], index: 6, kind: input, shape index: {}]
  %s7 = inlined_call_operand.vmem [shape: bf16[36,4], index: 7, kind: input, shape index: {}]
  %s8 = inlined_call_operand.vmem [shape: bf16[36,4], index: 8, kind: input, shape index: {}]
  %s9 = inlined_call_operand.vmem [shape: f32[4,4], index: 9, kind: input, shape index: {}]
  %s10 = inlined_call_operand.vmem [shape: bf16[72,8], index: 10, kind: input, shape index: {}]
  %s11 = inlined_call_operand.vmem [shape: bf16[72,8], index: 11, kind: input, shape index: {}]
  %s12 = inlined_call_operand.vmem [shape: f32[8,8], index: 12, kind: input, shape index: {}]
  %s13 = inlined_call_operand.vmem [shape: bf16[108,12], index: 13, kind: input, shape index: {}]
  %s14 = inlined_call_operand.vmem [shape: bf16[108,12], index: 14, kind: input, shape index: {}]
  %s15 = inlined_call_operand.vmem [shape: f32[12,12], index: 15, kind: input, shape index: {}]
  %s16 = inlined_call_operand.vmem [shape: bf16[144,16], index: 16, kind: input, shape index: {}]
  %s17 = inlined_call_operand.vmem [shape: bf16[144,16], index: 17, kind: input, shape index: {}]
  %s18 = inlined_call_operand.vmem [shape: f32[16,16], index: 18, kind: input, shape index: {}]
  %s19 = inlined_call_operand.vmem [shape: bf16[48,16], index: 19, kind: input, shape index: {}]
  %s20 = inlined_call_operand.vmem [shape: bf16[144,16], index: 20, kind: input, shape index: {}]
  %s21 = inlined_call_operand.hbm [shape: f32[128,16], index: 21, kind: output, shape index: {}]
  %s22 = sld [smem:[#allocation0]]
  $region94: #{imd_forward.1} parent=0
    _
  %s24 = ssub.s32 1, %s22
  %s25 = scalar_select 0, %s24, %s22
  $region1: #{imd_forward.1} parent=0
    #allocation2 [shape = 'u8[65536]{0}', space=vmem, size = 0x10000, scoped, tag = 'output window, operand 0, single buffered']
    #allocation3 [shape = 's32[1]{0}', space=sflag, size = 0x4, scoped, tag = 'scoped memory for imd_forward.1']
    %26 = vsyncpa [#allocation3], 0
    // Predicated region
    $region2: #{imd_forward.1} parent=1 // pred_check
      _
    $region3: #{imd_forward.1} parent=1 // pred_check_branch
      %28 = sbr.rel (0) target = $region5
    $region4: #{imd_forward.1} parent=1 // pred_region
      _
    $region5: #{imd_forward.1} parent=1 // pred_fallthru
      _
    // Predicated region
    $region6: #{imd_forward.1} parent=1 // pred_check
      _
    $region7: #{imd_forward.1} parent=1 // pred_check_branch
      %30 = sbr.rel (0) target = $region9
    $region8: #{imd_forward.1} parent=1 // pred_region
      _
    $region9: #{imd_forward.1} parent=1 // pred_fallthru
      _
    // Predicated region
    $region10: #{imd_forward.1} parent=1 // pred_check
      _
    $region11: #{imd_forward.1} parent=1 // pred_check_branch
      %32 = sbr.rel (0) target = $region13
    $region12: #{imd_forward.1} parent=1 // pred_region
      _
    $region13: #{imd_forward.1} parent=1 // pred_fallthru
      _
    // Predicated region
    $region14: #{imd_forward.1} parent=1 // pred_check
      _
    $region15: #{imd_forward.1} parent=1 // pred_check_branch
      %34 = sbr.rel (0) target = $region17
    $region16: #{imd_forward.1} parent=1 // pred_region
      _
    $region17: #{imd_forward.1} parent=1 // pred_fallthru
      _
    // Predicated region
    $region18: #{imd_forward.1} parent=1 // pred_check
      _
    $region19: #{imd_forward.1} parent=1 // pred_check_branch
      %36 = sbr.rel (0) target = $region21
    $region20: #{imd_forward.1} parent=1 // pred_region
      _
    $region21: #{imd_forward.1} parent=1 // pred_fallthru
      _
    // Predicated region
    $region22: #{imd_forward.1} parent=1 // pred_check
      _
    $region23: #{imd_forward.1} parent=1 // pred_check_branch
      %38 = sbr.rel (0) target = $region25
    $region24: #{imd_forward.1} parent=1 // pred_region
      _
    $region25: #{imd_forward.1} parent=1 // pred_fallthru
      _
    // Predicated region
    $region26: #{imd_forward.1} parent=1 // pred_check
      _
    $region27: #{imd_forward.1} parent=1 // pred_check_branch
      %40 = sbr.rel (0) target = $region29
    $region28: #{imd_forward.1} parent=1 // pred_region
      _
    $region29: #{imd_forward.1} parent=1 // pred_fallthru
      _
    // Predicated region
    $region30: #{imd_forward.1} parent=1 // pred_check
      _
    $region31: #{imd_forward.1} parent=1 // pred_check_branch
      %42 = sbr.rel (0) target = $region33
    $region32: #{imd_forward.1} parent=1 // pred_region
      _
    $region33: #{imd_forward.1} parent=1 // pred_fallthru
      _
    // Predicated region
    $region34: #{imd_forward.1} parent=1 // pred_check
      _
    $region35: #{imd_forward.1} parent=1 // pred_check_branch
      %44 = sbr.rel (0) target = $region37
    $region36: #{imd_forward.1} parent=1 // pred_region
      _
    $region37: #{imd_forward.1} parent=1 // pred_fallthru
      _
    // Predicated region
    $region38: #{imd_forward.1} parent=1 // pred_check
      _
    $region39: #{imd_forward.1} parent=1 // pred_check_branch
      %46 = sbr.rel (0) target = $region41
    $region40: #{imd_forward.1} parent=1 // pred_region
      _
    $region41: #{imd_forward.1} parent=1 // pred_fallthru
      _
    // Predicated region
    $region42: #{imd_forward.1} parent=1 // pred_check
      _
    $region43: #{imd_forward.1} parent=1 // pred_check_branch
      %48 = sbr.rel (0) target = $region45
    $region44: #{imd_forward.1} parent=1 // pred_region
      _
    $region45: #{imd_forward.1} parent=1 // pred_fallthru
      _
    // Predicated region
    $region46: #{imd_forward.1} parent=1 // pred_check
      _
    $region47: #{imd_forward.1} parent=1 // pred_check_branch
      %50 = sbr.rel (0) target = $region49
    $region48: #{imd_forward.1} parent=1 // pred_region
      _
    $region49: #{imd_forward.1} parent=1 // pred_fallthru
      _
    // Predicated region
    $region50: #{imd_forward.1} parent=1 // pred_check
      _
    $region51: #{imd_forward.1} parent=1 // pred_check_branch
      %52 = sbr.rel (0) target = $region53
    $region52: #{imd_forward.1} parent=1 // pred_region
      _
    $region53: #{imd_forward.1} parent=1 // pred_fallthru
      _
    // Predicated region
    $region54: #{imd_forward.1} parent=1 // pred_check
      _
    $region55: #{imd_forward.1} parent=1 // pred_check_branch
      %54 = sbr.rel (0) target = $region57
    $region56: #{imd_forward.1} parent=1 // pred_region
      _
    $region57: #{imd_forward.1} parent=1 // pred_fallthru
      _
    // Predicated region
    $region58: #{imd_forward.1} parent=1 // pred_check
      _
    $region59: #{imd_forward.1} parent=1 // pred_check_branch
      %56 = sbr.rel (0) target = $region61
    $region60: #{imd_forward.1} parent=1 // pred_region
      _
    $region61: #{imd_forward.1} parent=1 // pred_fallthru
      _
    // Predicated region
    $region62: #{imd_forward.1} parent=1 // pred_check
      _
    $region63: #{imd_forward.1} parent=1 // pred_check_branch
      %58 = sbr.rel (0) target = $region65
    $region64: #{imd_forward.1} parent=1 // pred_region
      _
    $region65: #{imd_forward.1} parent=1 // pred_fallthru
      _
    // Predicated region
    $region66: #{imd_forward.1} parent=1 // pred_check
      _
    $region67: #{imd_forward.1} parent=1 // pred_check_branch
      %60 = sbr.rel (0) target = $region69
    $region68: #{imd_forward.1} parent=1 // pred_region
      _
    $region69: #{imd_forward.1} parent=1 // pred_fallthru
      _
    // Predicated region
    $region70: #{imd_forward.1} parent=1 // pred_check
      _
    $region71: #{imd_forward.1} parent=1 // pred_check_branch
      %62 = sbr.rel (0) target = $region73
    $region72: #{imd_forward.1} parent=1 // pred_region
      _
    $region73: #{imd_forward.1} parent=1 // pred_fallthru
      _
    // Predicated region
    $region74: #{imd_forward.1} parent=1 // pred_check
      _
    $region75: #{imd_forward.1} parent=1 // pred_check_branch
      %64 = sbr.rel (0) target = $region77
    $region76: #{imd_forward.1} parent=1 // pred_region
      _
    $region77: #{imd_forward.1} parent=1 // pred_fallthru
      _
    // Predicated region
    $region78: #{imd_forward.1} parent=1 // pred_check
      _
    $region79: #{imd_forward.1} parent=1 // pred_check_branch
      %66 = sbr.rel (0) target = $region81
    $region80: #{imd_forward.1} parent=1 // pred_region
      _
    $region81: #{imd_forward.1} parent=1 // pred_fallthru
      _
    // Predicated region
    $region82: #{imd_forward.1} parent=1 // pred_check
      _
    $region83: #{imd_forward.1} parent=1 // pred_check_branch
      %68 = sbr.rel (0) target = $region85
    $region84: #{imd_forward.1} parent=1 // pred_region
      _
    $region85: #{imd_forward.1} parent=1 // pred_fallthru
      _
    %v70 = vld [vmem:[%s0] sm:$0xff]
    %v71 = vld [vmem:[%s0 + $0x8] sm:$0xff]
    %v72 = vld [vmem:[%s0 + $0x10] sm:$0xff]
    %v73 = vld [vmem:[%s0 + $0x18] sm:$0xff]
    %v74 = vld [vmem:[%s0 + $0x20] sm:$0xff]
    %v75 = vld [vmem:[%s0 + $0x28] sm:$0xff]
    %v76 = vld [vmem:[%s0 + $0x30] sm:$0xff]
    %v77 = vld [vmem:[%s0 + $0x38] sm:$0xff]
    %v78 = vld [vmem:[%s0 + $0x40] sm:$0xff]
    %v79 = vld [vmem:[%s0 + $0x48] sm:$0xff]
    %v80 = vld [vmem:[%s0 + $0x50] sm:$0xff]
    %v81 = vld [vmem:[%s0 + $0x58] sm:$0xff]
    %v82 = vld [vmem:[%s0 + $0x60] sm:$0xff]
    %v83 = vld [vmem:[%s0 + $0x68] sm:$0xff]
    %v84 = vld [vmem:[%s0 + $0x70] sm:$0xff]
    %v85 = vld [vmem:[%s0 + $0x78] sm:$0xff]
    %v86 = vld [vmem:[%s6] sm:$0xf]
    %v87 = vld [vmem:[%s6 + $0x4] sm:$0xf]
    %v88 = vpack.c.bf16 %v71, %v70
    %v89 = vpack.c.bf16 %v73, %v72
    %v90 = vpack.c.bf16 %v75, %v74
    %v91 = vpack.c.bf16 %v77, %v76
    %v92 = vpack.c.bf16 %v79, %v78
    %v93 = vpack.c.bf16 %v81, %v80
    %v94 = vpack.c.bf16 %v83, %v82
    %v95 = vpack.c.bf16 %v85, %v84
    %v96 = vld [vmem:[%s1] sm:$0x1]
    %v97 = vperm.slane %v96, 0
    %v100 = vunpack.c.l.b16 %v86
    %v101 = vunpack.c.l.b16 %v87
    %v102 = vpack.c.b16 %v101, %v100
    %vm104 = vcmask 130048
    %v106 = vsel %vm104, %v88, 0
    %v109 = vsel %vm104, %v89, 0
    %v112 = vsel %vm104, %v90, 0
    %v115 = vsel %vm104, %v91, 0
    %v118 = vsel %vm104, %v92, 0
    %v121 = vsel %vm104, %v93, 0
    %v124 = vsel %vm104, %v94, 0
    %v127 = vsel %vm104, %v95, 0
    %129 = vmatpush.bf16.msra.mxu0 0
    %130 = vmatpush.bf16.msra.mxu0 0
    %131 = vmatpush.bf16.msra.mxu0 0
    %132 = vmatpush.bf16.msra.mxu0 0
    %133 = vmatpush.bf16.msra.mxu0 0
    %134 = vmatpush.bf16.msra.mxu0 0
    %135 = vmatpush.bf16.msra.mxu0 0
    %136 = vmatpush.bf16.msra.mxu0 %v102
    %137 = vmatmul.bf16.gmra.mxu0 %v106
    %v138 = vpop.f32.mrf.mxu0
    %v139 = vadd.f32 %v97, %v138
    %v140 = vpop.f32.mrf.mxu0
    %v141 = vadd.f32 %v97, %v140
    %142 = vmatmul.bf16.gmra.mxu0 %v109
    %v143 = vpop.f32.mrf.mxu0
    %v144 = vadd.f32 %v97, %v143
    %v145 = vpop.f32.mrf.mxu0
    %v146 = vadd.f32 %v97, %v145
    %147 = vmatmul.bf16.gmra.mxu0 %v112
    %v148 = vpop.f32.mrf.mxu0
    %v149 = vadd.f32 %v97, %v148
    %v150 = vpop.f32.mrf.mxu0
    %v151 = vadd.f32 %v97, %v150
    %152 = vmatmul.bf16.gmra.mxu0 %v115
    %v153 = vpop.f32.mrf.mxu0
    %v154 = vadd.f32 %v97, %v153
    %v155 = vpop.f32.mrf.mxu0
    %v156 = vadd.f32 %v97, %v155
    %157 = vmatmul.bf16.gmra.mxu0 %v118
    %v158 = vpop.f32.mrf.mxu0
    %v159 = vadd.f32 %v97, %v158
    %v160 = vpop.f32.mrf.mxu0
    %v161 = vadd.f32 %v97, %v160
    %162 = vmatmul.bf16.gmra.mxu0 %v121
    %v163 = vpop.f32.mrf.mxu0
    %v164 = vadd.f32 %v97, %v163
    %v165 = vpop.f32.mrf.mxu0
    %v166 = vadd.f32 %v97, %v165
    %167 = vmatmul.bf16.gmra.mxu0 %v124
    %v168 = vpop.f32.mrf.mxu0
    %v169 = vadd.f32 %v97, %v168
    %v170 = vpop.f32.mrf.mxu0
    %v171 = vadd.f32 %v97, %v170
    %172 = vmatmul.bf16.gmra.mxu0 %v127
    %v173 = vpop.f32.mrf.mxu0
    %v174 = vadd.f32 %v97, %v173
    %v175 = vpop.f32.mrf.mxu0
    %v176 = vadd.f32 %v97, %v175
    %177 = vdwg.mxu0
    %v178 = vrot.slane %v139, 7
    %v179 = vrot.slane %v141, 7
    %v180 = vrot.slane %v144, 7
    %v181 = vrot.slane %v146, 7
    %v182 = vrot.slane %v149, 7
    %v183 = vrot.slane %v151, 7
    %v184 = vrot.slane %v154, 7
    %v185 = vrot.slane %v156, 7
    %v186 = vrot.slane %v159, 7
    %v187 = vrot.slane %v161, 7
    %v188 = vrot.slane %v164, 7
    %v189 = vrot.slane %v166, 7
    %v190 = vrot.slane %v169, 7
    %v191 = vrot.slane %v171, 7
    %v192 = vrot.slane %v174, 7
    %v193 = vrot.slane %v176, 7
    %v194 = vlaneseq
    %v195 = vshrl.u32 %v194, 7
    %vm196 = vcmp.lt.s32.totalorder %v195, 1
    %v197 = vsel %vm196, %v192, %v193
    %v198 = vsel %vm196, %v191, %v192
    %v199 = vsel %vm196, %v190, %v191
    %v200 = vsel %vm196, %v189, %v190
    %v201 = vsel %vm196, %v188, %v189
    %v202 = vsel %vm196, %v187, %v188
    %v203 = vsel %vm196, %v186, %v187
    %v204 = vsel %vm196, %v185, %v186
    %v205 = vsel %vm196, %v184, %v185
    %v206 = vsel %vm196, %v183, %v184
    %v207 = vsel %vm196, %v182, %v183
    %v208 = vsel %vm196, %v181, %v182
    %v209 = vsel %vm196, %v180, %v181
    %v210 = vsel %vm196, %v179, %v180
    %v211 = vsel %vm196, %v178, %v179
    %v212 = vsel %vm196, %v193, %v178
    %v213 = vrot.slane %v139, 1
    %v214 = vrot.slane %v141, 1
    %v215 = vrot.slane %v144, 1
    %v216 = vrot.slane %v146, 1
    %v217 = vrot.slane %v149, 1
    %v218 = vrot.slane %v151, 1
    %v219 = vrot.slane %v154, 1
    %v220 = vrot.slane %v156, 1
    %v221 = vrot.slane %v159, 1
    %v222 = vrot.slane %v161, 1
    %v223 = vrot.slane %v164, 1
    %v224 = vrot.slane %v166, 1
    %v225 = vrot.slane %v169, 1
    %v226 = vrot.slane %v171, 1
    %v227 = vrot.slane %v174, 1
    %v228 = vrot.slane %v176, 1
    %vm229 = vcmp.lt.s32.totalorder %v195, 7
    %v230 = vsel %vm229, %v227, %v228
    %v231 = vsel %vm229, %v226, %v227
    %v232 = vsel %vm229, %v225, %v226
    %v233 = vsel %vm229, %v224, %v225
    %v234 = vsel %vm229, %v223, %v224
    %v235 = vsel %vm229, %v222, %v223
    %v236 = vsel %vm229, %v221, %v222
    %v237 = vsel %vm229, %v220, %v221
    %v238 = vsel %vm229, %v219, %v220
    %v239 = vsel %vm229, %v218, %v219
    %v240 = vsel %vm229, %v217, %v218
    %v241 = vsel %vm229, %v216, %v217
    %v242 = vsel %vm229, %v215, %v216
    %v243 = vsel %vm229, %v214, %v215
    %v244 = vsel %vm229, %v213, %v214
    %v245 = vsel %vm229, %v228, %v213
    %262 = vrot.lane.b32.xlu0 %v176, 4
    %v263 = vpop.permute.xlu0 %262
    %264 = vrot.lane.b32.xlu0 %v139, 4
    %v265 = vpop.permute.xlu0 %264
    %266 = vrot.lane.b32.xlu0 %v141, 4
    %v267 = vpop.permute.xlu0 %266
    %268 = vrot.lane.b32.xlu0 %v144, 4
    %v269 = vpop.permute.xlu0 %268
    %270 = vrot.lane.b32.xlu0 %v146, 4
    %v271 = vpop.permute.xlu0 %270
    %272 = vrot.lane.b32.xlu0 %v149, 4
    %v273 = vpop.permute.xlu0 %272
    %274 = vrot.lane.b32.xlu0 %v151, 4
    %v275 = vpop.permute.xlu0 %274
    %276 = vrot.lane.b32.xlu0 %v154, 4
    %v277 = vpop.permute.xlu0 %276
    %278 = vrot.lane.b32.xlu0 %v156, 4
    %v279 = vpop.permute.xlu0 %278
    %280 = vrot.lane.b32.xlu0 %v159, 4
    %v281 = vpop.permute.xlu0 %280
    %282 = vrot.lane.b32.xlu0 %v161, 4
    %v283 = vpop.permute.xlu0 %282
    %284 = vrot.lane.b32.xlu0 %v164, 4
    %v285 = vpop.permute.xlu0 %284
    %286 = vrot.lane.b32.xlu0 %v166, 4
    %v287 = vpop.permute.xlu0 %286
    %288 = vrot.lane.b32.xlu0 %v169, 4
    %v289 = vpop.permute.xlu0 %288
    %290 = vrot.lane.b32.xlu0 %v171, 4
    %v291 = vpop.permute.xlu0 %290
    %292 = vrot.lane.b32.xlu0 %v174, 4
    %v293 = vpop.permute.xlu0 %292
    %326 = vrot.lane.b32.xlu0 %v245, 8
    %v327 = vpop.permute.xlu0 %326
    %328 = vrot.lane.b32.xlu0 %v244, 8
    %v329 = vpop.permute.xlu0 %328
    %330 = vrot.lane.b32.xlu0 %v243, 8
    %v331 = vpop.permute.xlu0 %330
    %332 = vrot.lane.b32.xlu0 %v242, 8
    %v333 = vpop.permute.xlu0 %332
    %334 = vrot.lane.b32.xlu0 %v241, 8
    %v335 = vpop.permute.xlu0 %334
    %336 = vrot.lane.b32.xlu0 %v240, 8
    %v337 = vpop.permute.xlu0 %336
    %338 = vrot.lane.b32.xlu0 %v239, 8
    %v339 = vpop.permute.xlu0 %338
    %340 = vrot.lane.b32.xlu0 %v238, 8
    %v341 = vpop.permute.xlu0 %340
    %342 = vrot.lane.b32.xlu0 %v237, 8
    %v343 = vpop.permute.xlu0 %342
    %344 = vrot.lane.b32.xlu0 %v236, 8
    %v345 = vpop.permute.xlu0 %344
    %346 = vrot.lane.b32.xlu0 %v235, 8
    %v347 = vpop.permute.xlu0 %346
    %348 = vrot.lane.b32.xlu0 %v234, 8
    %v349 = vpop.permute.xlu0 %348
    %350 = vrot.lane.b32.xlu0 %v233, 8
    %v351 = vpop.permute.xlu0 %350
    %352 = vrot.lane.b32.xlu0 %v232, 8
    %v353 = vpop.permute.xlu0 %352
    %354 = vrot.lane.b32.xlu0 %v231, 8
    %v355 = vpop.permute.xlu0 %354
    %356 = vrot.lane.b32.xlu0 %v230, 8
    %v357 = vpop.permute.xlu0 %356
    %390 = vrot.lane.b32.xlu0 %v212, 12
    %v391 = vpop.permute.xlu0 %390
    %392 = vrot.lane.b32.xlu0 %v211, 12
    %v393 = vpop.permute.xlu0 %392
    %394 = vrot.lane.b32.xlu0 %v210, 12
    %v395 = vpop.permute.xlu0 %394
    %396 = vrot.lane.b32.xlu0 %v209, 12
    %v397 = vpop.permute.xlu0 %396
    %398 = vrot.lane.b32.xlu0 %v208, 12
    %v399 = vpop.permute.xlu0 %398
    %400 = vrot.lane.b32.xlu0 %v207, 12
    %v401 = vpop.permute.xlu0 %400
    %402 = vrot.lane.b32.xlu0 %v206, 12
    %v403 = vpop.permute.xlu0 %402
    %404 = vrot.lane.b32.xlu0 %v205, 12
    %v405 = vpop.permute.xlu0 %404
    %406 = vrot.lane.b32.xlu0 %v204, 12
    %v407 = vpop.permute.xlu0 %406
    %408 = vrot.lane.b32.xlu0 %v203, 12
    %v409 = vpop.permute.xlu0 %408
    %410 = vrot.lane.b32.xlu0 %v202, 12
    %v411 = vpop.permute.xlu0 %410
    %412 = vrot.lane.b32.xlu0 %v201, 12
    %v413 = vpop.permute.xlu0 %412
    %414 = vrot.lane.b32.xlu0 %v200, 12
    %v415 = vpop.permute.xlu0 %414
    %416 = vrot.lane.b32.xlu0 %v199, 12
    %v417 = vpop.permute.xlu0 %416
    %418 = vrot.lane.b32.xlu0 %v198, 12
    %v419 = vpop.permute.xlu0 %418
    %420 = vrot.lane.b32.xlu0 %v197, 12
    %v421 = vpop.permute.xlu0 %420
    %438 = vrot.lane.b32.xlu0 %v139, 16
    %v439 = vpop.permute.xlu0 %438
    %440 = vrot.lane.b32.xlu0 %v141, 16
    %v441 = vpop.permute.xlu0 %440
    %442 = vrot.lane.b32.xlu0 %v144, 16
    %v443 = vpop.permute.xlu0 %442
    %444 = vrot.lane.b32.xlu0 %v146, 16
    %v445 = vpop.permute.xlu0 %444
    %446 = vrot.lane.b32.xlu0 %v149, 16
    %v447 = vpop.permute.xlu0 %446
    %448 = vrot.lane.b32.xlu0 %v151, 16
    %v449 = vpop.permute.xlu0 %448
    %450 = vrot.lane.b32.xlu0 %v154, 16
    %v451 = vpop.permute.xlu0 %450
    %452 = vrot.lane.b32.xlu0 %v156, 16
    %v453 = vpop.permute.xlu0 %452
    %454 = vrot.lane.b32.xlu0 %v159, 16
    %v455 = vpop.permute.xlu0 %454
    %456 = vrot.lane.b32.xlu0 %v161, 16
    %v457 = vpop.permute.xlu0 %456
    %458 = vrot.lane.b32.xlu0 %v164, 16
    %v459 = vpop.permute.xlu0 %458
    %460 = vrot.lane.b32.xlu0 %v166, 16
    %v461 = vpop.permute.xlu0 %460
    %462 = vrot.lane.b32.xlu0 %v169, 16
    %v463 = vpop.permute.xlu0 %462
    %464 = vrot.lane.b32.xlu0 %v171, 16
    %v465 = vpop.permute.xlu0 %464
    %466 = vrot.lane.b32.xlu0 %v174, 16
    %v467 = vpop.permute.xlu0 %466
    %468 = vrot.lane.b32.xlu0 %v176, 16
    %v469 = vpop.permute.xlu0 %468
    %486 = vrot.lane.b32.xlu0 %v244, 20
    %v487 = vpop.permute.xlu0 %486
    %488 = vrot.lane.b32.xlu0 %v243, 20
    %v489 = vpop.permute.xlu0 %488
    %490 = vrot.lane.b32.xlu0 %v242, 20
    %v491 = vpop.permute.xlu0 %490
    %492 = vrot.lane.b32.xlu0 %v241, 20
    %v493 = vpop.permute.xlu0 %492
    %494 = vrot.lane.b32.xlu0 %v240, 20
    %v495 = vpop.permute.xlu0 %494
    %496 = vrot.lane.b32.xlu0 %v239, 20
    %v497 = vpop.permute.xlu0 %496
    %498 = vrot.lane.b32.xlu0 %v238, 20
    %v499 = vpop.permute.xlu0 %498
    %500 = vrot.lane.b32.xlu0 %v237, 20
    %v501 = vpop.permute.xlu0 %500
    %502 = vrot.lane.b32.xlu0 %v236, 20
    %v503 = vpop.permute.xlu0 %502
    %504 = vrot.lane.b32.xlu0 %v235, 20
    %v505 = vpop.permute.xlu0 %504
    %506 = vrot.lane.b32.xlu0 %v234, 20
    %v507 = vpop.permute.xlu0 %506
    %508 = vrot.lane.b32.xlu0 %v233, 20
    %v509 = vpop.permute.xlu0 %508
    %510 = vrot.lane.b32.xlu0 %v232, 20
    %v511 = vpop.permute.xlu0 %510
    %512 = vrot.lane.b32.xlu0 %v231, 20
    %v513 = vpop.permute.xlu0 %512
    %514 = vrot.lane.b32.xlu0 %v230, 20
    %v515 = vpop.permute.xlu0 %514
    %516 = vrot.lane.b32.xlu0 %v245, 20
    %v517 = vpop.permute.xlu0 %516
    %534 = vrot.lane.b32.xlu0 %v211, 24
    %v535 = vpop.permute.xlu0 %534
    %536 = vrot.lane.b32.xlu0 %v210, 24
    %v537 = vpop.permute.xlu0 %536
    %538 = vrot.lane.b32.xlu0 %v209, 24
    %v539 = vpop.permute.xlu0 %538
    %540 = vrot.lane.b32.xlu0 %v208, 24
    %v541 = vpop.permute.xlu0 %540
    %542 = vrot.lane.b32.xlu0 %v207, 24
    %v543 = vpop.permute.xlu0 %542
    %544 = vrot.lane.b32.xlu0 %v206, 24
    %v545 = vpop.permute.xlu0 %544
    %546 = vrot.lane.b32.xlu0 %v205, 24
    %v547 = vpop.permute.xlu0 %546
    %548 = vrot.lane.b32.xlu0 %v204, 24
    %v549 = vpop.permute.xlu0 %548
    %550 = vrot.lane.b32.xlu0 %v203, 24
    %v551 = vpop.permute.xlu0 %550
    %552 = vrot.lane.b32.xlu0 %v202, 24
    %v553 = vpop.permute.xlu0 %552
    %554 = vrot.lane.b32.xlu0 %v201, 24
    %v555 = vpop.permute.xlu0 %554
    %556 = vrot.lane.b32.xlu0 %v200, 24
    %v557 = vpop.permute.xlu0 %556
    %558 = vrot.lane.b32.xlu0 %v199, 24
    %v559 = vpop.permute.xlu0 %558
    %560 = vrot.lane.b32.xlu0 %v198, 24
    %v561 = vpop.permute.xlu0 %560
    %562 = vrot.lane.b32.xlu0 %v197, 24
    %v563 = vpop.permute.xlu0 %562
    %564 = vrot.lane.b32.xlu0 %v212, 24
    %v565 = vpop.permute.xlu0 %564
    %582 = vrot.lane.b32.xlu0 %v141, 28
    %v583 = vpop.permute.xlu0 %582
    %584 = vrot.lane.b32.xlu0 %v144, 28
    %v585 = vpop.permute.xlu0 %584
    %586 = vrot.lane.b32.xlu0 %v146, 28
    %v587 = vpop.permute.xlu0 %586
    %588 = vrot.lane.b32.xlu0 %v149, 28
    %v589 = vpop.permute.xlu0 %588
    %590 = vrot.lane.b32.xlu0 %v151, 28
    %v591 = vpop.permute.xlu0 %590
    %592 = vrot.lane.b32.xlu0 %v154, 28
    %v593 = vpop.permute.xlu0 %592
    %594 = vrot.lane.b32.xlu0 %v156, 28
    %v595 = vpop.permute.xlu0 %594
    %596 = vrot.lane.b32.xlu0 %v159, 28
    %v597 = vpop.permute.xlu0 %596
    %598 = vrot.lane.b32.xlu0 %v161, 28
    %v599 = vpop.permute.xlu0 %598
    %600 = vrot.lane.b32.xlu0 %v164, 28
    %v601 = vpop.permute.xlu0 %600
    %602 = vrot.lane.b32.xlu0 %v166, 28
    %v603 = vpop.permute.xlu0 %602
    %604 = vrot.lane.b32.xlu0 %v169, 28
    %v605 = vpop.permute.xlu0 %604
    %606 = vrot.lane.b32.xlu0 %v171, 28
    %v607 = vpop.permute.xlu0 %606
    %608 = vrot.lane.b32.xlu0 %v174, 28
    %v609 = vpop.permute.xlu0 %608
    %610 = vrot.lane.b32.xlu0 %v176, 28
    %v611 = vpop.permute.xlu0 %610
    %612 = vrot.lane.b32.xlu0 %v139, 28
    %v613 = vpop.permute.xlu0 %612
    %630 = vrot.lane.b32.xlu0 %v243, 32
    %v631 = vpop.permute.xlu0 %630
    %632 = vrot.lane.b32.xlu0 %v242, 32
    %v633 = vpop.permute.xlu0 %632
    %634 = vrot.lane.b32.xlu0 %v241, 32
    %v635 = vpop.permute.xlu0 %634
    %636 = vrot.lane.b32.xlu0 %v240, 32
    %v637 = vpop.permute.xlu0 %636
    %638 = vrot.lane.b32.xlu0 %v239, 32
    %v639 = vpop.permute.xlu0 %638
    %640 = vrot.lane.b32.xlu0 %v238, 32
    %v641 = vpop.permute.xlu0 %640
    %642 = vrot.lane.b32.xlu0 %v237, 32
    %v643 = vpop.permute.xlu0 %642
    %644 = vrot.lane.b32.xlu0 %v236, 32
    %v645 = vpop.permute.xlu0 %644
    %646 = vrot.lane.b32.xlu0 %v235, 32
    %v647 = vpop.permute.xlu0 %646
    %648 = vrot.lane.b32.xlu0 %v234, 32
    %v649 = vpop.permute.xlu0 %648
    %650 = vrot.lane.b32.xlu0 %v233, 32
    %v651 = vpop.permute.xlu0 %650
    %652 = vrot.lane.b32.xlu0 %v232, 32
    %v653 = vpop.permute.xlu0 %652
    %654 = vrot.lane.b32.xlu0 %v231, 32
    %v655 = vpop.permute.xlu0 %654
    %656 = vrot.lane.b32.xlu0 %v230, 32
    %v657 = vpop.permute.xlu0 %656
    %658 = vrot.lane.b32.xlu0 %v245, 32
    %v659 = vpop.permute.xlu0 %658
    %660 = vrot.lane.b32.xlu0 %v244, 32
    %v661 = vpop.permute.xlu0 %660
    %vm678 = vcmask 31744
    %v679 = vsel %vm678, %v197, %v263
    %v680 = vsel %vm678, %v212, %v265
    %v681 = vsel %vm678, %v211, %v267
    %v682 = vsel %vm678, %v210, %v269
    %v683 = vsel %vm678, %v209, %v271
    %v684 = vsel %vm678, %v208, %v273
    %v685 = vsel %vm678, %v207, %v275
    %v686 = vsel %vm678, %v206, %v277
    %v687 = vsel %vm678, %v205, %v279
    %v688 = vsel %vm678, %v204, %v281
    %v689 = vsel %vm678, %v203, %v283
    %v690 = vsel %vm678, %v202, %v285
    %v691 = vsel %vm678, %v201, %v287
    %v692 = vsel %vm678, %v200, %v289
    %v693 = vsel %vm678, %v199, %v291
    %v694 = vsel %vm678, %v198, %v293
    %vm695 = vcmask 64512
    %v696 = vsel %vm695, %v679, %v327
    %v697 = vsel %vm695, %v680, %v329
    %v698 = vsel %vm695, %v681, %v331
    %v699 = vsel %vm695, %v682, %v333
    %v700 = vsel %vm695, %v683, %v335
    %v701 = vsel %vm695, %v684, %v337
    %v702 = vsel %vm695, %v685, %v339
    %v703 = vsel %vm695, %v686, %v341
    %v704 = vsel %vm695, %v687, %v343
    %v705 = vsel %vm695, %v688, %v345
    %v706 = vsel %vm695, %v689, %v347
    %v707 = vsel %vm695, %v690, %v349
    %v708 = vsel %vm695, %v691, %v351
    %v709 = vsel %vm695, %v692, %v353
    %v710 = vsel %vm695, %v693, %v355
    %v711 = vsel %vm695, %v694, %v357
    %vm712 = vcmask 97280
    %v713 = vsel %vm712, %v696, %v391
    %v714 = vsel %vm712, %v697, %v393
    %v715 = vsel %vm712, %v698, %v395
    %v716 = vsel %vm712, %v699, %v397
    %v717 = vsel %vm712, %v700, %v399
    %v718 = vsel %vm712, %v701, %v401
    %v719 = vsel %vm712, %v702, %v403
    %v720 = vsel %vm712, %v703, %v405
    %v721 = vsel %vm712, %v704, %v407
    %v722 = vsel %vm712, %v705, %v409
    %v723 = vsel %vm712, %v706, %v411
    %v724 = vsel %vm712, %v707, %v413
    %v725 = vsel %vm712, %v708, %v415
    %v726 = vsel %vm712, %v709, %v417
    %v727 = vsel %vm712, %v710, %v419
    %v728 = vsel %vm712, %v711, %v421
    %v729 = vsel %vm104, %v713, %v439
    %v730 = vsel %vm104, %v714, %v441
    %v731 = vsel %vm104, %v715, %v443
    %v732 = vsel %vm104, %v716, %v445
    %v733 = vsel %vm104, %v717, %v447
    %v734 = vsel %vm104, %v718, %v449
    %v735 = vsel %vm104, %v719, %v451
    %v736 = vsel %vm104, %v720, %v453
    %v737 = vsel %vm104, %v721, %v455
    %v738 = vsel %vm104, %v722, %v457
    %v739 = vsel %vm104, %v723, %v459
    %v740 = vsel %vm104, %v724, %v461
    %v741 = vsel %vm104, %v725, %v463
    %v742 = vsel %vm104, %v726, %v465
    %v743 = vsel %vm104, %v727, %v467
    %v744 = vsel %vm104, %v728, %v469
    %vm745 = vcmask 162816
    %v746 = vsel %vm745, %v729, %v487
    %v747 = vsel %vm745, %v730, %v489
    %v748 = vsel %vm745, %v731, %v491
    %v749 = vsel %vm745, %v732, %v493
    %v750 = vsel %vm745, %v733, %v495
    %v751 = vsel %vm745, %v734, %v497
    %v752 = vsel %vm745, %v735, %v499
    %v753 = vsel %vm745, %v736, %v501
    %v754 = vsel %vm745, %v737, %v503
    %v755 = vsel %vm745, %v738, %v505
    %v756 = vsel %vm745, %v739, %v507
    %v757 = vsel %vm745, %v740, %v509
    %v758 = vsel %vm745, %v741, %v511
    %v759 = vsel %vm745, %v742, %v513
    %v760 = vsel %vm745, %v743, %v515
    %v761 = vsel %vm745, %v744, %v517
    %vm762 = vcmask 195584
    %v763 = vsel %vm762, %v746, %v535
    %v764 = vsel %vm762, %v747, %v537
    %v765 = vsel %vm762, %v748, %v539
    %v766 = vsel %vm762, %v749, %v541
    %v767 = vsel %vm762, %v750, %v543
    %v768 = vsel %vm762, %v751, %v545
    %v769 = vsel %vm762, %v752, %v547
    %v770 = vsel %vm762, %v753, %v549
    %v771 = vsel %vm762, %v754, %v551
    %v772 = vsel %vm762, %v755, %v553
    %v773 = vsel %vm762, %v756, %v555
    %v774 = vsel %vm762, %v757, %v557
    %v775 = vsel %vm762, %v758, %v559
    %v776 = vsel %vm762, %v759, %v561
    %v777 = vsel %vm762, %v760, %v563
    %v778 = vsel %vm762, %v761, %v565
    %vm779 = vcmask 228352
    %v780 = vsel %vm779, %v763, %v583
    %v781 = vsel %vm779, %v764, %v585
    %v782 = vsel %vm779, %v765, %v587
    %v783 = vsel %vm779, %v766, %v589
    %v784 = vsel %vm779, %v767, %v591
    %v785 = vsel %vm779, %v768, %v593
    %v786 = vsel %vm779, %v769, %v595
    %v787 = vsel %vm779, %v770, %v597
    %v788 = vsel %vm779, %v771, %v599
    %v789 = vsel %vm779, %v772, %v601
    %v790 = vsel %vm779, %v773, %v603
    %v791 = vsel %vm779, %v774, %v605
    %v792 = vsel %vm779, %v775, %v607
    %v793 = vsel %vm779, %v776, %v609
    %v794 = vsel %vm779, %v777, %v611
    %v795 = vsel %vm779, %v778, %v613
    %vm796 = vcmask 261120
    %v797 = vsel %vm796, %v780, %v631
    %v798 = vsel %vm796, %v781, %v633
    %v799 = vsel %vm796, %v782, %v635
    %v800 = vsel %vm796, %v783, %v637
    %v801 = vsel %vm796, %v784, %v639
    %v802 = vsel %vm796, %v785, %v641
    %v803 = vsel %vm796, %v786, %v643
    %v804 = vsel %vm796, %v787, %v645
    %v805 = vsel %vm796, %v788, %v647
    %v806 = vsel %vm796, %v789, %v649
    %v807 = vsel %vm796, %v790, %v651
    %v808 = vsel %vm796, %v791, %v653
    %v809 = vsel %vm796, %v792, %v655
    %v810 = vsel %vm796, %v793, %v657
    %v811 = vsel %vm796, %v794, %v659
    %v812 = vsel %vm796, %v795, %v661
    %v813 = vld [vmem:[%s2] sm:$0xff]
    %v814 = vld [vmem:[%s2 + $0x8] sm:$0xff]
    %v815 = vld [vmem:[%s2 + $0x10] sm:$0xff]
    %v816 = vld [vmem:[%s2 + $0x18] sm:$0xff]
    %v817 = vld [vmem:[%s2 + $0x20] sm:$0xff]
    %v818 = vld [vmem:[%s2 + $0x28] sm:$0xff]
    %v819 = vld [vmem:[%s2 + $0x30] sm:$0xff]
    %v820 = vld [vmem:[%s2 + $0x38] sm:$0xff]
    %v821 = vld [vmem:[%s2 + $0x40] sm:$0xff]
    %v822 = vld [vmem:[%s2 + $0x48] sm:$0xff]
    %v823 = vld [vmem:[%s2 + $0x50] sm:$0xff]
    %v824 = vld [vmem:[%s2 + $0x58] sm:$0xff]
    %v825 = vld [vmem:[%s2 + $0x60] sm:$0xff]
    %v826 = vld [vmem:[%s2 + $0x68] sm:$0xff]
    %v827 = vld [vmem:[%s2 + $0x70] sm:$0xff]
    %v828 = vld [vmem:[%s2 + $0x78] sm:$0xff]
    %v829 = vmul.f32 %v797, %v813
    %v830 = vmul.f32 %v798, %v814
    %v831 = vmul.f32 %v799, %v815
    %v832 = vmul.f32 %v800, %v816
    %v833 = vmul.f32 %v801, %v817
    %v834 = vmul.f32 %v802, %v818
    %v835 = vmul.f32 %v803, %v819
    %v836 = vmul.f32 %v804, %v820
    %v837 = vmul.f32 %v805, %v821
    %v838 = vmul.f32 %v806, %v822
    %v839 = vmul.f32 %v807, %v823
    %v840 = vmul.f32 %v808, %v824
    %v841 = vmul.f32 %v809, %v825
    %v842 = vmul.f32 %v810, %v826
    %v843 = vmul.f32 %v811, %v827
    %v844 = vmul.f32 %v812, %v828
    %v845 = vpack.c.bf16 %v830, %v829
    %v846 = vpack.c.bf16 %v832, %v831
    %v847 = vpack.c.bf16 %v834, %v833
    %v848 = vpack.c.bf16 %v836, %v835
    %v849 = vpack.c.bf16 %v838, %v837
    %v850 = vpack.c.bf16 %v840, %v839
    %v851 = vpack.c.bf16 %v842, %v841
    %v852 = vpack.c.bf16 %v844, %v843
    %v853 = vld [vmem:[%s7] sm:$0xf]
    %v854 = vld [vmem:[%s7 + $0x4] sm:$0xf]
    %v855 = vld [vmem:[%s7 + $0x8] sm:$0xf]
    %v856 = vld [vmem:[%s7 + $0xc] sm:$0xf]
    %v857 = vld [vmem:[%s7 + $0x10] sm:$0x3]
    %v858 = vld [vmem:[%s1 + $0x1] sm:$0x1]
    %v859 = vperm.slane %v858, 0
    %v865 = vunpack.c.l.b16 %v853
    %v866 = vunpack.c.l.b16 %v854
    %v867 = vunpack.c.l.b16 %v855
    %v868 = vunpack.c.l.b16 %v856
    %v869 = vunpack.c.l.b16 %v857
    %v870 = vpack.c.b16 %v866, %v865
    %v871 = vpack.c.b16 %v868, %v867
    %v872 = vpack.c.b16 %v869, %v869
    %vm875 = vcmask 293888
    %v877 = vsel %vm875, %v845, 0
    %v880 = vsel %vm875, %v846, 0
    %v883 = vsel %vm875, %v847, 0
    %v886 = vsel %vm875, %v848, 0
    %v889 = vsel %vm875, %v849, 0
    %v892 = vsel %vm875, %v850, 0
    %v895 = vsel %vm875, %v851, 0
    %v898 = vsel %vm875, %v852, 0
    %vm900 = vcmask 1041408
    %v902 = vsel %vm900, %v872, 0
    %904 = vmatpush.bf16.msra.mxu0 0
    %905 = vmatpush.bf16.msra.mxu0 0
    %906 = vmatpush.bf16.msra.mxu0 0
    %907 = vmatpush.bf16.msra.mxu0 0
    %908 = vmatpush.bf16.msra.mxu0 0
    %909 = vmatpush.bf16.msra.mxu0 %v902
    %910 = vmatpush.bf16.msra.mxu0 %v871
    %911 = vmatpush.bf16.msra.mxu0 %v870
    %912 = vmatmul.bf16.gmra.mxu0 %v877
    %v913 = vpop.f32.mrf.mxu0
    %v914 = vadd.f32 %v859, %v913
    %v915 = vpop.f32.mrf.mxu0
    %v916 = vadd.f32 %v859, %v915
    %917 = vmatmul.bf16.gmra.mxu0 %v880
    %v918 = vpop.f32.mrf.mxu0
    %v919 = vadd.f32 %v859, %v918
    %v920 = vpop.f32.mrf.mxu0
    %v921 = vadd.f32 %v859, %v920
    %922 = vmatmul.bf16.gmra.mxu0 %v883
    %v923 = vpop.f32.mrf.mxu0
    %v924 = vadd.f32 %v859, %v923
    %v925 = vpop.f32.mrf.mxu0
    %v926 = vadd.f32 %v859, %v925
    %927 = vmatmul.bf16.gmra.mxu0 %v886
    %v928 = vpop.f32.mrf.mxu0
    %v929 = vadd.f32 %v859, %v928
    %v930 = vpop.f32.mrf.mxu0
    %v931 = vadd.f32 %v859, %v930
    %932 = vmatmul.bf16.gmra.mxu0 %v889
    %v933 = vpop.f32.mrf.mxu0
    %v934 = vadd.f32 %v859, %v933
    %v935 = vpop.f32.mrf.mxu0
    %v936 = vadd.f32 %v859, %v935
    %937 = vmatmul.bf16.gmra.mxu0 %v892
    %v938 = vpop.f32.mrf.mxu0
    %v939 = vadd.f32 %v859, %v938
    %v940 = vpop.f32.mrf.mxu0
    %v941 = vadd.f32 %v859, %v940
    %942 = vmatmul.bf16.gmra.mxu0 %v895
    %v943 = vpop.f32.mrf.mxu0
    %v944 = vadd.f32 %v859, %v943
    %v945 = vpop.f32.mrf.mxu0
    %v946 = vadd.f32 %v859, %v945
    %947 = vmatmul.bf16.gmra.mxu0 %v898
    %v948 = vpop.f32.mrf.mxu0
    %v949 = vadd.f32 %v859, %v948
    %v950 = vpop.f32.mrf.mxu0
    %v951 = vadd.f32 %v859, %v950
    %952 = vdwg.mxu0
    %v953 = vmax.f32 %v914, 0.0
    %v954 = vmax.f32 %v916, 0.0
    %v955 = vmax.f32 %v919, 0.0
    %v956 = vmax.f32 %v921, 0.0
    %v957 = vmax.f32 %v924, 0.0
    %v958 = vmax.f32 %v926, 0.0
    %v959 = vmax.f32 %v929, 0.0
    %v960 = vmax.f32 %v931, 0.0
    %v961 = vmax.f32 %v934, 0.0
    %v962 = vmax.f32 %v936, 0.0
    %v963 = vmax.f32 %v939, 0.0
    %v964 = vmax.f32 %v941, 0.0
    %v965 = vmax.f32 %v944, 0.0
    %v966 = vmax.f32 %v946, 0.0
    %v967 = vmax.f32 %v949, 0.0
    %v968 = vmax.f32 %v951, 0.0
    %v969 = vrot.slane %v953, 7
    %v970 = vrot.slane %v954, 7
    %v971 = vrot.slane %v955, 7
    %v972 = vrot.slane %v956, 7
    %v973 = vrot.slane %v957, 7
    %v974 = vrot.slane %v958, 7
    %v975 = vrot.slane %v959, 7
    %v976 = vrot.slane %v960, 7
    %v977 = vrot.slane %v961, 7
    %v978 = vrot.slane %v962, 7
    %v979 = vrot.slane %v963, 7
    %v980 = vrot.slane %v964, 7
    %v981 = vrot.slane %v965, 7
    %v982 = vrot.slane %v966, 7
    %v983 = vrot.slane %v967, 7
    %v984 = vrot.slane %v968, 7
    %v985 = vsel %vm196, %v983, %v984
    %v986 = vsel %vm196, %v982, %v983
    %v987 = vsel %vm196, %v981, %v982
    %v988 = vsel %vm196, %v980, %v981
    %v989 = vsel %vm196, %v979, %v980
    %v990 = vsel %vm196, %v978, %v979
    %v991 = vsel %vm196, %v977, %v978
    %v992 = vsel %vm196, %v976, %v977
    %v993 = vsel %vm196, %v975, %v976
    %v994 = vsel %vm196, %v974, %v975
    %v995 = vsel %vm196, %v973, %v974
    %v996 = vsel %vm196, %v972, %v973
    %v997 = vsel %vm196, %v971, %v972
    %v998 = vsel %vm196, %v970, %v971
    %v999 = vsel %vm196, %v969, %v970
    %v1000 = vsel %vm196, %v984, %v969
    %v1001 = vrot.slane %v953, 1
    %v1002 = vrot.slane %v954, 1
    %v1003 = vrot.slane %v955, 1
    %v1004 = vrot.slane %v956, 1
    %v1005 = vrot.slane %v957, 1
    %v1006 = vrot.slane %v958, 1
    %v1007 = vrot.slane %v959, 1
    %v1008 = vrot.slane %v960, 1
    %v1009 = vrot.slane %v961, 1
    %v1010 = vrot.slane %v962, 1
    %v1011 = vrot.slane %v963, 1
    %v1012 = vrot.slane %v964, 1
    %v1013 = vrot.slane %v965, 1
    %v1014 = vrot.slane %v966, 1
    %v1015 = vrot.slane %v967, 1
    %v1016 = vrot.slane %v968, 1
    %v1017 = vsel %vm229, %v1015, %v1016
    %v1018 = vsel %vm229, %v1014, %v1015
    %v1019 = vsel %vm229, %v1013, %v1014
    %v1020 = vsel %vm229, %v1012, %v1013
    %v1021 = vsel %vm229, %v1011, %v1012
    %v1022 = vsel %vm229, %v1010, %v1011
    %v1023 = vsel %vm229, %v1009, %v1010
    %v1024 = vsel %vm229, %v1008, %v1009
    %v1025 = vsel %vm229, %v1007, %v1008
    %v1026 = vsel %vm229, %v1006, %v1007
    %v1027 = vsel %vm229, %v1005, %v1006
    %v1028 = vsel %vm229, %v1004, %v1005
    %v1029 = vsel %vm229, %v1003, %v1004
    %v1030 = vsel %vm229, %v1002, %v1003
    %v1031 = vsel %vm229, %v1001, %v1002
    %v1032 = vsel %vm229, %v1016, %v1001
    %1049 = vrot.lane.b32.xlu0 %v968, 4
    %v1050 = vpop.permute.xlu0 %1049
    %1051 = vrot.lane.b32.xlu0 %v953, 4
    %v1052 = vpop.permute.xlu0 %1051
    %1053 = vrot.lane.b32.xlu0 %v954, 4
    %v1054 = vpop.permute.xlu0 %1053
    %1055 = vrot.lane.b32.xlu0 %v955, 4
    %v1056 = vpop.permute.xlu0 %1055
    %1057 = vrot.lane.b32.xlu0 %v956, 4
    %v1058 = vpop.permute.xlu0 %1057
    %1059 = vrot.lane.b32.xlu0 %v957, 4
    %v1060 = vpop.permute.xlu0 %1059
    %1061 = vrot.lane.b32.xlu0 %v958, 4
    %v1062 = vpop.permute.xlu0 %1061
    %1063 = vrot.lane.b32.xlu0 %v959, 4
    %v1064 = vpop.permute.xlu0 %1063
    %1065 = vrot.lane.b32.xlu0 %v960, 4
    %v1066 = vpop.permute.xlu0 %1065
    %1067 = vrot.lane.b32.xlu0 %v961, 4
    %v1068 = vpop.permute.xlu0 %1067
    %1069 = vrot.lane.b32.xlu0 %v962, 4
    %v1070 = vpop.permute.xlu0 %1069
    %1071 = vrot.lane.b32.xlu0 %v963, 4
    %v1072 = vpop.permute.xlu0 %1071
    %1073 = vrot.lane.b32.xlu0 %v964, 4
    %v1074 = vpop.permute.xlu0 %1073
    %1075 = vrot.lane.b32.xlu0 %v965, 4
    %v1076 = vpop.permute.xlu0 %1075
    %1077 = vrot.lane.b32.xlu0 %v966, 4
    %v1078 = vpop.permute.xlu0 %1077
    %1079 = vrot.lane.b32.xlu0 %v967, 4
    %v1080 = vpop.permute.xlu0 %1079
    %1113 = vrot.lane.b32.xlu0 %v1032, 8
    %v1114 = vpop.permute.xlu0 %1113
    %1115 = vrot.lane.b32.xlu0 %v1031, 8
    %v1116 = vpop.permute.xlu0 %1115
    %1117 = vrot.lane.b32.xlu0 %v1030, 8
    %v1118 = vpop.permute.xlu0 %1117
    %1119 = vrot.lane.b32.xlu0 %v1029, 8
    %v1120 = vpop.permute.xlu0 %1119
    %1121 = vrot.lane.b32.xlu0 %v1028, 8
    %v1122 = vpop.permute.xlu0 %1121
    %1123 = vrot.lane.b32.xlu0 %v1027, 8
    %v1124 = vpop.permute.xlu0 %1123
    %1125 = vrot.lane.b32.xlu0 %v1026, 8
    %v1126 = vpop.permute.xlu0 %1125
    %1127 = vrot.lane.b32.xlu0 %v1025, 8
    %v1128 = vpop.permute.xlu0 %1127
    %1129 = vrot.lane.b32.xlu0 %v1024, 8
    %v1130 = vpop.permute.xlu0 %1129
    %1131 = vrot.lane.b32.xlu0 %v1023, 8
    %v1132 = vpop.permute.xlu0 %1131
    %1133 = vrot.lane.b32.xlu0 %v1022, 8
    %v1134 = vpop.permute.xlu0 %1133
    %1135 = vrot.lane.b32.xlu0 %v1021, 8
    %v1136 = vpop.permute.xlu0 %1135
    %1137 = vrot.lane.b32.xlu0 %v1020, 8
    %v1138 = vpop.permute.xlu0 %1137
    %1139 = vrot.lane.b32.xlu0 %v1019, 8
    %v1140 = vpop.permute.xlu0 %1139
    %1141 = vrot.lane.b32.xlu0 %v1018, 8
    %v1142 = vpop.permute.xlu0 %1141
    %1143 = vrot.lane.b32.xlu0 %v1017, 8
    %v1144 = vpop.permute.xlu0 %1143
    %1177 = vrot.lane.b32.xlu0 %v1000, 12
    %v1178 = vpop.permute.xlu0 %1177
    %1179 = vrot.lane.b32.xlu0 %v999, 12
    %v1180 = vpop.permute.xlu0 %1179
    %1181 = vrot.lane.b32.xlu0 %v998, 12
    %v1182 = vpop.permute.xlu0 %1181
    %1183 = vrot.lane.b32.xlu0 %v997, 12
    %v1184 = vpop.permute.xlu0 %1183
    %1185 = vrot.lane.b32.xlu0 %v996, 12
    %v1186 = vpop.permute.xlu0 %1185
    %1187 = vrot.lane.b32.xlu0 %v995, 12
    %v1188 = vpop.permute.xlu0 %1187
    %1189 = vrot.lane.b32.xlu0 %v994, 12
    %v1190 = vpop.permute.xlu0 %1189
    %1191 = vrot.lane.b32.xlu0 %v993, 12
    %v1192 = vpop.permute.xlu0 %1191
    %1193 = vrot.lane.b32.xlu0 %v992, 12
    %v1194 = vpop.permute.xlu0 %1193
    %1195 = vrot.lane.b32.xlu0 %v991, 12
    %v1196 = vpop.permute.xlu0 %1195
    %1197 = vrot.lane.b32.xlu0 %v990, 12
    %v1198 = vpop.permute.xlu0 %1197
    %1199 = vrot.lane.b32.xlu0 %v989, 12
    %v1200 = vpop.permute.xlu0 %1199
    %1201 = vrot.lane.b32.xlu0 %v988, 12
    %v1202 = vpop.permute.xlu0 %1201
    %1203 = vrot.lane.b32.xlu0 %v987, 12
    %v1204 = vpop.permute.xlu0 %1203
    %1205 = vrot.lane.b32.xlu0 %v986, 12
    %v1206 = vpop.permute.xlu0 %1205
    %1207 = vrot.lane.b32.xlu0 %v985, 12
    %v1208 = vpop.permute.xlu0 %1207
    %1225 = vrot.lane.b32.xlu0 %v953, 16
    %v1226 = vpop.permute.xlu0 %1225
    %1227 = vrot.lane.b32.xlu0 %v954, 16
    %v1228 = vpop.permute.xlu0 %1227
    %1229 = vrot.lane.b32.xlu0 %v955, 16
    %v1230 = vpop.permute.xlu0 %1229
    %1231 = vrot.lane.b32.xlu0 %v956, 16
    %v1232 = vpop.permute.xlu0 %1231
    %1233 = vrot.lane.b32.xlu0 %v957, 16
    %v1234 = vpop.permute.xlu0 %1233
    %1235 = vrot.lane.b32.xlu0 %v958, 16
    %v1236 = vpop.permute.xlu0 %1235
    %1237 = vrot.lane.b32.xlu0 %v959, 16
    %v1238 = vpop.permute.xlu0 %1237
    %1239 = vrot.lane.b32.xlu0 %v960, 16
    %v1240 = vpop.permute.xlu0 %1239
    %1241 = vrot.lane.b32.xlu0 %v961, 16
    %v1242 = vpop.permute.xlu0 %1241
    %1243 = vrot.lane.b32.xlu0 %v962, 16
    %v1244 = vpop.permute.xlu0 %1243
    %1245 = vrot.lane.b32.xlu0 %v963, 16
    %v1246 = vpop.permute.xlu0 %1245
    %1247 = vrot.lane.b32.xlu0 %v964, 16
    %v1248 = vpop.permute.xlu0 %1247
    %1249 = vrot.lane.b32.xlu0 %v965, 16
    %v1250 = vpop.permute.xlu0 %1249
    %1251 = vrot.lane.b32.xlu0 %v966, 16
    %v1252 = vpop.permute.xlu0 %1251
    %1253 = vrot.lane.b32.xlu0 %v967, 16
    %v1254 = vpop.permute.xlu0 %1253
    %1255 = vrot.lane.b32.xlu0 %v968, 16
    %v1256 = vpop.permute.xlu0 %1255
    %1273 = vrot.lane.b32.xlu0 %v1031, 20
    %v1274 = vpop.permute.xlu0 %1273
    %1275 = vrot.lane.b32.xlu0 %v1030, 20
    %v1276 = vpop.permute.xlu0 %1275
    %1277 = vrot.lane.b32.xlu0 %v1029, 20
    %v1278 = vpop.permute.xlu0 %1277
    %1279 = vrot.lane.b32.xlu0 %v1028, 20
    %v1280 = vpop.permute.xlu0 %1279
    %1281 = vrot.lane.b32.xlu0 %v1027, 20
    %v1282 = vpop.permute.xlu0 %1281
    %1283 = vrot.lane.b32.xlu0 %v1026, 20
    %v1284 = vpop.permute.xlu0 %1283
    %1285 = vrot.lane.b32.xlu0 %v1025, 20
    %v1286 = vpop.permute.xlu0 %1285
    %1287 = vrot.lane.b32.xlu0 %v1024, 20
    %v1288 = vpop.permute.xlu0 %1287
    %1289 = vrot.lane.b32.xlu0 %v1023, 20
    %v1290 = vpop.permute.xlu0 %1289
    %1291 = vrot.lane.b32.xlu0 %v1022, 20
    %v1292 = vpop.permute.xlu0 %1291
    %1293 = vrot.lane.b32.xlu0 %v1021, 20
    %v1294 = vpop.permute.xlu0 %1293
    %1295 = vrot.lane.b32.xlu0 %v1020, 20
    %v1296 = vpop.permute.xlu0 %1295
    %1297 = vrot.lane.b32.xlu0 %v1019, 20
    %v1298 = vpop.permute.xlu0 %1297
    %1299 = vrot.lane.b32.xlu0 %v1018, 20
    %v1300 = vpop.permute.xlu0 %1299
    %1301 = vrot.lane.b32.xlu0 %v1017, 20
    %v1302 = vpop.permute.xlu0 %1301
    %1303 = vrot.lane.b32.xlu0 %v1032, 20
    %v1304 = vpop.permute.xlu0 %1303
    %1321 = vrot.lane.b32.xlu0 %v999, 24
    %v1322 = vpop.permute.xlu0 %1321
    %1323 = vrot.lane.b32.xlu0 %v998, 24
    %v1324 = vpop.permute.xlu0 %1323
    %1325 = vrot.lane.b32.xlu0 %v997, 24
    %v1326 = vpop.permute.xlu0 %1325
    %1327 = vrot.lane.b32.xlu0 %v996, 24
    %v1328 = vpop.permute.xlu0 %1327
    %1329 = vrot.lane.b32.xlu0 %v995, 24
    %v1330 = vpop.permute.xlu0 %1329
    %1331 = vrot.lane.b32.xlu0 %v994, 24
    %v1332 = vpop.permute.xlu0 %1331
    %1333 = vrot.lane.b32.xlu0 %v993, 24
    %v1334 = vpop.permute.xlu0 %1333
    %1335 = vrot.lane.b32.xlu0 %v992, 24
    %v1336 = vpop.permute.xlu0 %1335
    %1337 = vrot.lane.b32.xlu0 %v991, 24
    %v1338 = vpop.permute.xlu0 %1337
    %1339 = vrot.lane.b32.xlu0 %v990, 24
    %v1340 = vpop.permute.xlu0 %1339
    %1341 = vrot.lane.b32.xlu0 %v989, 24
    %v1342 = vpop.permute.xlu0 %1341
    %1343 = vrot.lane.b32.xlu0 %v988, 24
    %v1344 = vpop.permute.xlu0 %1343
    %1345 = vrot.lane.b32.xlu0 %v987, 24
    %v1346 = vpop.permute.xlu0 %1345
    %1347 = vrot.lane.b32.xlu0 %v986, 24
    %v1348 = vpop.permute.xlu0 %1347
    %1349 = vrot.lane.b32.xlu0 %v985, 24
    %v1350 = vpop.permute.xlu0 %1349
    %1351 = vrot.lane.b32.xlu0 %v1000, 24
    %v1352 = vpop.permute.xlu0 %1351
    %1369 = vrot.lane.b32.xlu0 %v954, 28
    %v1370 = vpop.permute.xlu0 %1369
    %1371 = vrot.lane.b32.xlu0 %v955, 28
    %v1372 = vpop.permute.xlu0 %1371
    %1373 = vrot.lane.b32.xlu0 %v956, 28
    %v1374 = vpop.permute.xlu0 %1373
    %1375 = vrot.lane.b32.xlu0 %v957, 28
    %v1376 = vpop.permute.xlu0 %1375
    %1377 = vrot.lane.b32.xlu0 %v958, 28
    %v1378 = vpop.permute.xlu0 %1377
    %1379 = vrot.lane.b32.xlu0 %v959, 28
    %v1380 = vpop.permute.xlu0 %1379
    %1381 = vrot.lane.b32.xlu0 %v960, 28
    %v1382 = vpop.permute.xlu0 %1381
    %1383 = vrot.lane.b32.xlu0 %v961, 28
    %v1384 = vpop.permute.xlu0 %1383
    %1385 = vrot.lane.b32.xlu0 %v962, 28
    %v1386 = vpop.permute.xlu0 %1385
    %1387 = vrot.lane.b32.xlu0 %v963, 28
    %v1388 = vpop.permute.xlu0 %1387
    %1389 = vrot.lane.b32.xlu0 %v964, 28
    %v1390 = vpop.permute.xlu0 %1389
    %1391 = vrot.lane.b32.xlu0 %v965, 28
    %v1392 = vpop.permute.xlu0 %1391
    %1393 = vrot.lane.b32.xlu0 %v966, 28
    %v1394 = vpop.permute.xlu0 %1393
    %1395 = vrot.lane.b32.xlu0 %v967, 28
    %v1396 = vpop.permute.xlu0 %1395
    %1397 = vrot.lane.b32.xlu0 %v968, 28
    %v1398 = vpop.permute.xlu0 %1397
    %1399 = vrot.lane.b32.xlu0 %v953, 28
    %v1400 = vpop.permute.xlu0 %1399
    %1417 = vrot.lane.b32.xlu0 %v1030, 32
    %v1418 = vpop.permute.xlu0 %1417
    %1419 = vrot.lane.b32.xlu0 %v1029, 32
    %v1420 = vpop.permute.xlu0 %1419
    %1421 = vrot.lane.b32.xlu0 %v1028, 32
    %v1422 = vpop.permute.xlu0 %1421
    %1423 = vrot.lane.b32.xlu0 %v1027, 32
    %v1424 = vpop.permute.xlu0 %1423
    %1425 = vrot.lane.b32.xlu0 %v1026, 32
    %v1426 = vpop.permute.xlu0 %1425
    %1427 = vrot.lane.b32.xlu0 %v1025, 32
    %v1428 = vpop.permute.xlu0 %1427
    %1429 = vrot.lane.b32.xlu0 %v1024, 32
    %v1430 = vpop.permute.xlu0 %1429
    %1431 = vrot.lane.b32.xlu0 %v1023, 32
    %v1432 = vpop.permute.xlu0 %1431
    %1433 = vrot.lane.b32.xlu0 %v1022, 32
    %v1434 = vpop.permute.xlu0 %1433
    %1435 = vrot.lane.b32.xlu0 %v1021, 32
    %v1436 = vpop.permute.xlu0 %1435
    %1437 = vrot.lane.b32.xlu0 %v1020, 32
    %v1438 = vpop.permute.xlu0 %1437
    %1439 = vrot.lane.b32.xlu0 %v1019, 32
    %v1440 = vpop.permute.xlu0 %1439
    %1441 = vrot.lane.b32.xlu0 %v1018, 32
    %v1442 = vpop.permute.xlu0 %1441
    %1443 = vrot.lane.b32.xlu0 %v1017, 32
    %v1444 = vpop.permute.xlu0 %1443
    %1445 = vrot.lane.b32.xlu0 %v1032, 32
    %v1446 = vpop.permute.xlu0 %1445
    %1447 = vrot.lane.b32.xlu0 %v1031, 32
    %v1448 = vpop.permute.xlu0 %1447
    %v1465 = vsel %vm678, %v985, %v1050
    %v1466 = vsel %vm678, %v1000, %v1052
    %v1467 = vsel %vm678, %v999, %v1054
    %v1468 = vsel %vm678, %v998, %v1056
    %v1469 = vsel %vm678, %v997, %v1058
    %v1470 = vsel %vm678, %v996, %v1060
    %v1471 = vsel %vm678, %v995, %v1062
    %v1472 = vsel %vm678, %v994, %v1064
    %v1473 = vsel %vm678, %v993, %v1066
    %v1474 = vsel %vm678, %v992, %v1068
    %v1475 = vsel %vm678, %v991, %v1070
    %v1476 = vsel %vm678, %v990, %v1072
    %v1477 = vsel %vm678, %v989, %v1074
    %v1478 = vsel %vm678, %v988, %v1076
    %v1479 = vsel %vm678, %v987, %v1078
    %v1480 = vsel %vm678, %v986, %v1080
    %v1481 = vsel %vm695, %v1465, %v1114
    %v1482 = vsel %vm695, %v1466, %v1116
    %v1483 = vsel %vm695, %v1467, %v1118
    %v1484 = vsel %vm695, %v1468, %v1120
    %v1485 = vsel %vm695, %v1469, %v1122
    %v1486 = vsel %vm695, %v1470, %v1124
    %v1487 = vsel %vm695, %v1471, %v1126
    %v1488 = vsel %vm695, %v1472, %v1128
    %v1489 = vsel %vm695, %v1473, %v1130
    %v1490 = vsel %vm695, %v1474, %v1132
    %v1491 = vsel %vm695, %v1475, %v1134
    %v1492 = vsel %vm695, %v1476, %v1136
    %v1493 = vsel %vm695, %v1477, %v1138
    %v1494 = vsel %vm695, %v1478, %v1140
    %v1495 = vsel %vm695, %v1479, %v1142
    %v1496 = vsel %vm695, %v1480, %v1144
    %v1497 = vsel %vm712, %v1481, %v1178
    %v1498 = vsel %vm712, %v1482, %v1180
    %v1499 = vsel %vm712, %v1483, %v1182
    %v1500 = vsel %vm712, %v1484, %v1184
    %v1501 = vsel %vm712, %v1485, %v1186
    %v1502 = vsel %vm712, %v1486, %v1188
    %v1503 = vsel %vm712, %v1487, %v1190
    %v1504 = vsel %vm712, %v1488, %v1192
    %v1505 = vsel %vm712, %v1489, %v1194
    %v1506 = vsel %vm712, %v1490, %v1196
    %v1507 = vsel %vm712, %v1491, %v1198
    %v1508 = vsel %vm712, %v1492, %v1200
    %v1509 = vsel %vm712, %v1493, %v1202
    %v1510 = vsel %vm712, %v1494, %v1204
    %v1511 = vsel %vm712, %v1495, %v1206
    %v1512 = vsel %vm712, %v1496, %v1208
    %v1513 = vsel %vm104, %v1497, %v1226
    %v1514 = vsel %vm104, %v1498, %v1228
    %v1515 = vsel %vm104, %v1499, %v1230
    %v1516 = vsel %vm104, %v1500, %v1232
    %v1517 = vsel %vm104, %v1501, %v1234
    %v1518 = vsel %vm104, %v1502, %v1236
    %v1519 = vsel %vm104, %v1503, %v1238
    %v1520 = vsel %vm104, %v1504, %v1240
    %v1521 = vsel %vm104, %v1505, %v1242
    %v1522 = vsel %vm104, %v1506, %v1244
    %v1523 = vsel %vm104, %v1507, %v1246
    %v1524 = vsel %vm104, %v1508, %v1248
    %v1525 = vsel %vm104, %v1509, %v1250
    %v1526 = vsel %vm104, %v1510, %v1252
    %v1527 = vsel %vm104, %v1511, %v1254
    %v1528 = vsel %vm104, %v1512, %v1256
    %v1529 = vsel %vm745, %v1513, %v1274
    %v1530 = vsel %vm745, %v1514, %v1276
    %v1531 = vsel %vm745, %v1515, %v1278
    %v1532 = vsel %vm745, %v1516, %v1280
    %v1533 = vsel %vm745, %v1517, %v1282
    %v1534 = vsel %vm745, %v1518, %v1284
    %v1535 = vsel %vm745, %v1519, %v1286
    %v1536 = vsel %vm745, %v1520, %v1288
    %v1537 = vsel %vm745, %v1521, %v1290
    %v1538 = vsel %vm745, %v1522, %v1292
    %v1539 = vsel %vm745, %v1523, %v1294
    %v1540 = vsel %vm745, %v1524, %v1296
    %v1541 = vsel %vm745, %v1525, %v1298
    %v1542 = vsel %vm745, %v1526, %v1300
    %v1543 = vsel %vm745, %v1527, %v1302
    %v1544 = vsel %vm745, %v1528, %v1304
    %v1545 = vsel %vm762, %v1529, %v1322
    %v1546 = vsel %vm762, %v1530, %v1324
    %v1547 = vsel %vm762, %v1531, %v1326
    %v1548 = vsel %vm762, %v1532, %v1328
    %v1549 = vsel %vm762, %v1533, %v1330
    %v1550 = vsel %vm762, %v1534, %v1332
    %v1551 = vsel %vm762, %v1535, %v1334
    %v1552 = vsel %vm762, %v1536, %v1336
    %v1553 = vsel %vm762, %v1537, %v1338
    %v1554 = vsel %vm762, %v1538, %v1340
    %v1555 = vsel %vm762, %v1539, %v1342
    %v1556 = vsel %vm762, %v1540, %v1344
    %v1557 = vsel %vm762, %v1541, %v1346
    %v1558 = vsel %vm762, %v1542, %v1348
    %v1559 = vsel %vm762, %v1543, %v1350
    %v1560 = vsel %vm762, %v1544, %v1352
    %v1561 = vsel %vm779, %v1545, %v1370
    %v1562 = vsel %vm779, %v1546, %v1372
    %v1563 = vsel %vm779, %v1547, %v1374
    %v1564 = vsel %vm779, %v1548, %v1376
    %v1565 = vsel %vm779, %v1549, %v1378
    %v1566 = vsel %vm779, %v1550, %v1380
    %v1567 = vsel %vm779, %v1551, %v1382
    %v1568 = vsel %vm779, %v1552, %v1384
    %v1569 = vsel %vm779, %v1553, %v1386
    %v1570 = vsel %vm779, %v1554, %v1388
    %v1571 = vsel %vm779, %v1555, %v1390
    %v1572 = vsel %vm779, %v1556, %v1392
    %v1573 = vsel %vm779, %v1557, %v1394
    %v1574 = vsel %vm779, %v1558, %v1396
    %v1575 = vsel %vm779, %v1559, %v1398
    %v1576 = vsel %vm779, %v1560, %v1400
    %v1577 = vsel %vm796, %v1561, %v1418
    %v1578 = vsel %vm796, %v1562, %v1420
    %v1579 = vsel %vm796, %v1563, %v1422
    %v1580 = vsel %vm796, %v1564, %v1424
    %v1581 = vsel %vm796, %v1565, %v1426
    %v1582 = vsel %vm796, %v1566, %v1428
    %v1583 = vsel %vm796, %v1567, %v1430
    %v1584 = vsel %vm796, %v1568, %v1432
    %v1585 = vsel %vm796, %v1569, %v1434
    %v1586 = vsel %vm796, %v1570, %v1436
    %v1587 = vsel %vm796, %v1571, %v1438
    %v1588 = vsel %vm796, %v1572, %v1440
    %v1589 = vsel %vm796, %v1573, %v1442
    %v1590 = vsel %vm796, %v1574, %v1444
    %v1591 = vsel %vm796, %v1575, %v1446
    %v1592 = vsel %vm796, %v1576, %v1448
    %v1593 = vmul.f32 %v1577, %v813
    %v1594 = vmul.f32 %v1578, %v814
    %v1595 = vmul.f32 %v1579, %v815
    %v1596 = vmul.f32 %v1580, %v816
    %v1597 = vmul.f32 %v1581, %v817
    %v1598 = vmul.f32 %v1582, %v818
    %v1599 = vmul.f32 %v1583, %v819
    %v1600 = vmul.f32 %v1584, %v820
    %v1601 = vmul.f32 %v1585, %v821
    %v1602 = vmul.f32 %v1586, %v822
    %v1603 = vmul.f32 %v1587, %v823
    %v1604 = vmul.f32 %v1588, %v824
    %v1605 = vmul.f32 %v1589, %v825
    %v1606 = vmul.f32 %v1590, %v826
    %v1607 = vmul.f32 %v1591, %v827
    %v1608 = vmul.f32 %v1592, %v828
    %v1609 = vpack.c.bf16 %v1594, %v1593
    %v1610 = vpack.c.bf16 %v1596, %v1595
    %v1611 = vpack.c.bf16 %v1598, %v1597
    %v1612 = vpack.c.bf16 %v1600, %v1599
    %v1613 = vpack.c.bf16 %v1602, %v1601
    %v1614 = vpack.c.bf16 %v1604, %v1603
    %v1615 = vpack.c.bf16 %v1606, %v1605
    %v1616 = vpack.c.bf16 %v1608, %v1607
    %v1617 = vld [vmem:[%s8] sm:$0xf]
    %v1618 = vld [vmem:[%s8 + $0x4] sm:$0xf]
    %v1619 = vld [vmem:[%s8 + $0x8] sm:$0xf]
    %v1620 = vld [vmem:[%s8 + $0xc] sm:$0xf]
    %v1621 = vld [vmem:[%s8 + $0x10] sm:$0x3]
    %v1622 = vld [vmem:[%s1 + $0x2] sm:$0x1]
    %v1623 = vperm.slane %v1622, 0
    %v1629 = vunpack.c.l.b16 %v1617
    %v1630 = vunpack.c.l.b16 %v1618
    %v1631 = vunpack.c.l.b16 %v1619
    %v1632 = vunpack.c.l.b16 %v1620
    %v1633 = vunpack.c.l.b16 %v1621
    %v1634 = vpack.c.b16 %v1630, %v1629
    %v1635 = vpack.c.b16 %v1632, %v1631
    %v1636 = vpack.c.b16 %v1633, %v1633
    %v1640 = vsel %vm875, %v1609, 0
    %v1643 = vsel %vm875, %v1610, 0
    %v1646 = vsel %vm875, %v1611, 0
    %v1649 = vsel %vm875, %v1612, 0
    %v1652 = vsel %vm875, %v1613, 0
    %v1655 = vsel %vm875, %v1614, 0
    %v1658 = vsel %vm875, %v1615, 0
    %v1661 = vsel %vm875, %v1616, 0
    %v1664 = vsel %vm900, %v1636, 0
    %1666 = vmatpush.bf16.msra.mxu0 0
    %1667 = vmatpush.bf16.msra.mxu0 0
    %1668 = vmatpush.bf16.msra.mxu0 0
    %1669 = vmatpush.bf16.msra.mxu0 0
    %1670 = vmatpush.bf16.msra.mxu0 0
    %1671 = vmatpush.bf16.msra.mxu0 %v1664
    %1672 = vmatpush.bf16.msra.mxu0 %v1635
    %1673 = vmatpush.bf16.msra.mxu0 %v1634
    %1674 = vmatmul.bf16.gmra.mxu0 %v1640
    %v1675 = vpop.f32.mrf.mxu0
    %v1676 = vadd.f32 %v1623, %v1675
    %v1677 = vpop.f32.mrf.mxu0
    %v1678 = vadd.f32 %v1623, %v1677
    %1679 = vmatmul.bf16.gmra.mxu0 %v1643
    %v1680 = vpop.f32.mrf.mxu0
    %v1681 = vadd.f32 %v1623, %v1680
    %v1682 = vpop.f32.mrf.mxu0
    %v1683 = vadd.f32 %v1623, %v1682
    %1684 = vmatmul.bf16.gmra.mxu0 %v1646
    %v1685 = vpop.f32.mrf.mxu0
    %v1686 = vadd.f32 %v1623, %v1685
    %v1687 = vpop.f32.mrf.mxu0
    %v1688 = vadd.f32 %v1623, %v1687
    %1689 = vmatmul.bf16.gmra.mxu0 %v1649
    %v1690 = vpop.f32.mrf.mxu0
    %v1691 = vadd.f32 %v1623, %v1690
    %v1692 = vpop.f32.mrf.mxu0
    %v1693 = vadd.f32 %v1623, %v1692
    %1694 = vmatmul.bf16.gmra.mxu0 %v1652
    %v1695 = vpop.f32.mrf.mxu0
    %v1696 = vadd.f32 %v1623, %v1695
    %v1697 = vpop.f32.mrf.mxu0
    %v1698 = vadd.f32 %v1623, %v1697
    %1699 = vmatmul.bf16.gmra.mxu0 %v1655
    %v1700 = vpop.f32.mrf.mxu0
    %v1701 = vadd.f32 %v1623, %v1700
    %v1702 = vpop.f32.mrf.mxu0
    %v1703 = vadd.f32 %v1623, %v1702
    %1704 = vmatmul.bf16.gmra.mxu0 %v1658
    %v1705 = vpop.f32.mrf.mxu0
    %v1706 = vadd.f32 %v1623, %v1705
    %v1707 = vpop.f32.mrf.mxu0
    %v1708 = vadd.f32 %v1623, %v1707
    %1709 = vmatmul.bf16.gmra.mxu0 %v1661
    %v1710 = vpop.f32.mrf.mxu0
    %v1711 = vadd.f32 %v1623, %v1710
    %v1712 = vpop.f32.mrf.mxu0
    %v1713 = vadd.f32 %v1623, %v1712
    %1714 = vdwg.mxu0
    %v1715 = vadd.f32 %v1676, %v139
    %v1716 = vadd.f32 %v1678, %v141
    %v1717 = vadd.f32 %v1681, %v144
    %v1718 = vadd.f32 %v1683, %v146
    %v1719 = vadd.f32 %v1686, %v149
    %v1720 = vadd.f32 %v1688, %v151
    %v1721 = vadd.f32 %v1691, %v154
    %v1722 = vadd.f32 %v1693, %v156
    %v1723 = vadd.f32 %v1696, %v159
    %v1724 = vadd.f32 %v1698, %v161
    %v1725 = vadd.f32 %v1701, %v164
    %v1726 = vadd.f32 %v1703, %v166
    %v1727 = vadd.f32 %v1706, %v169
    %v1728 = vadd.f32 %v1708, %v171
    %v1729 = vadd.f32 %v1711, %v174
    %v1730 = vadd.f32 %v1713, %v176
    %v1731 = vsel %vm678, %v1715, 0.0
    %v1732 = vsel %vm678, %v1716, 0.0
    %v1733 = vadd.f32 %v1731, %v1732
    %v1734 = vsel %vm678, %v1717, 0.0
    %v1735 = vadd.f32 %v1733, %v1734
    %v1736 = vsel %vm678, %v1718, 0.0
    %v1737 = vadd.f32 %v1735, %v1736
    %v1738 = vsel %vm678, %v1719, 0.0
    %v1739 = vadd.f32 %v1737, %v1738
    %v1740 = vsel %vm678, %v1720, 0.0
    %v1741 = vadd.f32 %v1739, %v1740
    %v1742 = vsel %vm678, %v1721, 0.0
    %v1743 = vadd.f32 %v1741, %v1742
    %v1744 = vsel %vm678, %v1722, 0.0
    %v1745 = vadd.f32 %v1743, %v1744
    %v1746 = vrot.slane %v1745, 4
    %v1747 = vadd.f32 %v1745, %v1746
    %v1748 = vrot.slane %v1747, 2
    %v1749 = vadd.f32 %v1747, %v1748
    %v1750 = vrot.slane %v1749, 1
    %v1751 = vadd.f32 %v1749, %v1750
    %v1752 = vsel %vm678, %v1723, 0.0
    %v1753 = vsel %vm678, %v1724, 0.0
    %v1754 = vadd.f32 %v1752, %v1753
    %v1755 = vsel %vm678, %v1725, 0.0
    %v1756 = vadd.f32 %v1754, %v1755
    %v1757 = vsel %vm678, %v1726, 0.0
    %v1758 = vadd.f32 %v1756, %v1757
    %v1759 = vsel %vm678, %v1727, 0.0
    %v1760 = vadd.f32 %v1758, %v1759
    %v1761 = vsel %vm678, %v1728, 0.0
    %v1762 = vadd.f32 %v1760, %v1761
    %v1763 = vsel %vm678, %v1729, 0.0
    %v1764 = vadd.f32 %v1762, %v1763
    %v1765 = vsel %vm678, %v1730, 0.0
    %v1766 = vadd.f32 %v1764, %v1765
    %v1767 = vrot.slane %v1766, 4
    %v1768 = vadd.f32 %v1766, %v1767
    %v1769 = vrot.slane %v1768, 2
    %v1770 = vadd.f32 %v1768, %v1769
    %v1771 = vrot.slane %v1770, 1
    %v1772 = vadd.f32 %v1770, %v1771
    %v1773 = vmul.f32 %v1751, 0.015625
    %v1774 = vmul.f32 %v1772, 0.015625
    %v1775 = vsub.f32 %v1715, %v1773
    %v1776 = vsub.f32 %v1716, %v1773
    %v1777 = vsub.f32 %v1717, %v1773
    %v1778 = vsub.f32 %v1718, %v1773
    %v1779 = vsub.f32 %v1719, %v1773
    %v1780 = vsub.f32 %v1720, %v1773
    %v1781 = vsub.f32 %v1721, %v1773
    %v1782 = vsub.f32 %v1722, %v1773
    %v1783 = vsub.f32 %v1723, %v1774
    %v1784 = vsub.f32 %v1724, %v1774
    %v1785 = vsub.f32 %v1725, %v1774
    %v1786 = vsub.f32 %v1726, %v1774
    %v1787 = vsub.f32 %v1727, %v1774
    %v1788 = vsub.f32 %v1728, %v1774
    %v1789 = vsub.f32 %v1729, %v1774
    %v1790 = vsub.f32 %v1730, %v1774
    %v1791 = vmul.f32 %v1775, %v1775
    %v1792 = vmul.f32 %v1776, %v1776
    %v1793 = vmul.f32 %v1777, %v1777
    %v1794 = vmul.f32 %v1778, %v1778
    %v1795 = vmul.f32 %v1779, %v1779
    %v1796 = vmul.f32 %v1780, %v1780
    %v1797 = vmul.f32 %v1781, %v1781
    %v1798 = vmul.f32 %v1782, %v1782
    %v1799 = vmul.f32 %v1783, %v1783
    %v1800 = vmul.f32 %v1784, %v1784
    %v1801 = vmul.f32 %v1785, %v1785
    %v1802 = vmul.f32 %v1786, %v1786
    %v1803 = vmul.f32 %v1787, %v1787
    %v1804 = vmul.f32 %v1788, %v1788
    %v1805 = vmul.f32 %v1789, %v1789
    %v1806 = vmul.f32 %v1790, %v1790
    %v1807 = vsel %vm678, %v1791, 0.0
    %v1808 = vsel %vm678, %v1792, 0.0
    %v1809 = vadd.f32 %v1807, %v1808
    %v1810 = vsel %vm678, %v1793, 0.0
    %v1811 = vadd.f32 %v1809, %v1810
    %v1812 = vsel %vm678, %v1794, 0.0
    %v1813 = vadd.f32 %v1811, %v1812
    %v1814 = vsel %vm678, %v1795, 0.0
    %v1815 = vadd.f32 %v1813, %v1814
    %v1816 = vsel %vm678, %v1796, 0.0
    %v1817 = vadd.f32 %v1815, %v1816
    %v1818 = vsel %vm678, %v1797, 0.0
    %v1819 = vadd.f32 %v1817, %v1818
    %v1820 = vsel %vm678, %v1798, 0.0
    %v1821 = vadd.f32 %v1819, %v1820
    %v1822 = vrot.slane %v1821, 4
    %v1823 = vadd.f32 %v1821, %v1822
    %v1824 = vrot.slane %v1823, 2
    %v1825 = vadd.f32 %v1823, %v1824
    %v1826 = vrot.slane %v1825, 1
    %v1827 = vadd.f32 %v1825, %v1826
    %v1828 = vsel %vm678, %v1799, 0.0
    %v1829 = vsel %vm678, %v1800, 0.0
    %v1830 = vadd.f32 %v1828, %v1829
    %v1831 = vsel %vm678, %v1801, 0.0
    %v1832 = vadd.f32 %v1830, %v1831
    %v1833 = vsel %vm678, %v1802, 0.0
    %v1834 = vadd.f32 %v1832, %v1833
    %v1835 = vsel %vm678, %v1803, 0.0
    %v1836 = vadd.f32 %v1834, %v1835
    %v1837 = vsel %vm678, %v1804, 0.0
    %v1838 = vadd.f32 %v1836, %v1837
    %v1839 = vsel %vm678, %v1805, 0.0
    %v1840 = vadd.f32 %v1838, %v1839
    %v1841 = vsel %vm678, %v1806, 0.0
    %v1842 = vadd.f32 %v1840, %v1841
    %v1843 = vrot.slane %v1842, 4
    %v1844 = vadd.f32 %v1842, %v1843
    %v1845 = vrot.slane %v1844, 2
    %v1846 = vadd.f32 %v1844, %v1845
    %v1847 = vrot.slane %v1846, 1
    %v1848 = vadd.f32 %v1846, %v1847
    %v1849 = vmul.f32 %v1827, 0.015625
    %v1850 = vmul.f32 %v1848, 0.015625
    %v1851 = vrsqrt.pop %v1849
    %v1852 = vmul.f32 %v1851, %v1849
    %v1853 = vmul.f32 %v1852, %v1851
    %v1854 = vmul.f32 0.5, %v1853
    %v1855 = vsub.f32 1.5, %v1854
    %v1856 = vmul.f32 %v1851, %v1855
    %v1857 = vmul.f32 %v1849, %v1856
    %vm1858 = vcmp.eq.f32.partialorder %v1849, inf
    %v1859 = vsel %vm1858, %v1849, %v1857
    %vm1860 = vcmp.eq.f32.partialorder %v1849, 0.0
    %v1861 = vand.u32 %v1849, 2147483648
    %v1862 = vsel %vm1860, %v1861, %v1859
    %v1863 = vrsqrt.pop %v1850
    %v1864 = vmul.f32 %v1863, %v1850
    %v1865 = vmul.f32 %v1864, %v1863
    %v1866 = vmul.f32 0.5, %v1865
    %v1867 = vsub.f32 1.5, %v1866
    %v1868 = vmul.f32 %v1863, %v1867
    %v1869 = vmul.f32 %v1850, %v1868
    %vm1870 = vcmp.eq.f32.partialorder %v1850, inf
    %v1871 = vsel %vm1870, %v1850, %v1869
    %vm1872 = vcmp.eq.f32.partialorder %v1850, 0.0
    %v1873 = vand.u32 %v1850, 2147483648
    %v1874 = vsel %vm1872, %v1873, %v1871
    %v1875 = vadd.f32 %v1862, %v1773
    %v1876 = vadd.f32 %v1874, %v1774
    %v1877 = vld [vmem:[%s9] sm:$0xf]
    %v1878 = vld [vmem:[%s1 + $0x3] sm:$0x1]
    %v1879 = vperm.slane %v1878, 0
    %vm1882 = vcmask 1041409
    %v1883 = vsel %vm1882, %v1876, %v1875
    %v1884 = vsel %vm678, %v1883, 0
    %vm1886 = vcmask 1043456
    %v1888 = vsel %vm1886, %v1877, 0
    %1890 = vmatpush.msra.mxu0 0.0
    %1891 = vmatpush.msra.mxu0 0.0
    %1892 = vmatpush.msra.mxu0 0.0
    %1893 = vmatpush.msra.mxu0 0.0
    %1894 = vmatpush.msra.mxu0 0.0
    %1895 = vmatpush.msra.mxu0 0.0
    %1896 = vmatpush.msra.mxu0 0.0
    %1897 = vmatpush.msra.mxu0 0.0
    %1898 = vmatpush.msra.mxu0 0.0
    %1899 = vmatpush.msra.mxu0 0.0
    %1900 = vmatpush.msra.mxu0 0.0
    %1901 = vmatpush.msra.mxu0 0.0
    %1902 = vmatpush.msra.mxu0 0.0
    %1903 = vmatpush.msra.mxu0 0.0
    %1904 = vmatpush.msra.mxu0 0.0
    %1905 = vmatpush.msra.mxu0 %v1888
    %1906 = vmatmul.f32.gmra.mxu0 %v1884
    %v1907 = vpop.f32.mrf.mxu0
    %v1908 = vadd.f32 %v1879, %v1907
    %1909 = vdwg.mxu0
    %v1910 = vsub.f32 0.0, %v1908
    %v1911 = vmul.f32 %v1910, 1.442695
    %v1912 = vpow.pop %v1911
    %v1913 = vadd.f32 %v1912, 1.0
    %v1914 = vrcp.pop %v1913
    %v1916 = vrot.slane %v1914, 1
    %v1917 = vperm.slane %v1914, 0
    %v1918 = vperm.slane %v1916, 0
    %v1921 = vmul.f32 %v1715, %v1917
    %v1922 = vmul.f32 %v1716, %v1917
    %v1923 = vmul.f32 %v1717, %v1917
    %v1924 = vmul.f32 %v1718, %v1917
    %v1925 = vmul.f32 %v1719, %v1917
    %v1926 = vmul.f32 %v1720, %v1917
    %v1927 = vmul.f32 %v1721, %v1917
    %v1928 = vmul.f32 %v1722, %v1917
    %v1929 = vmul.f32 %v1723, %v1918
    %v1930 = vmul.f32 %v1724, %v1918
    %v1931 = vmul.f32 %v1725, %v1918
    %v1932 = vmul.f32 %v1726, %v1918
    %v1933 = vmul.f32 %v1727, %v1918
    %v1934 = vmul.f32 %v1728, %v1918
    %v1935 = vmul.f32 %v1729, %v1918
    %v1936 = vmul.f32 %v1730, %v1918
    %v1937 = vadd.f32 %v1921, %v1715
    %v1938 = vadd.f32 %v1922, %v1716
    %v1939 = vadd.f32 %v1923, %v1717
    %v1940 = vadd.f32 %v1924, %v1718
    %v1941 = vadd.f32 %v1925, %v1719
    %v1942 = vadd.f32 %v1926, %v1720
    %v1943 = vadd.f32 %v1927, %v1721
    %v1944 = vadd.f32 %v1928, %v1722
    %v1945 = vadd.f32 %v1929, %v1723
    %v1946 = vadd.f32 %v1930, %v1724
    %v1947 = vadd.f32 %v1931, %v1725
    %v1948 = vadd.f32 %v1932, %v1726
    %v1949 = vadd.f32 %v1933, %v1727
    %v1950 = vadd.f32 %v1934, %v1728
    %v1951 = vadd.f32 %v1935, %v1729
    %v1952 = vadd.f32 %v1936, %v1730
    %1969 = vrot.lane.b32.xlu0 %v1715, 4
    %v1970 = vpop.permute.xlu0 %1969
    %1971 = vrot.lane.b32.xlu0 %v1716, 4
    %v1972 = vpop.permute.xlu0 %1971
    %1973 = vrot.lane.b32.xlu0 %v1717, 4
    %v1974 = vpop.permute.xlu0 %1973
    %1975 = vrot.lane.b32.xlu0 %v1718, 4
    %v1976 = vpop.permute.xlu0 %1975
    %1977 = vrot.lane.b32.xlu0 %v1719, 4
    %v1978 = vpop.permute.xlu0 %1977
    %1979 = vrot.lane.b32.xlu0 %v1720, 4
    %v1980 = vpop.permute.xlu0 %1979
    %1981 = vrot.lane.b32.xlu0 %v1721, 4
    %v1982 = vpop.permute.xlu0 %1981
    %1983 = vrot.lane.b32.xlu0 %v1722, 4
    %v1984 = vpop.permute.xlu0 %1983
    %1985 = vrot.lane.b32.xlu0 %v1723, 4
    %v1986 = vpop.permute.xlu0 %1985
    %1987 = vrot.lane.b32.xlu0 %v1724, 4
    %v1988 = vpop.permute.xlu0 %1987
    %1989 = vrot.lane.b32.xlu0 %v1725, 4
    %v1990 = vpop.permute.xlu0 %1989
    %1991 = vrot.lane.b32.xlu0 %v1726, 4
    %v1992 = vpop.permute.xlu0 %1991
    %1993 = vrot.lane.b32.xlu0 %v1727, 4
    %v1994 = vpop.permute.xlu0 %1993
    %1995 = vrot.lane.b32.xlu0 %v1728, 4
    %v1996 = vpop.permute.xlu0 %1995
    %1997 = vrot.lane.b32.xlu0 %v1729, 4
    %v1998 = vpop.permute.xlu0 %1997
    %1999 = vrot.lane.b32.xlu0 %v1730, 4
    %v2000 = vpop.permute.xlu0 %1999
    %v2017 = vsel %vm678, %v139, %v1970
    %v2018 = vsel %vm678, %v141, %v1972
    %v2019 = vsel %vm678, %v144, %v1974
    %v2020 = vsel %vm678, %v146, %v1976
    %v2021 = vsel %vm678, %v149, %v1978
    %v2022 = vsel %vm678, %v151, %v1980
    %v2023 = vsel %vm678, %v154, %v1982
    %v2024 = vsel %vm678, %v156, %v1984
    %v2025 = vsel %vm678, %v159, %v1986
    %v2026 = vsel %vm678, %v161, %v1988
    %v2027 = vsel %vm678, %v164, %v1990
    %v2028 = vsel %vm678, %v166, %v1992
    %v2029 = vsel %vm678, %v169, %v1994
    %v2030 = vsel %vm678, %v171, %v1996
    %v2031 = vsel %vm678, %v174, %v1998
    %v2032 = vsel %vm678, %v176, %v2000
    %v2033 = vrot.slane %v2017, 7
    %v2034 = vrot.slane %v2018, 7
    %v2035 = vrot.slane %v2019, 7
    %v2036 = vrot.slane %v2020, 7
    %v2037 = vrot.slane %v2021, 7
    %v2038 = vrot.slane %v2022, 7
    %v2039 = vrot.slane %v2023, 7
    %v2040 = vrot.slane %v2024, 7
    %v2041 = vrot.slane %v2025, 7
    %v2042 = vrot.slane %v2026, 7
    %v2043 = vrot.slane %v2027, 7
    %v2044 = vrot.slane %v2028, 7
    %v2045 = vrot.slane %v2029, 7
    %v2046 = vrot.slane %v2030, 7
    %v2047 = vrot.slane %v2031, 7
    %v2048 = vrot.slane %v2032, 7
    %v2049 = vsel %vm196, %v2047, %v2048
    %v2050 = vsel %vm196, %v2046, %v2047
    %v2051 = vsel %vm196, %v2045, %v2046
    %v2052 = vsel %vm196, %v2044, %v2045
    %v2053 = vsel %vm196, %v2043, %v2044
    %v2054 = vsel %vm196, %v2042, %v2043
    %v2055 = vsel %vm196, %v2041, %v2042
    %v2056 = vsel %vm196, %v2040, %v2041
    %v2057 = vsel %vm196, %v2039, %v2040
    %v2058 = vsel %vm196, %v2038, %v2039
    %v2059 = vsel %vm196, %v2037, %v2038
    %v2060 = vsel %vm196, %v2036, %v2037
    %v2061 = vsel %vm196, %v2035, %v2036
    %v2062 = vsel %vm196, %v2034, %v2035
    %v2063 = vsel %vm196, %v2033, %v2034
    %v2064 = vsel %vm196, %v2048, %v2033
    %v2065 = vrot.slane %v2017, 1
    %v2066 = vrot.slane %v2018, 1
    %v2067 = vrot.slane %v2019, 1
    %v2068 = vrot.slane %v2020, 1
    %v2069 = vrot.slane %v2021, 1
    %v2070 = vrot.slane %v2022, 1
    %v2071 = vrot.slane %v2023, 1
    %v2072 = vrot.slane %v2024, 1
    %v2073 = vrot.slane %v2025, 1
    %v2074 = vrot.slane %v2026, 1
    %v2075 = vrot.slane %v2027, 1
    %v2076 = vrot.slane %v2028, 1
    %v2077 = vrot.slane %v2029, 1
    %v2078 = vrot.slane %v2030, 1
    %v2079 = vrot.slane %v2031, 1
    %v2080 = vrot.slane %v2032, 1
    %v2081 = vsel %vm229, %v2079, %v2080
    %v2082 = vsel %vm229, %v2078, %v2079
    %v2083 = vsel %vm229, %v2077, %v2078
    %v2084 = vsel %vm229, %v2076, %v2077
    %v2085 = vsel %vm229, %v2075, %v2076
    %v2086 = vsel %vm229, %v2074, %v2075
    %v2087 = vsel %vm229, %v2073, %v2074
    %v2088 = vsel %vm229, %v2072, %v2073
    %v2089 = vsel %vm229, %v2071, %v2072
    %v2090 = vsel %vm229, %v2070, %v2071
    %v2091 = vsel %vm229, %v2069, %v2070
    %v2092 = vsel %vm229, %v2068, %v2069
    %v2093 = vsel %vm229, %v2067, %v2068
    %v2094 = vsel %vm229, %v2066, %v2067
    %v2095 = vsel %vm229, %v2065, %v2066
    %v2096 = vsel %vm229, %v2080, %v2065
    %2113 = vrot.lane.b32.xlu0 %v2032, 8
    %v2114 = vpop.permute.xlu0 %2113
    %2115 = vrot.lane.b32.xlu0 %v2017, 8
    %v2116 = vpop.permute.xlu0 %2115
    %2117 = vrot.lane.b32.xlu0 %v2018, 8
    %v2118 = vpop.permute.xlu0 %2117
    %2119 = vrot.lane.b32.xlu0 %v2019, 8
    %v2120 = vpop.permute.xlu0 %2119
    %2121 = vrot.lane.b32.xlu0 %v2020, 8
    %v2122 = vpop.permute.xlu0 %2121
    %2123 = vrot.lane.b32.xlu0 %v2021, 8
    %v2124 = vpop.permute.xlu0 %2123
    %2125 = vrot.lane.b32.xlu0 %v2022, 8
    %v2126 = vpop.permute.xlu0 %2125
    %2127 = vrot.lane.b32.xlu0 %v2023, 8
    %v2128 = vpop.permute.xlu0 %2127
    %2129 = vrot.lane.b32.xlu0 %v2024, 8
    %v2130 = vpop.permute.xlu0 %2129
    %2131 = vrot.lane.b32.xlu0 %v2025, 8
    %v2132 = vpop.permute.xlu0 %2131
    %2133 = vrot.lane.b32.xlu0 %v2026, 8
    %v2134 = vpop.permute.xlu0 %2133
    %2135 = vrot.lane.b32.xlu0 %v2027, 8
    %v2136 = vpop.permute.xlu0 %2135
    %2137 = vrot.lane.b32.xlu0 %v2028, 8
    %v2138 = vpop.permute.xlu0 %2137
    %2139 = vrot.lane.b32.xlu0 %v2029, 8
    %v2140 = vpop.permute.xlu0 %2139
    %2141 = vrot.lane.b32.xlu0 %v2030, 8
    %v2142 = vpop.permute.xlu0 %2141
    %2143 = vrot.lane.b32.xlu0 %v2031, 8
    %v2144 = vpop.permute.xlu0 %2143
    %2177 = vrot.lane.b32.xlu0 %v2096, 16
    %v2178 = vpop.permute.xlu0 %2177
    %2179 = vrot.lane.b32.xlu0 %v2095, 16
    %v2180 = vpop.permute.xlu0 %2179
    %2181 = vrot.lane.b32.xlu0 %v2094, 16
    %v2182 = vpop.permute.xlu0 %2181
    %2183 = vrot.lane.b32.xlu0 %v2093, 16
    %v2184 = vpop.permute.xlu0 %2183
    %2185 = vrot.lane.b32.xlu0 %v2092, 16
    %v2186 = vpop.permute.xlu0 %2185
    %2187 = vrot.lane.b32.xlu0 %v2091, 16
    %v2188 = vpop.permute.xlu0 %2187
    %2189 = vrot.lane.b32.xlu0 %v2090, 16
    %v2190 = vpop.permute.xlu0 %2189
    %2191 = vrot.lane.b32.xlu0 %v2089, 16
    %v2192 = vpop.permute.xlu0 %2191
    %2193 = vrot.lane.b32.xlu0 %v2088, 16
    %v2194 = vpop.permute.xlu0 %2193
    %2195 = vrot.lane.b32.xlu0 %v2087, 16
    %v2196 = vpop.permute.xlu0 %2195
    %2197 = vrot.lane.b32.xlu0 %v2086, 16
    %v2198 = vpop.permute.xlu0 %2197
    %2199 = vrot.lane.b32.xlu0 %v2085, 16
    %v2200 = vpop.permute.xlu0 %2199
    %2201 = vrot.lane.b32.xlu0 %v2084, 16
    %v2202 = vpop.permute.xlu0 %2201
    %2203 = vrot.lane.b32.xlu0 %v2083, 16
    %v2204 = vpop.permute.xlu0 %2203
    %2205 = vrot.lane.b32.xlu0 %v2082, 16
    %v2206 = vpop.permute.xlu0 %2205
    %2207 = vrot.lane.b32.xlu0 %v2081, 16
    %v2208 = vpop.permute.xlu0 %2207
    %2241 = vrot.lane.b32.xlu0 %v2064, 24
    %v2242 = vpop.permute.xlu0 %2241
    %2243 = vrot.lane.b32.xlu0 %v2063, 24
    %v2244 = vpop.permute.xlu0 %2243
    %2245 = vrot.lane.b32.xlu0 %v2062, 24
    %v2246 = vpop.permute.xlu0 %2245
    %2247 = vrot.lane.b32.xlu0 %v2061, 24
    %v2248 = vpop.permute.xlu0 %2247
    %2249 = vrot.lane.b32.xlu0 %v2060, 24
    %v2250 = vpop.permute.xlu0 %2249
    %2251 = vrot.lane.b32.xlu0 %v2059, 24
    %v2252 = vpop.permute.xlu0 %2251
    %2253 = vrot.lane.b32.xlu0 %v2058, 24
    %v2254 = vpop.permute.xlu0 %2253
    %2255 = vrot.lane.b32.xlu0 %v2057, 24
    %v2256 = vpop.permute.xlu0 %2255
    %2257 = vrot.lane.b32.xlu0 %v2056, 24
    %v2258 = vpop.permute.xlu0 %2257
    %2259 = vrot.lane.b32.xlu0 %v2055, 24
    %v2260 = vpop.permute.xlu0 %2259
    %2261 = vrot.lane.b32.xlu0 %v2054, 24
    %v2262 = vpop.permute.xlu0 %2261
    %2263 = vrot.lane.b32.xlu0 %v2053, 24
    %v2264 = vpop.permute.xlu0 %2263
    %2265 = vrot.lane.b32.xlu0 %v2052, 24
    %v2266 = vpop.permute.xlu0 %2265
    %2267 = vrot.lane.b32.xlu0 %v2051, 24
    %v2268 = vpop.permute.xlu0 %2267
    %2269 = vrot.lane.b32.xlu0 %v2050, 24
    %v2270 = vpop.permute.xlu0 %2269
    %2271 = vrot.lane.b32.xlu0 %v2049, 24
    %v2272 = vpop.permute.xlu0 %2271
    %2289 = vrot.lane.b32.xlu0 %v2017, 32
    %v2290 = vpop.permute.xlu0 %2289
    %2291 = vrot.lane.b32.xlu0 %v2018, 32
    %v2292 = vpop.permute.xlu0 %2291
    %2293 = vrot.lane.b32.xlu0 %v2019, 32
    %v2294 = vpop.permute.xlu0 %2293
    %2295 = vrot.lane.b32.xlu0 %v2020, 32
    %v2296 = vpop.permute.xlu0 %2295
    %2297 = vrot.lane.b32.xlu0 %v2021, 32
    %v2298 = vpop.permute.xlu0 %2297
    %2299 = vrot.lane.b32.xlu0 %v2022, 32
    %v2300 = vpop.permute.xlu0 %2299
    %2301 = vrot.lane.b32.xlu0 %v2023, 32
    %v2302 = vpop.permute.xlu0 %2301
    %2303 = vrot.lane.b32.xlu0 %v2024, 32
    %v2304 = vpop.permute.xlu0 %2303
    %2305 = vrot.lane.b32.xlu0 %v2025, 32
    %v2306 = vpop.permute.xlu0 %2305
    %2307 = vrot.lane.b32.xlu0 %v2026, 32
    %v2308 = vpop.permute.xlu0 %2307
    %2309 = vrot.lane.b32.xlu0 %v2027, 32
    %v2310 = vpop.permute.xlu0 %2309
    %2311 = vrot.lane.b32.xlu0 %v2028, 32
    %v2312 = vpop.permute.xlu0 %2311
    %2313 = vrot.lane.b32.xlu0 %v2029, 32
    %v2314 = vpop.permute.xlu0 %2313
    %2315 = vrot.lane.b32.xlu0 %v2030, 32
    %v2316 = vpop.permute.xlu0 %2315
    %2317 = vrot.lane.b32.xlu0 %v2031, 32
    %v2318 = vpop.permute.xlu0 %2317
    %2319 = vrot.lane.b32.xlu0 %v2032, 32
    %v2320 = vpop.permute.xlu0 %2319
    %2337 = vrot.lane.b32.xlu0 %v2095, 40
    %v2338 = vpop.permute.xlu0 %2337
    %2339 = vrot.lane.b32.xlu0 %v2094, 40
    %v2340 = vpop.permute.xlu0 %2339
    %2341 = vrot.lane.b32.xlu0 %v2093, 40
    %v2342 = vpop.permute.xlu0 %2341
    %2343 = vrot.lane.b32.xlu0 %v2092, 40
    %v2344 = vpop.permute.xlu0 %2343
    %2345 = vrot.lane.b32.xlu0 %v2091, 40
    %v2346 = vpop.permute.xlu0 %2345
    %2347 = vrot.lane.b32.xlu0 %v2090, 40
    %v2348 = vpop.permute.xlu0 %2347
    %2349 = vrot.lane.b32.xlu0 %v2089, 40
    %v2350 = vpop.permute.xlu0 %2349
    %2351 = vrot.lane.b32.xlu0 %v2088, 40
    %v2352 = vpop.permute.xlu0 %2351
    %2353 = vrot.lane.b32.xlu0 %v2087, 40
    %v2354 = vpop.permute.xlu0 %2353
    %2355 = vrot.lane.b32.xlu0 %v2086, 40
    %v2356 = vpop.permute.xlu0 %2355
    %2357 = vrot.lane.b32.xlu0 %v2085, 40
    %v2358 = vpop.permute.xlu0 %2357
    %2359 = vrot.lane.b32.xlu0 %v2084, 40
    %v2360 = vpop.permute.xlu0 %2359
    %2361 = vrot.lane.b32.xlu0 %v2083, 40
    %v2362 = vpop.permute.xlu0 %2361
    %2363 = vrot.lane.b32.xlu0 %v2082, 40
    %v2364 = vpop.permute.xlu0 %2363
    %2365 = vrot.lane.b32.xlu0 %v2081, 40
    %v2366 = vpop.permute.xlu0 %2365
    %2367 = vrot.lane.b32.xlu0 %v2096, 40
    %v2368 = vpop.permute.xlu0 %2367
    %2385 = vrot.lane.b32.xlu0 %v2063, 48
    %v2386 = vpop.permute.xlu0 %2385
    %2387 = vrot.lane.b32.xlu0 %v2062, 48
    %v2388 = vpop.permute.xlu0 %2387
    %2389 = vrot.lane.b32.xlu0 %v2061, 48
    %v2390 = vpop.permute.xlu0 %2389
    %2391 = vrot.lane.b32.xlu0 %v2060, 48
    %v2392 = vpop.permute.xlu0 %2391
    %2393 = vrot.lane.b32.xlu0 %v2059, 48
    %v2394 = vpop.permute.xlu0 %2393
    %2395 = vrot.lane.b32.xlu0 %v2058, 48
    %v2396 = vpop.permute.xlu0 %2395
    %2397 = vrot.lane.b32.xlu0 %v2057, 48
    %v2398 = vpop.permute.xlu0 %2397
    %2399 = vrot.lane.b32.xlu0 %v2056, 48
    %v2400 = vpop.permute.xlu0 %2399
    %2401 = vrot.lane.b32.xlu0 %v2055, 48
    %v2402 = vpop.permute.xlu0 %2401
    %2403 = vrot.lane.b32.xlu0 %v2054, 48
    %v2404 = vpop.permute.xlu0 %2403
    %2405 = vrot.lane.b32.xlu0 %v2053, 48
    %v2406 = vpop.permute.xlu0 %2405
    %2407 = vrot.lane.b32.xlu0 %v2052, 48
    %v2408 = vpop.permute.xlu0 %2407
    %2409 = vrot.lane.b32.xlu0 %v2051, 48
    %v2410 = vpop.permute.xlu0 %2409
    %2411 = vrot.lane.b32.xlu0 %v2050, 48
    %v2412 = vpop.permute.xlu0 %2411
    %2413 = vrot.lane.b32.xlu0 %v2049, 48
    %v2414 = vpop.permute.xlu0 %2413
    %2415 = vrot.lane.b32.xlu0 %v2064, 48
    %v2416 = vpop.permute.xlu0 %2415
    %2433 = vrot.lane.b32.xlu0 %v2018, 56
    %v2434 = vpop.permute.xlu0 %2433
    %2435 = vrot.lane.b32.xlu0 %v2019, 56
    %v2436 = vpop.permute.xlu0 %2435
    %2437 = vrot.lane.b32.xlu0 %v2020, 56
    %v2438 = vpop.permute.xlu0 %2437
    %2439 = vrot.lane.b32.xlu0 %v2021, 56
    %v2440 = vpop.permute.xlu0 %2439
    %2441 = vrot.lane.b32.xlu0 %v2022, 56
    %v2442 = vpop.permute.xlu0 %2441
    %2443 = vrot.lane.b32.xlu0 %v2023, 56
    %v2444 = vpop.permute.xlu0 %2443
    %2445 = vrot.lane.b32.xlu0 %v2024, 56
    %v2446 = vpop.permute.xlu0 %2445
    %2447 = vrot.lane.b32.xlu0 %v2025, 56
    %v2448 = vpop.permute.xlu0 %2447
    %2449 = vrot.lane.b32.xlu0 %v2026, 56
    %v2450 = vpop.permute.xlu0 %2449
    %2451 = vrot.lane.b32.xlu0 %v2027, 56
    %v2452 = vpop.permute.xlu0 %2451
    %2453 = vrot.lane.b32.xlu0 %v2028, 56
    %v2454 = vpop.permute.xlu0 %2453
    %2455 = vrot.lane.b32.xlu0 %v2029, 56
    %v2456 = vpop.permute.xlu0 %2455
    %2457 = vrot.lane.b32.xlu0 %v2030, 56
    %v2458 = vpop.permute.xlu0 %2457
    %2459 = vrot.lane.b32.xlu0 %v2031, 56
    %v2460 = vpop.permute.xlu0 %2459
    %2461 = vrot.lane.b32.xlu0 %v2032, 56
    %v2462 = vpop.permute.xlu0 %2461
    %2463 = vrot.lane.b32.xlu0 %v2017, 56
    %v2464 = vpop.permute.xlu0 %2463
    %2481 = vrot.lane.b32.xlu0 %v2094, 64
    %v2482 = vpop.permute.xlu0 %2481
    %2483 = vrot.lane.b32.xlu0 %v2093, 64
    %v2484 = vpop.permute.xlu0 %2483
    %2485 = vrot.lane.b32.xlu0 %v2092, 64
    %v2486 = vpop.permute.xlu0 %2485
    %2487 = vrot.lane.b32.xlu0 %v2091, 64
    %v2488 = vpop.permute.xlu0 %2487
    %2489 = vrot.lane.b32.xlu0 %v2090, 64
    %v2490 = vpop.permute.xlu0 %2489
    %2491 = vrot.lane.b32.xlu0 %v2089, 64
    %v2492 = vpop.permute.xlu0 %2491
    %2493 = vrot.lane.b32.xlu0 %v2088, 64
    %v2494 = vpop.permute.xlu0 %2493
    %2495 = vrot.lane.b32.xlu0 %v2087, 64
    %v2496 = vpop.permute.xlu0 %2495
    %2497 = vrot.lane.b32.xlu0 %v2086, 64
    %v2498 = vpop.permute.xlu0 %2497
    %2499 = vrot.lane.b32.xlu0 %v2085, 64
    %v2500 = vpop.permute.xlu0 %2499
    %2501 = vrot.lane.b32.xlu0 %v2084, 64
    %v2502 = vpop.permute.xlu0 %2501
    %2503 = vrot.lane.b32.xlu0 %v2083, 64
    %v2504 = vpop.permute.xlu0 %2503
    %2505 = vrot.lane.b32.xlu0 %v2082, 64
    %v2506 = vpop.permute.xlu0 %2505
    %2507 = vrot.lane.b32.xlu0 %v2081, 64
    %v2508 = vpop.permute.xlu0 %2507
    %2509 = vrot.lane.b32.xlu0 %v2096, 64
    %v2510 = vpop.permute.xlu0 %2509
    %2511 = vrot.lane.b32.xlu0 %v2095, 64
    %v2512 = vpop.permute.xlu0 %2511
    %v2529 = vsel %vm695, %v2049, %v2114
    %v2530 = vsel %vm695, %v2064, %v2116
    %v2531 = vsel %vm695, %v2063, %v2118
    %v2532 = vsel %vm695, %v2062, %v2120
    %v2533 = vsel %vm695, %v2061, %v2122
    %v2534 = vsel %vm695, %v2060, %v2124
    %v2535 = vsel %vm695, %v2059, %v2126
    %v2536 = vsel %vm695, %v2058, %v2128
    %v2537 = vsel %vm695, %v2057, %v2130
    %v2538 = vsel %vm695, %v2056, %v2132
    %v2539 = vsel %vm695, %v2055, %v2134
    %v2540 = vsel %vm695, %v2054, %v2136
    %v2541 = vsel %vm695, %v2053, %v2138
    %v2542 = vsel %vm695, %v2052, %v2140
    %v2543 = vsel %vm695, %v2051, %v2142
    %v2544 = vsel %vm695, %v2050, %v2144
    %v2545 = vsel %vm104, %v2529, %v2178
    %v2546 = vsel %vm104, %v2530, %v2180
    %v2547 = vsel %vm104, %v2531, %v2182
    %v2548 = vsel %vm104, %v2532, %v2184
    %v2549 = vsel %vm104, %v2533, %v2186
    %v2550 = vsel %vm104, %v2534, %v2188
    %v2551 = vsel %vm104, %v2535, %v2190
    %v2552 = vsel %vm104, %v2536, %v2192
    %v2553 = vsel %vm104, %v2537, %v2194
    %v2554 = vsel %vm104, %v2538, %v2196
    %v2555 = vsel %vm104, %v2539, %v2198
    %v2556 = vsel %vm104, %v2540, %v2200
    %v2557 = vsel %vm104, %v2541, %v2202
    %v2558 = vsel %vm104, %v2542, %v2204
    %v2559 = vsel %vm104, %v2543, %v2206
    %v2560 = vsel %vm104, %v2544, %v2208
    %v2561 = vsel %vm762, %v2545, %v2242
    %v2562 = vsel %vm762, %v2546, %v2244
    %v2563 = vsel %vm762, %v2547, %v2246
    %v2564 = vsel %vm762, %v2548, %v2248
    %v2565 = vsel %vm762, %v2549, %v2250
    %v2566 = vsel %vm762, %v2550, %v2252
    %v2567 = vsel %vm762, %v2551, %v2254
    %v2568 = vsel %vm762, %v2552, %v2256
    %v2569 = vsel %vm762, %v2553, %v2258
    %v2570 = vsel %vm762, %v2554, %v2260
    %v2571 = vsel %vm762, %v2555, %v2262
    %v2572 = vsel %vm762, %v2556, %v2264
    %v2573 = vsel %vm762, %v2557, %v2266
    %v2574 = vsel %vm762, %v2558, %v2268
    %v2575 = vsel %vm762, %v2559, %v2270
    %v2576 = vsel %vm762, %v2560, %v2272
    %v2577 = vsel %vm796, %v2561, %v2290
    %v2578 = vsel %vm796, %v2562, %v2292
    %v2579 = vsel %vm796, %v2563, %v2294
    %v2580 = vsel %vm796, %v2564, %v2296
    %v2581 = vsel %vm796, %v2565, %v2298
    %v2582 = vsel %vm796, %v2566, %v2300
    %v2583 = vsel %vm796, %v2567, %v2302
    %v2584 = vsel %vm796, %v2568, %v2304
    %v2585 = vsel %vm796, %v2569, %v2306
    %v2586 = vsel %vm796, %v2570, %v2308
    %v2587 = vsel %vm796, %v2571, %v2310
    %v2588 = vsel %vm796, %v2572, %v2312
    %v2589 = vsel %vm796, %v2573, %v2314
    %v2590 = vsel %vm796, %v2574, %v2316
    %v2591 = vsel %vm796, %v2575, %v2318
    %v2592 = vsel %vm796, %v2576, %v2320
    %vm2593 = vcmask 326656
    %v2594 = vsel %vm2593, %v2577, %v2338
    %v2595 = vsel %vm2593, %v2578, %v2340
    %v2596 = vsel %vm2593, %v2579, %v2342
    %v2597 = vsel %vm2593, %v2580, %v2344
    %v2598 = vsel %vm2593, %v2581, %v2346
    %v2599 = vsel %vm2593, %v2582, %v2348
    %v2600 = vsel %vm2593, %v2583, %v2350
    %v2601 = vsel %vm2593, %v2584, %v2352
    %v2602 = vsel %vm2593, %v2585, %v2354
    %v2603 = vsel %vm2593, %v2586, %v2356
    %v2604 = vsel %vm2593, %v2587, %v2358
    %v2605 = vsel %vm2593, %v2588, %v2360
    %v2606 = vsel %vm2593, %v2589, %v2362
    %v2607 = vsel %vm2593, %v2590, %v2364
    %v2608 = vsel %vm2593, %v2591, %v2366
    %v2609 = vsel %vm2593, %v2592, %v2368
    %vm2610 = vcmask 392192
    %v2611 = vsel %vm2610, %v2594, %v2386
    %v2612 = vsel %vm2610, %v2595, %v2388
    %v2613 = vsel %vm2610, %v2596, %v2390
    %v2614 = vsel %vm2610, %v2597, %v2392
    %v2615 = vsel %vm2610, %v2598, %v2394
    %v2616 = vsel %vm2610, %v2599, %v2396
    %v2617 = vsel %vm2610, %v2600, %v2398
    %v2618 = vsel %vm2610, %v2601, %v2400
    %v2619 = vsel %vm2610, %v2602, %v2402
    %v2620 = vsel %vm2610, %v2603, %v2404
    %v2621 = vsel %vm2610, %v2604, %v2406
    %v2622 = vsel %vm2610, %v2605, %v2408
    %v2623 = vsel %vm2610, %v2606, %v2410
    %v2624 = vsel %vm2610, %v2607, %v2412
    %v2625 = vsel %vm2610, %v2608, %v2414
    %v2626 = vsel %vm2610, %v2609, %v2416
    %vm2627 = vcmask 457728
    %v2628 = vsel %vm2627, %v2611, %v2434
    %v2629 = vsel %vm2627, %v2612, %v2436
    %v2630 = vsel %vm2627, %v2613, %v2438
    %v2631 = vsel %vm2627, %v2614, %v2440
    %v2632 = vsel %vm2627, %v2615, %v2442
    %v2633 = vsel %vm2627, %v2616, %v2444
    %v2634 = vsel %vm2627, %v2617, %v2446
    %v2635 = vsel %vm2627, %v2618, %v2448
    %v2636 = vsel %vm2627, %v2619, %v2450
    %v2637 = vsel %vm2627, %v2620, %v2452
    %v2638 = vsel %vm2627, %v2621, %v2454
    %v2639 = vsel %vm2627, %v2622, %v2456
    %v2640 = vsel %vm2627, %v2623, %v2458
    %v2641 = vsel %vm2627, %v2624, %v2460
    %v2642 = vsel %vm2627, %v2625, %v2462
    %v2643 = vsel %vm2627, %v2626, %v2464
    %vm2644 = vcmask 523264
    %v2645 = vsel %vm2644, %v2628, %v2482
    %v2646 = vsel %vm2644, %v2629, %v2484
    %v2647 = vsel %vm2644, %v2630, %v2486
    %v2648 = vsel %vm2644, %v2631, %v2488
    %v2649 = vsel %vm2644, %v2632, %v2490
    %v2650 = vsel %vm2644, %v2633, %v2492
    %v2651 = vsel %vm2644, %v2634, %v2494
    %v2652 = vsel %vm2644, %v2635, %v2496
    %v2653 = vsel %vm2644, %v2636, %v2498
    %v2654 = vsel %vm2644, %v2637, %v2500
    %v2655 = vsel %vm2644, %v2638, %v2502
    %v2656 = vsel %vm2644, %v2639, %v2504
    %v2657 = vsel %vm2644, %v2640, %v2506
    %v2658 = vsel %vm2644, %v2641, %v2508
    %v2659 = vsel %vm2644, %v2642, %v2510
    %v2660 = vsel %vm2644, %v2643, %v2512
    %v2661 = vld [vmem:[%s3] sm:$0xff]
    %v2662 = vld [vmem:[%s3 + $0x8] sm:$0xff]
    %v2663 = vld [vmem:[%s3 + $0x10] sm:$0xff]
    %v2664 = vld [vmem:[%s3 + $0x18] sm:$0xff]
    %v2665 = vld [vmem:[%s3 + $0x20] sm:$0xff]
    %v2666 = vld [vmem:[%s3 + $0x28] sm:$0xff]
    %v2667 = vld [vmem:[%s3 + $0x30] sm:$0xff]
    %v2668 = vld [vmem:[%s3 + $0x38] sm:$0xff]
    %v2669 = vld [vmem:[%s3 + $0x40] sm:$0xff]
    %v2670 = vld [vmem:[%s3 + $0x48] sm:$0xff]
    %v2671 = vld [vmem:[%s3 + $0x50] sm:$0xff]
    %v2672 = vld [vmem:[%s3 + $0x58] sm:$0xff]
    %v2673 = vld [vmem:[%s3 + $0x60] sm:$0xff]
    %v2674 = vld [vmem:[%s3 + $0x68] sm:$0xff]
    %v2675 = vld [vmem:[%s3 + $0x70] sm:$0xff]
    %v2676 = vld [vmem:[%s3 + $0x78] sm:$0xff]
    %v2677 = vmul.f32 %v2645, %v2661
    %v2678 = vmul.f32 %v2646, %v2662
    %v2679 = vmul.f32 %v2647, %v2663
    %v2680 = vmul.f32 %v2648, %v2664
    %v2681 = vmul.f32 %v2649, %v2665
    %v2682 = vmul.f32 %v2650, %v2666
    %v2683 = vmul.f32 %v2651, %v2667
    %v2684 = vmul.f32 %v2652, %v2668
    %v2685 = vmul.f32 %v2653, %v2669
    %v2686 = vmul.f32 %v2654, %v2670
    %v2687 = vmul.f32 %v2655, %v2671
    %v2688 = vmul.f32 %v2656, %v2672
    %v2689 = vmul.f32 %v2657, %v2673
    %v2690 = vmul.f32 %v2658, %v2674
    %v2691 = vmul.f32 %v2659, %v2675
    %v2692 = vmul.f32 %v2660, %v2676
    %v2693 = vpack.c.bf16 %v2678, %v2677
    %v2694 = vpack.c.bf16 %v2680, %v2679
    %v2695 = vpack.c.bf16 %v2682, %v2681
    %v2696 = vpack.c.bf16 %v2684, %v2683
    %v2697 = vpack.c.bf16 %v2686, %v2685
    %v2698 = vpack.c.bf16 %v2688, %v2687
    %v2699 = vpack.c.bf16 %v2690, %v2689
    %v2700 = vpack.c.bf16 %v2692, %v2691
    %v2701 = vld [vmem:[%s10] sm:$0xf]
    %v2702 = vld [vmem:[%s10 + $0x4] sm:$0xf]
    %v2703 = vld [vmem:[%s10 + $0x8] sm:$0xf]
    %v2704 = vld [vmem:[%s10 + $0xc] sm:$0xf]
    %v2705 = vld [vmem:[%s10 + $0x10] sm:$0xf]
    %v2706 = vld [vmem:[%s10 + $0x14] sm:$0xf]
    %v2707 = vld [vmem:[%s10 + $0x18] sm:$0xf]
    %v2708 = vld [vmem:[%s10 + $0x1c] sm:$0xf]
    %v2709 = vld [vmem:[%s10 + $0x20] sm:$0xf]
    %v2710 = vld [vmem:[%s1 + $0x4] sm:$0x1]
    %v2711 = vperm.slane %v2710, 0
    %v2721 = vunpack.c.l.b16 %v2701
    %v2722 = vunpack.c.l.b16 %v2702
    %v2723 = vunpack.c.l.b16 %v2703
    %v2724 = vunpack.c.l.b16 %v2704
    %v2725 = vunpack.c.l.b16 %v2705
    %v2726 = vunpack.c.l.b16 %v2706
    %v2727 = vunpack.c.l.b16 %v2707
    %v2728 = vunpack.c.l.b16 %v2708
    %v2729 = vunpack.c.l.b16 %v2709
    %v2730 = vpack.c.b16 %v2722, %v2721
    %v2731 = vpack.c.b16 %v2724, %v2723
    %v2732 = vpack.c.b16 %v2726, %v2725
    %v2733 = vpack.c.b16 %v2728, %v2727
    %v2734 = vpack.c.b16 %v2729, %v2729
    %vm2739 = vcmask 588800
    %v2741 = vsel %vm2739, %v2693, 0
    %v2744 = vsel %vm2739, %v2694, 0
    %v2747 = vsel %vm2739, %v2695, 0
    %v2750 = vsel %vm2739, %v2696, 0
    %v2753 = vsel %vm2739, %v2697, 0
    %v2756 = vsel %vm2739, %v2698, 0
    %v2759 = vsel %vm2739, %v2699, 0
    %v2762 = vsel %vm2739, %v2700, 0
    %v2765 = vsel %vm1886, %v2734, 0
    %2767 = vmatpush.bf16.msra.mxu0 0
    %2768 = vmatpush.bf16.msra.mxu0 0
    %2769 = vmatpush.bf16.msra.mxu0 0
    %2770 = vmatpush.bf16.msra.mxu0 %v2765
    %2771 = vmatpush.bf16.msra.mxu0 %v2733
    %2772 = vmatpush.bf16.msra.mxu0 %v2732
    %2773 = vmatpush.bf16.msra.mxu0 %v2731
    %2774 = vmatpush.bf16.msra.mxu0 %v2730
    %2775 = vmatmul.bf16.gmra.mxu0 %v2741
    %v2776 = vpop.f32.mrf.mxu0
    %v2777 = vadd.f32 %v2711, %v2776
    %v2778 = vpop.f32.mrf.mxu0
    %v2779 = vadd.f32 %v2711, %v2778
    %2780 = vmatmul.bf16.gmra.mxu0 %v2744
    %v2781 = vpop.f32.mrf.mxu0
    %v2782 = vadd.f32 %v2711, %v2781
    %v2783 = vpop.f32.mrf.mxu0
    %v2784 = vadd.f32 %v2711, %v2783
    %2785 = vmatmul.bf16.gmra.mxu0 %v2747
    %v2786 = vpop.f32.mrf.mxu0
    %v2787 = vadd.f32 %v2711, %v2786
    %v2788 = vpop.f32.mrf.mxu0
    %v2789 = vadd.f32 %v2711, %v2788
    %2790 = vmatmul.bf16.gmra.mxu0 %v2750
    %v2791 = vpop.f32.mrf.mxu0
    %v2792 = vadd.f32 %v2711, %v2791
    %v2793 = vpop.f32.mrf.mxu0
    %v2794 = vadd.f32 %v2711, %v2793
    %2795 = vmatmul.bf16.gmra.mxu0 %v2753
    %v2796 = vpop.f32.mrf.mxu0
    %v2797 = vadd.f32 %v2711, %v2796
    %v2798 = vpop.f32.mrf.mxu0
    %v2799 = vadd.f32 %v2711, %v2798
    %2800 = vmatmul.bf16.gmra.mxu0 %v2756
    %v2801 = vpop.f32.mrf.mxu0
    %v2802 = vadd.f32 %v2711, %v2801
    %v2803 = vpop.f32.mrf.mxu0
    %v2804 = vadd.f32 %v2711, %v2803
    %2805 = vmatmul.bf16.gmra.mxu0 %v2759
    %v2806 = vpop.f32.mrf.mxu0
    %v2807 = vadd.f32 %v2711, %v2806
    %v2808 = vpop.f32.mrf.mxu0
    %v2809 = vadd.f32 %v2711, %v2808
    %2810 = vmatmul.bf16.gmra.mxu0 %v2762
    %v2811 = vpop.f32.mrf.mxu0
    %v2812 = vadd.f32 %v2711, %v2811
    %v2813 = vpop.f32.mrf.mxu0
    %v2814 = vadd.f32 %v2711, %v2813
    %2815 = vdwg.mxu0
    %v2816 = vmax.f32 %v2777, 0.0
    %v2817 = vmax.f32 %v2779, 0.0
    %v2818 = vmax.f32 %v2782, 0.0
    %v2819 = vmax.f32 %v2784, 0.0
    %v2820 = vmax.f32 %v2787, 0.0
    %v2821 = vmax.f32 %v2789, 0.0
    %v2822 = vmax.f32 %v2792, 0.0
    %v2823 = vmax.f32 %v2794, 0.0
    %v2824 = vmax.f32 %v2797, 0.0
    %v2825 = vmax.f32 %v2799, 0.0
    %v2826 = vmax.f32 %v2802, 0.0
    %v2827 = vmax.f32 %v2804, 0.0
    %v2828 = vmax.f32 %v2807, 0.0
    %v2829 = vmax.f32 %v2809, 0.0
    %v2830 = vmax.f32 %v2812, 0.0
    %v2831 = vmax.f32 %v2814, 0.0
    %v2832 = vrot.slane %v2816, 7
    %v2833 = vrot.slane %v2817, 7
    %v2834 = vrot.slane %v2818, 7
    %v2835 = vrot.slane %v2819, 7
    %v2836 = vrot.slane %v2820, 7
    %v2837 = vrot.slane %v2821, 7
    %v2838 = vrot.slane %v2822, 7
    %v2839 = vrot.slane %v2823, 7
    %v2840 = vrot.slane %v2824, 7
    %v2841 = vrot.slane %v2825, 7
    %v2842 = vrot.slane %v2826, 7
    %v2843 = vrot.slane %v2827, 7
    %v2844 = vrot.slane %v2828, 7
    %v2845 = vrot.slane %v2829, 7
    %v2846 = vrot.slane %v2830, 7
    %v2847 = vrot.slane %v2831, 7
    %v2848 = vsel %vm196, %v2846, %v2847
    %v2849 = vsel %vm196, %v2845, %v2846
    %v2850 = vsel %vm196, %v2844, %v2845
    %v2851 = vsel %vm196, %v2843, %v2844
    %v2852 = vsel %vm196, %v2842, %v2843
    %v2853 = vsel %vm196, %v2841, %v2842
    %v2854 = vsel %vm196, %v2840, %v2841
    %v2855 = vsel %vm196, %v2839, %v2840
    %v2856 = vsel %vm196, %v2838, %v2839
    %v2857 = vsel %vm196, %v2837, %v2838
    %v2858 = vsel %vm196, %v2836, %v2837
    %v2859 = vsel %vm196, %v2835, %v2836
    %v2860 = vsel %vm196, %v2834, %v2835
    %v2861 = vsel %vm196, %v2833, %v2834
    %v2862 = vsel %vm196, %v2832, %v2833
    %v2863 = vsel %vm196, %v2847, %v2832
    %v2864 = vrot.slane %v2816, 1
    %v2865 = vrot.slane %v2817, 1
    %v2866 = vrot.slane %v2818, 1
    %v2867 = vrot.slane %v2819, 1
    %v2868 = vrot.slane %v2820, 1
    %v2869 = vrot.slane %v2821, 1
    %v2870 = vrot.slane %v2822, 1
    %v2871 = vrot.slane %v2823, 1
    %v2872 = vrot.slane %v2824, 1
    %v2873 = vrot.slane %v2825, 1
    %v2874 = vrot.slane %v2826, 1
    %v2875 = vrot.slane %v2827, 1
    %v2876 = vrot.slane %v2828, 1
    %v2877 = vrot.slane %v2829, 1
    %v2878 = vrot.slane %v2830, 1
    %v2879 = vrot.slane %v2831, 1
    %v2880 = vsel %vm229, %v2878, %v2879
    %v2881 = vsel %vm229, %v2877, %v2878
    %v2882 = vsel %vm229, %v2876, %v2877
    %v2883 = vsel %vm229, %v2875, %v2876
    %v2884 = vsel %vm229, %v2874, %v2875
    %v2885 = vsel %vm229, %v2873, %v2874
    %v2886 = vsel %vm229, %v2872, %v2873
    %v2887 = vsel %vm229, %v2871, %v2872
    %v2888 = vsel %vm229, %v2870, %v2871
    %v2889 = vsel %vm229, %v2869, %v2870
    %v2890 = vsel %vm229, %v2868, %v2869
    %v2891 = vsel %vm229, %v2867, %v2868
    %v2892 = vsel %vm229, %v2866, %v2867
    %v2893 = vsel %vm229, %v2865, %v2866
    %v2894 = vsel %vm229, %v2864, %v2865
    %v2895 = vsel %vm229, %v2879, %v2864
    %2912 = vrot.lane.b32.xlu0 %v2831, 8
    %v2913 = vpop.permute.xlu0 %2912
    %2914 = vrot.lane.b32.xlu0 %v2816, 8
    %v2915 = vpop.permute.xlu0 %2914
    %2916 = vrot.lane.b32.xlu0 %v2817, 8
    %v2917 = vpop.permute.xlu0 %2916
    %2918 = vrot.lane.b32.xlu0 %v2818, 8
    %v2919 = vpop.permute.xlu0 %2918
    %2920 = vrot.lane.b32.xlu0 %v2819, 8
    %v2921 = vpop.permute.xlu0 %2920
    %2922 = vrot.lane.b32.xlu0 %v2820, 8
    %v2923 = vpop.permute.xlu0 %2922
    %2924 = vrot.lane.b32.xlu0 %v2821, 8
    %v2925 = vpop.permute.xlu0 %2924
    %2926 = vrot.lane.b32.xlu0 %v2822, 8
    %v2927 = vpop.permute.xlu0 %2926
    %2928 = vrot.lane.b32.xlu0 %v2823, 8
    %v2929 = vpop.permute.xlu0 %2928
    %2930 = vrot.lane.b32.xlu0 %v2824, 8
    %v2931 = vpop.permute.xlu0 %2930
    %2932 = vrot.lane.b32.xlu0 %v2825, 8
    %v2933 = vpop.permute.xlu0 %2932
    %2934 = vrot.lane.b32.xlu0 %v2826, 8
    %v2935 = vpop.permute.xlu0 %2934
    %2936 = vrot.lane.b32.xlu0 %v2827, 8
    %v2937 = vpop.permute.xlu0 %2936
    %2938 = vrot.lane.b32.xlu0 %v2828, 8
    %v2939 = vpop.permute.xlu0 %2938
    %2940 = vrot.lane.b32.xlu0 %v2829, 8
    %v2941 = vpop.permute.xlu0 %2940
    %2942 = vrot.lane.b32.xlu0 %v2830, 8
    %v2943 = vpop.permute.xlu0 %2942
    %2976 = vrot.lane.b32.xlu0 %v2895, 16
    %v2977 = vpop.permute.xlu0 %2976
    %2978 = vrot.lane.b32.xlu0 %v2894, 16
    %v2979 = vpop.permute.xlu0 %2978
    %2980 = vrot.lane.b32.xlu0 %v2893, 16
    %v2981 = vpop.permute.xlu0 %2980
    %2982 = vrot.lane.b32.xlu0 %v2892, 16
    %v2983 = vpop.permute.xlu0 %2982
    %2984 = vrot.lane.b32.xlu0 %v2891, 16
    %v2985 = vpop.permute.xlu0 %2984
    %2986 = vrot.lane.b32.xlu0 %v2890, 16
    %v2987 = vpop.permute.xlu0 %2986
    %2988 = vrot.lane.b32.xlu0 %v2889, 16
    %v2989 = vpop.permute.xlu0 %2988
    %2990 = vrot.lane.b32.xlu0 %v2888, 16
    %v2991 = vpop.permute.xlu0 %2990
    %2992 = vrot.lane.b32.xlu0 %v2887, 16
    %v2993 = vpop.permute.xlu0 %2992
    %2994 = vrot.lane.b32.xlu0 %v2886, 16
    %v2995 = vpop.permute.xlu0 %2994
    %2996 = vrot.lane.b32.xlu0 %v2885, 16
    %v2997 = vpop.permute.xlu0 %2996
    %2998 = vrot.lane.b32.xlu0 %v2884, 16
    %v2999 = vpop.permute.xlu0 %2998
    %3000 = vrot.lane.b32.xlu0 %v2883, 16
    %v3001 = vpop.permute.xlu0 %3000
    %3002 = vrot.lane.b32.xlu0 %v2882, 16
    %v3003 = vpop.permute.xlu0 %3002
    %3004 = vrot.lane.b32.xlu0 %v2881, 16
    %v3005 = vpop.permute.xlu0 %3004
    %3006 = vrot.lane.b32.xlu0 %v2880, 16
    %v3007 = vpop.permute.xlu0 %3006
    %3040 = vrot.lane.b32.xlu0 %v2863, 24
    %v3041 = vpop.permute.xlu0 %3040
    %3042 = vrot.lane.b32.xlu0 %v2862, 24
    %v3043 = vpop.permute.xlu0 %3042
    %3044 = vrot.lane.b32.xlu0 %v2861, 24
    %v3045 = vpop.permute.xlu0 %3044
    %3046 = vrot.lane.b32.xlu0 %v2860, 24
    %v3047 = vpop.permute.xlu0 %3046
    %3048 = vrot.lane.b32.xlu0 %v2859, 24
    %v3049 = vpop.permute.xlu0 %3048
    %3050 = vrot.lane.b32.xlu0 %v2858, 24
    %v3051 = vpop.permute.xlu0 %3050
    %3052 = vrot.lane.b32.xlu0 %v2857, 24
    %v3053 = vpop.permute.xlu0 %3052
    %3054 = vrot.lane.b32.xlu0 %v2856, 24
    %v3055 = vpop.permute.xlu0 %3054
    %3056 = vrot.lane.b32.xlu0 %v2855, 24
    %v3057 = vpop.permute.xlu0 %3056
    %3058 = vrot.lane.b32.xlu0 %v2854, 24
    %v3059 = vpop.permute.xlu0 %3058
    %3060 = vrot.lane.b32.xlu0 %v2853, 24
    %v3061 = vpop.permute.xlu0 %3060
    %3062 = vrot.lane.b32.xlu0 %v2852, 24
    %v3063 = vpop.permute.xlu0 %3062
    %3064 = vrot.lane.b32.xlu0 %v2851, 24
    %v3065 = vpop.permute.xlu0 %3064
    %3066 = vrot.lane.b32.xlu0 %v2850, 24
    %v3067 = vpop.permute.xlu0 %3066
    %3068 = vrot.lane.b32.xlu0 %v2849, 24
    %v3069 = vpop.permute.xlu0 %3068
    %3070 = vrot.lane.b32.xlu0 %v2848, 24
    %v3071 = vpop.permute.xlu0 %3070
    %3088 = vrot.lane.b32.xlu0 %v2816, 32
    %v3089 = vpop.permute.xlu0 %3088
    %3090 = vrot.lane.b32.xlu0 %v2817, 32
    %v3091 = vpop.permute.xlu0 %3090
    %3092 = vrot.lane.b32.xlu0 %v2818, 32
    %v3093 = vpop.permute.xlu0 %3092
    %3094 = vrot.lane.b32.xlu0 %v2819, 32
    %v3095 = vpop.permute.xlu0 %3094
    %3096 = vrot.lane.b32.xlu0 %v2820, 32
    %v3097 = vpop.permute.xlu0 %3096
    %3098 = vrot.lane.b32.xlu0 %v2821, 32
    %v3099 = vpop.permute.xlu0 %3098
    %3100 = vrot.lane.b32.xlu0 %v2822, 32
    %v3101 = vpop.permute.xlu0 %3100
    %3102 = vrot.lane.b32.xlu0 %v2823, 32
    %v3103 = vpop.permute.xlu0 %3102
    %3104 = vrot.lane.b32.xlu0 %v2824, 32
    %v3105 = vpop.permute.xlu0 %3104
    %3106 = vrot.lane.b32.xlu0 %v2825, 32
    %v3107 = vpop.permute.xlu0 %3106
    %3108 = vrot.lane.b32.xlu0 %v2826, 32
    %v3109 = vpop.permute.xlu0 %3108
    %3110 = vrot.lane.b32.xlu0 %v2827, 32
    %v3111 = vpop.permute.xlu0 %3110
    %3112 = vrot.lane.b32.xlu0 %v2828, 32
    %v3113 = vpop.permute.xlu0 %3112
    %3114 = vrot.lane.b32.xlu0 %v2829, 32
    %v3115 = vpop.permute.xlu0 %3114
    %3116 = vrot.lane.b32.xlu0 %v2830, 32
    %v3117 = vpop.permute.xlu0 %3116
    %3118 = vrot.lane.b32.xlu0 %v2831, 32
    %v3119 = vpop.permute.xlu0 %3118
    %3136 = vrot.lane.b32.xlu0 %v2894, 40
    %v3137 = vpop.permute.xlu0 %3136
    %3138 = vrot.lane.b32.xlu0 %v2893, 40
    %v3139 = vpop.permute.xlu0 %3138
    %3140 = vrot.lane.b32.xlu0 %v2892, 40
    %v3141 = vpop.permute.xlu0 %3140
    %3142 = vrot.lane.b32.xlu0 %v2891, 40
    %v3143 = vpop.permute.xlu0 %3142
    %3144 = vrot.lane.b32.xlu0 %v2890, 40
    %v3145 = vpop.permute.xlu0 %3144
    %3146 = vrot.lane.b32.xlu0 %v2889, 40
    %v3147 = vpop.permute.xlu0 %3146
    %3148 = vrot.lane.b32.xlu0 %v2888, 40
    %v3149 = vpop.permute.xlu0 %3148
    %3150 = vrot.lane.b32.xlu0 %v2887, 40
    %v3151 = vpop.permute.xlu0 %3150
    %3152 = vrot.lane.b32.xlu0 %v2886, 40
    %v3153 = vpop.permute.xlu0 %3152
    %3154 = vrot.lane.b32.xlu0 %v2885, 40
    %v3155 = vpop.permute.xlu0 %3154
    %3156 = vrot.lane.b32.xlu0 %v2884, 40
    %v3157 = vpop.permute.xlu0 %3156
    %3158 = vrot.lane.b32.xlu0 %v2883, 40
    %v3159 = vpop.permute.xlu0 %3158
    %3160 = vrot.lane.b32.xlu0 %v2882, 40
    %v3161 = vpop.permute.xlu0 %3160
    %3162 = vrot.lane.b32.xlu0 %v2881, 40
    %v3163 = vpop.permute.xlu0 %3162
    %3164 = vrot.lane.b32.xlu0 %v2880, 40
    %v3165 = vpop.permute.xlu0 %3164
    %3166 = vrot.lane.b32.xlu0 %v2895, 40
    %v3167 = vpop.permute.xlu0 %3166
    %3184 = vrot.lane.b32.xlu0 %v2862, 48
    %v3185 = vpop.permute.xlu0 %3184
    %3186 = vrot.lane.b32.xlu0 %v2861, 48
    %v3187 = vpop.permute.xlu0 %3186
    %3188 = vrot.lane.b32.xlu0 %v2860, 48
    %v3189 = vpop.permute.xlu0 %3188
    %3190 = vrot.lane.b32.xlu0 %v2859, 48
    %v3191 = vpop.permute.xlu0 %3190
    %3192 = vrot.lane.b32.xlu0 %v2858, 48
    %v3193 = vpop.permute.xlu0 %3192
    %3194 = vrot.lane.b32.xlu0 %v2857, 48
    %v3195 = vpop.permute.xlu0 %3194
    %3196 = vrot.lane.b32.xlu0 %v2856, 48
    %v3197 = vpop.permute.xlu0 %3196
    %3198 = vrot.lane.b32.xlu0 %v2855, 48
    %v3199 = vpop.permute.xlu0 %3198
    %3200 = vrot.lane.b32.xlu0 %v2854, 48
    %v3201 = vpop.permute.xlu0 %3200
    %3202 = vrot.lane.b32.xlu0 %v2853, 48
    %v3203 = vpop.permute.xlu0 %3202
    %3204 = vrot.lane.b32.xlu0 %v2852, 48
    %v3205 = vpop.permute.xlu0 %3204
    %3206 = vrot.lane.b32.xlu0 %v2851, 48
    %v3207 = vpop.permute.xlu0 %3206
    %3208 = vrot.lane.b32.xlu0 %v2850, 48
    %v3209 = vpop.permute.xlu0 %3208
    %3210 = vrot.lane.b32.xlu0 %v2849, 48
    %v3211 = vpop.permute.xlu0 %3210
    %3212 = vrot.lane.b32.xlu0 %v2848, 48
    %v3213 = vpop.permute.xlu0 %3212
    %3214 = vrot.lane.b32.xlu0 %v2863, 48
    %v3215 = vpop.permute.xlu0 %3214
    %3232 = vrot.lane.b32.xlu0 %v2817, 56
    %v3233 = vpop.permute.xlu0 %3232
    %3234 = vrot.lane.b32.xlu0 %v2818, 56
    %v3235 = vpop.permute.xlu0 %3234
    %3236 = vrot.lane.b32.xlu0 %v2819, 56
    %v3237 = vpop.permute.xlu0 %3236
    %3238 = vrot.lane.b32.xlu0 %v2820, 56
    %v3239 = vpop.permute.xlu0 %3238
    %3240 = vrot.lane.b32.xlu0 %v2821, 56
    %v3241 = vpop.permute.xlu0 %3240
    %3242 = vrot.lane.b32.xlu0 %v2822, 56
    %v3243 = vpop.permute.xlu0 %3242
    %3244 = vrot.lane.b32.xlu0 %v2823, 56
    %v3245 = vpop.permute.xlu0 %3244
    %3246 = vrot.lane.b32.xlu0 %v2824, 56
    %v3247 = vpop.permute.xlu0 %3246
    %3248 = vrot.lane.b32.xlu0 %v2825, 56
    %v3249 = vpop.permute.xlu0 %3248
    %3250 = vrot.lane.b32.xlu0 %v2826, 56
    %v3251 = vpop.permute.xlu0 %3250
    %3252 = vrot.lane.b32.xlu0 %v2827, 56
    %v3253 = vpop.permute.xlu0 %3252
    %3254 = vrot.lane.b32.xlu0 %v2828, 56
    %v3255 = vpop.permute.xlu0 %3254
    %3256 = vrot.lane.b32.xlu0 %v2829, 56
    %v3257 = vpop.permute.xlu0 %3256
    %3258 = vrot.lane.b32.xlu0 %v2830, 56
    %v3259 = vpop.permute.xlu0 %3258
    %3260 = vrot.lane.b32.xlu0 %v2831, 56
    %v3261 = vpop.permute.xlu0 %3260
    %3262 = vrot.lane.b32.xlu0 %v2816, 56
    %v3263 = vpop.permute.xlu0 %3262
    %3280 = vrot.lane.b32.xlu0 %v2893, 64
    %v3281 = vpop.permute.xlu0 %3280
    %3282 = vrot.lane.b32.xlu0 %v2892, 64
    %v3283 = vpop.permute.xlu0 %3282
    %3284 = vrot.lane.b32.xlu0 %v2891, 64
    %v3285 = vpop.permute.xlu0 %3284
    %3286 = vrot.lane.b32.xlu0 %v2890, 64
    %v3287 = vpop.permute.xlu0 %3286
    %3288 = vrot.lane.b32.xlu0 %v2889, 64
    %v3289 = vpop.permute.xlu0 %3288
    %3290 = vrot.lane.b32.xlu0 %v2888, 64
    %v3291 = vpop.permute.xlu0 %3290
    %3292 = vrot.lane.b32.xlu0 %v2887, 64
    %v3293 = vpop.permute.xlu0 %3292
    %3294 = vrot.lane.b32.xlu0 %v2886, 64
    %v3295 = vpop.permute.xlu0 %3294
    %3296 = vrot.lane.b32.xlu0 %v2885, 64
    %v3297 = vpop.permute.xlu0 %3296
    %3298 = vrot.lane.b32.xlu0 %v2884, 64
    %v3299 = vpop.permute.xlu0 %3298
    %3300 = vrot.lane.b32.xlu0 %v2883, 64
    %v3301 = vpop.permute.xlu0 %3300
    %3302 = vrot.lane.b32.xlu0 %v2882, 64
    %v3303 = vpop.permute.xlu0 %3302
    %3304 = vrot.lane.b32.xlu0 %v2881, 64
    %v3305 = vpop.permute.xlu0 %3304
    %3306 = vrot.lane.b32.xlu0 %v2880, 64
    %v3307 = vpop.permute.xlu0 %3306
    %3308 = vrot.lane.b32.xlu0 %v2895, 64
    %v3309 = vpop.permute.xlu0 %3308
    %3310 = vrot.lane.b32.xlu0 %v2894, 64
    %v3311 = vpop.permute.xlu0 %3310
    %v3328 = vsel %vm695, %v2848, %v2913
    %v3329 = vsel %vm695, %v2863, %v2915
    %v3330 = vsel %vm695, %v2862, %v2917
    %v3331 = vsel %vm695, %v2861, %v2919
    %v3332 = vsel %vm695, %v2860, %v2921
    %v3333 = vsel %vm695, %v2859, %v2923
    %v3334 = vsel %vm695, %v2858, %v2925
    %v3335 = vsel %vm695, %v2857, %v2927
    %v3336 = vsel %vm695, %v2856, %v2929
    %v3337 = vsel %vm695, %v2855, %v2931
    %v3338 = vsel %vm695, %v2854, %v2933
    %v3339 = vsel %vm695, %v2853, %v2935
    %v3340 = vsel %vm695, %v2852, %v2937
    %v3341 = vsel %vm695, %v2851, %v2939
    %v3342 = vsel %vm695, %v2850, %v2941
    %v3343 = vsel %vm695, %v2849, %v2943
    %v3344 = vsel %vm104, %v3328, %v2977
    %v3345 = vsel %vm104, %v3329, %v2979
    %v3346 = vsel %vm104, %v3330, %v2981
    %v3347 = vsel %vm104, %v3331, %v2983
    %v3348 = vsel %vm104, %v3332, %v2985
    %v3349 = vsel %vm104, %v3333, %v2987
    %v3350 = vsel %vm104, %v3334, %v2989
    %v3351 = vsel %vm104, %v3335, %v2991
    %v3352 = vsel %vm104, %v3336, %v2993
    %v3353 = vsel %vm104, %v3337, %v2995
    %v3354 = vsel %vm104, %v3338, %v2997
    %v3355 = vsel %vm104, %v3339, %v2999
    %v3356 = vsel %vm104, %v3340, %v3001
    %v3357 = vsel %vm104, %v3341, %v3003
    %v3358 = vsel %vm104, %v3342, %v3005
    %v3359 = vsel %vm104, %v3343, %v3007
    %v3360 = vsel %vm762, %v3344, %v3041
    %v3361 = vsel %vm762, %v3345, %v3043
    %v3362 = vsel %vm762, %v3346, %v3045
    %v3363 = vsel %vm762, %v3347, %v3047
    %v3364 = vsel %vm762, %v3348, %v3049
    %v3365 = vsel %vm762, %v3349, %v3051
    %v3366 = vsel %vm762, %v3350, %v3053
    %v3367 = vsel %vm762, %v3351, %v3055
    %v3368 = vsel %vm762, %v3352, %v3057
    %v3369 = vsel %vm762, %v3353, %v3059
    %v3370 = vsel %vm762, %v3354, %v3061
    %v3371 = vsel %vm762, %v3355, %v3063
    %v3372 = vsel %vm762, %v3356, %v3065
    %v3373 = vsel %vm762, %v3357, %v3067
    %v3374 = vsel %vm762, %v3358, %v3069
    %v3375 = vsel %vm762, %v3359, %v3071
    %v3376 = vsel %vm796, %v3360, %v3089
    %v3377 = vsel %vm796, %v3361, %v3091
    %v3378 = vsel %vm796, %v3362, %v3093
    %v3379 = vsel %vm796, %v3363, %v3095
    %v3380 = vsel %vm796, %v3364, %v3097
    %v3381 = vsel %vm796, %v3365, %v3099
    %v3382 = vsel %vm796, %v3366, %v3101
    %v3383 = vsel %vm796, %v3367, %v3103
    %v3384 = vsel %vm796, %v3368, %v3105
    %v3385 = vsel %vm796, %v3369, %v3107
    %v3386 = vsel %vm796, %v3370, %v3109
    %v3387 = vsel %vm796, %v3371, %v3111
    %v3388 = vsel %vm796, %v3372, %v3113
    %v3389 = vsel %vm796, %v3373, %v3115
    %v3390 = vsel %vm796, %v3374, %v3117
    %v3391 = vsel %vm796, %v3375, %v3119
    %v3392 = vsel %vm2593, %v3376, %v3137
    %v3393 = vsel %vm2593, %v3377, %v3139
    %v3394 = vsel %vm2593, %v3378, %v3141
    %v3395 = vsel %vm2593, %v3379, %v3143
    %v3396 = vsel %vm2593, %v3380, %v3145
    %v3397 = vsel %vm2593, %v3381, %v3147
    %v3398 = vsel %vm2593, %v3382, %v3149
    %v3399 = vsel %vm2593, %v3383, %v3151
    %v3400 = vsel %vm2593, %v3384, %v3153
    %v3401 = vsel %vm2593, %v3385, %v3155
    %v3402 = vsel %vm2593, %v3386, %v3157
    %v3403 = vsel %vm2593, %v3387, %v3159
    %v3404 = vsel %vm2593, %v3388, %v3161
    %v3405 = vsel %vm2593, %v3389, %v3163
    %v3406 = vsel %vm2593, %v3390, %v3165
    %v3407 = vsel %vm2593, %v3391, %v3167
    %v3408 = vsel %vm2610, %v3392, %v3185
    %v3409 = vsel %vm2610, %v3393, %v3187
    %v3410 = vsel %vm2610, %v3394, %v3189
    %v3411 = vsel %vm2610, %v3395, %v3191
    %v3412 = vsel %vm2610, %v3396, %v3193
    %v3413 = vsel %vm2610, %v3397, %v3195
    %v3414 = vsel %vm2610, %v3398, %v3197
    %v3415 = vsel %vm2610, %v3399, %v3199
    %v3416 = vsel %vm2610, %v3400, %v3201
    %v3417 = vsel %vm2610, %v3401, %v3203
    %v3418 = vsel %vm2610, %v3402, %v3205
    %v3419 = vsel %vm2610, %v3403, %v3207
    %v3420 = vsel %vm2610, %v3404, %v3209
    %v3421 = vsel %vm2610, %v3405, %v3211
    %v3422 = vsel %vm2610, %v3406, %v3213
    %v3423 = vsel %vm2610, %v3407, %v3215
    %v3424 = vsel %vm2627, %v3408, %v3233
    %v3425 = vsel %vm2627, %v3409, %v3235
    %v3426 = vsel %vm2627, %v3410, %v3237
    %v3427 = vsel %vm2627, %v3411, %v3239
    %v3428 = vsel %vm2627, %v3412, %v3241
    %v3429 = vsel %vm2627, %v3413, %v3243
    %v3430 = vsel %vm2627, %v3414, %v3245
    %v3431 = vsel %vm2627, %v3415, %v3247
    %v3432 = vsel %vm2627, %v3416, %v3249
    %v3433 = vsel %vm2627, %v3417, %v3251
    %v3434 = vsel %vm2627, %v3418, %v3253
    %v3435 = vsel %vm2627, %v3419, %v3255
    %v3436 = vsel %vm2627, %v3420, %v3257
    %v3437 = vsel %vm2627, %v3421, %v3259
    %v3438 = vsel %vm2627, %v3422, %v3261
    %v3439 = vsel %vm2627, %v3423, %v3263
    %v3440 = vsel %vm2644, %v3424, %v3281
    %v3441 = vsel %vm2644, %v3425, %v3283
    %v3442 = vsel %vm2644, %v3426, %v3285
    %v3443 = vsel %vm2644, %v3427, %v3287
    %v3444 = vsel %vm2644, %v3428, %v3289
    %v3445 = vsel %vm2644, %v3429, %v3291
    %v3446 = vsel %vm2644, %v3430, %v3293
    %v3447 = vsel %vm2644, %v3431, %v3295
    %v3448 = vsel %vm2644, %v3432, %v3297
    %v3449 = vsel %vm2644, %v3433, %v3299
    %v3450 = vsel %vm2644, %v3434, %v3301
    %v3451 = vsel %vm2644, %v3435, %v3303
    %v3452 = vsel %vm2644, %v3436, %v3305
    %v3453 = vsel %vm2644, %v3437, %v3307
    %v3454 = vsel %vm2644, %v3438, %v3309
    %v3455 = vsel %vm2644, %v3439, %v3311
    %v3456 = vmul.f32 %v3440, %v2661
    %v3457 = vmul.f32 %v3441, %v2662
    %v3458 = vmul.f32 %v3442, %v2663
    %v3459 = vmul.f32 %v3443, %v2664
    %v3460 = vmul.f32 %v3444, %v2665
    %v3461 = vmul.f32 %v3445, %v2666
    %v3462 = vmul.f32 %v3446, %v2667
    %v3463 = vmul.f32 %v3447, %v2668
    %v3464 = vmul.f32 %v3448, %v2669
    %v3465 = vmul.f32 %v3449, %v2670
    %v3466 = vmul.f32 %v3450, %v2671
    %v3467 = vmul.f32 %v3451, %v2672
    %v3468 = vmul.f32 %v3452, %v2673
    %v3469 = vmul.f32 %v3453, %v2674
    %v3470 = vmul.f32 %v3454, %v2675
    %v3471 = vmul.f32 %v3455, %v2676
    %v3472 = vpack.c.bf16 %v3457, %v3456
    %v3473 = vpack.c.bf16 %v3459, %v3458
    %v3474 = vpack.c.bf16 %v3461, %v3460
    %v3475 = vpack.c.bf16 %v3463, %v3462
    %v3476 = vpack.c.bf16 %v3465, %v3464
    %v3477 = vpack.c.bf16 %v3467, %v3466
    %v3478 = vpack.c.bf16 %v3469, %v3468
    %v3479 = vpack.c.bf16 %v3471, %v3470
    %v3480 = vld [vmem:[%s11] sm:$0xf]
    %v3481 = vld [vmem:[%s11 + $0x4] sm:$0xf]
    %v3482 = vld [vmem:[%s11 + $0x8] sm:$0xf]
    %v3483 = vld [vmem:[%s11 + $0xc] sm:$0xf]
    %v3484 = vld [vmem:[%s11 + $0x10] sm:$0xf]
    %v3485 = vld [vmem:[%s11 + $0x14] sm:$0xf]
    %v3486 = vld [vmem:[%s11 + $0x18] sm:$0xf]
    %v3487 = vld [vmem:[%s11 + $0x1c] sm:$0xf]
    %v3488 = vld [vmem:[%s11 + $0x20] sm:$0xf]
    %v3489 = vld [vmem:[%s1 + $0x5] sm:$0x1]
    %v3490 = vperm.slane %v3489, 0
    %v3500 = vunpack.c.l.b16 %v3480
    %v3501 = vunpack.c.l.b16 %v3481
    %v3502 = vunpack.c.l.b16 %v3482
    %v3503 = vunpack.c.l.b16 %v3483
    %v3504 = vunpack.c.l.b16 %v3484
    %v3505 = vunpack.c.l.b16 %v3485
    %v3506 = vunpack.c.l.b16 %v3486
    %v3507 = vunpack.c.l.b16 %v3487
    %v3508 = vunpack.c.l.b16 %v3488
    %v3509 = vpack.c.b16 %v3501, %v3500
    %v3510 = vpack.c.b16 %v3503, %v3502
    %v3511 = vpack.c.b16 %v3505, %v3504
    %v3512 = vpack.c.b16 %v3507, %v3506
    %v3513 = vpack.c.b16 %v3508, %v3508
    %v3519 = vsel %vm2739, %v3472, 0
    %v3522 = vsel %vm2739, %v3473, 0
    %v3525 = vsel %vm2739, %v3474, 0
    %v3528 = vsel %vm2739, %v3475, 0
    %v3531 = vsel %vm2739, %v3476, 0
    %v3534 = vsel %vm2739, %v3477, 0
    %v3537 = vsel %vm2739, %v3478, 0
    %v3540 = vsel %vm2739, %v3479, 0
    %v3543 = vsel %vm1886, %v3513, 0
    %3545 = vmatpush.bf16.msra.mxu0 0
    %3546 = vmatpush.bf16.msra.mxu0 0
    %3547 = vmatpush.bf16.msra.mxu0 0
    %3548 = vmatpush.bf16.msra.mxu0 %v3543
    %3549 = vmatpush.bf16.msra.mxu0 %v3512
    %3550 = vmatpush.bf16.msra.mxu0 %v3511
    %3551 = vmatpush.bf16.msra.mxu0 %v3510
    %3552 = vmatpush.bf16.msra.mxu0 %v3509
    %3553 = vmatmul.bf16.gmra.mxu0 %v3519
    %v3554 = vpop.f32.mrf.mxu0
    %v3555 = vadd.f32 %v3490, %v3554
    %v3556 = vpop.f32.mrf.mxu0
    %v3557 = vadd.f32 %v3490, %v3556
    %3558 = vmatmul.bf16.gmra.mxu0 %v3522
    %v3559 = vpop.f32.mrf.mxu0
    %v3560 = vadd.f32 %v3490, %v3559
    %v3561 = vpop.f32.mrf.mxu0
    %v3562 = vadd.f32 %v3490, %v3561
    %3563 = vmatmul.bf16.gmra.mxu0 %v3525
    %v3564 = vpop.f32.mrf.mxu0
    %v3565 = vadd.f32 %v3490, %v3564
    %v3566 = vpop.f32.mrf.mxu0
    %v3567 = vadd.f32 %v3490, %v3566
    %3568 = vmatmul.bf16.gmra.mxu0 %v3528
    %v3569 = vpop.f32.mrf.mxu0
    %v3570 = vadd.f32 %v3490, %v3569
    %v3571 = vpop.f32.mrf.mxu0
    %v3572 = vadd.f32 %v3490, %v3571
    %3573 = vmatmul.bf16.gmra.mxu0 %v3531
    %v3574 = vpop.f32.mrf.mxu0
    %v3575 = vadd.f32 %v3490, %v3574
    %v3576 = vpop.f32.mrf.mxu0
    %v3577 = vadd.f32 %v3490, %v3576
    %3578 = vmatmul.bf16.gmra.mxu0 %v3534
    %v3579 = vpop.f32.mrf.mxu0
    %v3580 = vadd.f32 %v3490, %v3579
    %v3581 = vpop.f32.mrf.mxu0
    %v3582 = vadd.f32 %v3490, %v3581
    %3583 = vmatmul.bf16.gmra.mxu0 %v3537
    %v3584 = vpop.f32.mrf.mxu0
    %v3585 = vadd.f32 %v3490, %v3584
    %v3586 = vpop.f32.mrf.mxu0
    %v3587 = vadd.f32 %v3490, %v3586
    %3588 = vmatmul.bf16.gmra.mxu0 %v3540
    %v3589 = vpop.f32.mrf.mxu0
    %v3590 = vadd.f32 %v3490, %v3589
    %v3591 = vpop.f32.mrf.mxu0
    %v3592 = vadd.f32 %v3490, %v3591
    %3593 = vdwg.mxu0
    %v3594 = vadd.f32 %v3555, %v2017
    %v3595 = vadd.f32 %v3557, %v2018
    %v3596 = vadd.f32 %v3560, %v2019
    %v3597 = vadd.f32 %v3562, %v2020
    %v3598 = vadd.f32 %v3565, %v2021
    %v3599 = vadd.f32 %v3567, %v2022
    %v3600 = vadd.f32 %v3570, %v2023
    %v3601 = vadd.f32 %v3572, %v2024
    %v3602 = vadd.f32 %v3575, %v2025
    %v3603 = vadd.f32 %v3577, %v2026
    %v3604 = vadd.f32 %v3580, %v2027
    %v3605 = vadd.f32 %v3582, %v2028
    %v3606 = vadd.f32 %v3585, %v2029
    %v3607 = vadd.f32 %v3587, %v2030
    %v3608 = vadd.f32 %v3590, %v2031
    %v3609 = vadd.f32 %v3592, %v2032
    %v3610 = vsel %vm695, %v3594, 0.0
    %v3611 = vsel %vm695, %v3595, 0.0
    %v3612 = vadd.f32 %v3610, %v3611
    %v3613 = vsel %vm695, %v3596, 0.0
    %v3614 = vadd.f32 %v3612, %v3613
    %v3615 = vsel %vm695, %v3597, 0.0
    %v3616 = vadd.f32 %v3614, %v3615
    %v3617 = vsel %vm695, %v3598, 0.0
    %v3618 = vadd.f32 %v3616, %v3617
    %v3619 = vsel %vm695, %v3599, 0.0
    %v3620 = vadd.f32 %v3618, %v3619
    %v3621 = vsel %vm695, %v3600, 0.0
    %v3622 = vadd.f32 %v3620, %v3621
    %v3623 = vsel %vm695, %v3601, 0.0
    %v3624 = vadd.f32 %v3622, %v3623
    %v3625 = vrot.slane %v3624, 4
    %v3626 = vadd.f32 %v3624, %v3625
    %v3627 = vrot.slane %v3626, 2
    %v3628 = vadd.f32 %v3626, %v3627
    %v3629 = vrot.slane %v3628, 1
    %v3630 = vadd.f32 %v3628, %v3629
    %v3631 = vsel %vm695, %v3602, 0.0
    %v3632 = vsel %vm695, %v3603, 0.0
    %v3633 = vadd.f32 %v3631, %v3632
    %v3634 = vsel %vm695, %v3604, 0.0
    %v3635 = vadd.f32 %v3633, %v3634
    %v3636 = vsel %vm695, %v3605, 0.0
    %v3637 = vadd.f32 %v3635, %v3636
    %v3638 = vsel %vm695, %v3606, 0.0
    %v3639 = vadd.f32 %v3637, %v3638
    %v3640 = vsel %vm695, %v3607, 0.0
    %v3641 = vadd.f32 %v3639, %v3640
    %v3642 = vsel %vm695, %v3608, 0.0
    %v3643 = vadd.f32 %v3641, %v3642
    %v3644 = vsel %vm695, %v3609, 0.0
    %v3645 = vadd.f32 %v3643, %v3644
    %v3646 = vrot.slane %v3645, 4
    %v3647 = vadd.f32 %v3645, %v3646
    %v3648 = vrot.slane %v3647, 2
    %v3649 = vadd.f32 %v3647, %v3648
    %v3650 = vrot.slane %v3649, 1
    %v3651 = vadd.f32 %v3649, %v3650
    %v3652 = vmul.f32 %v3630, 0.015625
    %v3653 = vmul.f32 %v3651, 0.015625
    %v3654 = vsub.f32 %v3594, %v3652
    %v3655 = vsub.f32 %v3595, %v3652
    %v3656 = vsub.f32 %v3596, %v3652
    %v3657 = vsub.f32 %v3597, %v3652
    %v3658 = vsub.f32 %v3598, %v3652
    %v3659 = vsub.f32 %v3599, %v3652
    %v3660 = vsub.f32 %v3600, %v3652
    %v3661 = vsub.f32 %v3601, %v3652
    %v3662 = vsub.f32 %v3602, %v3653
    %v3663 = vsub.f32 %v3603, %v3653
    %v3664 = vsub.f32 %v3604, %v3653
    %v3665 = vsub.f32 %v3605, %v3653
    %v3666 = vsub.f32 %v3606, %v3653
    %v3667 = vsub.f32 %v3607, %v3653
    %v3668 = vsub.f32 %v3608, %v3653
    %v3669 = vsub.f32 %v3609, %v3653
    %v3670 = vmul.f32 %v3654, %v3654
    %v3671 = vmul.f32 %v3655, %v3655
    %v3672 = vmul.f32 %v3656, %v3656
    %v3673 = vmul.f32 %v3657, %v3657
    %v3674 = vmul.f32 %v3658, %v3658
    %v3675 = vmul.f32 %v3659, %v3659
    %v3676 = vmul.f32 %v3660, %v3660
    %v3677 = vmul.f32 %v3661, %v3661
    %v3678 = vmul.f32 %v3662, %v3662
    %v3679 = vmul.f32 %v3663, %v3663
    %v3680 = vmul.f32 %v3664, %v3664
    %v3681 = vmul.f32 %v3665, %v3665
    %v3682 = vmul.f32 %v3666, %v3666
    %v3683 = vmul.f32 %v3667, %v3667
    %v3684 = vmul.f32 %v3668, %v3668
    %v3685 = vmul.f32 %v3669, %v3669
    %v3686 = vsel %vm695, %v3670, 0.0
    %v3687 = vsel %vm695, %v3671, 0.0
    %v3688 = vadd.f32 %v3686, %v3687
    %v3689 = vsel %vm695, %v3672, 0.0
    %v3690 = vadd.f32 %v3688, %v3689
    %v3691 = vsel %vm695, %v3673, 0.0
    %v3692 = vadd.f32 %v3690, %v3691
    %v3693 = vsel %vm695, %v3674, 0.0
    %v3694 = vadd.f32 %v3692, %v3693
    %v3695 = vsel %vm695, %v3675, 0.0
    %v3696 = vadd.f32 %v3694, %v3695
    %v3697 = vsel %vm695, %v3676, 0.0
    %v3698 = vadd.f32 %v3696, %v3697
    %v3699 = vsel %vm695, %v3677, 0.0
    %v3700 = vadd.f32 %v3698, %v3699
    %v3701 = vrot.slane %v3700, 4
    %v3702 = vadd.f32 %v3700, %v3701
    %v3703 = vrot.slane %v3702, 2
    %v3704 = vadd.f32 %v3702, %v3703
    %v3705 = vrot.slane %v3704, 1
    %v3706 = vadd.f32 %v3704, %v3705
    %v3707 = vsel %vm695, %v3678, 0.0
    %v3708 = vsel %vm695, %v3679, 0.0
    %v3709 = vadd.f32 %v3707, %v3708
    %v3710 = vsel %vm695, %v3680, 0.0
    %v3711 = vadd.f32 %v3709, %v3710
    %v3712 = vsel %vm695, %v3681, 0.0
    %v3713 = vadd.f32 %v3711, %v3712
    %v3714 = vsel %vm695, %v3682, 0.0
    %v3715 = vadd.f32 %v3713, %v3714
    %v3716 = vsel %vm695, %v3683, 0.0
    %v3717 = vadd.f32 %v3715, %v3716
    %v3718 = vsel %vm695, %v3684, 0.0
    %v3719 = vadd.f32 %v3717, %v3718
    %v3720 = vsel %vm695, %v3685, 0.0
    %v3721 = vadd.f32 %v3719, %v3720
    %v3722 = vrot.slane %v3721, 4
    %v3723 = vadd.f32 %v3721, %v3722
    %v3724 = vrot.slane %v3723, 2
    %v3725 = vadd.f32 %v3723, %v3724
    %v3726 = vrot.slane %v3725, 1
    %v3727 = vadd.f32 %v3725, %v3726
    %v3728 = vmul.f32 %v3706, 0.015625
    %v3729 = vmul.f32 %v3727, 0.015625
    %v3730 = vrsqrt.pop %v3728
    %v3731 = vmul.f32 %v3730, %v3728
    %v3732 = vmul.f32 %v3731, %v3730
    %v3733 = vmul.f32 0.5, %v3732
    %v3734 = vsub.f32 1.5, %v3733
    %v3735 = vmul.f32 %v3730, %v3734
    %v3736 = vmul.f32 %v3728, %v3735
    %vm3737 = vcmp.eq.f32.partialorder %v3728, inf
    %v3738 = vsel %vm3737, %v3728, %v3736
    %vm3739 = vcmp.eq.f32.partialorder %v3728, 0.0
    %v3740 = vand.u32 %v3728, 2147483648
    %v3741 = vsel %vm3739, %v3740, %v3738
    %v3742 = vrsqrt.pop %v3729
    %v3743 = vmul.f32 %v3742, %v3729
    %v3744 = vmul.f32 %v3743, %v3742
    %v3745 = vmul.f32 0.5, %v3744
    %v3746 = vsub.f32 1.5, %v3745
    %v3747 = vmul.f32 %v3742, %v3746
    %v3748 = vmul.f32 %v3729, %v3747
    %vm3749 = vcmp.eq.f32.partialorder %v3729, inf
    %v3750 = vsel %vm3749, %v3729, %v3748
    %vm3751 = vcmp.eq.f32.partialorder %v3729, 0.0
    %v3752 = vand.u32 %v3729, 2147483648
    %v3753 = vsel %vm3751, %v3752, %v3750
    %v3754 = vadd.f32 %v3741, %v3652
    %v3755 = vadd.f32 %v3753, %v3653
    %v3756 = vld [vmem:[%s12] sm:$0xff]
    %v3757 = vld [vmem:[%s1 + $0x6] sm:$0x1]
    %v3758 = vperm.slane %v3757, 0
    %v3761 = vsel %vm1882, %v3755, %v3754
    %v3762 = vsel %vm695, %v3761, 0
    %3764 = vmatpush.msra.mxu0 0.0
    %3765 = vmatpush.msra.mxu0 0.0
    %3766 = vmatpush.msra.mxu0 0.0
    %3767 = vmatpush.msra.mxu0 0.0
    %3768 = vmatpush.msra.mxu0 0.0
    %3769 = vmatpush.msra.mxu0 0.0
    %3770 = vmatpush.msra.mxu0 0.0
    %3771 = vmatpush.msra.mxu0 0.0
    %3772 = vmatpush.msra.mxu0 0.0
    %3773 = vmatpush.msra.mxu0 0.0
    %3774 = vmatpush.msra.mxu0 0.0
    %3775 = vmatpush.msra.mxu0 0.0
    %3776 = vmatpush.msra.mxu0 0.0
    %3777 = vmatpush.msra.mxu0 0.0
    %3778 = vmatpush.msra.mxu0 0.0
    %3779 = vmatpush.msra.mxu0 %v3756
    %3780 = vmatmul.f32.gmra.mxu0 %v3762
    %v3781 = vpop.f32.mrf.mxu0
    %v3782 = vadd.f32 %v3758, %v3781
    %3783 = vdwg.mxu0
    %v3784 = vsub.f32 0.0, %v3782
    %v3785 = vmul.f32 %v3784, 1.442695
    %v3786 = vpow.pop %v3785
    %v3787 = vadd.f32 %v3786, 1.0
    %v3788 = vrcp.pop %v3787
    %v3790 = vrot.slane %v3788, 1
    %v3791 = vperm.slane %v3788, 0
    %v3792 = vperm.slane %v3790, 0
    %v3795 = vmul.f32 %v3594, %v3791
    %v3796 = vmul.f32 %v3595, %v3791
    %v3797 = vmul.f32 %v3596, %v3791
    %v3798 = vmul.f32 %v3597, %v3791
    %v3799 = vmul.f32 %v3598, %v3791
    %v3800 = vmul.f32 %v3599, %v3791
    %v3801 = vmul.f32 %v3600, %v3791
    %v3802 = vmul.f32 %v3601, %v3791
    %v3803 = vmul.f32 %v3602, %v3792
    %v3804 = vmul.f32 %v3603, %v3792
    %v3805 = vmul.f32 %v3604, %v3792
    %v3806 = vmul.f32 %v3605, %v3792
    %v3807 = vmul.f32 %v3606, %v3792
    %v3808 = vmul.f32 %v3607, %v3792
    %v3809 = vmul.f32 %v3608, %v3792
    %v3810 = vmul.f32 %v3609, %v3792
    %v3811 = vadd.f32 %v3795, %v3594
    %v3812 = vadd.f32 %v3796, %v3595
    %v3813 = vadd.f32 %v3797, %v3596
    %v3814 = vadd.f32 %v3798, %v3597
    %v3815 = vadd.f32 %v3799, %v3598
    %v3816 = vadd.f32 %v3800, %v3599
    %v3817 = vadd.f32 %v3801, %v3600
    %v3818 = vadd.f32 %v3802, %v3601
    %v3819 = vadd.f32 %v3803, %v3602
    %v3820 = vadd.f32 %v3804, %v3603
    %v3821 = vadd.f32 %v3805, %v3604
    %v3822 = vadd.f32 %v3806, %v3605
    %v3823 = vadd.f32 %v3807, %v3606
    %v3824 = vadd.f32 %v3808, %v3607
    %v3825 = vadd.f32 %v3809, %v3608
    %v3826 = vadd.f32 %v3810, %v3609
    %3843 = vrot.lane.b32.xlu0 %v3594, 4
    %v3844 = vpop.permute.xlu0 %3843
    %3845 = vrot.lane.b32.xlu0 %v3595, 4
    %v3846 = vpop.permute.xlu0 %3845
    %3847 = vrot.lane.b32.xlu0 %v3596, 4
    %v3848 = vpop.permute.xlu0 %3847
    %3849 = vrot.lane.b32.xlu0 %v3597, 4
    %v3850 = vpop.permute.xlu0 %3849
    %3851 = vrot.lane.b32.xlu0 %v3598, 4
    %v3852 = vpop.permute.xlu0 %3851
    %3853 = vrot.lane.b32.xlu0 %v3599, 4
    %v3854 = vpop.permute.xlu0 %3853
    %3855 = vrot.lane.b32.xlu0 %v3600, 4
    %v3856 = vpop.permute.xlu0 %3855
    %3857 = vrot.lane.b32.xlu0 %v3601, 4
    %v3858 = vpop.permute.xlu0 %3857
    %3859 = vrot.lane.b32.xlu0 %v3602, 4
    %v3860 = vpop.permute.xlu0 %3859
    %3861 = vrot.lane.b32.xlu0 %v3603, 4
    %v3862 = vpop.permute.xlu0 %3861
    %3863 = vrot.lane.b32.xlu0 %v3604, 4
    %v3864 = vpop.permute.xlu0 %3863
    %3865 = vrot.lane.b32.xlu0 %v3605, 4
    %v3866 = vpop.permute.xlu0 %3865
    %3867 = vrot.lane.b32.xlu0 %v3606, 4
    %v3868 = vpop.permute.xlu0 %3867
    %3869 = vrot.lane.b32.xlu0 %v3607, 4
    %v3870 = vpop.permute.xlu0 %3869
    %3871 = vrot.lane.b32.xlu0 %v3608, 4
    %v3872 = vpop.permute.xlu0 %3871
    %3873 = vrot.lane.b32.xlu0 %v3609, 4
    %v3874 = vpop.permute.xlu0 %3873
    %v3891 = vsel %vm678, %v139, %v3844
    %v3892 = vsel %vm678, %v141, %v3846
    %v3893 = vsel %vm678, %v144, %v3848
    %v3894 = vsel %vm678, %v146, %v3850
    %v3895 = vsel %vm678, %v149, %v3852
    %v3896 = vsel %vm678, %v151, %v3854
    %v3897 = vsel %vm678, %v154, %v3856
    %v3898 = vsel %vm678, %v156, %v3858
    %v3899 = vsel %vm678, %v159, %v3860
    %v3900 = vsel %vm678, %v161, %v3862
    %v3901 = vsel %vm678, %v164, %v3864
    %v3902 = vsel %vm678, %v166, %v3866
    %v3903 = vsel %vm678, %v169, %v3868
    %v3904 = vsel %vm678, %v171, %v3870
    %v3905 = vsel %vm678, %v174, %v3872
    %v3906 = vsel %vm678, %v176, %v3874
    %v3907 = vrot.slane %v3891, 7
    %v3908 = vrot.slane %v3892, 7
    %v3909 = vrot.slane %v3893, 7
    %v3910 = vrot.slane %v3894, 7
    %v3911 = vrot.slane %v3895, 7
    %v3912 = vrot.slane %v3896, 7
    %v3913 = vrot.slane %v3897, 7
    %v3914 = vrot.slane %v3898, 7
    %v3915 = vrot.slane %v3899, 7
    %v3916 = vrot.slane %v3900, 7
    %v3917 = vrot.slane %v3901, 7
    %v3918 = vrot.slane %v3902, 7
    %v3919 = vrot.slane %v3903, 7
    %v3920 = vrot.slane %v3904, 7
    %v3921 = vrot.slane %v3905, 7
    %v3922 = vrot.slane %v3906, 7
    %v3923 = vsel %vm196, %v3921, %v3922
    %v3924 = vsel %vm196, %v3920, %v3921
    %v3925 = vsel %vm196, %v3919, %v3920
    %v3926 = vsel %vm196, %v3918, %v3919
    %v3927 = vsel %vm196, %v3917, %v3918
    %v3928 = vsel %vm196, %v3916, %v3917
    %v3929 = vsel %vm196, %v3915, %v3916
    %v3930 = vsel %vm196, %v3914, %v3915
    %v3931 = vsel %vm196, %v3913, %v3914
    %v3932 = vsel %vm196, %v3912, %v3913
    %v3933 = vsel %vm196, %v3911, %v3912
    %v3934 = vsel %vm196, %v3910, %v3911
    %v3935 = vsel %vm196, %v3909, %v3910
    %v3936 = vsel %vm196, %v3908, %v3909
    %v3937 = vsel %vm196, %v3907, %v3908
    %v3938 = vsel %vm196, %v3922, %v3907
    %v3939 = vrot.slane %v3891, 1
    %v3940 = vrot.slane %v3892, 1
    %v3941 = vrot.slane %v3893, 1
    %v3942 = vrot.slane %v3894, 1
    %v3943 = vrot.slane %v3895, 1
    %v3944 = vrot.slane %v3896, 1
    %v3945 = vrot.slane %v3897, 1
    %v3946 = vrot.slane %v3898, 1
    %v3947 = vrot.slane %v3899, 1
    %v3948 = vrot.slane %v3900, 1
    %v3949 = vrot.slane %v3901, 1
    %v3950 = vrot.slane %v3902, 1
    %v3951 = vrot.slane %v3903, 1
    %v3952 = vrot.slane %v3904, 1
    %v3953 = vrot.slane %v3905, 1
    %v3954 = vrot.slane %v3906, 1
    %v3955 = vsel %vm229, %v3953, %v3954
    %v3956 = vsel %vm229, %v3952, %v3953
    %v3957 = vsel %vm229, %v3951, %v3952
    %v3958 = vsel %vm229, %v3950, %v3951
    %v3959 = vsel %vm229, %v3949, %v3950
    %v3960 = vsel %vm229, %v3948, %v3949
    %v3961 = vsel %vm229, %v3947, %v3948
    %v3962 = vsel %vm229, %v3946, %v3947
    %v3963 = vsel %vm229, %v3945, %v3946
    %v3964 = vsel %vm229, %v3944, %v3945
    %v3965 = vsel %vm229, %v3943, %v3944
    %v3966 = vsel %vm229, %v3942, %v3943
    %v3967 = vsel %vm229, %v3941, %v3942
    %v3968 = vsel %vm229, %v3940, %v3941
    %v3969 = vsel %vm229, %v3939, %v3940
    %v3970 = vsel %vm229, %v3954, %v3939
    %3987 = vrot.lane.b32.xlu0 %v3906, 12
    %v3988 = vpop.permute.xlu0 %3987
    %3989 = vrot.lane.b32.xlu0 %v3891, 12
    %v3990 = vpop.permute.xlu0 %3989
    %3991 = vrot.lane.b32.xlu0 %v3892, 12
    %v3992 = vpop.permute.xlu0 %3991
    %3993 = vrot.lane.b32.xlu0 %v3893, 12
    %v3994 = vpop.permute.xlu0 %3993
    %3995 = vrot.lane.b32.xlu0 %v3894, 12
    %v3996 = vpop.permute.xlu0 %3995
    %3997 = vrot.lane.b32.xlu0 %v3895, 12
    %v3998 = vpop.permute.xlu0 %3997
    %3999 = vrot.lane.b32.xlu0 %v3896, 12
    %v4000 = vpop.permute.xlu0 %3999
    %4001 = vrot.lane.b32.xlu0 %v3897, 12
    %v4002 = vpop.permute.xlu0 %4001
    %4003 = vrot.lane.b32.xlu0 %v3898, 12
    %v4004 = vpop.permute.xlu0 %4003
    %4005 = vrot.lane.b32.xlu0 %v3899, 12
    %v4006 = vpop.permute.xlu0 %4005
    %4007 = vrot.lane.b32.xlu0 %v3900, 12
    %v4008 = vpop.permute.xlu0 %4007
    %4009 = vrot.lane.b32.xlu0 %v3901, 12
    %v4010 = vpop.permute.xlu0 %4009
    %4011 = vrot.lane.b32.xlu0 %v3902, 12
    %v4012 = vpop.permute.xlu0 %4011
    %4013 = vrot.lane.b32.xlu0 %v3903, 12
    %v4014 = vpop.permute.xlu0 %4013
    %4015 = vrot.lane.b32.xlu0 %v3904, 12
    %v4016 = vpop.permute.xlu0 %4015
    %4017 = vrot.lane.b32.xlu0 %v3905, 12
    %v4018 = vpop.permute.xlu0 %4017
    %4051 = vrot.lane.b32.xlu0 %v3970, 24
    %v4052 = vpop.permute.xlu0 %4051
    %4053 = vrot.lane.b32.xlu0 %v3969, 24
    %v4054 = vpop.permute.xlu0 %4053
    %4055 = vrot.lane.b32.xlu0 %v3968, 24
    %v4056 = vpop.permute.xlu0 %4055
    %4057 = vrot.lane.b32.xlu0 %v3967, 24
    %v4058 = vpop.permute.xlu0 %4057
    %4059 = vrot.lane.b32.xlu0 %v3966, 24
    %v4060 = vpop.permute.xlu0 %4059
    %4061 = vrot.lane.b32.xlu0 %v3965, 24
    %v4062 = vpop.permute.xlu0 %4061
    %4063 = vrot.lane.b32.xlu0 %v3964, 24
    %v4064 = vpop.permute.xlu0 %4063
    %4065 = vrot.lane.b32.xlu0 %v3963, 24
    %v4066 = vpop.permute.xlu0 %4065
    %4067 = vrot.lane.b32.xlu0 %v3962, 24
    %v4068 = vpop.permute.xlu0 %4067
    %4069 = vrot.lane.b32.xlu0 %v3961, 24
    %v4070 = vpop.permute.xlu0 %4069
    %4071 = vrot.lane.b32.xlu0 %v3960, 24
    %v4072 = vpop.permute.xlu0 %4071
    %4073 = vrot.lane.b32.xlu0 %v3959, 24
    %v4074 = vpop.permute.xlu0 %4073
    %4075 = vrot.lane.b32.xlu0 %v3958, 24
    %v4076 = vpop.permute.xlu0 %4075
    %4077 = vrot.lane.b32.xlu0 %v3957, 24
    %v4078 = vpop.permute.xlu0 %4077
    %4079 = vrot.lane.b32.xlu0 %v3956, 24
    %v4080 = vpop.permute.xlu0 %4079
    %4081 = vrot.lane.b32.xlu0 %v3955, 24
    %v4082 = vpop.permute.xlu0 %4081
    %4115 = vrot.lane.b32.xlu0 %v3938, 36
    %v4116 = vpop.permute.xlu0 %4115
    %4117 = vrot.lane.b32.xlu0 %v3937, 36
    %v4118 = vpop.permute.xlu0 %4117
    %4119 = vrot.lane.b32.xlu0 %v3936, 36
    %v4120 = vpop.permute.xlu0 %4119
    %4121 = vrot.lane.b32.xlu0 %v3935, 36
    %v4122 = vpop.permute.xlu0 %4121
    %4123 = vrot.lane.b32.xlu0 %v3934, 36
    %v4124 = vpop.permute.xlu0 %4123
    %4125 = vrot.lane.b32.xlu0 %v3933, 36
    %v4126 = vpop.permute.xlu0 %4125
    %4127 = vrot.lane.b32.xlu0 %v3932, 36
    %v4128 = vpop.permute.xlu0 %4127
    %4129 = vrot.lane.b32.xlu0 %v3931, 36
    %v4130 = vpop.permute.xlu0 %4129
    %4131 = vrot.lane.b32.xlu0 %v3930, 36
    %v4132 = vpop.permute.xlu0 %4131
    %4133 = vrot.lane.b32.xlu0 %v3929, 36
    %v4134 = vpop.permute.xlu0 %4133
    %4135 = vrot.lane.b32.xlu0 %v3928, 36
    %v4136 = vpop.permute.xlu0 %4135
    %4137 = vrot.lane.b32.xlu0 %v3927, 36
    %v4138 = vpop.permute.xlu0 %4137
    %4139 = vrot.lane.b32.xlu0 %v3926, 36
    %v4140 = vpop.permute.xlu0 %4139
    %4141 = vrot.lane.b32.xlu0 %v3925, 36
    %v4142 = vpop.permute.xlu0 %4141
    %4143 = vrot.lane.b32.xlu0 %v3924, 36
    %v4144 = vpop.permute.xlu0 %4143
    %4145 = vrot.lane.b32.xlu0 %v3923, 36
    %v4146 = vpop.permute.xlu0 %4145
    %4163 = vrot.lane.b32.xlu0 %v3891, 48
    %v4164 = vpop.permute.xlu0 %4163
    %4165 = vrot.lane.b32.xlu0 %v3892, 48
    %v4166 = vpop.permute.xlu0 %4165
    %4167 = vrot.lane.b32.xlu0 %v3893, 48
    %v4168 = vpop.permute.xlu0 %4167
    %4169 = vrot.lane.b32.xlu0 %v3894, 48
    %v4170 = vpop.permute.xlu0 %4169
    %4171 = vrot.lane.b32.xlu0 %v3895, 48
    %v4172 = vpop.permute.xlu0 %4171
    %4173 = vrot.lane.b32.xlu0 %v3896, 48
    %v4174 = vpop.permute.xlu0 %4173
    %4175 = vrot.lane.b32.xlu0 %v3897, 48
    %v4176 = vpop.permute.xlu0 %4175
    %4177 = vrot.lane.b32.xlu0 %v3898, 48
    %v4178 = vpop.permute.xlu0 %4177
    %4179 = vrot.lane.b32.xlu0 %v3899, 48
    %v4180 = vpop.permute.xlu0 %4179
    %4181 = vrot.lane.b32.xlu0 %v3900, 48
    %v4182 = vpop.permute.xlu0 %4181
    %4183 = vrot.lane.b32.xlu0 %v3901, 48
    %v4184 = vpop.permute.xlu0 %4183
    %4185 = vrot.lane.b32.xlu0 %v3902, 48
    %v4186 = vpop.permute.xlu0 %4185
    %4187 = vrot.lane.b32.xlu0 %v3903, 48
    %v4188 = vpop.permute.xlu0 %4187
    %4189 = vrot.lane.b32.xlu0 %v3904, 48
    %v4190 = vpop.permute.xlu0 %4189
    %4191 = vrot.lane.b32.xlu0 %v3905, 48
    %v4192 = vpop.permute.xlu0 %4191
    %4193 = vrot.lane.b32.xlu0 %v3906, 48
    %v4194 = vpop.permute.xlu0 %4193
    %4211 = vrot.lane.b32.xlu0 %v3969, 60
    %v4212 = vpop.permute.xlu0 %4211
    %4213 = vrot.lane.b32.xlu0 %v3968, 60
    %v4214 = vpop.permute.xlu0 %4213
    %4215 = vrot.lane.b32.xlu0 %v3967, 60
    %v4216 = vpop.permute.xlu0 %4215
    %4217 = vrot.lane.b32.xlu0 %v3966, 60
    %v4218 = vpop.permute.xlu0 %4217
    %4219 = vrot.lane.b32.xlu0 %v3965, 60
    %v4220 = vpop.permute.xlu0 %4219
    %4221 = vrot.lane.b32.xlu0 %v3964, 60
    %v4222 = vpop.permute.xlu0 %4221
    %4223 = vrot.lane.b32.xlu0 %v3963, 60
    %v4224 = vpop.permute.xlu0 %4223
    %4225 = vrot.lane.b32.xlu0 %v3962, 60
    %v4226 = vpop.permute.xlu0 %4225
    %4227 = vrot.lane.b32.xlu0 %v3961, 60
    %v4228 = vpop.permute.xlu0 %4227
    %4229 = vrot.lane.b32.xlu0 %v3960, 60
    %v4230 = vpop.permute.xlu0 %4229
    %4231 = vrot.lane.b32.xlu0 %v3959, 60
    %v4232 = vpop.permute.xlu0 %4231
    %4233 = vrot.lane.b32.xlu0 %v3958, 60
    %v4234 = vpop.permute.xlu0 %4233
    %4235 = vrot.lane.b32.xlu0 %v3957, 60
    %v4236 = vpop.permute.xlu0 %4235
    %4237 = vrot.lane.b32.xlu0 %v3956, 60
    %v4238 = vpop.permute.xlu0 %4237
    %4239 = vrot.lane.b32.xlu0 %v3955, 60
    %v4240 = vpop.permute.xlu0 %4239
    %4241 = vrot.lane.b32.xlu0 %v3970, 60
    %v4242 = vpop.permute.xlu0 %4241
    %4259 = vrot.lane.b32.xlu0 %v3937, 72
    %v4260 = vpop.permute.xlu0 %4259
    %4261 = vrot.lane.b32.xlu0 %v3936, 72
    %v4262 = vpop.permute.xlu0 %4261
    %4263 = vrot.lane.b32.xlu0 %v3935, 72
    %v4264 = vpop.permute.xlu0 %4263
    %4265 = vrot.lane.b32.xlu0 %v3934, 72
    %v4266 = vpop.permute.xlu0 %4265
    %4267 = vrot.lane.b32.xlu0 %v3933, 72
    %v4268 = vpop.permute.xlu0 %4267
    %4269 = vrot.lane.b32.xlu0 %v3932, 72
    %v4270 = vpop.permute.xlu0 %4269
    %4271 = vrot.lane.b32.xlu0 %v3931, 72
    %v4272 = vpop.permute.xlu0 %4271
    %4273 = vrot.lane.b32.xlu0 %v3930, 72
    %v4274 = vpop.permute.xlu0 %4273
    %4275 = vrot.lane.b32.xlu0 %v3929, 72
    %v4276 = vpop.permute.xlu0 %4275
    %4277 = vrot.lane.b32.xlu0 %v3928, 72
    %v4278 = vpop.permute.xlu0 %4277
    %4279 = vrot.lane.b32.xlu0 %v3927, 72
    %v4280 = vpop.permute.xlu0 %4279
    %4281 = vrot.lane.b32.xlu0 %v3926, 72
    %v4282 = vpop.permute.xlu0 %4281
    %4283 = vrot.lane.b32.xlu0 %v3925, 72
    %v4284 = vpop.permute.xlu0 %4283
    %4285 = vrot.lane.b32.xlu0 %v3924, 72
    %v4286 = vpop.permute.xlu0 %4285
    %4287 = vrot.lane.b32.xlu0 %v3923, 72
    %v4288 = vpop.permute.xlu0 %4287
    %4289 = vrot.lane.b32.xlu0 %v3938, 72
    %v4290 = vpop.permute.xlu0 %4289
    %4307 = vrot.lane.b32.xlu0 %v3892, 84
    %v4308 = vpop.permute.xlu0 %4307
    %4309 = vrot.lane.b32.xlu0 %v3893, 84
    %v4310 = vpop.permute.xlu0 %4309
    %4311 = vrot.lane.b32.xlu0 %v3894, 84
    %v4312 = vpop.permute.xlu0 %4311
    %4313 = vrot.lane.b32.xlu0 %v3895, 84
    %v4314 = vpop.permute.xlu0 %4313
    %4315 = vrot.lane.b32.xlu0 %v3896, 84
    %v4316 = vpop.permute.xlu0 %4315
    %4317 = vrot.lane.b32.xlu0 %v3897, 84
    %v4318 = vpop.permute.xlu0 %4317
    %4319 = vrot.lane.b32.xlu0 %v3898, 84
    %v4320 = vpop.permute.xlu0 %4319
    %4321 = vrot.lane.b32.xlu0 %v3899, 84
    %v4322 = vpop.permute.xlu0 %4321
    %4323 = vrot.lane.b32.xlu0 %v3900, 84
    %v4324 = vpop.permute.xlu0 %4323
    %4325 = vrot.lane.b32.xlu0 %v3901, 84
    %v4326 = vpop.permute.xlu0 %4325
    %4327 = vrot.lane.b32.xlu0 %v3902, 84
    %v4328 = vpop.permute.xlu0 %4327
    %4329 = vrot.lane.b32.xlu0 %v3903, 84
    %v4330 = vpop.permute.xlu0 %4329
    %4331 = vrot.lane.b32.xlu0 %v3904, 84
    %v4332 = vpop.permute.xlu0 %4331
    %4333 = vrot.lane.b32.xlu0 %v3905, 84
    %v4334 = vpop.permute.xlu0 %4333
    %4335 = vrot.lane.b32.xlu0 %v3906, 84
    %v4336 = vpop.permute.xlu0 %4335
    %4337 = vrot.lane.b32.xlu0 %v3891, 84
    %v4338 = vpop.permute.xlu0 %4337
    %4355 = vrot.lane.b32.xlu0 %v3968, 96
    %v4356 = vpop.permute.xlu0 %4355
    %4357 = vrot.lane.b32.xlu0 %v3967, 96
    %v4358 = vpop.permute.xlu0 %4357
    %4359 = vrot.lane.b32.xlu0 %v3966, 96
    %v4360 = vpop.permute.xlu0 %4359
    %4361 = vrot.lane.b32.xlu0 %v3965, 96
    %v4362 = vpop.permute.xlu0 %4361
    %4363 = vrot.lane.b32.xlu0 %v3964, 96
    %v4364 = vpop.permute.xlu0 %4363
    %4365 = vrot.lane.b32.xlu0 %v3963, 96
    %v4366 = vpop.permute.xlu0 %4365
    %4367 = vrot.lane.b32.xlu0 %v3962, 96
    %v4368 = vpop.permute.xlu0 %4367
    %4369 = vrot.lane.b32.xlu0 %v3961, 96
    %v4370 = vpop.permute.xlu0 %4369
    %4371 = vrot.lane.b32.xlu0 %v3960, 96
    %v4372 = vpop.permute.xlu0 %4371
    %4373 = vrot.lane.b32.xlu0 %v3959, 96
    %v4374 = vpop.permute.xlu0 %4373
    %4375 = vrot.lane.b32.xlu0 %v3958, 96
    %v4376 = vpop.permute.xlu0 %4375
    %4377 = vrot.lane.b32.xlu0 %v3957, 96
    %v4378 = vpop.permute.xlu0 %4377
    %4379 = vrot.lane.b32.xlu0 %v3956, 96
    %v4380 = vpop.permute.xlu0 %4379
    %4381 = vrot.lane.b32.xlu0 %v3955, 96
    %v4382 = vpop.permute.xlu0 %4381
    %4383 = vrot.lane.b32.xlu0 %v3970, 96
    %v4384 = vpop.permute.xlu0 %4383
    %4385 = vrot.lane.b32.xlu0 %v3969, 96
    %v4386 = vpop.permute.xlu0 %4385
    %v4403 = vsel %vm712, %v3923, %v3988
    %v4404 = vsel %vm712, %v3938, %v3990
    %v4405 = vsel %vm712, %v3937, %v3992
    %v4406 = vsel %vm712, %v3936, %v3994
    %v4407 = vsel %vm712, %v3935, %v3996
    %v4408 = vsel %vm712, %v3934, %v3998
    %v4409 = vsel %vm712, %v3933, %v4000
    %v4410 = vsel %vm712, %v3932, %v4002
    %v4411 = vsel %vm712, %v3931, %v4004
    %v4412 = vsel %vm712, %v3930, %v4006
    %v4413 = vsel %vm712, %v3929, %v4008
    %v4414 = vsel %vm712, %v3928, %v4010
    %v4415 = vsel %vm712, %v3927, %v4012
    %v4416 = vsel %vm712, %v3926, %v4014
    %v4417 = vsel %vm712, %v3925, %v4016
    %v4418 = vsel %vm712, %v3924, %v4018
    %v4419 = vsel %vm762, %v4403, %v4052
    %v4420 = vsel %vm762, %v4404, %v4054
    %v4421 = vsel %vm762, %v4405, %v4056
    %v4422 = vsel %vm762, %v4406, %v4058
    %v4423 = vsel %vm762, %v4407, %v4060
    %v4424 = vsel %vm762, %v4408, %v4062
    %v4425 = vsel %vm762, %v4409, %v4064
    %v4426 = vsel %vm762, %v4410, %v4066
    %v4427 = vsel %vm762, %v4411, %v4068
    %v4428 = vsel %vm762, %v4412, %v4070
    %v4429 = vsel %vm762, %v4413, %v4072
    %v4430 = vsel %vm762, %v4414, %v4074
    %v4431 = vsel %vm762, %v4415, %v4076
    %v4432 = vsel %vm762, %v4416, %v4078
    %v4433 = vsel %vm762, %v4417, %v4080
    %v4434 = vsel %vm762, %v4418, %v4082
    %v4435 = vsel %vm875, %v4419, %v4116
    %v4436 = vsel %vm875, %v4420, %v4118
    %v4437 = vsel %vm875, %v4421, %v4120
    %v4438 = vsel %vm875, %v4422, %v4122
    %v4439 = vsel %vm875, %v4423, %v4124
    %v4440 = vsel %vm875, %v4424, %v4126
    %v4441 = vsel %vm875, %v4425, %v4128
    %v4442 = vsel %vm875, %v4426, %v4130
    %v4443 = vsel %vm875, %v4427, %v4132
    %v4444 = vsel %vm875, %v4428, %v4134
    %v4445 = vsel %vm875, %v4429, %v4136
    %v4446 = vsel %vm875, %v4430, %v4138
    %v4447 = vsel %vm875, %v4431, %v4140
    %v4448 = vsel %vm875, %v4432, %v4142
    %v4449 = vsel %vm875, %v4433, %v4144
    %v4450 = vsel %vm875, %v4434, %v4146
    %v4451 = vsel %vm2610, %v4435, %v4164
    %v4452 = vsel %vm2610, %v4436, %v4166
    %v4453 = vsel %vm2610, %v4437, %v4168
    %v4454 = vsel %vm2610, %v4438, %v4170
    %v4455 = vsel %vm2610, %v4439, %v4172
    %v4456 = vsel %vm2610, %v4440, %v4174
    %v4457 = vsel %vm2610, %v4441, %v4176
    %v4458 = vsel %vm2610, %v4442, %v4178
    %v4459 = vsel %vm2610, %v4443, %v4180
    %v4460 = vsel %vm2610, %v4444, %v4182
    %v4461 = vsel %vm2610, %v4445, %v4184
    %v4462 = vsel %vm2610, %v4446, %v4186
    %v4463 = vsel %vm2610, %v4447, %v4188
    %v4464 = vsel %vm2610, %v4448, %v4190
    %v4465 = vsel %vm2610, %v4449, %v4192
    %v4466 = vsel %vm2610, %v4450, %v4194
    %vm4467 = vcmask 490496
    %v4468 = vsel %vm4467, %v4451, %v4212
    %v4469 = vsel %vm4467, %v4452, %v4214
    %v4470 = vsel %vm4467, %v4453, %v4216
    %v4471 = vsel %vm4467, %v4454, %v4218
    %v4472 = vsel %vm4467, %v4455, %v4220
    %v4473 = vsel %vm4467, %v4456, %v4222
    %v4474 = vsel %vm4467, %v4457, %v4224
    %v4475 = vsel %vm4467, %v4458, %v4226
    %v4476 = vsel %vm4467, %v4459, %v4228
    %v4477 = vsel %vm4467, %v4460, %v4230
    %v4478 = vsel %vm4467, %v4461, %v4232
    %v4479 = vsel %vm4467, %v4462, %v4234
    %v4480 = vsel %vm4467, %v4463, %v4236
    %v4481 = vsel %vm4467, %v4464, %v4238
    %v4482 = vsel %vm4467, %v4465, %v4240
    %v4483 = vsel %vm4467, %v4466, %v4242
    %v4484 = vsel %vm2739, %v4468, %v4260
    %v4485 = vsel %vm2739, %v4469, %v4262
    %v4486 = vsel %vm2739, %v4470, %v4264
    %v4487 = vsel %vm2739, %v4471, %v4266
    %v4488 = vsel %vm2739, %v4472, %v4268
    %v4489 = vsel %vm2739, %v4473, %v4270
    %v4490 = vsel %vm2739, %v4474, %v4272
    %v4491 = vsel %vm2739, %v4475, %v4274
    %v4492 = vsel %vm2739, %v4476, %v4276
    %v4493 = vsel %vm2739, %v4477, %v4278
    %v4494 = vsel %vm2739, %v4478, %v4280
    %v4495 = vsel %vm2739, %v4479, %v4282
    %v4496 = vsel %vm2739, %v4480, %v4284
    %v4497 = vsel %vm2739, %v4481, %v4286
    %v4498 = vsel %vm2739, %v4482, %v4288
    %v4499 = vsel %vm2739, %v4483, %v4290
    %vm4500 = vcmask 687104
    %v4501 = vsel %vm4500, %v4484, %v4308
    %v4502 = vsel %vm4500, %v4485, %v4310
    %v4503 = vsel %vm4500, %v4486, %v4312
    %v4504 = vsel %vm4500, %v4487, %v4314
    %v4505 = vsel %vm4500, %v4488, %v4316
    %v4506 = vsel %vm4500, %v4489, %v4318
    %v4507 = vsel %vm4500, %v4490, %v4320
    %v4508 = vsel %vm4500, %v4491, %v4322
    %v4509 = vsel %vm4500, %v4492, %v4324
    %v4510 = vsel %vm4500, %v4493, %v4326
    %v4511 = vsel %vm4500, %v4494, %v4328
    %v4512 = vsel %vm4500, %v4495, %v4330
    %v4513 = vsel %vm4500, %v4496, %v4332
    %v4514 = vsel %vm4500, %v4497, %v4334
    %v4515 = vsel %vm4500, %v4498, %v4336
    %v4516 = vsel %vm4500, %v4499, %v4338
    %vm4517 = vcmask 785408
    %v4518 = vsel %vm4517, %v4501, %v4356
    %v4519 = vsel %vm4517, %v4502, %v4358
    %v4520 = vsel %vm4517, %v4503, %v4360
    %v4521 = vsel %vm4517, %v4504, %v4362
    %v4522 = vsel %vm4517, %v4505, %v4364
    %v4523 = vsel %vm4517, %v4506, %v4366
    %v4524 = vsel %vm4517, %v4507, %v4368
    %v4525 = vsel %vm4517, %v4508, %v4370
    %v4526 = vsel %vm4517, %v4509, %v4372
    %v4527 = vsel %vm4517, %v4510, %v4374
    %v4528 = vsel %vm4517, %v4511, %v4376
    %v4529 = vsel %vm4517, %v4512, %v4378
    %v4530 = vsel %vm4517, %v4513, %v4380
    %v4531 = vsel %vm4517, %v4514, %v4382
    %v4532 = vsel %vm4517, %v4515, %v4384
    %v4533 = vsel %vm4517, %v4516, %v4386
    %v4534 = vld [vmem:[%s4] sm:$0xff]
    %v4535 = vld [vmem:[%s4 + $0x8] sm:$0xff]
    %v4536 = vld [vmem:[%s4 + $0x10] sm:$0xff]
    %v4537 = vld [vmem:[%s4 + $0x18] sm:$0xff]
    %v4538 = vld [vmem:[%s4 + $0x20] sm:$0xff]
    %v4539 = vld [vmem:[%s4 + $0x28] sm:$0xff]
    %v4540 = vld [vmem:[%s4 + $0x30] sm:$0xff]
    %v4541 = vld [vmem:[%s4 + $0x38] sm:$0xff]
    %v4542 = vld [vmem:[%s4 + $0x40] sm:$0xff]
    %v4543 = vld [vmem:[%s4 + $0x48] sm:$0xff]
    %v4544 = vld [vmem:[%s4 + $0x50] sm:$0xff]
    %v4545 = vld [vmem:[%s4 + $0x58] sm:$0xff]
    %v4546 = vld [vmem:[%s4 + $0x60] sm:$0xff]
    %v4547 = vld [vmem:[%s4 + $0x68] sm:$0xff]
    %v4548 = vld [vmem:[%s4 + $0x70] sm:$0xff]
    %v4549 = vld [vmem:[%s4 + $0x78] sm:$0xff]
    %v4550 = vmul.f32 %v4518, %v4534
    %v4551 = vmul.f32 %v4519, %v4535
    %v4552 = vmul.f32 %v4520, %v4536
    %v4553 = vmul.f32 %v4521, %v4537
    %v4554 = vmul.f32 %v4522, %v4538
    %v4555 = vmul.f32 %v4523, %v4539
    %v4556 = vmul.f32 %v4524, %v4540
    %v4557 = vmul.f32 %v4525, %v4541
    %v4558 = vmul.f32 %v4526, %v4542
    %v4559 = vmul.f32 %v4527, %v4543
    %v4560 = vmul.f32 %v4528, %v4544
    %v4561 = vmul.f32 %v4529, %v4545
    %v4562 = vmul.f32 %v4530, %v4546
    %v4563 = vmul.f32 %v4531, %v4547
    %v4564 = vmul.f32 %v4532, %v4548
    %v4565 = vmul.f32 %v4533, %v4549
    %v4566 = vpack.c.bf16 %v4551, %v4550
    %v4567 = vpack.c.bf16 %v4553, %v4552
    %v4568 = vpack.c.bf16 %v4555, %v4554
    %v4569 = vpack.c.bf16 %v4557, %v4556
    %v4570 = vpack.c.bf16 %v4559, %v4558
    %v4571 = vpack.c.bf16 %v4561, %v4560
    %v4572 = vpack.c.bf16 %v4563, %v4562
    %v4573 = vpack.c.bf16 %v4565, %v4564
    %v4574 = vld [vmem:[%s13] sm:$0xf]
    %v4575 = vld [vmem:[%s13 + $0x4] sm:$0xf]
    %v4576 = vld [vmem:[%s13 + $0x8] sm:$0xf]
    %v4577 = vld [vmem:[%s13 + $0xc] sm:$0xf]
    %v4578 = vld [vmem:[%s13 + $0x10] sm:$0xf]
    %v4579 = vld [vmem:[%s13 + $0x14] sm:$0xf]
    %v4580 = vld [vmem:[%s13 + $0x18] sm:$0xf]
    %v4581 = vld [vmem:[%s13 + $0x1c] sm:$0xf]
    %v4582 = vld [vmem:[%s13 + $0x20] sm:$0xf]
    %v4583 = vld [vmem:[%s13 + $0x24] sm:$0xf]
    %v4584 = vld [vmem:[%s13 + $0x28] sm:$0xf]
    %v4585 = vld [vmem:[%s13 + $0x2c] sm:$0xf]
    %v4586 = vld [vmem:[%s13 + $0x30] sm:$0xf]
    %v4587 = vld [vmem:[%s13 + $0x34] sm:$0x3]
    %v4588 = vld [vmem:[%s1 + $0x7] sm:$0x1]
    %v4589 = vperm.slane %v4588, 0
    %v4604 = vunpack.c.l.b16 %v4574
    %v4605 = vunpack.c.l.b16 %v4575
    %v4606 = vunpack.c.l.b16 %v4576
    %v4607 = vunpack.c.l.b16 %v4577
    %v4608 = vunpack.c.l.b16 %v4578
    %v4609 = vunpack.c.l.b16 %v4579
    %v4610 = vunpack.c.l.b16 %v4580
    %v4611 = vunpack.c.l.b16 %v4581
    %v4612 = vunpack.c.l.b16 %v4582
    %v4613 = vunpack.c.l.b16 %v4583
    %v4614 = vunpack.c.l.b16 %v4584
    %v4615 = vunpack.c.l.b16 %v4585
    %v4616 = vunpack.c.l.b16 %v4586
    %v4617 = vunpack.c.l.b16 %v4587
    %v4618 = vpack.c.b16 %v4605, %v4604
    %v4619 = vpack.c.b16 %v4607, %v4606
    %v4620 = vpack.c.b16 %v4609, %v4608
    %v4621 = vpack.c.b16 %v4611, %v4610
    %v4622 = vpack.c.b16 %v4613, %v4612
    %v4623 = vpack.c.b16 %v4615, %v4614
    %v4624 = vpack.c.b16 %v4617, %v4616
    %vm4631 = vcmask 883712
    %v4633 = vsel %vm4631, %v4566, 0
    %v4636 = vsel %vm4631, %v4567, 0
    %v4639 = vsel %vm4631, %v4568, 0
    %v4642 = vsel %vm4631, %v4569, 0
    %v4645 = vsel %vm4631, %v4570, 0
    %v4648 = vsel %vm4631, %v4571, 0
    %v4651 = vsel %vm4631, %v4572, 0
    %v4654 = vsel %vm4631, %v4573, 0
    %vm4656 = vcmask 1045504
    %v4658 = vsel %vm4656, %v4624, 0
    %4660 = vmatpush.bf16.msra.mxu0 0
    %4661 = vmatpush.bf16.msra.mxu0 %v4658
    %4662 = vmatpush.bf16.msra.mxu0 %v4623
    %4663 = vmatpush.bf16.msra.mxu0 %v4622
    %4664 = vmatpush.bf16.msra.mxu0 %v4621
    %4665 = vmatpush.bf16.msra.mxu0 %v4620
    %4666 = vmatpush.bf16.msra.mxu0 %v4619
    %4667 = vmatpush.bf16.msra.mxu0 %v4618
    %4668 = vmatmul.bf16.gmra.mxu0 %v4633
    %v4669 = vpop.f32.mrf.mxu0
    %v4670 = vadd.f32 %v4589, %v4669
    %v4671 = vpop.f32.mrf.mxu0
    %v4672 = vadd.f32 %v4589, %v4671
    %4673 = vmatmul.bf16.gmra.mxu0 %v4636
    %v4674 = vpop.f32.mrf.mxu0
    %v4675 = vadd.f32 %v4589, %v4674
    %v4676 = vpop.f32.mrf.mxu0
    %v4677 = vadd.f32 %v4589, %v4676
    %4678 = vmatmul.bf16.gmra.mxu0 %v4639
    %v4679 = vpop.f32.mrf.mxu0
    %v4680 = vadd.f32 %v4589, %v4679
    %v4681 = vpop.f32.mrf.mxu0
    %v4682 = vadd.f32 %v4589, %v4681
    %4683 = vmatmul.bf16.gmra.mxu0 %v4642
    %v4684 = vpop.f32.mrf.mxu0
    %v4685 = vadd.f32 %v4589, %v4684
    %v4686 = vpop.f32.mrf.mxu0
    %v4687 = vadd.f32 %v4589, %v4686
    %4688 = vmatmul.bf16.gmra.mxu0 %v4645
    %v4689 = vpop.f32.mrf.mxu0
    %v4690 = vadd.f32 %v4589, %v4689
    %v4691 = vpop.f32.mrf.mxu0
    %v4692 = vadd.f32 %v4589, %v4691
    %4693 = vmatmul.bf16.gmra.mxu0 %v4648
    %v4694 = vpop.f32.mrf.mxu0
    %v4695 = vadd.f32 %v4589, %v4694
    %v4696 = vpop.f32.mrf.mxu0
    %v4697 = vadd.f32 %v4589, %v4696
    %4698 = vmatmul.bf16.gmra.mxu0 %v4651
    %v4699 = vpop.f32.mrf.mxu0
    %v4700 = vadd.f32 %v4589, %v4699
    %v4701 = vpop.f32.mrf.mxu0
    %v4702 = vadd.f32 %v4589, %v4701
    %4703 = vmatmul.bf16.gmra.mxu0 %v4654
    %v4704 = vpop.f32.mrf.mxu0
    %v4705 = vadd.f32 %v4589, %v4704
    %v4706 = vpop.f32.mrf.mxu0
    %v4707 = vadd.f32 %v4589, %v4706
    %4708 = vdwg.mxu0
    %v4709 = vmax.f32 %v4670, 0.0
    %v4710 = vmax.f32 %v4672, 0.0
    %v4711 = vmax.f32 %v4675, 0.0
    %v4712 = vmax.f32 %v4677, 0.0
    %v4713 = vmax.f32 %v4680, 0.0
    %v4714 = vmax.f32 %v4682, 0.0
    %v4715 = vmax.f32 %v4685, 0.0
    %v4716 = vmax.f32 %v4687, 0.0
    %v4717 = vmax.f32 %v4690, 0.0
    %v4718 = vmax.f32 %v4692, 0.0
    %v4719 = vmax.f32 %v4695, 0.0
    %v4720 = vmax.f32 %v4697, 0.0
    %v4721 = vmax.f32 %v4700, 0.0
    %v4722 = vmax.f32 %v4702, 0.0
    %v4723 = vmax.f32 %v4705, 0.0
    %v4724 = vmax.f32 %v4707, 0.0
    %v4725 = vrot.slane %v4709, 7
    %v4726 = vrot.slane %v4710, 7
    %v4727 = vrot.slane %v4711, 7
    %v4728 = vrot.slane %v4712, 7
    %v4729 = vrot.slane %v4713, 7
    %v4730 = vrot.slane %v4714, 7
    %v4731 = vrot.slane %v4715, 7
    %v4732 = vrot.slane %v4716, 7
    %v4733 = vrot.slane %v4717, 7
    %v4734 = vrot.slane %v4718, 7
    %v4735 = vrot.slane %v4719, 7
    %v4736 = vrot.slane %v4720, 7
    %v4737 = vrot.slane %v4721, 7
    %v4738 = vrot.slane %v4722, 7
    %v4739 = vrot.slane %v4723, 7
    %v4740 = vrot.slane %v4724, 7
    %v4741 = vsel %vm196, %v4739, %v4740
    %v4742 = vsel %vm196, %v4738, %v4739
    %v4743 = vsel %vm196, %v4737, %v4738
    %v4744 = vsel %vm196, %v4736, %v4737
    %v4745 = vsel %vm196, %v4735, %v4736
    %v4746 = vsel %vm196, %v4734, %v4735
    %v4747 = vsel %vm196, %v4733, %v4734
    %v4748 = vsel %vm196, %v4732, %v4733
    %v4749 = vsel %vm196, %v4731, %v4732
    %v4750 = vsel %vm196, %v4730, %v4731
    %v4751 = vsel %vm196, %v4729, %v4730
    %v4752 = vsel %vm196, %v4728, %v4729
    %v4753 = vsel %vm196, %v4727, %v4728
    %v4754 = vsel %vm196, %v4726, %v4727
    %v4755 = vsel %vm196, %v4725, %v4726
    %v4756 = vsel %vm196, %v4740, %v4725
    %v4757 = vrot.slane %v4709, 1
    %v4758 = vrot.slane %v4710, 1
    %v4759 = vrot.slane %v4711, 1
    %v4760 = vrot.slane %v4712, 1
    %v4761 = vrot.slane %v4713, 1
    %v4762 = vrot.slane %v4714, 1
    %v4763 = vrot.slane %v4715, 1
    %v4764 = vrot.slane %v4716, 1
    %v4765 = vrot.slane %v4717, 1
    %v4766 = vrot.slane %v4718, 1
    %v4767 = vrot.slane %v4719, 1
    %v4768 = vrot.slane %v4720, 1
    %v4769 = vrot.slane %v4721, 1
    %v4770 = vrot.slane %v4722, 1
    %v4771 = vrot.slane %v4723, 1
    %v4772 = vrot.slane %v4724, 1
    %v4773 = vsel %vm229, %v4771, %v4772
    %v4774 = vsel %vm229, %v4770, %v4771
    %v4775 = vsel %vm229, %v4769, %v4770
    %v4776 = vsel %vm229, %v4768, %v4769
    %v4777 = vsel %vm229, %v4767, %v4768
    %v4778 = vsel %vm229, %v4766, %v4767
    %v4779 = vsel %vm229, %v4765, %v4766
    %v4780 = vsel %vm229, %v4764, %v4765
    %v4781 = vsel %vm229, %v4763, %v4764
    %v4782 = vsel %vm229, %v4762, %v4763
    %v4783 = vsel %vm229, %v4761, %v4762
    %v4784 = vsel %vm229, %v4760, %v4761
    %v4785 = vsel %vm229, %v4759, %v4760
    %v4786 = vsel %vm229, %v4758, %v4759
    %v4787 = vsel %vm229, %v4757, %v4758
    %v4788 = vsel %vm229, %v4772, %v4757
    %4805 = vrot.lane.b32.xlu0 %v4724, 12
    %v4806 = vpop.permute.xlu0 %4805
    %4807 = vrot.lane.b32.xlu0 %v4709, 12
    %v4808 = vpop.permute.xlu0 %4807
    %4809 = vrot.lane.b32.xlu0 %v4710, 12
    %v4810 = vpop.permute.xlu0 %4809
    %4811 = vrot.lane.b32.xlu0 %v4711, 12
    %v4812 = vpop.permute.xlu0 %4811
    %4813 = vrot.lane.b32.xlu0 %v4712, 12
    %v4814 = vpop.permute.xlu0 %4813
    %4815 = vrot.lane.b32.xlu0 %v4713, 12
    %v4816 = vpop.permute.xlu0 %4815
    %4817 = vrot.lane.b32.xlu0 %v4714, 12
    %v4818 = vpop.permute.xlu0 %4817
    %4819 = vrot.lane.b32.xlu0 %v4715, 12
    %v4820 = vpop.permute.xlu0 %4819
    %4821 = vrot.lane.b32.xlu0 %v4716, 12
    %v4822 = vpop.permute.xlu0 %4821
    %4823 = vrot.lane.b32.xlu0 %v4717, 12
    %v4824 = vpop.permute.xlu0 %4823
    %4825 = vrot.lane.b32.xlu0 %v4718, 12
    %v4826 = vpop.permute.xlu0 %4825
    %4827 = vrot.lane.b32.xlu0 %v4719, 12
    %v4828 = vpop.permute.xlu0 %4827
    %4829 = vrot.lane.b32.xlu0 %v4720, 12
    %v4830 = vpop.permute.xlu0 %4829
    %4831 = vrot.lane.b32.xlu0 %v4721, 12
    %v4832 = vpop.permute.xlu0 %4831
    %4833 = vrot.lane.b32.xlu0 %v4722, 12
    %v4834 = vpop.permute.xlu0 %4833
    %4835 = vrot.lane.b32.xlu0 %v4723, 12
    %v4836 = vpop.permute.xlu0 %4835
    %4869 = vrot.lane.b32.xlu0 %v4788, 24
    %v4870 = vpop.permute.xlu0 %4869
    %4871 = vrot.lane.b32.xlu0 %v4787, 24
    %v4872 = vpop.permute.xlu0 %4871
    %4873 = vrot.lane.b32.xlu0 %v4786, 24
    %v4874 = vpop.permute.xlu0 %4873
    %4875 = vrot.lane.b32.xlu0 %v4785, 24
    %v4876 = vpop.permute.xlu0 %4875
    %4877 = vrot.lane.b32.xlu0 %v4784, 24
    %v4878 = vpop.permute.xlu0 %4877
    %4879 = vrot.lane.b32.xlu0 %v4783, 24
    %v4880 = vpop.permute.xlu0 %4879
    %4881 = vrot.lane.b32.xlu0 %v4782, 24
    %v4882 = vpop.permute.xlu0 %4881
    %4883 = vrot.lane.b32.xlu0 %v4781, 24
    %v4884 = vpop.permute.xlu0 %4883
    %4885 = vrot.lane.b32.xlu0 %v4780, 24
    %v4886 = vpop.permute.xlu0 %4885
    %4887 = vrot.lane.b32.xlu0 %v4779, 24
    %v4888 = vpop.permute.xlu0 %4887
    %4889 = vrot.lane.b32.xlu0 %v4778, 24
    %v4890 = vpop.permute.xlu0 %4889
    %4891 = vrot.lane.b32.xlu0 %v4777, 24
    %v4892 = vpop.permute.xlu0 %4891
    %4893 = vrot.lane.b32.xlu0 %v4776, 24
    %v4894 = vpop.permute.xlu0 %4893
    %4895 = vrot.lane.b32.xlu0 %v4775, 24
    %v4896 = vpop.permute.xlu0 %4895
    %4897 = vrot.lane.b32.xlu0 %v4774, 24
    %v4898 = vpop.permute.xlu0 %4897
    %4899 = vrot.lane.b32.xlu0 %v4773, 24
    %v4900 = vpop.permute.xlu0 %4899
    %4933 = vrot.lane.b32.xlu0 %v4756, 36
    %v4934 = vpop.permute.xlu0 %4933
    %4935 = vrot.lane.b32.xlu0 %v4755, 36
    %v4936 = vpop.permute.xlu0 %4935
    %4937 = vrot.lane.b32.xlu0 %v4754, 36
    %v4938 = vpop.permute.xlu0 %4937
    %4939 = vrot.lane.b32.xlu0 %v4753, 36
    %v4940 = vpop.permute.xlu0 %4939
    %4941 = vrot.lane.b32.xlu0 %v4752, 36
    %v4942 = vpop.permute.xlu0 %4941
    %4943 = vrot.lane.b32.xlu0 %v4751, 36
    %v4944 = vpop.permute.xlu0 %4943
    %4945 = vrot.lane.b32.xlu0 %v4750, 36
    %v4946 = vpop.permute.xlu0 %4945
    %4947 = vrot.lane.b32.xlu0 %v4749, 36
    %v4948 = vpop.permute.xlu0 %4947
    %4949 = vrot.lane.b32.xlu0 %v4748, 36
    %v4950 = vpop.permute.xlu0 %4949
    %4951 = vrot.lane.b32.xlu0 %v4747, 36
    %v4952 = vpop.permute.xlu0 %4951
    %4953 = vrot.lane.b32.xlu0 %v4746, 36
    %v4954 = vpop.permute.xlu0 %4953
    %4955 = vrot.lane.b32.xlu0 %v4745, 36
    %v4956 = vpop.permute.xlu0 %4955
    %4957 = vrot.lane.b32.xlu0 %v4744, 36
    %v4958 = vpop.permute.xlu0 %4957
    %4959 = vrot.lane.b32.xlu0 %v4743, 36
    %v4960 = vpop.permute.xlu0 %4959
    %4961 = vrot.lane.b32.xlu0 %v4742, 36
    %v4962 = vpop.permute.xlu0 %4961
    %4963 = vrot.lane.b32.xlu0 %v4741, 36
    %v4964 = vpop.permute.xlu0 %4963
    %4981 = vrot.lane.b32.xlu0 %v4709, 48
    %v4982 = vpop.permute.xlu0 %4981
    %4983 = vrot.lane.b32.xlu0 %v4710, 48
    %v4984 = vpop.permute.xlu0 %4983
    %4985 = vrot.lane.b32.xlu0 %v4711, 48
    %v4986 = vpop.permute.xlu0 %4985
    %4987 = vrot.lane.b32.xlu0 %v4712, 48
    %v4988 = vpop.permute.xlu0 %4987
    %4989 = vrot.lane.b32.xlu0 %v4713, 48
    %v4990 = vpop.permute.xlu0 %4989
    %4991 = vrot.lane.b32.xlu0 %v4714, 48
    %v4992 = vpop.permute.xlu0 %4991
    %4993 = vrot.lane.b32.xlu0 %v4715, 48
    %v4994 = vpop.permute.xlu0 %4993
    %4995 = vrot.lane.b32.xlu0 %v4716, 48
    %v4996 = vpop.permute.xlu0 %4995
    %4997 = vrot.lane.b32.xlu0 %v4717, 48
    %v4998 = vpop.permute.xlu0 %4997
    %4999 = vrot.lane.b32.xlu0 %v4718, 48
    %v5000 = vpop.permute.xlu0 %4999
    %5001 = vrot.lane.b32.xlu0 %v4719, 48
    %v5002 = vpop.permute.xlu0 %5001
    %5003 = vrot.lane.b32.xlu0 %v4720, 48
    %v5004 = vpop.permute.xlu0 %5003
    %5005 = vrot.lane.b32.xlu0 %v4721, 48
    %v5006 = vpop.permute.xlu0 %5005
    %5007 = vrot.lane.b32.xlu0 %v4722, 48
    %v5008 = vpop.permute.xlu0 %5007
    %5009 = vrot.lane.b32.xlu0 %v4723, 48
    %v5010 = vpop.permute.xlu0 %5009
    %5011 = vrot.lane.b32.xlu0 %v4724, 48
    %v5012 = vpop.permute.xlu0 %5011
    %5029 = vrot.lane.b32.xlu0 %v4787, 60
    %v5030 = vpop.permute.xlu0 %5029
    %5031 = vrot.lane.b32.xlu0 %v4786, 60
    %v5032 = vpop.permute.xlu0 %5031
    %5033 = vrot.lane.b32.xlu0 %v4785, 60
    %v5034 = vpop.permute.xlu0 %5033
    %5035 = vrot.lane.b32.xlu0 %v4784, 60
    %v5036 = vpop.permute.xlu0 %5035
    %5037 = vrot.lane.b32.xlu0 %v4783, 60
    %v5038 = vpop.permute.xlu0 %5037
    %5039 = vrot.lane.b32.xlu0 %v4782, 60
    %v5040 = vpop.permute.xlu0 %5039
    %5041 = vrot.lane.b32.xlu0 %v4781, 60
    %v5042 = vpop.permute.xlu0 %5041
    %5043 = vrot.lane.b32.xlu0 %v4780, 60
    %v5044 = vpop.permute.xlu0 %5043
    %5045 = vrot.lane.b32.xlu0 %v4779, 60
    %v5046 = vpop.permute.xlu0 %5045
    %5047 = vrot.lane.b32.xlu0 %v4778, 60
    %v5048 = vpop.permute.xlu0 %5047
    %5049 = vrot.lane.b32.xlu0 %v4777, 60
    %v5050 = vpop.permute.xlu0 %5049
    %5051 = vrot.lane.b32.xlu0 %v4776, 60
    %v5052 = vpop.permute.xlu0 %5051
    %5053 = vrot.lane.b32.xlu0 %v4775, 60
    %v5054 = vpop.permute.xlu0 %5053
    %5055 = vrot.lane.b32.xlu0 %v4774, 60
    %v5056 = vpop.permute.xlu0 %5055
    %5057 = vrot.lane.b32.xlu0 %v4773, 60
    %v5058 = vpop.permute.xlu0 %5057
    %5059 = vrot.lane.b32.xlu0 %v4788, 60
    %v5060 = vpop.permute.xlu0 %5059
    %5077 = vrot.lane.b32.xlu0 %v4755, 72
    %v5078 = vpop.permute.xlu0 %5077
    %5079 = vrot.lane.b32.xlu0 %v4754, 72
    %v5080 = vpop.permute.xlu0 %5079
    %5081 = vrot.lane.b32.xlu0 %v4753, 72
    %v5082 = vpop.permute.xlu0 %5081
    %5083 = vrot.lane.b32.xlu0 %v4752, 72
    %v5084 = vpop.permute.xlu0 %5083
    %5085 = vrot.lane.b32.xlu0 %v4751, 72
    %v5086 = vpop.permute.xlu0 %5085
    %5087 = vrot.lane.b32.xlu0 %v4750, 72
    %v5088 = vpop.permute.xlu0 %5087
    %5089 = vrot.lane.b32.xlu0 %v4749, 72
    %v5090 = vpop.permute.xlu0 %5089
    %5091 = vrot.lane.b32.xlu0 %v4748, 72
    %v5092 = vpop.permute.xlu0 %5091
    %5093 = vrot.lane.b32.xlu0 %v4747, 72
    %v5094 = vpop.permute.xlu0 %5093
    %5095 = vrot.lane.b32.xlu0 %v4746, 72
    %v5096 = vpop.permute.xlu0 %5095
    %5097 = vrot.lane.b32.xlu0 %v4745, 72
    %v5098 = vpop.permute.xlu0 %5097
    %5099 = vrot.lane.b32.xlu0 %v4744, 72
    %v5100 = vpop.permute.xlu0 %5099
    %5101 = vrot.lane.b32.xlu0 %v4743, 72
    %v5102 = vpop.permute.xlu0 %5101
    %5103 = vrot.lane.b32.xlu0 %v4742, 72
    %v5104 = vpop.permute.xlu0 %5103
    %5105 = vrot.lane.b32.xlu0 %v4741, 72
    %v5106 = vpop.permute.xlu0 %5105
    %5107 = vrot.lane.b32.xlu0 %v4756, 72
    %v5108 = vpop.permute.xlu0 %5107
    %5125 = vrot.lane.b32.xlu0 %v4710, 84
    %v5126 = vpop.permute.xlu0 %5125
    %5127 = vrot.lane.b32.xlu0 %v4711, 84
    %v5128 = vpop.permute.xlu0 %5127
    %5129 = vrot.lane.b32.xlu0 %v4712, 84
    %v5130 = vpop.permute.xlu0 %5129
    %5131 = vrot.lane.b32.xlu0 %v4713, 84
    %v5132 = vpop.permute.xlu0 %5131
    %5133 = vrot.lane.b32.xlu0 %v4714, 84
    %v5134 = vpop.permute.xlu0 %5133
    %5135 = vrot.lane.b32.xlu0 %v4715, 84
    %v5136 = vpop.permute.xlu0 %5135
    %5137 = vrot.lane.b32.xlu0 %v4716, 84
    %v5138 = vpop.permute.xlu0 %5137
    %5139 = vrot.lane.b32.xlu0 %v4717, 84
    %v5140 = vpop.permute.xlu0 %5139
    %5141 = vrot.lane.b32.xlu0 %v4718, 84
    %v5142 = vpop.permute.xlu0 %5141
    %5143 = vrot.lane.b32.xlu0 %v4719, 84
    %v5144 = vpop.permute.xlu0 %5143
    %5145 = vrot.lane.b32.xlu0 %v4720, 84
    %v5146 = vpop.permute.xlu0 %5145
    %5147 = vrot.lane.b32.xlu0 %v4721, 84
    %v5148 = vpop.permute.xlu0 %5147
    %5149 = vrot.lane.b32.xlu0 %v4722, 84
    %v5150 = vpop.permute.xlu0 %5149
    %5151 = vrot.lane.b32.xlu0 %v4723, 84
    %v5152 = vpop.permute.xlu0 %5151
    %5153 = vrot.lane.b32.xlu0 %v4724, 84
    %v5154 = vpop.permute.xlu0 %5153
    %5155 = vrot.lane.b32.xlu0 %v4709, 84
    %v5156 = vpop.permute.xlu0 %5155
    %5173 = vrot.lane.b32.xlu0 %v4786, 96
    %v5174 = vpop.permute.xlu0 %5173
    %5175 = vrot.lane.b32.xlu0 %v4785, 96
    %v5176 = vpop.permute.xlu0 %5175
    %5177 = vrot.lane.b32.xlu0 %v4784, 96
    %v5178 = vpop.permute.xlu0 %5177
    %5179 = vrot.lane.b32.xlu0 %v4783, 96
    %v5180 = vpop.permute.xlu0 %5179
    %5181 = vrot.lane.b32.xlu0 %v4782, 96
    %v5182 = vpop.permute.xlu0 %5181
    %5183 = vrot.lane.b32.xlu0 %v4781, 96
    %v5184 = vpop.permute.xlu0 %5183
    %5185 = vrot.lane.b32.xlu0 %v4780, 96
    %v5186 = vpop.permute.xlu0 %5185
    %5187 = vrot.lane.b32.xlu0 %v4779, 96
    %v5188 = vpop.permute.xlu0 %5187
    %5189 = vrot.lane.b32.xlu0 %v4778, 96
    %v5190 = vpop.permute.xlu0 %5189
    %5191 = vrot.lane.b32.xlu0 %v4777, 96
    %v5192 = vpop.permute.xlu0 %5191
    %5193 = vrot.lane.b32.xlu0 %v4776, 96
    %v5194 = vpop.permute.xlu0 %5193
    %5195 = vrot.lane.b32.xlu0 %v4775, 96
    %v5196 = vpop.permute.xlu0 %5195
    %5197 = vrot.lane.b32.xlu0 %v4774, 96
    %v5198 = vpop.permute.xlu0 %5197
    %5199 = vrot.lane.b32.xlu0 %v4773, 96
    %v5200 = vpop.permute.xlu0 %5199
    %5201 = vrot.lane.b32.xlu0 %v4788, 96
    %v5202 = vpop.permute.xlu0 %5201
    %5203 = vrot.lane.b32.xlu0 %v4787, 96
    %v5204 = vpop.permute.xlu0 %5203
    %v5221 = vsel %vm712, %v4741, %v4806
    %v5222 = vsel %vm712, %v4756, %v4808
    %v5223 = vsel %vm712, %v4755, %v4810
    %v5224 = vsel %vm712, %v4754, %v4812
    %v5225 = vsel %vm712, %v4753, %v4814
    %v5226 = vsel %vm712, %v4752, %v4816
    %v5227 = vsel %vm712, %v4751, %v4818
    %v5228 = vsel %vm712, %v4750, %v4820
    %v5229 = vsel %vm712, %v4749, %v4822
    %v5230 = vsel %vm712, %v4748, %v4824
    %v5231 = vsel %vm712, %v4747, %v4826
    %v5232 = vsel %vm712, %v4746, %v4828
    %v5233 = vsel %vm712, %v4745, %v4830
    %v5234 = vsel %vm712, %v4744, %v4832
    %v5235 = vsel %vm712, %v4743, %v4834
    %v5236 = vsel %vm712, %v4742, %v4836
    %v5237 = vsel %vm762, %v5221, %v4870
    %v5238 = vsel %vm762, %v5222, %v4872
    %v5239 = vsel %vm762, %v5223, %v4874
    %v5240 = vsel %vm762, %v5224, %v4876
    %v5241 = vsel %vm762, %v5225, %v4878
    %v5242 = vsel %vm762, %v5226, %v4880
    %v5243 = vsel %vm762, %v5227, %v4882
    %v5244 = vsel %vm762, %v5228, %v4884
    %v5245 = vsel %vm762, %v5229, %v4886
    %v5246 = vsel %vm762, %v5230, %v4888
    %v5247 = vsel %vm762, %v5231, %v4890
    %v5248 = vsel %vm762, %v5232, %v4892
    %v5249 = vsel %vm762, %v5233, %v4894
    %v5250 = vsel %vm762, %v5234, %v4896
    %v5251 = vsel %vm762, %v5235, %v4898
    %v5252 = vsel %vm762, %v5236, %v4900
    %v5253 = vsel %vm875, %v5237, %v4934
    %v5254 = vsel %vm875, %v5238, %v4936
    %v5255 = vsel %vm875, %v5239, %v4938
    %v5256 = vsel %vm875, %v5240, %v4940
    %v5257 = vsel %vm875, %v5241, %v4942
    %v5258 = vsel %vm875, %v5242, %v4944
    %v5259 = vsel %vm875, %v5243, %v4946
    %v5260 = vsel %vm875, %v5244, %v4948
    %v5261 = vsel %vm875, %v5245, %v4950
    %v5262 = vsel %vm875, %v5246, %v4952
    %v5263 = vsel %vm875, %v5247, %v4954
    %v5264 = vsel %vm875, %v5248, %v4956
    %v5265 = vsel %vm875, %v5249, %v4958
    %v5266 = vsel %vm875, %v5250, %v4960
    %v5267 = vsel %vm875, %v5251, %v4962
    %v5268 = vsel %vm875, %v5252, %v4964
    %v5269 = vsel %vm2610, %v5253, %v4982
    %v5270 = vsel %vm2610, %v5254, %v4984
    %v5271 = vsel %vm2610, %v5255, %v4986
    %v5272 = vsel %vm2610, %v5256, %v4988
    %v5273 = vsel %vm2610, %v5257, %v4990
    %v5274 = vsel %vm2610, %v5258, %v4992
    %v5275 = vsel %vm2610, %v5259, %v4994
    %v5276 = vsel %vm2610, %v5260, %v4996
    %v5277 = vsel %vm2610, %v5261, %v4998
    %v5278 = vsel %vm2610, %v5262, %v5000
    %v5279 = vsel %vm2610, %v5263, %v5002
    %v5280 = vsel %vm2610, %v5264, %v5004
    %v5281 = vsel %vm2610, %v5265, %v5006
    %v5282 = vsel %vm2610, %v5266, %v5008
    %v5283 = vsel %vm2610, %v5267, %v5010
    %v5284 = vsel %vm2610, %v5268, %v5012
    %v5285 = vsel %vm4467, %v5269, %v5030
    %v5286 = vsel %vm4467, %v5270, %v5032
    %v5287 = vsel %vm4467, %v5271, %v5034
    %v5288 = vsel %vm4467, %v5272, %v5036
    %v5289 = vsel %vm4467, %v5273, %v5038
    %v5290 = vsel %vm4467, %v5274, %v5040
    %v5291 = vsel %vm4467, %v5275, %v5042
    %v5292 = vsel %vm4467, %v5276, %v5044
    %v5293 = vsel %vm4467, %v5277, %v5046
    %v5294 = vsel %vm4467, %v5278, %v5048
    %v5295 = vsel %vm4467, %v5279, %v5050
    %v5296 = vsel %vm4467, %v5280, %v5052
    %v5297 = vsel %vm4467, %v5281, %v5054
    %v5298 = vsel %vm4467, %v5282, %v5056
    %v5299 = vsel %vm4467, %v5283, %v5058
    %v5300 = vsel %vm4467, %v5284, %v5060
    %v5301 = vsel %vm2739, %v5285, %v5078
    %v5302 = vsel %vm2739, %v5286, %v5080
    %v5303 = vsel %vm2739, %v5287, %v5082
    %v5304 = vsel %vm2739, %v5288, %v5084
    %v5305 = vsel %vm2739, %v5289, %v5086
    %v5306 = vsel %vm2739, %v5290, %v5088
    %v5307 = vsel %vm2739, %v5291, %v5090
    %v5308 = vsel %vm2739, %v5292, %v5092
    %v5309 = vsel %vm2739, %v5293, %v5094
    %v5310 = vsel %vm2739, %v5294, %v5096
    %v5311 = vsel %vm2739, %v5295, %v5098
    %v5312 = vsel %vm2739, %v5296, %v5100
    %v5313 = vsel %vm2739, %v5297, %v5102
    %v5314 = vsel %vm2739, %v5298, %v5104
    %v5315 = vsel %vm2739, %v5299, %v5106
    %v5316 = vsel %vm2739, %v5300, %v5108
    %v5317 = vsel %vm4500, %v5301, %v5126
    %v5318 = vsel %vm4500, %v5302, %v5128
    %v5319 = vsel %vm4500, %v5303, %v5130
    %v5320 = vsel %vm4500, %v5304, %v5132
    %v5321 = vsel %vm4500, %v5305, %v5134
    %v5322 = vsel %vm4500, %v5306, %v5136
    %v5323 = vsel %vm4500, %v5307, %v5138
    %v5324 = vsel %vm4500, %v5308, %v5140
    %v5325 = vsel %vm4500, %v5309, %v5142
    %v5326 = vsel %vm4500, %v5310, %v5144
    %v5327 = vsel %vm4500, %v5311, %v5146
    %v5328 = vsel %vm4500, %v5312, %v5148
    %v5329 = vsel %vm4500, %v5313, %v5150
    %v5330 = vsel %vm4500, %v5314, %v5152
    %v5331 = vsel %vm4500, %v5315, %v5154
    %v5332 = vsel %vm4500, %v5316, %v5156
    %v5333 = vsel %vm4517, %v5317, %v5174
    %v5334 = vsel %vm4517, %v5318, %v5176
    %v5335 = vsel %vm4517, %v5319, %v5178
    %v5336 = vsel %vm4517, %v5320, %v5180
    %v5337 = vsel %vm4517, %v5321, %v5182
    %v5338 = vsel %vm4517, %v5322, %v5184
    %v5339 = vsel %vm4517, %v5323, %v5186
    %v5340 = vsel %vm4517, %v5324, %v5188
    %v5341 = vsel %vm4517, %v5325, %v5190
    %v5342 = vsel %vm4517, %v5326, %v5192
    %v5343 = vsel %vm4517, %v5327, %v5194
    %v5344 = vsel %vm4517, %v5328, %v5196
    %v5345 = vsel %vm4517, %v5329, %v5198
    %v5346 = vsel %vm4517, %v5330, %v5200
    %v5347 = vsel %vm4517, %v5331, %v5202
    %v5348 = vsel %vm4517, %v5332, %v5204
    %v5349 = vmul.f32 %v5333, %v4534
    %v5350 = vmul.f32 %v5334, %v4535
    %v5351 = vmul.f32 %v5335, %v4536
    %v5352 = vmul.f32 %v5336, %v4537
    %v5353 = vmul.f32 %v5337, %v4538
    %v5354 = vmul.f32 %v5338, %v4539
    %v5355 = vmul.f32 %v5339, %v4540
    %v5356 = vmul.f32 %v5340, %v4541
    %v5357 = vmul.f32 %v5341, %v4542
    %v5358 = vmul.f32 %v5342, %v4543
    %v5359 = vmul.f32 %v5343, %v4544
    %v5360 = vmul.f32 %v5344, %v4545
    %v5361 = vmul.f32 %v5345, %v4546
    %v5362 = vmul.f32 %v5346, %v4547
    %v5363 = vmul.f32 %v5347, %v4548
    %v5364 = vmul.f32 %v5348, %v4549
    %v5365 = vpack.c.bf16 %v5350, %v5349
    %v5366 = vpack.c.bf16 %v5352, %v5351
    %v5367 = vpack.c.bf16 %v5354, %v5353
    %v5368 = vpack.c.bf16 %v5356, %v5355
    %v5369 = vpack.c.bf16 %v5358, %v5357
    %v5370 = vpack.c.bf16 %v5360, %v5359
    %v5371 = vpack.c.bf16 %v5362, %v5361
    %v5372 = vpack.c.bf16 %v5364, %v5363
    %v5373 = vld [vmem:[%s14] sm:$0xf]
    %v5374 = vld [vmem:[%s14 + $0x4] sm:$0xf]
    %v5375 = vld [vmem:[%s14 + $0x8] sm:$0xf]
    %v5376 = vld [vmem:[%s14 + $0xc] sm:$0xf]
    %v5377 = vld [vmem:[%s14 + $0x10] sm:$0xf]
    %v5378 = vld [vmem:[%s14 + $0x14] sm:$0xf]
    %v5379 = vld [vmem:[%s14 + $0x18] sm:$0xf]
    %v5380 = vld [vmem:[%s14 + $0x1c] sm:$0xf]
    %v5381 = vld [vmem:[%s14 + $0x20] sm:$0xf]
    %v5382 = vld [vmem:[%s14 + $0x24] sm:$0xf]
    %v5383 = vld [vmem:[%s14 + $0x28] sm:$0xf]
    %v5384 = vld [vmem:[%s14 + $0x2c] sm:$0xf]
    %v5385 = vld [vmem:[%s14 + $0x30] sm:$0xf]
    %v5386 = vld [vmem:[%s14 + $0x34] sm:$0x3]
    %v5387 = vld [vmem:[%s1 + $0x8] sm:$0x1]
    %v5388 = vperm.slane %v5387, 0
    %v5403 = vunpack.c.l.b16 %v5373
    %v5404 = vunpack.c.l.b16 %v5374
    %v5405 = vunpack.c.l.b16 %v5375
    %v5406 = vunpack.c.l.b16 %v5376
    %v5407 = vunpack.c.l.b16 %v5377
    %v5408 = vunpack.c.l.b16 %v5378
    %v5409 = vunpack.c.l.b16 %v5379
    %v5410 = vunpack.c.l.b16 %v5380
    %v5411 = vunpack.c.l.b16 %v5381
    %v5412 = vunpack.c.l.b16 %v5382
    %v5413 = vunpack.c.l.b16 %v5383
    %v5414 = vunpack.c.l.b16 %v5384
    %v5415 = vunpack.c.l.b16 %v5385
    %v5416 = vunpack.c.l.b16 %v5386
    %v5417 = vpack.c.b16 %v5404, %v5403
    %v5418 = vpack.c.b16 %v5406, %v5405
    %v5419 = vpack.c.b16 %v5408, %v5407
    %v5420 = vpack.c.b16 %v5410, %v5409
    %v5421 = vpack.c.b16 %v5412, %v5411
    %v5422 = vpack.c.b16 %v5414, %v5413
    %v5423 = vpack.c.b16 %v5416, %v5415
    %v5431 = vsel %vm4631, %v5365, 0
    %v5434 = vsel %vm4631, %v5366, 0
    %v5437 = vsel %vm4631, %v5367, 0
    %v5440 = vsel %vm4631, %v5368, 0
    %v5443 = vsel %vm4631, %v5369, 0
    %v5446 = vsel %vm4631, %v5370, 0
    %v5449 = vsel %vm4631, %v5371, 0
    %v5452 = vsel %vm4631, %v5372, 0
    %v5455 = vsel %vm4656, %v5423, 0
    %5457 = vmatpush.bf16.msra.mxu0 0
    %5458 = vmatpush.bf16.msra.mxu0 %v5455
    %5459 = vmatpush.bf16.msra.mxu0 %v5422
    %5460 = vmatpush.bf16.msra.mxu0 %v5421
    %5461 = vmatpush.bf16.msra.mxu0 %v5420
    %5462 = vmatpush.bf16.msra.mxu0 %v5419
    %5463 = vmatpush.bf16.msra.mxu0 %v5418
    %5464 = vmatpush.bf16.msra.mxu0 %v5417
    %5465 = vmatmul.bf16.gmra.mxu0 %v5431
    %v5466 = vpop.f32.mrf.mxu0
    %v5467 = vadd.f32 %v5388, %v5466
    %v5468 = vpop.f32.mrf.mxu0
    %v5469 = vadd.f32 %v5388, %v5468
    %5470 = vmatmul.bf16.gmra.mxu0 %v5434
    %v5471 = vpop.f32.mrf.mxu0
    %v5472 = vadd.f32 %v5388, %v5471
    %v5473 = vpop.f32.mrf.mxu0
    %v5474 = vadd.f32 %v5388, %v5473
    %5475 = vmatmul.bf16.gmra.mxu0 %v5437
    %v5476 = vpop.f32.mrf.mxu0
    %v5477 = vadd.f32 %v5388, %v5476
    %v5478 = vpop.f32.mrf.mxu0
    %v5479 = vadd.f32 %v5388, %v5478
    %5480 = vmatmul.bf16.gmra.mxu0 %v5440
    %v5481 = vpop.f32.mrf.mxu0
    %v5482 = vadd.f32 %v5388, %v5481
    %v5483 = vpop.f32.mrf.mxu0
    %v5484 = vadd.f32 %v5388, %v5483
    %5485 = vmatmul.bf16.gmra.mxu0 %v5443
    %v5486 = vpop.f32.mrf.mxu0
    %v5487 = vadd.f32 %v5388, %v5486
    %v5488 = vpop.f32.mrf.mxu0
    %v5489 = vadd.f32 %v5388, %v5488
    %5490 = vmatmul.bf16.gmra.mxu0 %v5446
    %v5491 = vpop.f32.mrf.mxu0
    %v5492 = vadd.f32 %v5388, %v5491
    %v5493 = vpop.f32.mrf.mxu0
    %v5494 = vadd.f32 %v5388, %v5493
    %5495 = vmatmul.bf16.gmra.mxu0 %v5449
    %v5496 = vpop.f32.mrf.mxu0
    %v5497 = vadd.f32 %v5388, %v5496
    %v5498 = vpop.f32.mrf.mxu0
    %v5499 = vadd.f32 %v5388, %v5498
    %5500 = vmatmul.bf16.gmra.mxu0 %v5452
    %v5501 = vpop.f32.mrf.mxu0
    %v5502 = vadd.f32 %v5388, %v5501
    %v5503 = vpop.f32.mrf.mxu0
    %v5504 = vadd.f32 %v5388, %v5503
    %5505 = vdwg.mxu0
    %v5506 = vadd.f32 %v5467, %v3891
    %v5507 = vadd.f32 %v5469, %v3892
    %v5508 = vadd.f32 %v5472, %v3893
    %v5509 = vadd.f32 %v5474, %v3894
    %v5510 = vadd.f32 %v5477, %v3895
    %v5511 = vadd.f32 %v5479, %v3896
    %v5512 = vadd.f32 %v5482, %v3897
    %v5513 = vadd.f32 %v5484, %v3898
    %v5514 = vadd.f32 %v5487, %v3899
    %v5515 = vadd.f32 %v5489, %v3900
    %v5516 = vadd.f32 %v5492, %v3901
    %v5517 = vadd.f32 %v5494, %v3902
    %v5518 = vadd.f32 %v5497, %v3903
    %v5519 = vadd.f32 %v5499, %v3904
    %v5520 = vadd.f32 %v5502, %v3905
    %v5521 = vadd.f32 %v5504, %v3906
    %v5522 = vsel %vm712, %v5506, 0.0
    %v5523 = vsel %vm712, %v5507, 0.0
    %v5524 = vadd.f32 %v5522, %v5523
    %v5525 = vsel %vm712, %v5508, 0.0
    %v5526 = vadd.f32 %v5524, %v5525
    %v5527 = vsel %vm712, %v5509, 0.0
    %v5528 = vadd.f32 %v5526, %v5527
    %v5529 = vsel %vm712, %v5510, 0.0
    %v5530 = vadd.f32 %v5528, %v5529
    %v5531 = vsel %vm712, %v5511, 0.0
    %v5532 = vadd.f32 %v5530, %v5531
    %v5533 = vsel %vm712, %v5512, 0.0
    %v5534 = vadd.f32 %v5532, %v5533
    %v5535 = vsel %vm712, %v5513, 0.0
    %v5536 = vadd.f32 %v5534, %v5535
    %v5537 = vrot.slane %v5536, 4
    %v5538 = vadd.f32 %v5536, %v5537
    %v5539 = vrot.slane %v5538, 2
    %v5540 = vadd.f32 %v5538, %v5539
    %v5541 = vrot.slane %v5540, 1
    %v5542 = vadd.f32 %v5540, %v5541
    %v5543 = vsel %vm712, %v5514, 0.0
    %v5544 = vsel %vm712, %v5515, 0.0
    %v5545 = vadd.f32 %v5543, %v5544
    %v5546 = vsel %vm712, %v5516, 0.0
    %v5547 = vadd.f32 %v5545, %v5546
    %v5548 = vsel %vm712, %v5517, 0.0
    %v5549 = vadd.f32 %v5547, %v5548
    %v5550 = vsel %vm712, %v5518, 0.0
    %v5551 = vadd.f32 %v5549, %v5550
    %v5552 = vsel %vm712, %v5519, 0.0
    %v5553 = vadd.f32 %v5551, %v5552
    %v5554 = vsel %vm712, %v5520, 0.0
    %v5555 = vadd.f32 %v5553, %v5554
    %v5556 = vsel %vm712, %v5521, 0.0
    %v5557 = vadd.f32 %v5555, %v5556
    %v5558 = vrot.slane %v5557, 4
    %v5559 = vadd.f32 %v5557, %v5558
    %v5560 = vrot.slane %v5559, 2
    %v5561 = vadd.f32 %v5559, %v5560
    %v5562 = vrot.slane %v5561, 1
    %v5563 = vadd.f32 %v5561, %v5562
    %v5564 = vmul.f32 %v5542, 0.015625
    %v5565 = vmul.f32 %v5563, 0.015625
    %v5566 = vsub.f32 %v5506, %v5564
    %v5567 = vsub.f32 %v5507, %v5564
    %v5568 = vsub.f32 %v5508, %v5564
    %v5569 = vsub.f32 %v5509, %v5564
    %v5570 = vsub.f32 %v5510, %v5564
    %v5571 = vsub.f32 %v5511, %v5564
    %v5572 = vsub.f32 %v5512, %v5564
    %v5573 = vsub.f32 %v5513, %v5564
    %v5574 = vsub.f32 %v5514, %v5565
    %v5575 = vsub.f32 %v5515, %v5565
    %v5576 = vsub.f32 %v5516, %v5565
    %v5577 = vsub.f32 %v5517, %v5565
    %v5578 = vsub.f32 %v5518, %v5565
    %v5579 = vsub.f32 %v5519, %v5565
    %v5580 = vsub.f32 %v5520, %v5565
    %v5581 = vsub.f32 %v5521, %v5565
    %v5582 = vmul.f32 %v5566, %v5566
    %v5583 = vmul.f32 %v5567, %v5567
    %v5584 = vmul.f32 %v5568, %v5568
    %v5585 = vmul.f32 %v5569, %v5569
    %v5586 = vmul.f32 %v5570, %v5570
    %v5587 = vmul.f32 %v5571, %v5571
    %v5588 = vmul.f32 %v5572, %v5572
    %v5589 = vmul.f32 %v5573, %v5573
    %v5590 = vmul.f32 %v5574, %v5574
    %v5591 = vmul.f32 %v5575, %v5575
    %v5592 = vmul.f32 %v5576, %v5576
    %v5593 = vmul.f32 %v5577, %v5577
    %v5594 = vmul.f32 %v5578, %v5578
    %v5595 = vmul.f32 %v5579, %v5579
    %v5596 = vmul.f32 %v5580, %v5580
    %v5597 = vmul.f32 %v5581, %v5581
    %v5598 = vsel %vm712, %v5582, 0.0
    %v5599 = vsel %vm712, %v5583, 0.0
    %v5600 = vadd.f32 %v5598, %v5599
    %v5601 = vsel %vm712, %v5584, 0.0
    %v5602 = vadd.f32 %v5600, %v5601
    %v5603 = vsel %vm712, %v5585, 0.0
    %v5604 = vadd.f32 %v5602, %v5603
    %v5605 = vsel %vm712, %v5586, 0.0
    %v5606 = vadd.f32 %v5604, %v5605
    %v5607 = vsel %vm712, %v5587, 0.0
    %v5608 = vadd.f32 %v5606, %v5607
    %v5609 = vsel %vm712, %v5588, 0.0
    %v5610 = vadd.f32 %v5608, %v5609
    %v5611 = vsel %vm712, %v5589, 0.0
    %v5612 = vadd.f32 %v5610, %v5611
    %v5613 = vrot.slane %v5612, 4
    %v5614 = vadd.f32 %v5612, %v5613
    %v5615 = vrot.slane %v5614, 2
    %v5616 = vadd.f32 %v5614, %v5615
    %v5617 = vrot.slane %v5616, 1
    %v5618 = vadd.f32 %v5616, %v5617
    %v5619 = vsel %vm712, %v5590, 0.0
    %v5620 = vsel %vm712, %v5591, 0.0
    %v5621 = vadd.f32 %v5619, %v5620
    %v5622 = vsel %vm712, %v5592, 0.0
    %v5623 = vadd.f32 %v5621, %v5622
    %v5624 = vsel %vm712, %v5593, 0.0
    %v5625 = vadd.f32 %v5623, %v5624
    %v5626 = vsel %vm712, %v5594, 0.0
    %v5627 = vadd.f32 %v5625, %v5626
    %v5628 = vsel %vm712, %v5595, 0.0
    %v5629 = vadd.f32 %v5627, %v5628
    %v5630 = vsel %vm712, %v5596, 0.0
    %v5631 = vadd.f32 %v5629, %v5630
    %v5632 = vsel %vm712, %v5597, 0.0
    %v5633 = vadd.f32 %v5631, %v5632
    %v5634 = vrot.slane %v5633, 4
    %v5635 = vadd.f32 %v5633, %v5634
    %v5636 = vrot.slane %v5635, 2
    %v5637 = vadd.f32 %v5635, %v5636
    %v5638 = vrot.slane %v5637, 1
    %v5639 = vadd.f32 %v5637, %v5638
    %v5640 = vmul.f32 %v5618, 0.015625
    %v5641 = vmul.f32 %v5639, 0.015625
    %v5642 = vrsqrt.pop %v5640
    %v5643 = vmul.f32 %v5642, %v5640
    %v5644 = vmul.f32 %v5643, %v5642
    %v5645 = vmul.f32 0.5, %v5644
    %v5646 = vsub.f32 1.5, %v5645
    %v5647 = vmul.f32 %v5642, %v5646
    %v5648 = vmul.f32 %v5640, %v5647
    %vm5649 = vcmp.eq.f32.partialorder %v5640, inf
    %v5650 = vsel %vm5649, %v5640, %v5648
    %vm5651 = vcmp.eq.f32.partialorder %v5640, 0.0
    %v5652 = vand.u32 %v5640, 2147483648
    %v5653 = vsel %vm5651, %v5652, %v5650
    %v5654 = vrsqrt.pop %v5641
    %v5655 = vmul.f32 %v5654, %v5641
    %v5656 = vmul.f32 %v5655, %v5654
    %v5657 = vmul.f32 0.5, %v5656
    %v5658 = vsub.f32 1.5, %v5657
    %v5659 = vmul.f32 %v5654, %v5658
    %v5660 = vmul.f32 %v5641, %v5659
    %vm5661 = vcmp.eq.f32.partialorder %v5641, inf
    %v5662 = vsel %vm5661, %v5641, %v5660
    %vm5663 = vcmp.eq.f32.partialorder %v5641, 0.0
    %v5664 = vand.u32 %v5641, 2147483648
    %v5665 = vsel %vm5663, %v5664, %v5662
    %v5666 = vadd.f32 %v5653, %v5564
    %v5667 = vadd.f32 %v5665, %v5565
    %v5668 = vld [vmem:[%s15] sm:$0xff]
    %v5669 = vld [vmem:[%s15 + $0x8] sm:$0xf]
    %v5670 = vld [vmem:[%s1 + $0x9] sm:$0x1]
    %v5671 = vperm.slane %v5670, 0
    %v5674 = vsel %vm1882, %v5667, %v5666
    %v5675 = vsel %vm712, %v5674, 0
    %v5678 = vsel %vm1886, %v5669, 0
    %5680 = vmatpush.msra.mxu0 0.0
    %5681 = vmatpush.msra.mxu0 0.0
    %5682 = vmatpush.msra.mxu0 0.0
    %5683 = vmatpush.msra.mxu0 0.0
    %5684 = vmatpush.msra.mxu0 0.0
    %5685 = vmatpush.msra.mxu0 0.0
    %5686 = vmatpush.msra.mxu0 0.0
    %5687 = vmatpush.msra.mxu0 0.0
    %5688 = vmatpush.msra.mxu0 0.0
    %5689 = vmatpush.msra.mxu0 0.0
    %5690 = vmatpush.msra.mxu0 0.0
    %5691 = vmatpush.msra.mxu0 0.0
    %5692 = vmatpush.msra.mxu0 0.0
    %5693 = vmatpush.msra.mxu0 0.0
    %5694 = vmatpush.msra.mxu0 %v5678
    %5695 = vmatpush.msra.mxu0 %v5668
    %5696 = vmatmul.f32.gmra.mxu0 %v5675
    %v5697 = vpop.f32.mrf.mxu0
    %v5698 = vadd.f32 %v5671, %v5697
    %5699 = vdwg.mxu0
    %v5700 = vsub.f32 0.0, %v5698
    %v5701 = vmul.f32 %v5700, 1.442695
    %v5702 = vpow.pop %v5701
    %v5703 = vadd.f32 %v5702, 1.0
    %v5704 = vrcp.pop %v5703
    %v5706 = vrot.slane %v5704, 1
    %v5707 = vperm.slane %v5704, 0
    %v5708 = vperm.slane %v5706, 0
    %v5711 = vmul.f32 %v5506, %v5707
    %v5712 = vmul.f32 %v5507, %v5707
    %v5713 = vmul.f32 %v5508, %v5707
    %v5714 = vmul.f32 %v5509, %v5707
    %v5715 = vmul.f32 %v5510, %v5707
    %v5716 = vmul.f32 %v5511, %v5707
    %v5717 = vmul.f32 %v5512, %v5707
    %v5718 = vmul.f32 %v5513, %v5707
    %v5719 = vmul.f32 %v5514, %v5708
    %v5720 = vmul.f32 %v5515, %v5708
    %v5721 = vmul.f32 %v5516, %v5708
    %v5722 = vmul.f32 %v5517, %v5708
    %v5723 = vmul.f32 %v5518, %v5708
    %v5724 = vmul.f32 %v5519, %v5708
    %v5725 = vmul.f32 %v5520, %v5708
    %v5726 = vmul.f32 %v5521, %v5708
    %v5727 = vadd.f32 %v5711, %v5506
    %v5728 = vadd.f32 %v5712, %v5507
    %v5729 = vadd.f32 %v5713, %v5508
    %v5730 = vadd.f32 %v5714, %v5509
    %v5731 = vadd.f32 %v5715, %v5510
    %v5732 = vadd.f32 %v5716, %v5511
    %v5733 = vadd.f32 %v5717, %v5512
    %v5734 = vadd.f32 %v5718, %v5513
    %v5735 = vadd.f32 %v5719, %v5514
    %v5736 = vadd.f32 %v5720, %v5515
    %v5737 = vadd.f32 %v5721, %v5516
    %v5738 = vadd.f32 %v5722, %v5517
    %v5739 = vadd.f32 %v5723, %v5518
    %v5740 = vadd.f32 %v5724, %v5519
    %v5741 = vadd.f32 %v5725, %v5520
    %v5742 = vadd.f32 %v5726, %v5521
    %5759 = vrot.lane.b32.xlu0 %v5506, 4
    %v5760 = vpop.permute.xlu0 %5759
    %5761 = vrot.lane.b32.xlu0 %v5507, 4
    %v5762 = vpop.permute.xlu0 %5761
    %5763 = vrot.lane.b32.xlu0 %v5508, 4
    %v5764 = vpop.permute.xlu0 %5763
    %5765 = vrot.lane.b32.xlu0 %v5509, 4
    %v5766 = vpop.permute.xlu0 %5765
    %5767 = vrot.lane.b32.xlu0 %v5510, 4
    %v5768 = vpop.permute.xlu0 %5767
    %5769 = vrot.lane.b32.xlu0 %v5511, 4
    %v5770 = vpop.permute.xlu0 %5769
    %5771 = vrot.lane.b32.xlu0 %v5512, 4
    %v5772 = vpop.permute.xlu0 %5771
    %5773 = vrot.lane.b32.xlu0 %v5513, 4
    %v5774 = vpop.permute.xlu0 %5773
    %5775 = vrot.lane.b32.xlu0 %v5514, 4
    %v5776 = vpop.permute.xlu0 %5775
    %5777 = vrot.lane.b32.xlu0 %v5515, 4
    %v5778 = vpop.permute.xlu0 %5777
    %5779 = vrot.lane.b32.xlu0 %v5516, 4
    %v5780 = vpop.permute.xlu0 %5779
    %5781 = vrot.lane.b32.xlu0 %v5517, 4
    %v5782 = vpop.permute.xlu0 %5781
    %5783 = vrot.lane.b32.xlu0 %v5518, 4
    %v5784 = vpop.permute.xlu0 %5783
    %5785 = vrot.lane.b32.xlu0 %v5519, 4
    %v5786 = vpop.permute.xlu0 %5785
    %5787 = vrot.lane.b32.xlu0 %v5520, 4
    %v5788 = vpop.permute.xlu0 %5787
    %5789 = vrot.lane.b32.xlu0 %v5521, 4
    %v5790 = vpop.permute.xlu0 %5789
    %v5807 = vsel %vm678, %v139, %v5760
    %v5808 = vsel %vm678, %v141, %v5762
    %v5809 = vsel %vm678, %v144, %v5764
    %v5810 = vsel %vm678, %v146, %v5766
    %v5811 = vsel %vm678, %v149, %v5768
    %v5812 = vsel %vm678, %v151, %v5770
    %v5813 = vsel %vm678, %v154, %v5772
    %v5814 = vsel %vm678, %v156, %v5774
    %v5815 = vsel %vm678, %v159, %v5776
    %v5816 = vsel %vm678, %v161, %v5778
    %v5817 = vsel %vm678, %v164, %v5780
    %v5818 = vsel %vm678, %v166, %v5782
    %v5819 = vsel %vm678, %v169, %v5784
    %v5820 = vsel %vm678, %v171, %v5786
    %v5821 = vsel %vm678, %v174, %v5788
    %v5822 = vsel %vm678, %v176, %v5790
    %v5823 = vrot.slane %v5807, 7
    %v5824 = vrot.slane %v5808, 7
    %v5825 = vrot.slane %v5809, 7
    %v5826 = vrot.slane %v5810, 7
    %v5827 = vrot.slane %v5811, 7
    %v5828 = vrot.slane %v5812, 7
    %v5829 = vrot.slane %v5813, 7
    %v5830 = vrot.slane %v5814, 7
    %v5831 = vrot.slane %v5815, 7
    %v5832 = vrot.slane %v5816, 7
    %v5833 = vrot.slane %v5817, 7
    %v5834 = vrot.slane %v5818, 7
    %v5835 = vrot.slane %v5819, 7
    %v5836 = vrot.slane %v5820, 7
    %v5837 = vrot.slane %v5821, 7
    %v5838 = vrot.slane %v5822, 7
    %v5839 = vsel %vm196, %v5837, %v5838
    %v5840 = vsel %vm196, %v5836, %v5837
    %v5841 = vsel %vm196, %v5835, %v5836
    %v5842 = vsel %vm196, %v5834, %v5835
    %v5843 = vsel %vm196, %v5833, %v5834
    %v5844 = vsel %vm196, %v5832, %v5833
    %v5845 = vsel %vm196, %v5831, %v5832
    %v5846 = vsel %vm196, %v5830, %v5831
    %v5847 = vsel %vm196, %v5829, %v5830
    %v5848 = vsel %vm196, %v5828, %v5829
    %v5849 = vsel %vm196, %v5827, %v5828
    %v5850 = vsel %vm196, %v5826, %v5827
    %v5851 = vsel %vm196, %v5825, %v5826
    %v5852 = vsel %vm196, %v5824, %v5825
    %v5853 = vsel %vm196, %v5823, %v5824
    %v5854 = vsel %vm196, %v5838, %v5823
    %v5855 = vrot.slane %v5807, 1
    %v5856 = vrot.slane %v5808, 1
    %v5857 = vrot.slane %v5809, 1
    %v5858 = vrot.slane %v5810, 1
    %v5859 = vrot.slane %v5811, 1
    %v5860 = vrot.slane %v5812, 1
    %v5861 = vrot.slane %v5813, 1
    %v5862 = vrot.slane %v5814, 1
    %v5863 = vrot.slane %v5815, 1
    %v5864 = vrot.slane %v5816, 1
    %v5865 = vrot.slane %v5817, 1
    %v5866 = vrot.slane %v5818, 1
    %v5867 = vrot.slane %v5819, 1
    %v5868 = vrot.slane %v5820, 1
    %v5869 = vrot.slane %v5821, 1
    %v5870 = vrot.slane %v5822, 1
    %v5871 = vsel %vm229, %v5869, %v5870
    %v5872 = vsel %vm229, %v5868, %v5869
    %v5873 = vsel %vm229, %v5867, %v5868
    %v5874 = vsel %vm229, %v5866, %v5867
    %v5875 = vsel %vm229, %v5865, %v5866
    %v5876 = vsel %vm229, %v5864, %v5865
    %v5877 = vsel %vm229, %v5863, %v5864
    %v5878 = vsel %vm229, %v5862, %v5863
    %v5879 = vsel %vm229, %v5861, %v5862
    %v5880 = vsel %vm229, %v5860, %v5861
    %v5881 = vsel %vm229, %v5859, %v5860
    %v5882 = vsel %vm229, %v5858, %v5859
    %v5883 = vsel %vm229, %v5857, %v5858
    %v5884 = vsel %vm229, %v5856, %v5857
    %v5885 = vsel %vm229, %v5855, %v5856
    %v5886 = vsel %vm229, %v5870, %v5855
    %5903 = vrot.lane.b32.xlu0 %v5822, 16
    %v5904 = vpop.permute.xlu0 %5903
    %5905 = vrot.lane.b32.xlu0 %v5807, 16
    %v5906 = vpop.permute.xlu0 %5905
    %5907 = vrot.lane.b32.xlu0 %v5808, 16
    %v5908 = vpop.permute.xlu0 %5907
    %5909 = vrot.lane.b32.xlu0 %v5809, 16
    %v5910 = vpop.permute.xlu0 %5909
    %5911 = vrot.lane.b32.xlu0 %v5810, 16
    %v5912 = vpop.permute.xlu0 %5911
    %5913 = vrot.lane.b32.xlu0 %v5811, 16
    %v5914 = vpop.permute.xlu0 %5913
    %5915 = vrot.lane.b32.xlu0 %v5812, 16
    %v5916 = vpop.permute.xlu0 %5915
    %5917 = vrot.lane.b32.xlu0 %v5813, 16
    %v5918 = vpop.permute.xlu0 %5917
    %5919 = vrot.lane.b32.xlu0 %v5814, 16
    %v5920 = vpop.permute.xlu0 %5919
    %5921 = vrot.lane.b32.xlu0 %v5815, 16
    %v5922 = vpop.permute.xlu0 %5921
    %5923 = vrot.lane.b32.xlu0 %v5816, 16
    %v5924 = vpop.permute.xlu0 %5923
    %5925 = vrot.lane.b32.xlu0 %v5817, 16
    %v5926 = vpop.permute.xlu0 %5925
    %5927 = vrot.lane.b32.xlu0 %v5818, 16
    %v5928 = vpop.permute.xlu0 %5927
    %5929 = vrot.lane.b32.xlu0 %v5819, 16
    %v5930 = vpop.permute.xlu0 %5929
    %5931 = vrot.lane.b32.xlu0 %v5820, 16
    %v5932 = vpop.permute.xlu0 %5931
    %5933 = vrot.lane.b32.xlu0 %v5821, 16
    %v5934 = vpop.permute.xlu0 %5933
    %5967 = vrot.lane.b32.xlu0 %v5886, 32
    %v5968 = vpop.permute.xlu0 %5967
    %5969 = vrot.lane.b32.xlu0 %v5885, 32
    %v5970 = vpop.permute.xlu0 %5969
    %5971 = vrot.lane.b32.xlu0 %v5884, 32
    %v5972 = vpop.permute.xlu0 %5971
    %5973 = vrot.lane.b32.xlu0 %v5883, 32
    %v5974 = vpop.permute.xlu0 %5973
    %5975 = vrot.lane.b32.xlu0 %v5882, 32
    %v5976 = vpop.permute.xlu0 %5975
    %5977 = vrot.lane.b32.xlu0 %v5881, 32
    %v5978 = vpop.permute.xlu0 %5977
    %5979 = vrot.lane.b32.xlu0 %v5880, 32
    %v5980 = vpop.permute.xlu0 %5979
    %5981 = vrot.lane.b32.xlu0 %v5879, 32
    %v5982 = vpop.permute.xlu0 %5981
    %5983 = vrot.lane.b32.xlu0 %v5878, 32
    %v5984 = vpop.permute.xlu0 %5983
    %5985 = vrot.lane.b32.xlu0 %v5877, 32
    %v5986 = vpop.permute.xlu0 %5985
    %5987 = vrot.lane.b32.xlu0 %v5876, 32
    %v5988 = vpop.permute.xlu0 %5987
    %5989 = vrot.lane.b32.xlu0 %v5875, 32
    %v5990 = vpop.permute.xlu0 %5989
    %5991 = vrot.lane.b32.xlu0 %v5874, 32
    %v5992 = vpop.permute.xlu0 %5991
    %5993 = vrot.lane.b32.xlu0 %v5873, 32
    %v5994 = vpop.permute.xlu0 %5993
    %5995 = vrot.lane.b32.xlu0 %v5872, 32
    %v5996 = vpop.permute.xlu0 %5995
    %5997 = vrot.lane.b32.xlu0 %v5871, 32
    %v5998 = vpop.permute.xlu0 %5997
    %6031 = vrot.lane.b32.xlu0 %v5854, 48
    %v6032 = vpop.permute.xlu0 %6031
    %6033 = vrot.lane.b32.xlu0 %v5853, 48
    %v6034 = vpop.permute.xlu0 %6033
    %6035 = vrot.lane.b32.xlu0 %v5852, 48
    %v6036 = vpop.permute.xlu0 %6035
    %6037 = vrot.lane.b32.xlu0 %v5851, 48
    %v6038 = vpop.permute.xlu0 %6037
    %6039 = vrot.lane.b32.xlu0 %v5850, 48
    %v6040 = vpop.permute.xlu0 %6039
    %6041 = vrot.lane.b32.xlu0 %v5849, 48
    %v6042 = vpop.permute.xlu0 %6041
    %6043 = vrot.lane.b32.xlu0 %v5848, 48
    %v6044 = vpop.permute.xlu0 %6043
    %6045 = vrot.lane.b32.xlu0 %v5847, 48
    %v6046 = vpop.permute.xlu0 %6045
    %6047 = vrot.lane.b32.xlu0 %v5846, 48
    %v6048 = vpop.permute.xlu0 %6047
    %6049 = vrot.lane.b32.xlu0 %v5845, 48
    %v6050 = vpop.permute.xlu0 %6049
    %6051 = vrot.lane.b32.xlu0 %v5844, 48
    %v6052 = vpop.permute.xlu0 %6051
    %6053 = vrot.lane.b32.xlu0 %v5843, 48
    %v6054 = vpop.permute.xlu0 %6053
    %6055 = vrot.lane.b32.xlu0 %v5842, 48
    %v6056 = vpop.permute.xlu0 %6055
    %6057 = vrot.lane.b32.xlu0 %v5841, 48
    %v6058 = vpop.permute.xlu0 %6057
    %6059 = vrot.lane.b32.xlu0 %v5840, 48
    %v6060 = vpop.permute.xlu0 %6059
    %6061 = vrot.lane.b32.xlu0 %v5839, 48
    %v6062 = vpop.permute.xlu0 %6061
    %6079 = vrot.lane.b32.xlu0 %v5807, 64
    %v6080 = vpop.permute.xlu0 %6079
    %6081 = vrot.lane.b32.xlu0 %v5808, 64
    %v6082 = vpop.permute.xlu0 %6081
    %6083 = vrot.lane.b32.xlu0 %v5809, 64
    %v6084 = vpop.permute.xlu0 %6083
    %6085 = vrot.lane.b32.xlu0 %v5810, 64
    %v6086 = vpop.permute.xlu0 %6085
    %6087 = vrot.lane.b32.xlu0 %v5811, 64
    %v6088 = vpop.permute.xlu0 %6087
    %6089 = vrot.lane.b32.xlu0 %v5812, 64
    %v6090 = vpop.permute.xlu0 %6089
    %6091 = vrot.lane.b32.xlu0 %v5813, 64
    %v6092 = vpop.permute.xlu0 %6091
    %6093 = vrot.lane.b32.xlu0 %v5814, 64
    %v6094 = vpop.permute.xlu0 %6093
    %6095 = vrot.lane.b32.xlu0 %v5815, 64
    %v6096 = vpop.permute.xlu0 %6095
    %6097 = vrot.lane.b32.xlu0 %v5816, 64
    %v6098 = vpop.permute.xlu0 %6097
    %6099 = vrot.lane.b32.xlu0 %v5817, 64
    %v6100 = vpop.permute.xlu0 %6099
    %6101 = vrot.lane.b32.xlu0 %v5818, 64
    %v6102 = vpop.permute.xlu0 %6101
    %6103 = vrot.lane.b32.xlu0 %v5819, 64
    %v6104 = vpop.permute.xlu0 %6103
    %6105 = vrot.lane.b32.xlu0 %v5820, 64
    %v6106 = vpop.permute.xlu0 %6105
    %6107 = vrot.lane.b32.xlu0 %v5821, 64
    %v6108 = vpop.permute.xlu0 %6107
    %6109 = vrot.lane.b32.xlu0 %v5822, 64
    %v6110 = vpop.permute.xlu0 %6109
    %6127 = vrot.lane.b32.xlu0 %v5885, 80
    %v6128 = vpop.permute.xlu0 %6127
    %6129 = vrot.lane.b32.xlu0 %v5884, 80
    %v6130 = vpop.permute.xlu0 %6129
    %6131 = vrot.lane.b32.xlu0 %v5883, 80
    %v6132 = vpop.permute.xlu0 %6131
    %6133 = vrot.lane.b32.xlu0 %v5882, 80
    %v6134 = vpop.permute.xlu0 %6133
    %6135 = vrot.lane.b32.xlu0 %v5881, 80
    %v6136 = vpop.permute.xlu0 %6135
    %6137 = vrot.lane.b32.xlu0 %v5880, 80
    %v6138 = vpop.permute.xlu0 %6137
    %6139 = vrot.lane.b32.xlu0 %v5879, 80
    %v6140 = vpop.permute.xlu0 %6139
    %6141 = vrot.lane.b32.xlu0 %v5878, 80
    %v6142 = vpop.permute.xlu0 %6141
    %6143 = vrot.lane.b32.xlu0 %v5877, 80
    %v6144 = vpop.permute.xlu0 %6143
    %6145 = vrot.lane.b32.xlu0 %v5876, 80
    %v6146 = vpop.permute.xlu0 %6145
    %6147 = vrot.lane.b32.xlu0 %v5875, 80
    %v6148 = vpop.permute.xlu0 %6147
    %6149 = vrot.lane.b32.xlu0 %v5874, 80
    %v6150 = vpop.permute.xlu0 %6149
    %6151 = vrot.lane.b32.xlu0 %v5873, 80
    %v6152 = vpop.permute.xlu0 %6151
    %6153 = vrot.lane.b32.xlu0 %v5872, 80
    %v6154 = vpop.permute.xlu0 %6153
    %6155 = vrot.lane.b32.xlu0 %v5871, 80
    %v6156 = vpop.permute.xlu0 %6155
    %6157 = vrot.lane.b32.xlu0 %v5886, 80
    %v6158 = vpop.permute.xlu0 %6157
    %6175 = vrot.lane.b32.xlu0 %v5853, 96
    %v6176 = vpop.permute.xlu0 %6175
    %6177 = vrot.lane.b32.xlu0 %v5852, 96
    %v6178 = vpop.permute.xlu0 %6177
    %6179 = vrot.lane.b32.xlu0 %v5851, 96
    %v6180 = vpop.permute.xlu0 %6179
    %6181 = vrot.lane.b32.xlu0 %v5850, 96
    %v6182 = vpop.permute.xlu0 %6181
    %6183 = vrot.lane.b32.xlu0 %v5849, 96
    %v6184 = vpop.permute.xlu0 %6183
    %6185 = vrot.lane.b32.xlu0 %v5848, 96
    %v6186 = vpop.permute.xlu0 %6185
    %6187 = vrot.lane.b32.xlu0 %v5847, 96
    %v6188 = vpop.permute.xlu0 %6187
    %6189 = vrot.lane.b32.xlu0 %v5846, 96
    %v6190 = vpop.permute.xlu0 %6189
    %6191 = vrot.lane.b32.xlu0 %v5845, 96
    %v6192 = vpop.permute.xlu0 %6191
    %6193 = vrot.lane.b32.xlu0 %v5844, 96
    %v6194 = vpop.permute.xlu0 %6193
    %6195 = vrot.lane.b32.xlu0 %v5843, 96
    %v6196 = vpop.permute.xlu0 %6195
    %6197 = vrot.lane.b32.xlu0 %v5842, 96
    %v6198 = vpop.permute.xlu0 %6197
    %6199 = vrot.lane.b32.xlu0 %v5841, 96
    %v6200 = vpop.permute.xlu0 %6199
    %6201 = vrot.lane.b32.xlu0 %v5840, 96
    %v6202 = vpop.permute.xlu0 %6201
    %6203 = vrot.lane.b32.xlu0 %v5839, 96
    %v6204 = vpop.permute.xlu0 %6203
    %6205 = vrot.lane.b32.xlu0 %v5854, 96
    %v6206 = vpop.permute.xlu0 %6205
    %6223 = vrot.lane.b32.xlu0 %v5808, 112
    %v6224 = vpop.permute.xlu0 %6223
    %6225 = vrot.lane.b32.xlu0 %v5809, 112
    %v6226 = vpop.permute.xlu0 %6225
    %6227 = vrot.lane.b32.xlu0 %v5810, 112
    %v6228 = vpop.permute.xlu0 %6227
    %6229 = vrot.lane.b32.xlu0 %v5811, 112
    %v6230 = vpop.permute.xlu0 %6229
    %6231 = vrot.lane.b32.xlu0 %v5812, 112
    %v6232 = vpop.permute.xlu0 %6231
    %6233 = vrot.lane.b32.xlu0 %v5813, 112
    %v6234 = vpop.permute.xlu0 %6233
    %6235 = vrot.lane.b32.xlu0 %v5814, 112
    %v6236 = vpop.permute.xlu0 %6235
    %6237 = vrot.lane.b32.xlu0 %v5815, 112
    %v6238 = vpop.permute.xlu0 %6237
    %6239 = vrot.lane.b32.xlu0 %v5816, 112
    %v6240 = vpop.permute.xlu0 %6239
    %6241 = vrot.lane.b32.xlu0 %v5817, 112
    %v6242 = vpop.permute.xlu0 %6241
    %6243 = vrot.lane.b32.xlu0 %v5818, 112
    %v6244 = vpop.permute.xlu0 %6243
    %6245 = vrot.lane.b32.xlu0 %v5819, 112
    %v6246 = vpop.permute.xlu0 %6245
    %6247 = vrot.lane.b32.xlu0 %v5820, 112
    %v6248 = vpop.permute.xlu0 %6247
    %6249 = vrot.lane.b32.xlu0 %v5821, 112
    %v6250 = vpop.permute.xlu0 %6249
    %6251 = vrot.lane.b32.xlu0 %v5822, 112
    %v6252 = vpop.permute.xlu0 %6251
    %6253 = vrot.lane.b32.xlu0 %v5807, 112
    %v6254 = vpop.permute.xlu0 %6253
    %v6271 = vsel %vm104, %v5839, %v5904
    %v6272 = vsel %vm104, %v5854, %v5906
    %v6273 = vsel %vm104, %v5853, %v5908
    %v6274 = vsel %vm104, %v5852, %v5910
    %v6275 = vsel %vm104, %v5851, %v5912
    %v6276 = vsel %vm104, %v5850, %v5914
    %v6277 = vsel %vm104, %v5849, %v5916
    %v6278 = vsel %vm104, %v5848, %v5918
    %v6279 = vsel %vm104, %v5847, %v5920
    %v6280 = vsel %vm104, %v5846, %v5922
    %v6281 = vsel %vm104, %v5845, %v5924
    %v6282 = vsel %vm104, %v5844, %v5926
    %v6283 = vsel %vm104, %v5843, %v5928
    %v6284 = vsel %vm104, %v5842, %v5930
    %v6285 = vsel %vm104, %v5841, %v5932
    %v6286 = vsel %vm104, %v5840, %v5934
    %v6287 = vsel %vm796, %v6271, %v5968
    %v6288 = vsel %vm796, %v6272, %v5970
    %v6289 = vsel %vm796, %v6273, %v5972
    %v6290 = vsel %vm796, %v6274, %v5974
    %v6291 = vsel %vm796, %v6275, %v5976
    %v6292 = vsel %vm796, %v6276, %v5978
    %v6293 = vsel %vm796, %v6277, %v5980
    %v6294 = vsel %vm796, %v6278, %v5982
    %v6295 = vsel %vm796, %v6279, %v5984
    %v6296 = vsel %vm796, %v6280, %v5986
    %v6297 = vsel %vm796, %v6281, %v5988
    %v6298 = vsel %vm796, %v6282, %v5990
    %v6299 = vsel %vm796, %v6283, %v5992
    %v6300 = vsel %vm796, %v6284, %v5994
    %v6301 = vsel %vm796, %v6285, %v5996
    %v6302 = vsel %vm796, %v6286, %v5998
    %v6303 = vsel %vm2610, %v6287, %v6032
    %v6304 = vsel %vm2610, %v6288, %v6034
    %v6305 = vsel %vm2610, %v6289, %v6036
    %v6306 = vsel %vm2610, %v6290, %v6038
    %v6307 = vsel %vm2610, %v6291, %v6040
    %v6308 = vsel %vm2610, %v6292, %v6042
    %v6309 = vsel %vm2610, %v6293, %v6044
    %v6310 = vsel %vm2610, %v6294, %v6046
    %v6311 = vsel %vm2610, %v6295, %v6048
    %v6312 = vsel %vm2610, %v6296, %v6050
    %v6313 = vsel %vm2610, %v6297, %v6052
    %v6314 = vsel %vm2610, %v6298, %v6054
    %v6315 = vsel %vm2610, %v6299, %v6056
    %v6316 = vsel %vm2610, %v6300, %v6058
    %v6317 = vsel %vm2610, %v6301, %v6060
    %v6318 = vsel %vm2610, %v6302, %v6062
    %v6319 = vsel %vm2644, %v6303, %v6080
    %v6320 = vsel %vm2644, %v6304, %v6082
    %v6321 = vsel %vm2644, %v6305, %v6084
    %v6322 = vsel %vm2644, %v6306, %v6086
    %v6323 = vsel %vm2644, %v6307, %v6088
    %v6324 = vsel %vm2644, %v6308, %v6090
    %v6325 = vsel %vm2644, %v6309, %v6092
    %v6326 = vsel %vm2644, %v6310, %v6094
    %v6327 = vsel %vm2644, %v6311, %v6096
    %v6328 = vsel %vm2644, %v6312, %v6098
    %v6329 = vsel %vm2644, %v6313, %v6100
    %v6330 = vsel %vm2644, %v6314, %v6102
    %v6331 = vsel %vm2644, %v6315, %v6104
    %v6332 = vsel %vm2644, %v6316, %v6106
    %v6333 = vsel %vm2644, %v6317, %v6108
    %v6334 = vsel %vm2644, %v6318, %v6110
    %vm6335 = vcmask 654336
    %v6336 = vsel %vm6335, %v6319, %v6128
    %v6337 = vsel %vm6335, %v6320, %v6130
    %v6338 = vsel %vm6335, %v6321, %v6132
    %v6339 = vsel %vm6335, %v6322, %v6134
    %v6340 = vsel %vm6335, %v6323, %v6136
    %v6341 = vsel %vm6335, %v6324, %v6138
    %v6342 = vsel %vm6335, %v6325, %v6140
    %v6343 = vsel %vm6335, %v6326, %v6142
    %v6344 = vsel %vm6335, %v6327, %v6144
    %v6345 = vsel %vm6335, %v6328, %v6146
    %v6346 = vsel %vm6335, %v6329, %v6148
    %v6347 = vsel %vm6335, %v6330, %v6150
    %v6348 = vsel %vm6335, %v6331, %v6152
    %v6349 = vsel %vm6335, %v6332, %v6154
    %v6350 = vsel %vm6335, %v6333, %v6156
    %v6351 = vsel %vm6335, %v6334, %v6158
    %v6352 = vsel %vm4517, %v6336, %v6176
    %v6353 = vsel %vm4517, %v6337, %v6178
    %v6354 = vsel %vm4517, %v6338, %v6180
    %v6355 = vsel %vm4517, %v6339, %v6182
    %v6356 = vsel %vm4517, %v6340, %v6184
    %v6357 = vsel %vm4517, %v6341, %v6186
    %v6358 = vsel %vm4517, %v6342, %v6188
    %v6359 = vsel %vm4517, %v6343, %v6190
    %v6360 = vsel %vm4517, %v6344, %v6192
    %v6361 = vsel %vm4517, %v6345, %v6194
    %v6362 = vsel %vm4517, %v6346, %v6196
    %v6363 = vsel %vm4517, %v6347, %v6198
    %v6364 = vsel %vm4517, %v6348, %v6200
    %v6365 = vsel %vm4517, %v6349, %v6202
    %v6366 = vsel %vm4517, %v6350, %v6204
    %v6367 = vsel %vm4517, %v6351, %v6206
    %vm6368 = vcmask 916480
    %v6369 = vsel %vm6368, %v6352, %v6224
    %v6370 = vsel %vm6368, %v6353, %v6226
    %v6371 = vsel %vm6368, %v6354, %v6228
    %v6372 = vsel %vm6368, %v6355, %v6230
    %v6373 = vsel %vm6368, %v6356, %v6232
    %v6374 = vsel %vm6368, %v6357, %v6234
    %v6375 = vsel %vm6368, %v6358, %v6236
    %v6376 = vsel %vm6368, %v6359, %v6238
    %v6377 = vsel %vm6368, %v6360, %v6240
    %v6378 = vsel %vm6368, %v6361, %v6242
    %v6379 = vsel %vm6368, %v6362, %v6244
    %v6380 = vsel %vm6368, %v6363, %v6246
    %v6381 = vsel %vm6368, %v6364, %v6248
    %v6382 = vsel %vm6368, %v6365, %v6250
    %v6383 = vsel %vm6368, %v6366, %v6252
    %v6384 = vsel %vm6368, %v6367, %v6254
    %v6385 = vld [vmem:[%s5] sm:$0xff]
    %v6386 = vld [vmem:[%s5 + $0x8] sm:$0xff]
    %v6387 = vld [vmem:[%s5 + $0x10] sm:$0xff]
    %v6388 = vld [vmem:[%s5 + $0x18] sm:$0xff]
    %v6389 = vld [vmem:[%s5 + $0x20] sm:$0xff]
    %v6390 = vld [vmem:[%s5 + $0x28] sm:$0xff]
    %v6391 = vld [vmem:[%s5 + $0x30] sm:$0xff]
    %v6392 = vld [vmem:[%s5 + $0x38] sm:$0xff]
    %v6393 = vld [vmem:[%s5 + $0x40] sm:$0xff]
    %v6394 = vld [vmem:[%s5 + $0x48] sm:$0xff]
    %v6395 = vld [vmem:[%s5 + $0x50] sm:$0xff]
    %v6396 = vld [vmem:[%s5 + $0x58] sm:$0xff]
    %v6397 = vld [vmem:[%s5 + $0x60] sm:$0xff]
    %v6398 = vld [vmem:[%s5 + $0x68] sm:$0xff]
    %v6399 = vld [vmem:[%s5 + $0x70] sm:$0xff]
    %v6400 = vld [vmem:[%s5 + $0x78] sm:$0xff]
    %v6401 = vld [vmem:[%s5 + $0x80] sm:$0xff]
    %v6402 = vld [vmem:[%s5 + $0x88] sm:$0xff]
    %v6403 = vld [vmem:[%s5 + $0x90] sm:$0xff]
    %v6404 = vld [vmem:[%s5 + $0x98] sm:$0xff]
    %v6405 = vld [vmem:[%s5 + $0xa0] sm:$0xff]
    %v6406 = vld [vmem:[%s5 + $0xa8] sm:$0xff]
    %v6407 = vld [vmem:[%s5 + $0xb0] sm:$0xff]
    %v6408 = vld [vmem:[%s5 + $0xb8] sm:$0xff]
    %v6409 = vld [vmem:[%s5 + $0xc0] sm:$0xff]
    %v6410 = vld [vmem:[%s5 + $0xc8] sm:$0xff]
    %v6411 = vld [vmem:[%s5 + $0xd0] sm:$0xff]
    %v6412 = vld [vmem:[%s5 + $0xd8] sm:$0xff]
    %v6413 = vld [vmem:[%s5 + $0xe0] sm:$0xff]
    %v6414 = vld [vmem:[%s5 + $0xe8] sm:$0xff]
    %v6415 = vld [vmem:[%s5 + $0xf0] sm:$0xff]
    %v6416 = vld [vmem:[%s5 + $0xf8] sm:$0xff]
    %v6417 = vmul.f32 %v6369, %v6385
    %v6418 = vmul.f32 %v5884, %v6386
    %v6419 = vmul.f32 %v6370, %v6387
    %v6420 = vmul.f32 %v5883, %v6388
    %v6421 = vmul.f32 %v6371, %v6389
    %v6422 = vmul.f32 %v5882, %v6390
    %v6423 = vmul.f32 %v6372, %v6391
    %v6424 = vmul.f32 %v5881, %v6392
    %v6425 = vmul.f32 %v6373, %v6393
    %v6426 = vmul.f32 %v5880, %v6394
    %v6427 = vmul.f32 %v6374, %v6395
    %v6428 = vmul.f32 %v5879, %v6396
    %v6429 = vmul.f32 %v6375, %v6397
    %v6430 = vmul.f32 %v5878, %v6398
    %v6431 = vmul.f32 %v6376, %v6399
    %v6432 = vmul.f32 %v5877, %v6400
    %v6433 = vmul.f32 %v6377, %v6401
    %v6434 = vmul.f32 %v5876, %v6402
    %v6435 = vmul.f32 %v6378, %v6403
    %v6436 = vmul.f32 %v5875, %v6404
    %v6437 = vmul.f32 %v6379, %v6405
    %v6438 = vmul.f32 %v5874, %v6406
    %v6439 = vmul.f32 %v6380, %v6407
    %v6440 = vmul.f32 %v5873, %v6408
    %v6441 = vmul.f32 %v6381, %v6409
    %v6442 = vmul.f32 %v5872, %v6410
    %v6443 = vmul.f32 %v6382, %v6411
    %v6444 = vmul.f32 %v5871, %v6412
    %v6445 = vmul.f32 %v6383, %v6413
    %v6446 = vmul.f32 %v5886, %v6414
    %v6447 = vmul.f32 %v6384, %v6415
    %v6448 = vmul.f32 %v5885, %v6416
    %v6449 = vpack.c.bf16 %v6419, %v6417
    %v6450 = vpack.c.bf16 %v6420, %v6418
    %v6451 = vpack.c.bf16 %v6423, %v6421
    %v6452 = vpack.c.bf16 %v6424, %v6422
    %v6453 = vpack.c.bf16 %v6427, %v6425
    %v6454 = vpack.c.bf16 %v6428, %v6426
    %v6455 = vpack.c.bf16 %v6431, %v6429
    %v6456 = vpack.c.bf16 %v6432, %v6430
    %v6457 = vpack.c.bf16 %v6435, %v6433
    %v6458 = vpack.c.bf16 %v6436, %v6434
    %v6459 = vpack.c.bf16 %v6439, %v6437
    %v6460 = vpack.c.bf16 %v6440, %v6438
    %v6461 = vpack.c.bf16 %v6443, %v6441
    %v6462 = vpack.c.bf16 %v6444, %v6442
    %v6463 = vpack.c.bf16 %v6447, %v6445
    %v6464 = vpack.c.bf16 %v6448, %v6446
    %v6465 = vld [vmem:[%s16] sm:$0xf]
    %v6466 = vld [vmem:[%s16 + $0x4] sm:$0xf]
    %v6467 = vld [vmem:[%s16 + $0x8] sm:$0xf]
    %v6468 = vld [vmem:[%s16 + $0xc] sm:$0xf]
    %v6469 = vld [vmem:[%s16 + $0x10] sm:$0xf]
    %v6470 = vld [vmem:[%s16 + $0x14] sm:$0xf]
    %v6471 = vld [vmem:[%s16 + $0x18] sm:$0xf]
    %v6472 = vld [vmem:[%s16 + $0x1c] sm:$0xf]
    %v6473 = vld [vmem:[%s16 + $0x20] sm:$0xf]
    %v6474 = vld [vmem:[%s16 + $0x24] sm:$0xf]
    %v6475 = vld [vmem:[%s16 + $0x28] sm:$0xf]
    %v6476 = vld [vmem:[%s16 + $0x2c] sm:$0xf]
    %v6477 = vld [vmem:[%s16 + $0x30] sm:$0xf]
    %v6478 = vld [vmem:[%s16 + $0x34] sm:$0xf]
    %v6479 = vld [vmem:[%s16 + $0x38] sm:$0xf]
    %v6480 = vld [vmem:[%s16 + $0x3c] sm:$0xf]
    %v6481 = vld [vmem:[%s16 + $0x40] sm:$0xf]
    %v6482 = vld [vmem:[%s16 + $0x44] sm:$0xf]
    %v6483 = vld [vmem:[%s1 + $0xa] sm:$0x1]
    %v6484 = vperm.slane %v6483, 0
    %v6503 = vunpack.c.l.b16 %v6465
    %v6504 = vunpack.c.l.b16 %v6466
    %v6505 = vunpack.c.l.b16 %v6467
    %v6506 = vunpack.c.l.b16 %v6468
    %v6507 = vunpack.c.l.b16 %v6469
    %v6508 = vunpack.c.l.b16 %v6470
    %v6509 = vunpack.c.l.b16 %v6471
    %v6510 = vunpack.c.l.b16 %v6472
    %v6511 = vunpack.c.l.b16 %v6473
    %v6512 = vunpack.c.l.b16 %v6474
    %v6513 = vunpack.c.l.b16 %v6475
    %v6514 = vunpack.c.l.b16 %v6476
    %v6515 = vunpack.c.l.b16 %v6477
    %v6516 = vunpack.c.l.b16 %v6478
    %v6517 = vunpack.c.l.b16 %v6479
    %v6518 = vunpack.c.l.b16 %v6480
    %v6519 = vunpack.c.l.b16 %v6481
    %v6520 = vunpack.c.l.b16 %v6482
    %v6521 = vpack.c.b16 %v6504, %v6503
    %v6522 = vpack.c.b16 %v6506, %v6505
    %v6523 = vpack.c.b16 %v6508, %v6507
    %v6524 = vpack.c.b16 %v6510, %v6509
    %v6525 = vpack.c.b16 %v6512, %v6511
    %v6526 = vpack.c.b16 %v6514, %v6513
    %v6527 = vpack.c.b16 %v6516, %v6515
    %v6528 = vpack.c.b16 %v6518, %v6517
    %v6529 = vpack.c.b16 %v6520, %v6519
    %v6540 = vsel %vm104, %v6450, 0
    %v6543 = vsel %vm104, %v6452, 0
    %v6546 = vsel %vm104, %v6454, 0
    %v6549 = vsel %vm104, %v6456, 0
    %v6552 = vsel %vm104, %v6458, 0
    %v6555 = vsel %vm104, %v6460, 0
    %v6558 = vsel %vm104, %v6462, 0
    %v6561 = vsel %vm104, %v6464, 0
    %6563 = vmatpush.bf16.msra.mxu0 %v6528
    %6564 = vmatpush.bf16.msra.mxu0 %v6527
    %6565 = vmatpush.bf16.msra.mxu0 %v6526
    %6566 = vmatpush.bf16.msra.mxu0 %v6525
    %6567 = vmatpush.bf16.msra.mxu0 %v6524
    %6568 = vmatpush.bf16.msra.mxu0 %v6523
    %6569 = vmatpush.bf16.msra.mxu0 %v6522
    %6570 = vmatpush.bf16.msra.mxu0 %v6521
    %6571 = vmatmul.bf16.gmra.mxu0 %v6449
    %v6572 = vpop.f32.mrf.mxu0
    %v6573 = vadd.f32 %v6484, %v6572
    %v6574 = vpop.f32.mrf.mxu0
    %v6575 = vadd.f32 %v6484, %v6574
    %6576 = vmatmul.bf16.gmra.mxu0 %v6451
    %v6577 = vpop.f32.mrf.mxu0
    %v6578 = vadd.f32 %v6484, %v6577
    %v6579 = vpop.f32.mrf.mxu0
    %v6580 = vadd.f32 %v6484, %v6579
    %6581 = vmatmul.bf16.gmra.mxu0 %v6453
    %v6582 = vpop.f32.mrf.mxu0
    %v6583 = vadd.f32 %v6484, %v6582
    %v6584 = vpop.f32.mrf.mxu0
    %v6585 = vadd.f32 %v6484, %v6584
    %6586 = vmatmul.bf16.gmra.mxu0 %v6455
    %v6587 = vpop.f32.mrf.mxu0
    %v6588 = vadd.f32 %v6484, %v6587
    %v6589 = vpop.f32.mrf.mxu0
    %v6590 = vadd.f32 %v6484, %v6589
    %6591 = vmatmul.bf16.gmra.mxu0 %v6457
    %v6592 = vpop.f32.mrf.mxu0
    %v6593 = vadd.f32 %v6484, %v6592
    %v6594 = vpop.f32.mrf.mxu0
    %v6595 = vadd.f32 %v6484, %v6594
    %6596 = vmatmul.bf16.gmra.mxu0 %v6459
    %v6597 = vpop.f32.mrf.mxu0
    %v6598 = vadd.f32 %v6484, %v6597
    %v6599 = vpop.f32.mrf.mxu0
    %v6600 = vadd.f32 %v6484, %v6599
    %6601 = vmatmul.bf16.gmra.mxu0 %v6461
    %v6602 = vpop.f32.mrf.mxu0
    %v6603 = vadd.f32 %v6484, %v6602
    %v6604 = vpop.f32.mrf.mxu0
    %v6605 = vadd.f32 %v6484, %v6604
    %6606 = vmatmul.bf16.gmra.mxu0 %v6463
    %v6607 = vpop.f32.mrf.mxu0
    %v6608 = vadd.f32 %v6484, %v6607
    %v6609 = vpop.f32.mrf.mxu0
    %v6610 = vadd.f32 %v6484, %v6609
    %6611 = vdwg.mxu0
    %6612 = vmatpush.bf16.msra.mxu0 0
    %6613 = vmatpush.bf16.msra.mxu0 0
    %6614 = vmatpush.bf16.msra.mxu0 0
    %6615 = vmatpush.bf16.msra.mxu0 0
    %6616 = vmatpush.bf16.msra.mxu0 0
    %6617 = vmatpush.bf16.msra.mxu0 0
    %6618 = vmatpush.bf16.msra.mxu0 0
    %6619 = vmatpush.bf16.msra.mxu0 %v6529
    %6620 = vmatmul.bf16.gmra.mxu0 %v6540
    %v6621 = vpop.f32.mrf.mxu0
    %v6622 = vadd.f32 %v6573, %v6621
    %v6623 = vpop.f32.mrf.mxu0
    %v6624 = vadd.f32 %v6575, %v6623
    %6625 = vmatmul.bf16.gmra.mxu0 %v6543
    %v6626 = vpop.f32.mrf.mxu0
    %v6627 = vadd.f32 %v6578, %v6626
    %v6628 = vpop.f32.mrf.mxu0
    %v6629 = vadd.f32 %v6580, %v6628
    %6630 = vmatmul.bf16.gmra.mxu0 %v6546
    %v6631 = vpop.f32.mrf.mxu0
    %v6632 = vadd.f32 %v6583, %v6631
    %v6633 = vpop.f32.mrf.mxu0
    %v6634 = vadd.f32 %v6585, %v6633
    %6635 = vmatmul.bf16.gmra.mxu0 %v6549
    %v6636 = vpop.f32.mrf.mxu0
    %v6637 = vadd.f32 %v6588, %v6636
    %v6638 = vpop.f32.mrf.mxu0
    %v6639 = vadd.f32 %v6590, %v6638
    %6640 = vmatmul.bf16.gmra.mxu0 %v6552
    %v6641 = vpop.f32.mrf.mxu0
    %v6642 = vadd.f32 %v6593, %v6641
    %v6643 = vpop.f32.mrf.mxu0
    %v6644 = vadd.f32 %v6595, %v6643
    %6645 = vmatmul.bf16.gmra.mxu0 %v6555
    %v6646 = vpop.f32.mrf.mxu0
    %v6647 = vadd.f32 %v6598, %v6646
    %v6648 = vpop.f32.mrf.mxu0
    %v6649 = vadd.f32 %v6600, %v6648
    %6650 = vmatmul.bf16.gmra.mxu0 %v6558
    %v6651 = vpop.f32.mrf.mxu0
    %v6652 = vadd.f32 %v6603, %v6651
    %v6653 = vpop.f32.mrf.mxu0
    %v6654 = vadd.f32 %v6605, %v6653
    %6655 = vmatmul.bf16.gmra.mxu0 %v6561
    %v6656 = vpop.f32.mrf.mxu0
    %v6657 = vadd.f32 %v6608, %v6656
    %v6658 = vpop.f32.mrf.mxu0
    %v6659 = vadd.f32 %v6610, %v6658
    %6660 = vdwg.mxu0
    %v6661 = vmax.f32 %v6622, 0.0
    %v6662 = vmax.f32 %v6624, 0.0
    %v6663 = vmax.f32 %v6627, 0.0
    %v6664 = vmax.f32 %v6629, 0.0
    %v6665 = vmax.f32 %v6632, 0.0
    %v6666 = vmax.f32 %v6634, 0.0
    %v6667 = vmax.f32 %v6637, 0.0
    %v6668 = vmax.f32 %v6639, 0.0
    %v6669 = vmax.f32 %v6642, 0.0
    %v6670 = vmax.f32 %v6644, 0.0
    %v6671 = vmax.f32 %v6647, 0.0
    %v6672 = vmax.f32 %v6649, 0.0
    %v6673 = vmax.f32 %v6652, 0.0
    %v6674 = vmax.f32 %v6654, 0.0
    %v6675 = vmax.f32 %v6657, 0.0
    %v6676 = vmax.f32 %v6659, 0.0
    %v6677 = vrot.slane %v6661, 7
    %v6678 = vrot.slane %v6662, 7
    %v6679 = vrot.slane %v6663, 7
    %v6680 = vrot.slane %v6664, 7
    %v6681 = vrot.slane %v6665, 7
    %v6682 = vrot.slane %v6666, 7
    %v6683 = vrot.slane %v6667, 7
    %v6684 = vrot.slane %v6668, 7
    %v6685 = vrot.slane %v6669, 7
    %v6686 = vrot.slane %v6670, 7
    %v6687 = vrot.slane %v6671, 7
    %v6688 = vrot.slane %v6672, 7
    %v6689 = vrot.slane %v6673, 7
    %v6690 = vrot.slane %v6674, 7
    %v6691 = vrot.slane %v6675, 7
    %v6692 = vrot.slane %v6676, 7
    %v6693 = vsel %vm196, %v6691, %v6692
    %v6694 = vsel %vm196, %v6690, %v6691
    %v6695 = vsel %vm196, %v6689, %v6690
    %v6696 = vsel %vm196, %v6688, %v6689
    %v6697 = vsel %vm196, %v6687, %v6688
    %v6698 = vsel %vm196, %v6686, %v6687
    %v6699 = vsel %vm196, %v6685, %v6686
    %v6700 = vsel %vm196, %v6684, %v6685
    %v6701 = vsel %vm196, %v6683, %v6684
    %v6702 = vsel %vm196, %v6682, %v6683
    %v6703 = vsel %vm196, %v6681, %v6682
    %v6704 = vsel %vm196, %v6680, %v6681
    %v6705 = vsel %vm196, %v6679, %v6680
    %v6706 = vsel %vm196, %v6678, %v6679
    %v6707 = vsel %vm196, %v6677, %v6678
    %v6708 = vsel %vm196, %v6692, %v6677
    %v6709 = vrot.slane %v6661, 1
    %v6710 = vrot.slane %v6662, 1
    %v6711 = vrot.slane %v6663, 1
    %v6712 = vrot.slane %v6664, 1
    %v6713 = vrot.slane %v6665, 1
    %v6714 = vrot.slane %v6666, 1
    %v6715 = vrot.slane %v6667, 1
    %v6716 = vrot.slane %v6668, 1
    %v6717 = vrot.slane %v6669, 1
    %v6718 = vrot.slane %v6670, 1
    %v6719 = vrot.slane %v6671, 1
    %v6720 = vrot.slane %v6672, 1
    %v6721 = vrot.slane %v6673, 1
    %v6722 = vrot.slane %v6674, 1
    %v6723 = vrot.slane %v6675, 1
    %v6724 = vrot.slane %v6676, 1
    %v6725 = vsel %vm229, %v6723, %v6724
    %v6726 = vsel %vm229, %v6722, %v6723
    %v6727 = vsel %vm229, %v6721, %v6722
    %v6728 = vsel %vm229, %v6720, %v6721
    %v6729 = vsel %vm229, %v6719, %v6720
    %v6730 = vsel %vm229, %v6718, %v6719
    %v6731 = vsel %vm229, %v6717, %v6718
    %v6732 = vsel %vm229, %v6716, %v6717
    %v6733 = vsel %vm229, %v6715, %v6716
    %v6734 = vsel %vm229, %v6714, %v6715
    %v6735 = vsel %vm229, %v6713, %v6714
    %v6736 = vsel %vm229, %v6712, %v6713
    %v6737 = vsel %vm229, %v6711, %v6712
    %v6738 = vsel %vm229, %v6710, %v6711
    %v6739 = vsel %vm229, %v6709, %v6710
    %v6740 = vsel %vm229, %v6724, %v6709
    %6757 = vrot.lane.b32.xlu0 %v6676, 16
    %v6758 = vpop.permute.xlu0 %6757
    %6759 = vrot.lane.b32.xlu0 %v6661, 16
    %v6760 = vpop.permute.xlu0 %6759
    %6761 = vrot.lane.b32.xlu0 %v6662, 16
    %v6762 = vpop.permute.xlu0 %6761
    %6763 = vrot.lane.b32.xlu0 %v6663, 16
    %v6764 = vpop.permute.xlu0 %6763
    %6765 = vrot.lane.b32.xlu0 %v6664, 16
    %v6766 = vpop.permute.xlu0 %6765
    %6767 = vrot.lane.b32.xlu0 %v6665, 16
    %v6768 = vpop.permute.xlu0 %6767
    %6769 = vrot.lane.b32.xlu0 %v6666, 16
    %v6770 = vpop.permute.xlu0 %6769
    %6771 = vrot.lane.b32.xlu0 %v6667, 16
    %v6772 = vpop.permute.xlu0 %6771
    %6773 = vrot.lane.b32.xlu0 %v6668, 16
    %v6774 = vpop.permute.xlu0 %6773
    %6775 = vrot.lane.b32.xlu0 %v6669, 16
    %v6776 = vpop.permute.xlu0 %6775
    %6777 = vrot.lane.b32.xlu0 %v6670, 16
    %v6778 = vpop.permute.xlu0 %6777
    %6779 = vrot.lane.b32.xlu0 %v6671, 16
    %v6780 = vpop.permute.xlu0 %6779
    %6781 = vrot.lane.b32.xlu0 %v6672, 16
    %v6782 = vpop.permute.xlu0 %6781
    %6783 = vrot.lane.b32.xlu0 %v6673, 16
    %v6784 = vpop.permute.xlu0 %6783
    %6785 = vrot.lane.b32.xlu0 %v6674, 16
    %v6786 = vpop.permute.xlu0 %6785
    %6787 = vrot.lane.b32.xlu0 %v6675, 16
    %v6788 = vpop.permute.xlu0 %6787
    %6821 = vrot.lane.b32.xlu0 %v6740, 32
    %v6822 = vpop.permute.xlu0 %6821
    %6823 = vrot.lane.b32.xlu0 %v6739, 32
    %v6824 = vpop.permute.xlu0 %6823
    %6825 = vrot.lane.b32.xlu0 %v6738, 32
    %v6826 = vpop.permute.xlu0 %6825
    %6827 = vrot.lane.b32.xlu0 %v6737, 32
    %v6828 = vpop.permute.xlu0 %6827
    %6829 = vrot.lane.b32.xlu0 %v6736, 32
    %v6830 = vpop.permute.xlu0 %6829
    %6831 = vrot.lane.b32.xlu0 %v6735, 32
    %v6832 = vpop.permute.xlu0 %6831
    %6833 = vrot.lane.b32.xlu0 %v6734, 32
    %v6834 = vpop.permute.xlu0 %6833
    %6835 = vrot.lane.b32.xlu0 %v6733, 32
    %v6836 = vpop.permute.xlu0 %6835
    %6837 = vrot.lane.b32.xlu0 %v6732, 32
    %v6838 = vpop.permute.xlu0 %6837
    %6839 = vrot.lane.b32.xlu0 %v6731, 32
    %v6840 = vpop.permute.xlu0 %6839
    %6841 = vrot.lane.b32.xlu0 %v6730, 32
    %v6842 = vpop.permute.xlu0 %6841
    %6843 = vrot.lane.b32.xlu0 %v6729, 32
    %v6844 = vpop.permute.xlu0 %6843
    %6845 = vrot.lane.b32.xlu0 %v6728, 32
    %v6846 = vpop.permute.xlu0 %6845
    %6847 = vrot.lane.b32.xlu0 %v6727, 32
    %v6848 = vpop.permute.xlu0 %6847
    %6849 = vrot.lane.b32.xlu0 %v6726, 32
    %v6850 = vpop.permute.xlu0 %6849
    %6851 = vrot.lane.b32.xlu0 %v6725, 32
    %v6852 = vpop.permute.xlu0 %6851
    %6885 = vrot.lane.b32.xlu0 %v6708, 48
    %v6886 = vpop.permute.xlu0 %6885
    %6887 = vrot.lane.b32.xlu0 %v6707, 48
    %v6888 = vpop.permute.xlu0 %6887
    %6889 = vrot.lane.b32.xlu0 %v6706, 48
    %v6890 = vpop.permute.xlu0 %6889
    %6891 = vrot.lane.b32.xlu0 %v6705, 48
    %v6892 = vpop.permute.xlu0 %6891
    %6893 = vrot.lane.b32.xlu0 %v6704, 48
    %v6894 = vpop.permute.xlu0 %6893
    %6895 = vrot.lane.b32.xlu0 %v6703, 48
    %v6896 = vpop.permute.xlu0 %6895
    %6897 = vrot.lane.b32.xlu0 %v6702, 48
    %v6898 = vpop.permute.xlu0 %6897
    %6899 = vrot.lane.b32.xlu0 %v6701, 48
    %v6900 = vpop.permute.xlu0 %6899
    %6901 = vrot.lane.b32.xlu0 %v6700, 48
    %v6902 = vpop.permute.xlu0 %6901
    %6903 = vrot.lane.b32.xlu0 %v6699, 48
    %v6904 = vpop.permute.xlu0 %6903
    %6905 = vrot.lane.b32.xlu0 %v6698, 48
    %v6906 = vpop.permute.xlu0 %6905
    %6907 = vrot.lane.b32.xlu0 %v6697, 48
    %v6908 = vpop.permute.xlu0 %6907
    %6909 = vrot.lane.b32.xlu0 %v6696, 48
    %v6910 = vpop.permute.xlu0 %6909
    %6911 = vrot.lane.b32.xlu0 %v6695, 48
    %v6912 = vpop.permute.xlu0 %6911
    %6913 = vrot.lane.b32.xlu0 %v6694, 48
    %v6914 = vpop.permute.xlu0 %6913
    %6915 = vrot.lane.b32.xlu0 %v6693, 48
    %v6916 = vpop.permute.xlu0 %6915
    %6933 = vrot.lane.b32.xlu0 %v6661, 64
    %v6934 = vpop.permute.xlu0 %6933
    %6935 = vrot.lane.b32.xlu0 %v6662, 64
    %v6936 = vpop.permute.xlu0 %6935
    %6937 = vrot.lane.b32.xlu0 %v6663, 64
    %v6938 = vpop.permute.xlu0 %6937
    %6939 = vrot.lane.b32.xlu0 %v6664, 64
    %v6940 = vpop.permute.xlu0 %6939
    %6941 = vrot.lane.b32.xlu0 %v6665, 64
    %v6942 = vpop.permute.xlu0 %6941
    %6943 = vrot.lane.b32.xlu0 %v6666, 64
    %v6944 = vpop.permute.xlu0 %6943
    %6945 = vrot.lane.b32.xlu0 %v6667, 64
    %v6946 = vpop.permute.xlu0 %6945
    %6947 = vrot.lane.b32.xlu0 %v6668, 64
    %v6948 = vpop.permute.xlu0 %6947
    %6949 = vrot.lane.b32.xlu0 %v6669, 64
    %v6950 = vpop.permute.xlu0 %6949
    %6951 = vrot.lane.b32.xlu0 %v6670, 64
    %v6952 = vpop.permute.xlu0 %6951
    %6953 = vrot.lane.b32.xlu0 %v6671, 64
    %v6954 = vpop.permute.xlu0 %6953
    %6955 = vrot.lane.b32.xlu0 %v6672, 64
    %v6956 = vpop.permute.xlu0 %6955
    %6957 = vrot.lane.b32.xlu0 %v6673, 64
    %v6958 = vpop.permute.xlu0 %6957
    %6959 = vrot.lane.b32.xlu0 %v6674, 64
    %v6960 = vpop.permute.xlu0 %6959
    %6961 = vrot.lane.b32.xlu0 %v6675, 64
    %v6962 = vpop.permute.xlu0 %6961
    %6963 = vrot.lane.b32.xlu0 %v6676, 64
    %v6964 = vpop.permute.xlu0 %6963
    %6981 = vrot.lane.b32.xlu0 %v6739, 80
    %v6982 = vpop.permute.xlu0 %6981
    %6983 = vrot.lane.b32.xlu0 %v6738, 80
    %v6984 = vpop.permute.xlu0 %6983
    %6985 = vrot.lane.b32.xlu0 %v6737, 80
    %v6986 = vpop.permute.xlu0 %6985
    %6987 = vrot.lane.b32.xlu0 %v6736, 80
    %v6988 = vpop.permute.xlu0 %6987
    %6989 = vrot.lane.b32.xlu0 %v6735, 80
    %v6990 = vpop.permute.xlu0 %6989
    %6991 = vrot.lane.b32.xlu0 %v6734, 80
    %v6992 = vpop.permute.xlu0 %6991
    %6993 = vrot.lane.b32.xlu0 %v6733, 80
    %v6994 = vpop.permute.xlu0 %6993
    %6995 = vrot.lane.b32.xlu0 %v6732, 80
    %v6996 = vpop.permute.xlu0 %6995
    %6997 = vrot.lane.b32.xlu0 %v6731, 80
    %v6998 = vpop.permute.xlu0 %6997
    %6999 = vrot.lane.b32.xlu0 %v6730, 80
    %v7000 = vpop.permute.xlu0 %6999
    %7001 = vrot.lane.b32.xlu0 %v6729, 80
    %v7002 = vpop.permute.xlu0 %7001
    %7003 = vrot.lane.b32.xlu0 %v6728, 80
    %v7004 = vpop.permute.xlu0 %7003
    %7005 = vrot.lane.b32.xlu0 %v6727, 80
    %v7006 = vpop.permute.xlu0 %7005
    %7007 = vrot.lane.b32.xlu0 %v6726, 80
    %v7008 = vpop.permute.xlu0 %7007
    %7009 = vrot.lane.b32.xlu0 %v6725, 80
    %v7010 = vpop.permute.xlu0 %7009
    %7011 = vrot.lane.b32.xlu0 %v6740, 80
    %v7012 = vpop.permute.xlu0 %7011
    %7029 = vrot.lane.b32.xlu0 %v6707, 96
    %v7030 = vpop.permute.xlu0 %7029
    %7031 = vrot.lane.b32.xlu0 %v6706, 96
    %v7032 = vpop.permute.xlu0 %7031
    %7033 = vrot.lane.b32.xlu0 %v6705, 96
    %v7034 = vpop.permute.xlu0 %7033
    %7035 = vrot.lane.b32.xlu0 %v6704, 96
    %v7036 = vpop.permute.xlu0 %7035
    %7037 = vrot.lane.b32.xlu0 %v6703, 96
    %v7038 = vpop.permute.xlu0 %7037
    %7039 = vrot.lane.b32.xlu0 %v6702, 96
    %v7040 = vpop.permute.xlu0 %7039
    %7041 = vrot.lane.b32.xlu0 %v6701, 96
    %v7042 = vpop.permute.xlu0 %7041
    %7043 = vrot.lane.b32.xlu0 %v6700, 96
    %v7044 = vpop.permute.xlu0 %7043
    %7045 = vrot.lane.b32.xlu0 %v6699, 96
    %v7046 = vpop.permute.xlu0 %7045
    %7047 = vrot.lane.b32.xlu0 %v6698, 96
    %v7048 = vpop.permute.xlu0 %7047
    %7049 = vrot.lane.b32.xlu0 %v6697, 96
    %v7050 = vpop.permute.xlu0 %7049
    %7051 = vrot.lane.b32.xlu0 %v6696, 96
    %v7052 = vpop.permute.xlu0 %7051
    %7053 = vrot.lane.b32.xlu0 %v6695, 96
    %v7054 = vpop.permute.xlu0 %7053
    %7055 = vrot.lane.b32.xlu0 %v6694, 96
    %v7056 = vpop.permute.xlu0 %7055
    %7057 = vrot.lane.b32.xlu0 %v6693, 96
    %v7058 = vpop.permute.xlu0 %7057
    %7059 = vrot.lane.b32.xlu0 %v6708, 96
    %v7060 = vpop.permute.xlu0 %7059
    %7077 = vrot.lane.b32.xlu0 %v6662, 112
    %v7078 = vpop.permute.xlu0 %7077
    %7079 = vrot.lane.b32.xlu0 %v6663, 112
    %v7080 = vpop.permute.xlu0 %7079
    %7081 = vrot.lane.b32.xlu0 %v6664, 112
    %v7082 = vpop.permute.xlu0 %7081
    %7083 = vrot.lane.b32.xlu0 %v6665, 112
    %v7084 = vpop.permute.xlu0 %7083
    %7085 = vrot.lane.b32.xlu0 %v6666, 112
    %v7086 = vpop.permute.xlu0 %7085
    %7087 = vrot.lane.b32.xlu0 %v6667, 112
    %v7088 = vpop.permute.xlu0 %7087
    %7089 = vrot.lane.b32.xlu0 %v6668, 112
    %v7090 = vpop.permute.xlu0 %7089
    %7091 = vrot.lane.b32.xlu0 %v6669, 112
    %v7092 = vpop.permute.xlu0 %7091
    %7093 = vrot.lane.b32.xlu0 %v6670, 112
    %v7094 = vpop.permute.xlu0 %7093
    %7095 = vrot.lane.b32.xlu0 %v6671, 112
    %v7096 = vpop.permute.xlu0 %7095
    %7097 = vrot.lane.b32.xlu0 %v6672, 112
    %v7098 = vpop.permute.xlu0 %7097
    %7099 = vrot.lane.b32.xlu0 %v6673, 112
    %v7100 = vpop.permute.xlu0 %7099
    %7101 = vrot.lane.b32.xlu0 %v6674, 112
    %v7102 = vpop.permute.xlu0 %7101
    %7103 = vrot.lane.b32.xlu0 %v6675, 112
    %v7104 = vpop.permute.xlu0 %7103
    %7105 = vrot.lane.b32.xlu0 %v6676, 112
    %v7106 = vpop.permute.xlu0 %7105
    %7107 = vrot.lane.b32.xlu0 %v6661, 112
    %v7108 = vpop.permute.xlu0 %7107
    %v7125 = vsel %vm104, %v6693, %v6758
    %v7126 = vsel %vm104, %v6708, %v6760
    %v7127 = vsel %vm104, %v6707, %v6762
    %v7128 = vsel %vm104, %v6706, %v6764
    %v7129 = vsel %vm104, %v6705, %v6766
    %v7130 = vsel %vm104, %v6704, %v6768
    %v7131 = vsel %vm104, %v6703, %v6770
    %v7132 = vsel %vm104, %v6702, %v6772
    %v7133 = vsel %vm104, %v6701, %v6774
    %v7134 = vsel %vm104, %v6700, %v6776
    %v7135 = vsel %vm104, %v6699, %v6778
    %v7136 = vsel %vm104, %v6698, %v6780
    %v7137 = vsel %vm104, %v6697, %v6782
    %v7138 = vsel %vm104, %v6696, %v6784
    %v7139 = vsel %vm104, %v6695, %v6786
    %v7140 = vsel %vm104, %v6694, %v6788
    %v7141 = vsel %vm796, %v7125, %v6822
    %v7142 = vsel %vm796, %v7126, %v6824
    %v7143 = vsel %vm796, %v7127, %v6826
    %v7144 = vsel %vm796, %v7128, %v6828
    %v7145 = vsel %vm796, %v7129, %v6830
    %v7146 = vsel %vm796, %v7130, %v6832
    %v7147 = vsel %vm796, %v7131, %v6834
    %v7148 = vsel %vm796, %v7132, %v6836
    %v7149 = vsel %vm796, %v7133, %v6838
    %v7150 = vsel %vm796, %v7134, %v6840
    %v7151 = vsel %vm796, %v7135, %v6842
    %v7152 = vsel %vm796, %v7136, %v6844
    %v7153 = vsel %vm796, %v7137, %v6846
    %v7154 = vsel %vm796, %v7138, %v6848
    %v7155 = vsel %vm796, %v7139, %v6850
    %v7156 = vsel %vm796, %v7140, %v6852
    %v7157 = vsel %vm2610, %v7141, %v6886
    %v7158 = vsel %vm2610, %v7142, %v6888
    %v7159 = vsel %vm2610, %v7143, %v6890
    %v7160 = vsel %vm2610, %v7144, %v6892
    %v7161 = vsel %vm2610, %v7145, %v6894
    %v7162 = vsel %vm2610, %v7146, %v6896
    %v7163 = vsel %vm2610, %v7147, %v6898
    %v7164 = vsel %vm2610, %v7148, %v6900
    %v7165 = vsel %vm2610, %v7149, %v6902
    %v7166 = vsel %vm2610, %v7150, %v6904
    %v7167 = vsel %vm2610, %v7151, %v6906
    %v7168 = vsel %vm2610, %v7152, %v6908
    %v7169 = vsel %vm2610, %v7153, %v6910
    %v7170 = vsel %vm2610, %v7154, %v6912
    %v7171 = vsel %vm2610, %v7155, %v6914
    %v7172 = vsel %vm2610, %v7156, %v6916
    %v7173 = vsel %vm2644, %v7157, %v6934
    %v7174 = vsel %vm2644, %v7158, %v6936
    %v7175 = vsel %vm2644, %v7159, %v6938
    %v7176 = vsel %vm2644, %v7160, %v6940
    %v7177 = vsel %vm2644, %v7161, %v6942
    %v7178 = vsel %vm2644, %v7162, %v6944
    %v7179 = vsel %vm2644, %v7163, %v6946
    %v7180 = vsel %vm2644, %v7164, %v6948
    %v7181 = vsel %vm2644, %v7165, %v6950
    %v7182 = vsel %vm2644, %v7166, %v6952
    %v7183 = vsel %vm2644, %v7167, %v6954
    %v7184 = vsel %vm2644, %v7168, %v6956
    %v7185 = vsel %vm2644, %v7169, %v6958
    %v7186 = vsel %vm2644, %v7170, %v6960
    %v7187 = vsel %vm2644, %v7171, %v6962
    %v7188 = vsel %vm2644, %v7172, %v6964
    %v7189 = vsel %vm6335, %v7173, %v6982
    %v7190 = vsel %vm6335, %v7174, %v6984
    %v7191 = vsel %vm6335, %v7175, %v6986
    %v7192 = vsel %vm6335, %v7176, %v6988
    %v7193 = vsel %vm6335, %v7177, %v6990
    %v7194 = vsel %vm6335, %v7178, %v6992
    %v7195 = vsel %vm6335, %v7179, %v6994
    %v7196 = vsel %vm6335, %v7180, %v6996
    %v7197 = vsel %vm6335, %v7181, %v6998
    %v7198 = vsel %vm6335, %v7182, %v7000
    %v7199 = vsel %vm6335, %v7183, %v7002
    %v7200 = vsel %vm6335, %v7184, %v7004
    %v7201 = vsel %vm6335, %v7185, %v7006
    %v7202 = vsel %vm6335, %v7186, %v7008
    %v7203 = vsel %vm6335, %v7187, %v7010
    %v7204 = vsel %vm6335, %v7188, %v7012
    %v7205 = vsel %vm4517, %v7189, %v7030
    %v7206 = vsel %vm4517, %v7190, %v7032
    %v7207 = vsel %vm4517, %v7191, %v7034
    %v7208 = vsel %vm4517, %v7192, %v7036
    %v7209 = vsel %vm4517, %v7193, %v7038
    %v7210 = vsel %vm4517, %v7194, %v7040
    %v7211 = vsel %vm4517, %v7195, %v7042
    %v7212 = vsel %vm4517, %v7196, %v7044
    %v7213 = vsel %vm4517, %v7197, %v7046
    %v7214 = vsel %vm4517, %v7198, %v7048
    %v7215 = vsel %vm4517, %v7199, %v7050
    %v7216 = vsel %vm4517, %v7200, %v7052
    %v7217 = vsel %vm4517, %v7201, %v7054
    %v7218 = vsel %vm4517, %v7202, %v7056
    %v7219 = vsel %vm4517, %v7203, %v7058
    %v7220 = vsel %vm4517, %v7204, %v7060
    %v7221 = vsel %vm6368, %v7205, %v7078
    %v7222 = vsel %vm6368, %v7206, %v7080
    %v7223 = vsel %vm6368, %v7207, %v7082
    %v7224 = vsel %vm6368, %v7208, %v7084
    %v7225 = vsel %vm6368, %v7209, %v7086
    %v7226 = vsel %vm6368, %v7210, %v7088
    %v7227 = vsel %vm6368, %v7211, %v7090
    %v7228 = vsel %vm6368, %v7212, %v7092
    %v7229 = vsel %vm6368, %v7213, %v7094
    %v7230 = vsel %vm6368, %v7214, %v7096
    %v7231 = vsel %vm6368, %v7215, %v7098
    %v7232 = vsel %vm6368, %v7216, %v7100
    %v7233 = vsel %vm6368, %v7217, %v7102
    %v7234 = vsel %vm6368, %v7218, %v7104
    %v7235 = vsel %vm6368, %v7219, %v7106
    %v7236 = vsel %vm6368, %v7220, %v7108
    %v7237 = vmul.f32 %v7221, %v6385
    %v7238 = vmul.f32 %v6738, %v6386
    %v7239 = vmul.f32 %v7222, %v6387
    %v7240 = vmul.f32 %v6737, %v6388
    %v7241 = vmul.f32 %v7223, %v6389
    %v7242 = vmul.f32 %v6736, %v6390
    %v7243 = vmul.f32 %v7224, %v6391
    %v7244 = vmul.f32 %v6735, %v6392
    %v7245 = vmul.f32 %v7225, %v6393
    %v7246 = vmul.f32 %v6734, %v6394
    %v7247 = vmul.f32 %v7226, %v6395
    %v7248 = vmul.f32 %v6733, %v6396
    %v7249 = vmul.f32 %v7227, %v6397
    %v7250 = vmul.f32 %v6732, %v6398
    %v7251 = vmul.f32 %v7228, %v6399
    %v7252 = vmul.f32 %v6731, %v6400
    %v7253 = vmul.f32 %v7229, %v6401
    %v7254 = vmul.f32 %v6730, %v6402
    %v7255 = vmul.f32 %v7230, %v6403
    %v7256 = vmul.f32 %v6729, %v6404
    %v7257 = vmul.f32 %v7231, %v6405
    %v7258 = vmul.f32 %v6728, %v6406
    %v7259 = vmul.f32 %v7232, %v6407
    %v7260 = vmul.f32 %v6727, %v6408
    %v7261 = vmul.f32 %v7233, %v6409
    %v7262 = vmul.f32 %v6726, %v6410
    %v7263 = vmul.f32 %v7234, %v6411
    %v7264 = vmul.f32 %v6725, %v6412
    %v7265 = vmul.f32 %v7235, %v6413
    %v7266 = vmul.f32 %v6740, %v6414
    %v7267 = vmul.f32 %v7236, %v6415
    %v7268 = vmul.f32 %v6739, %v6416
    %v7269 = vpack.c.bf16 %v7239, %v7237
    %v7270 = vpack.c.bf16 %v7240, %v7238
    %v7271 = vpack.c.bf16 %v7243, %v7241
    %v7272 = vpack.c.bf16 %v7244, %v7242
    %v7273 = vpack.c.bf16 %v7247, %v7245
    %v7274 = vpack.c.bf16 %v7248, %v7246
    %v7275 = vpack.c.bf16 %v7251, %v7249
    %v7276 = vpack.c.bf16 %v7252, %v7250
    %v7277 = vpack.c.bf16 %v7255, %v7253
    %v7278 = vpack.c.bf16 %v7256, %v7254
    %v7279 = vpack.c.bf16 %v7259, %v7257
    %v7280 = vpack.c.bf16 %v7260, %v7258
    %v7281 = vpack.c.bf16 %v7263, %v7261
    %v7282 = vpack.c.bf16 %v7264, %v7262
    %v7283 = vpack.c.bf16 %v7267, %v7265
    %v7284 = vpack.c.bf16 %v7268, %v7266
    %v7285 = vld [vmem:[%s17] sm:$0xf]
    %v7286 = vld [vmem:[%s17 + $0x4] sm:$0xf]
    %v7287 = vld [vmem:[%s17 + $0x8] sm:$0xf]
    %v7288 = vld [vmem:[%s17 + $0xc] sm:$0xf]
    %v7289 = vld [vmem:[%s17 + $0x10] sm:$0xf]
    %v7290 = vld [vmem:[%s17 + $0x14] sm:$0xf]
    %v7291 = vld [vmem:[%s17 + $0x18] sm:$0xf]
    %v7292 = vld [vmem:[%s17 + $0x1c] sm:$0xf]
    %v7293 = vld [vmem:[%s17 + $0x20] sm:$0xf]
    %v7294 = vld [vmem:[%s17 + $0x24] sm:$0xf]
    %v7295 = vld [vmem:[%s17 + $0x28] sm:$0xf]
    %v7296 = vld [vmem:[%s17 + $0x2c] sm:$0xf]
    %v7297 = vld [vmem:[%s17 + $0x30] sm:$0xf]
    %v7298 = vld [vmem:[%s17 + $0x34] sm:$0xf]
    %v7299 = vld [vmem:[%s17 + $0x38] sm:$0xf]
    %v7300 = vld [vmem:[%s17 + $0x3c] sm:$0xf]
    %v7301 = vld [vmem:[%s17 + $0x40] sm:$0xf]
    %v7302 = vld [vmem:[%s17 + $0x44] sm:$0xf]
    %v7303 = vld [vmem:[%s1 + $0xb] sm:$0x1]
    %v7304 = vperm.slane %v7303, 0
    %v7323 = vunpack.c.l.b16 %v7285
    %v7324 = vunpack.c.l.b16 %v7286
    %v7325 = vunpack.c.l.b16 %v7287
    %v7326 = vunpack.c.l.b16 %v7288
    %v7327 = vunpack.c.l.b16 %v7289
    %v7328 = vunpack.c.l.b16 %v7290
    %v7329 = vunpack.c.l.b16 %v7291
    %v7330 = vunpack.c.l.b16 %v7292
    %v7331 = vunpack.c.l.b16 %v7293
    %v7332 = vunpack.c.l.b16 %v7294
    %v7333 = vunpack.c.l.b16 %v7295
    %v7334 = vunpack.c.l.b16 %v7296
    %v7335 = vunpack.c.l.b16 %v7297
    %v7336 = vunpack.c.l.b16 %v7298
    %v7337 = vunpack.c.l.b16 %v7299
    %v7338 = vunpack.c.l.b16 %v7300
    %v7339 = vunpack.c.l.b16 %v7301
    %v7340 = vunpack.c.l.b16 %v7302
    %v7341 = vpack.c.b16 %v7324, %v7323
    %v7342 = vpack.c.b16 %v7326, %v7325
    %v7343 = vpack.c.b16 %v7328, %v7327
    %v7344 = vpack.c.b16 %v7330, %v7329
    %v7345 = vpack.c.b16 %v7332, %v7331
    %v7346 = vpack.c.b16 %v7334, %v7333
    %v7347 = vpack.c.b16 %v7336, %v7335
    %v7348 = vpack.c.b16 %v7338, %v7337
    %v7349 = vpack.c.b16 %v7340, %v7339
    %v7360 = vsel %vm104, %v7270, 0
    %v7363 = vsel %vm104, %v7272, 0
    %v7366 = vsel %vm104, %v7274, 0
    %v7369 = vsel %vm104, %v7276, 0
    %v7372 = vsel %vm104, %v7278, 0
    %v7375 = vsel %vm104, %v7280, 0
    %v7378 = vsel %vm104, %v7282, 0
    %v7381 = vsel %vm104, %v7284, 0
    %7383 = vmatpush.bf16.msra.mxu0 %v7348
    %7384 = vmatpush.bf16.msra.mxu0 %v7347
    %7385 = vmatpush.bf16.msra.mxu0 %v7346
    %7386 = vmatpush.bf16.msra.mxu0 %v7345
    %7387 = vmatpush.bf16.msra.mxu0 %v7344
    %7388 = vmatpush.bf16.msra.mxu0 %v7343
    %7389 = vmatpush.bf16.msra.mxu0 %v7342
    %7390 = vmatpush.bf16.msra.mxu0 %v7341
    %7391 = vmatmul.bf16.gmra.mxu0 %v7269
    %v7392 = vpop.f32.mrf.mxu0
    %v7393 = vadd.f32 %v7304, %v7392
    %v7394 = vpop.f32.mrf.mxu0
    %v7395 = vadd.f32 %v7304, %v7394
    %7396 = vmatmul.bf16.gmra.mxu0 %v7271
    %v7397 = vpop.f32.mrf.mxu0
    %v7398 = vadd.f32 %v7304, %v7397
    %v7399 = vpop.f32.mrf.mxu0
    %v7400 = vadd.f32 %v7304, %v7399
    %7401 = vmatmul.bf16.gmra.mxu0 %v7273
    %v7402 = vpop.f32.mrf.mxu0
    %v7403 = vadd.f32 %v7304, %v7402
    %v7404 = vpop.f32.mrf.mxu0
    %v7405 = vadd.f32 %v7304, %v7404
    %7406 = vmatmul.bf16.gmra.mxu0 %v7275
    %v7407 = vpop.f32.mrf.mxu0
    %v7408 = vadd.f32 %v7304, %v7407
    %v7409 = vpop.f32.mrf.mxu0
    %v7410 = vadd.f32 %v7304, %v7409
    %7411 = vmatmul.bf16.gmra.mxu0 %v7277
    %v7412 = vpop.f32.mrf.mxu0
    %v7413 = vadd.f32 %v7304, %v7412
    %v7414 = vpop.f32.mrf.mxu0
    %v7415 = vadd.f32 %v7304, %v7414
    %7416 = vmatmul.bf16.gmra.mxu0 %v7279
    %v7417 = vpop.f32.mrf.mxu0
    %v7418 = vadd.f32 %v7304, %v7417
    %v7419 = vpop.f32.mrf.mxu0
    %v7420 = vadd.f32 %v7304, %v7419
    %7421 = vmatmul.bf16.gmra.mxu0 %v7281
    %v7422 = vpop.f32.mrf.mxu0
    %v7423 = vadd.f32 %v7304, %v7422
    %v7424 = vpop.f32.mrf.mxu0
    %v7425 = vadd.f32 %v7304, %v7424
    %7426 = vmatmul.bf16.gmra.mxu0 %v7283
    %v7427 = vpop.f32.mrf.mxu0
    %v7428 = vadd.f32 %v7304, %v7427
    %v7429 = vpop.f32.mrf.mxu0
    %v7430 = vadd.f32 %v7304, %v7429
    %7431 = vdwg.mxu0
    %7432 = vmatpush.bf16.msra.mxu0 0
    %7433 = vmatpush.bf16.msra.mxu0 0
    %7434 = vmatpush.bf16.msra.mxu0 0
    %7435 = vmatpush.bf16.msra.mxu0 0
    %7436 = vmatpush.bf16.msra.mxu0 0
    %7437 = vmatpush.bf16.msra.mxu0 0
    %7438 = vmatpush.bf16.msra.mxu0 0
    %7439 = vmatpush.bf16.msra.mxu0 %v7349
    %7440 = vmatmul.bf16.gmra.mxu0 %v7360
    %v7441 = vpop.f32.mrf.mxu0
    %v7442 = vadd.f32 %v7393, %v7441
    %v7443 = vpop.f32.mrf.mxu0
    %v7444 = vadd.f32 %v7395, %v7443
    %7445 = vmatmul.bf16.gmra.mxu0 %v7363
    %v7446 = vpop.f32.mrf.mxu0
    %v7447 = vadd.f32 %v7398, %v7446
    %v7448 = vpop.f32.mrf.mxu0
    %v7449 = vadd.f32 %v7400, %v7448
    %7450 = vmatmul.bf16.gmra.mxu0 %v7366
    %v7451 = vpop.f32.mrf.mxu0
    %v7452 = vadd.f32 %v7403, %v7451
    %v7453 = vpop.f32.mrf.mxu0
    %v7454 = vadd.f32 %v7405, %v7453
    %7455 = vmatmul.bf16.gmra.mxu0 %v7369
    %v7456 = vpop.f32.mrf.mxu0
    %v7457 = vadd.f32 %v7408, %v7456
    %v7458 = vpop.f32.mrf.mxu0
    %v7459 = vadd.f32 %v7410, %v7458
    %7460 = vmatmul.bf16.gmra.mxu0 %v7372
    %v7461 = vpop.f32.mrf.mxu0
    %v7462 = vadd.f32 %v7413, %v7461
    %v7463 = vpop.f32.mrf.mxu0
    %v7464 = vadd.f32 %v7415, %v7463
    %7465 = vmatmul.bf16.gmra.mxu0 %v7375
    %v7466 = vpop.f32.mrf.mxu0
    %v7467 = vadd.f32 %v7418, %v7466
    %v7468 = vpop.f32.mrf.mxu0
    %v7469 = vadd.f32 %v7420, %v7468
    %7470 = vmatmul.bf16.gmra.mxu0 %v7378
    %v7471 = vpop.f32.mrf.mxu0
    %v7472 = vadd.f32 %v7423, %v7471
    %v7473 = vpop.f32.mrf.mxu0
    %v7474 = vadd.f32 %v7425, %v7473
    %7475 = vmatmul.bf16.gmra.mxu0 %v7381
    %v7476 = vpop.f32.mrf.mxu0
    %v7477 = vadd.f32 %v7428, %v7476
    %v7478 = vpop.f32.mrf.mxu0
    %v7479 = vadd.f32 %v7430, %v7478
    %7480 = vdwg.mxu0
    %v7481 = vadd.f32 %v7442, %v5807
    %v7482 = vadd.f32 %v7444, %v5808
    %v7483 = vadd.f32 %v7447, %v5809
    %v7484 = vadd.f32 %v7449, %v5810
    %v7485 = vadd.f32 %v7452, %v5811
    %v7486 = vadd.f32 %v7454, %v5812
    %v7487 = vadd.f32 %v7457, %v5813
    %v7488 = vadd.f32 %v7459, %v5814
    %v7489 = vadd.f32 %v7462, %v5815
    %v7490 = vadd.f32 %v7464, %v5816
    %v7491 = vadd.f32 %v7467, %v5817
    %v7492 = vadd.f32 %v7469, %v5818
    %v7493 = vadd.f32 %v7472, %v5819
    %v7494 = vadd.f32 %v7474, %v5820
    %v7495 = vadd.f32 %v7477, %v5821
    %v7496 = vadd.f32 %v7479, %v5822
    %v7497 = vsel %vm104, %v7481, 0.0
    %v7498 = vsel %vm104, %v7482, 0.0
    %v7499 = vadd.f32 %v7497, %v7498
    %v7500 = vsel %vm104, %v7483, 0.0
    %v7501 = vadd.f32 %v7499, %v7500
    %v7502 = vsel %vm104, %v7484, 0.0
    %v7503 = vadd.f32 %v7501, %v7502
    %v7504 = vsel %vm104, %v7485, 0.0
    %v7505 = vadd.f32 %v7503, %v7504
    %v7506 = vsel %vm104, %v7486, 0.0
    %v7507 = vadd.f32 %v7505, %v7506
    %v7508 = vsel %vm104, %v7487, 0.0
    %v7509 = vadd.f32 %v7507, %v7508
    %v7510 = vsel %vm104, %v7488, 0.0
    %v7511 = vadd.f32 %v7509, %v7510
    %v7512 = vrot.slane %v7511, 4
    %v7513 = vadd.f32 %v7511, %v7512
    %v7514 = vrot.slane %v7513, 2
    %v7515 = vadd.f32 %v7513, %v7514
    %v7516 = vrot.slane %v7515, 1
    %v7517 = vadd.f32 %v7515, %v7516
    %v7518 = vsel %vm104, %v7489, 0.0
    %v7519 = vsel %vm104, %v7490, 0.0
    %v7520 = vadd.f32 %v7518, %v7519
    %v7521 = vsel %vm104, %v7491, 0.0
    %v7522 = vadd.f32 %v7520, %v7521
    %v7523 = vsel %vm104, %v7492, 0.0
    %v7524 = vadd.f32 %v7522, %v7523
    %v7525 = vsel %vm104, %v7493, 0.0
    %v7526 = vadd.f32 %v7524, %v7525
    %v7527 = vsel %vm104, %v7494, 0.0
    %v7528 = vadd.f32 %v7526, %v7527
    %v7529 = vsel %vm104, %v7495, 0.0
    %v7530 = vadd.f32 %v7528, %v7529
    %v7531 = vsel %vm104, %v7496, 0.0
    %v7532 = vadd.f32 %v7530, %v7531
    %v7533 = vrot.slane %v7532, 4
    %v7534 = vadd.f32 %v7532, %v7533
    %v7535 = vrot.slane %v7534, 2
    %v7536 = vadd.f32 %v7534, %v7535
    %v7537 = vrot.slane %v7536, 1
    %v7538 = vadd.f32 %v7536, %v7537
    %v7539 = vmul.f32 %v7517, 0.015625
    %v7540 = vmul.f32 %v7538, 0.015625
    %v7541 = vsub.f32 %v7481, %v7539
    %v7542 = vsub.f32 %v7482, %v7539
    %v7543 = vsub.f32 %v7483, %v7539
    %v7544 = vsub.f32 %v7484, %v7539
    %v7545 = vsub.f32 %v7485, %v7539
    %v7546 = vsub.f32 %v7486, %v7539
    %v7547 = vsub.f32 %v7487, %v7539
    %v7548 = vsub.f32 %v7488, %v7539
    %v7549 = vsub.f32 %v7489, %v7540
    %v7550 = vsub.f32 %v7490, %v7540
    %v7551 = vsub.f32 %v7491, %v7540
    %v7552 = vsub.f32 %v7492, %v7540
    %v7553 = vsub.f32 %v7493, %v7540
    %v7554 = vsub.f32 %v7494, %v7540
    %v7555 = vsub.f32 %v7495, %v7540
    %v7556 = vsub.f32 %v7496, %v7540
    %v7557 = vmul.f32 %v7541, %v7541
    %v7558 = vmul.f32 %v7542, %v7542
    %v7559 = vmul.f32 %v7543, %v7543
    %v7560 = vmul.f32 %v7544, %v7544
    %v7561 = vmul.f32 %v7545, %v7545
    %v7562 = vmul.f32 %v7546, %v7546
    %v7563 = vmul.f32 %v7547, %v7547
    %v7564 = vmul.f32 %v7548, %v7548
    %v7565 = vmul.f32 %v7549, %v7549
    %v7566 = vmul.f32 %v7550, %v7550
    %v7567 = vmul.f32 %v7551, %v7551
    %v7568 = vmul.f32 %v7552, %v7552
    %v7569 = vmul.f32 %v7553, %v7553
    %v7570 = vmul.f32 %v7554, %v7554
    %v7571 = vmul.f32 %v7555, %v7555
    %v7572 = vmul.f32 %v7556, %v7556
    %v7573 = vsel %vm104, %v7557, 0.0
    %v7574 = vsel %vm104, %v7558, 0.0
    %v7575 = vadd.f32 %v7573, %v7574
    %v7576 = vsel %vm104, %v7559, 0.0
    %v7577 = vadd.f32 %v7575, %v7576
    %v7578 = vsel %vm104, %v7560, 0.0
    %v7579 = vadd.f32 %v7577, %v7578
    %v7580 = vsel %vm104, %v7561, 0.0
    %v7581 = vadd.f32 %v7579, %v7580
    %v7582 = vsel %vm104, %v7562, 0.0
    %v7583 = vadd.f32 %v7581, %v7582
    %v7584 = vsel %vm104, %v7563, 0.0
    %v7585 = vadd.f32 %v7583, %v7584
    %v7586 = vsel %vm104, %v7564, 0.0
    %v7587 = vadd.f32 %v7585, %v7586
    %v7588 = vrot.slane %v7587, 4
    %v7589 = vadd.f32 %v7587, %v7588
    %v7590 = vrot.slane %v7589, 2
    %v7591 = vadd.f32 %v7589, %v7590
    %v7592 = vrot.slane %v7591, 1
    %v7593 = vadd.f32 %v7591, %v7592
    %v7594 = vsel %vm104, %v7565, 0.0
    %v7595 = vsel %vm104, %v7566, 0.0
    %v7596 = vadd.f32 %v7594, %v7595
    %v7597 = vsel %vm104, %v7567, 0.0
    %v7598 = vadd.f32 %v7596, %v7597
    %v7599 = vsel %vm104, %v7568, 0.0
    %v7600 = vadd.f32 %v7598, %v7599
    %v7601 = vsel %vm104, %v7569, 0.0
    %v7602 = vadd.f32 %v7600, %v7601
    %v7603 = vsel %vm104, %v7570, 0.0
    %v7604 = vadd.f32 %v7602, %v7603
    %v7605 = vsel %vm104, %v7571, 0.0
    %v7606 = vadd.f32 %v7604, %v7605
    %v7607 = vsel %vm104, %v7572, 0.0
    %v7608 = vadd.f32 %v7606, %v7607
    %v7609 = vrot.slane %v7608, 4
    %v7610 = vadd.f32 %v7608, %v7609
    %v7611 = vrot.slane %v7610, 2
    %v7612 = vadd.f32 %v7610, %v7611
    %v7613 = vrot.slane %v7612, 1
    %v7614 = vadd.f32 %v7612, %v7613
    %v7615 = vmul.f32 %v7593, 0.015625
    %v7616 = vmul.f32 %v7614, 0.015625
    %v7617 = vrsqrt.pop %v7615
    %v7618 = vmul.f32 %v7617, %v7615
    %v7619 = vmul.f32 %v7618, %v7617
    %v7620 = vmul.f32 0.5, %v7619
    %v7621 = vsub.f32 1.5, %v7620
    %v7622 = vmul.f32 %v7617, %v7621
    %v7623 = vmul.f32 %v7615, %v7622
    %vm7624 = vcmp.eq.f32.partialorder %v7615, inf
    %v7625 = vsel %vm7624, %v7615, %v7623
    %vm7626 = vcmp.eq.f32.partialorder %v7615, 0.0
    %v7627 = vand.u32 %v7615, 2147483648
    %v7628 = vsel %vm7626, %v7627, %v7625
    %v7629 = vrsqrt.pop %v7616
    %v7630 = vmul.f32 %v7629, %v7616
    %v7631 = vmul.f32 %v7630, %v7629
    %v7632 = vmul.f32 0.5, %v7631
    %v7633 = vsub.f32 1.5, %v7632
    %v7634 = vmul.f32 %v7629, %v7633
    %v7635 = vmul.f32 %v7616, %v7634
    %vm7636 = vcmp.eq.f32.partialorder %v7616, inf
    %v7637 = vsel %vm7636, %v7616, %v7635
    %vm7638 = vcmp.eq.f32.partialorder %v7616, 0.0
    %v7639 = vand.u32 %v7616, 2147483648
    %v7640 = vsel %vm7638, %v7639, %v7637
    %v7641 = vadd.f32 %v7628, %v7539
    %v7642 = vadd.f32 %v7640, %v7540
    %v7643 = vld [vmem:[%s18] sm:$0xff]
    %v7644 = vld [vmem:[%s18 + $0x8] sm:$0xff]
    %v7645 = vld [vmem:[%s1 + $0xc] sm:$0x1]
    %v7646 = vperm.slane %v7645, 0
    %v7649 = vsel %vm1882, %v7642, %v7641
    %v7650 = vsel %vm104, %v7649, 0
    %7652 = vmatpush.msra.mxu0 0.0
    %7653 = vmatpush.msra.mxu0 0.0
    %7654 = vmatpush.msra.mxu0 0.0
    %7655 = vmatpush.msra.mxu0 0.0
    %7656 = vmatpush.msra.mxu0 0.0
    %7657 = vmatpush.msra.mxu0 0.0
    %7658 = vmatpush.msra.mxu0 0.0
    %7659 = vmatpush.msra.mxu0 0.0
    %7660 = vmatpush.msra.mxu0 0.0
    %7661 = vmatpush.msra.mxu0 0.0
    %7662 = vmatpush.msra.mxu0 0.0
    %7663 = vmatpush.msra.mxu0 0.0
    %7664 = vmatpush.msra.mxu0 0.0
    %7665 = vmatpush.msra.mxu0 0.0
    %7666 = vmatpush.msra.mxu0 %v7644
    %7667 = vmatpush.msra.mxu0 %v7643
    %7668 = vmatmul.f32.gmra.mxu0 %v7650
    %v7669 = vpop.f32.mrf.mxu0
    %v7670 = vadd.f32 %v7646, %v7669
    %7671 = vdwg.mxu0
    %v7672 = vsub.f32 0.0, %v7670
    %v7673 = vmul.f32 %v7672, 1.442695
    %v7674 = vpow.pop %v7673
    %v7675 = vadd.f32 %v7674, 1.0
    %v7676 = vrcp.pop %v7675
    %v7678 = vrot.slane %v7676, 1
    %v7679 = vperm.slane %v7676, 0
    %v7680 = vperm.slane %v7678, 0
    %v7683 = vmul.f32 %v7481, %v7679
    %v7684 = vmul.f32 %v7482, %v7679
    %v7685 = vmul.f32 %v7483, %v7679
    %v7686 = vmul.f32 %v7484, %v7679
    %v7687 = vmul.f32 %v7485, %v7679
    %v7688 = vmul.f32 %v7486, %v7679
    %v7689 = vmul.f32 %v7487, %v7679
    %v7690 = vmul.f32 %v7488, %v7679
    %v7691 = vmul.f32 %v7489, %v7680
    %v7692 = vmul.f32 %v7490, %v7680
    %v7693 = vmul.f32 %v7491, %v7680
    %v7694 = vmul.f32 %v7492, %v7680
    %v7695 = vmul.f32 %v7493, %v7680
    %v7696 = vmul.f32 %v7494, %v7680
    %v7697 = vmul.f32 %v7495, %v7680
    %v7698 = vmul.f32 %v7496, %v7680
    %v7699 = vadd.f32 %v7683, %v7481
    %v7700 = vadd.f32 %v7684, %v7482
    %v7701 = vadd.f32 %v7685, %v7483
    %v7702 = vadd.f32 %v7686, %v7484
    %v7703 = vadd.f32 %v7687, %v7485
    %v7704 = vadd.f32 %v7688, %v7486
    %v7705 = vadd.f32 %v7689, %v7487
    %v7706 = vadd.f32 %v7690, %v7488
    %v7707 = vadd.f32 %v7691, %v7489
    %v7708 = vadd.f32 %v7692, %v7490
    %v7709 = vadd.f32 %v7693, %v7491
    %v7710 = vadd.f32 %v7694, %v7492
    %v7711 = vadd.f32 %v7695, %v7493
    %v7712 = vadd.f32 %v7696, %v7494
    %v7713 = vadd.f32 %v7697, %v7495
    %v7714 = vadd.f32 %v7698, %v7496
    %7731 = vrot.lane.b32.xlu0 %v3811, 4
    %v7732 = vpop.permute.xlu0 %7731
    %7733 = vrot.lane.b32.xlu0 %v3812, 4
    %v7734 = vpop.permute.xlu0 %7733
    %7735 = vrot.lane.b32.xlu0 %v3813, 4
    %v7736 = vpop.permute.xlu0 %7735
    %7737 = vrot.lane.b32.xlu0 %v3814, 4
    %v7738 = vpop.permute.xlu0 %7737
    %7739 = vrot.lane.b32.xlu0 %v3815, 4
    %v7740 = vpop.permute.xlu0 %7739
    %7741 = vrot.lane.b32.xlu0 %v3816, 4
    %v7742 = vpop.permute.xlu0 %7741
    %7743 = vrot.lane.b32.xlu0 %v3817, 4
    %v7744 = vpop.permute.xlu0 %7743
    %7745 = vrot.lane.b32.xlu0 %v3818, 4
    %v7746 = vpop.permute.xlu0 %7745
    %7747 = vrot.lane.b32.xlu0 %v3819, 4
    %v7748 = vpop.permute.xlu0 %7747
    %7749 = vrot.lane.b32.xlu0 %v3820, 4
    %v7750 = vpop.permute.xlu0 %7749
    %7751 = vrot.lane.b32.xlu0 %v3821, 4
    %v7752 = vpop.permute.xlu0 %7751
    %7753 = vrot.lane.b32.xlu0 %v3822, 4
    %v7754 = vpop.permute.xlu0 %7753
    %7755 = vrot.lane.b32.xlu0 %v3823, 4
    %v7756 = vpop.permute.xlu0 %7755
    %7757 = vrot.lane.b32.xlu0 %v3824, 4
    %v7758 = vpop.permute.xlu0 %7757
    %7759 = vrot.lane.b32.xlu0 %v3825, 4
    %v7760 = vpop.permute.xlu0 %7759
    %7761 = vrot.lane.b32.xlu0 %v3826, 4
    %v7762 = vpop.permute.xlu0 %7761
    %7795 = vrot.lane.b32.xlu0 %v5727, 12
    %v7796 = vpop.permute.xlu0 %7795
    %7797 = vrot.lane.b32.xlu0 %v5728, 12
    %v7798 = vpop.permute.xlu0 %7797
    %7799 = vrot.lane.b32.xlu0 %v5729, 12
    %v7800 = vpop.permute.xlu0 %7799
    %7801 = vrot.lane.b32.xlu0 %v5730, 12
    %v7802 = vpop.permute.xlu0 %7801
    %7803 = vrot.lane.b32.xlu0 %v5731, 12
    %v7804 = vpop.permute.xlu0 %7803
    %7805 = vrot.lane.b32.xlu0 %v5732, 12
    %v7806 = vpop.permute.xlu0 %7805
    %7807 = vrot.lane.b32.xlu0 %v5733, 12
    %v7808 = vpop.permute.xlu0 %7807
    %7809 = vrot.lane.b32.xlu0 %v5734, 12
    %v7810 = vpop.permute.xlu0 %7809
    %7811 = vrot.lane.b32.xlu0 %v5735, 12
    %v7812 = vpop.permute.xlu0 %7811
    %7813 = vrot.lane.b32.xlu0 %v5736, 12
    %v7814 = vpop.permute.xlu0 %7813
    %7815 = vrot.lane.b32.xlu0 %v5737, 12
    %v7816 = vpop.permute.xlu0 %7815
    %7817 = vrot.lane.b32.xlu0 %v5738, 12
    %v7818 = vpop.permute.xlu0 %7817
    %7819 = vrot.lane.b32.xlu0 %v5739, 12
    %v7820 = vpop.permute.xlu0 %7819
    %7821 = vrot.lane.b32.xlu0 %v5740, 12
    %v7822 = vpop.permute.xlu0 %7821
    %7823 = vrot.lane.b32.xlu0 %v5741, 12
    %v7824 = vpop.permute.xlu0 %7823
    %7825 = vrot.lane.b32.xlu0 %v5742, 12
    %v7826 = vpop.permute.xlu0 %7825
    %7859 = vrot.lane.b32.xlu0 %v7699, 24
    %v7860 = vpop.permute.xlu0 %7859
    %7861 = vrot.lane.b32.xlu0 %v7700, 24
    %v7862 = vpop.permute.xlu0 %7861
    %7863 = vrot.lane.b32.xlu0 %v7701, 24
    %v7864 = vpop.permute.xlu0 %7863
    %7865 = vrot.lane.b32.xlu0 %v7702, 24
    %v7866 = vpop.permute.xlu0 %7865
    %7867 = vrot.lane.b32.xlu0 %v7703, 24
    %v7868 = vpop.permute.xlu0 %7867
    %7869 = vrot.lane.b32.xlu0 %v7704, 24
    %v7870 = vpop.permute.xlu0 %7869
    %7871 = vrot.lane.b32.xlu0 %v7705, 24
    %v7872 = vpop.permute.xlu0 %7871
    %7873 = vrot.lane.b32.xlu0 %v7706, 24
    %v7874 = vpop.permute.xlu0 %7873
    %7875 = vrot.lane.b32.xlu0 %v7707, 24
    %v7876 = vpop.permute.xlu0 %7875
    %7877 = vrot.lane.b32.xlu0 %v7708, 24
    %v7878 = vpop.permute.xlu0 %7877
    %7879 = vrot.lane.b32.xlu0 %v7709, 24
    %v7880 = vpop.permute.xlu0 %7879
    %7881 = vrot.lane.b32.xlu0 %v7710, 24
    %v7882 = vpop.permute.xlu0 %7881
    %7883 = vrot.lane.b32.xlu0 %v7711, 24
    %v7884 = vpop.permute.xlu0 %7883
    %7885 = vrot.lane.b32.xlu0 %v7712, 24
    %v7886 = vpop.permute.xlu0 %7885
    %7887 = vrot.lane.b32.xlu0 %v7713, 24
    %v7888 = vpop.permute.xlu0 %7887
    %7889 = vrot.lane.b32.xlu0 %v7714, 24
    %v7890 = vpop.permute.xlu0 %7889
    %7907 = vrot.lane.b32.xlu0 %v3594, 40
    %v7908 = vpop.permute.xlu0 %7907
    %7909 = vrot.lane.b32.xlu0 %v3595, 40
    %v7910 = vpop.permute.xlu0 %7909
    %7911 = vrot.lane.b32.xlu0 %v3596, 40
    %v7912 = vpop.permute.xlu0 %7911
    %7913 = vrot.lane.b32.xlu0 %v3597, 40
    %v7914 = vpop.permute.xlu0 %7913
    %7915 = vrot.lane.b32.xlu0 %v3598, 40
    %v7916 = vpop.permute.xlu0 %7915
    %7917 = vrot.lane.b32.xlu0 %v3599, 40
    %v7918 = vpop.permute.xlu0 %7917
    %7919 = vrot.lane.b32.xlu0 %v3600, 40
    %v7920 = vpop.permute.xlu0 %7919
    %7921 = vrot.lane.b32.xlu0 %v3601, 40
    %v7922 = vpop.permute.xlu0 %7921
    %7923 = vrot.lane.b32.xlu0 %v3602, 40
    %v7924 = vpop.permute.xlu0 %7923
    %7925 = vrot.lane.b32.xlu0 %v3603, 40
    %v7926 = vpop.permute.xlu0 %7925
    %7927 = vrot.lane.b32.xlu0 %v3604, 40
    %v7928 = vpop.permute.xlu0 %7927
    %7929 = vrot.lane.b32.xlu0 %v3605, 40
    %v7930 = vpop.permute.xlu0 %7929
    %7931 = vrot.lane.b32.xlu0 %v3606, 40
    %v7932 = vpop.permute.xlu0 %7931
    %7933 = vrot.lane.b32.xlu0 %v3607, 40
    %v7934 = vpop.permute.xlu0 %7933
    %7935 = vrot.lane.b32.xlu0 %v3608, 40
    %v7936 = vpop.permute.xlu0 %7935
    %7937 = vrot.lane.b32.xlu0 %v3609, 40
    %v7938 = vpop.permute.xlu0 %7937
    %v7955 = vsel %vm678, %v1937, %v7732
    %v7956 = vsel %vm678, %v1938, %v7734
    %v7957 = vsel %vm678, %v1939, %v7736
    %v7958 = vsel %vm678, %v1940, %v7738
    %v7959 = vsel %vm678, %v1941, %v7740
    %v7960 = vsel %vm678, %v1942, %v7742
    %v7961 = vsel %vm678, %v1943, %v7744
    %v7962 = vsel %vm678, %v1944, %v7746
    %v7963 = vsel %vm678, %v1945, %v7748
    %v7964 = vsel %vm678, %v1946, %v7750
    %v7965 = vsel %vm678, %v1947, %v7752
    %v7966 = vsel %vm678, %v1948, %v7754
    %v7967 = vsel %vm678, %v1949, %v7756
    %v7968 = vsel %vm678, %v1950, %v7758
    %v7969 = vsel %vm678, %v1951, %v7760
    %v7970 = vsel %vm678, %v1952, %v7762
    %v7971 = vsel %vm712, %v7955, %v7796
    %v7972 = vsel %vm712, %v7956, %v7798
    %v7973 = vsel %vm712, %v7957, %v7800
    %v7974 = vsel %vm712, %v7958, %v7802
    %v7975 = vsel %vm712, %v7959, %v7804
    %v7976 = vsel %vm712, %v7960, %v7806
    %v7977 = vsel %vm712, %v7961, %v7808
    %v7978 = vsel %vm712, %v7962, %v7810
    %v7979 = vsel %vm712, %v7963, %v7812
    %v7980 = vsel %vm712, %v7964, %v7814
    %v7981 = vsel %vm712, %v7965, %v7816
    %v7982 = vsel %vm712, %v7966, %v7818
    %v7983 = vsel %vm712, %v7967, %v7820
    %v7984 = vsel %vm712, %v7968, %v7822
    %v7985 = vsel %vm712, %v7969, %v7824
    %v7986 = vsel %vm712, %v7970, %v7826
    %v7987 = vsel %vm762, %v7971, %v7860
    %v7988 = vsel %vm762, %v7972, %v7862
    %v7989 = vsel %vm762, %v7973, %v7864
    %v7990 = vsel %vm762, %v7974, %v7866
    %v7991 = vsel %vm762, %v7975, %v7868
    %v7992 = vsel %vm762, %v7976, %v7870
    %v7993 = vsel %vm762, %v7977, %v7872
    %v7994 = vsel %vm762, %v7978, %v7874
    %v7995 = vsel %vm762, %v7979, %v7876
    %v7996 = vsel %vm762, %v7980, %v7878
    %v7997 = vsel %vm762, %v7981, %v7880
    %v7998 = vsel %vm762, %v7982, %v7882
    %v7999 = vsel %vm762, %v7983, %v7884
    %v8000 = vsel %vm762, %v7984, %v7886
    %v8001 = vsel %vm762, %v7985, %v7888
    %v8002 = vsel %vm762, %v7986, %v7890
    %v8003 = vsel %vm2593, %v7987, %v7908
    %v8004 = vsel %vm2593, %v7988, %v7910
    %v8005 = vsel %vm2593, %v7989, %v7912
    %v8006 = vsel %vm2593, %v7990, %v7914
    %v8007 = vsel %vm2593, %v7991, %v7916
    %v8008 = vsel %vm2593, %v7992, %v7918
    %v8009 = vsel %vm2593, %v7993, %v7920
    %v8010 = vsel %vm2593, %v7994, %v7922
    %v8011 = vsel %vm2593, %v7995, %v7924
    %v8012 = vsel %vm2593, %v7996, %v7926
    %v8013 = vsel %vm2593, %v7997, %v7928
    %v8014 = vsel %vm2593, %v7998, %v7930
    %v8015 = vsel %vm2593, %v7999, %v7932
    %v8016 = vsel %vm2593, %v8000, %v7934
    %v8017 = vsel %vm2593, %v8001, %v7936
    %v8018 = vsel %vm2593, %v8002, %v7938
    %v8019 = vld [vmem:[%s19] sm:$0xf]
    %v8020 = vld [vmem:[%s19 + $0x4] sm:$0xf]
    %v8021 = vld [vmem:[%s19 + $0x8] sm:$0xf]
    %v8022 = vld [vmem:[%s19 + $0xc] sm:$0xf]
    %v8023 = vld [vmem:[%s19 + $0x10] sm:$0xf]
    %v8024 = vld [vmem:[%s19 + $0x14] sm:$0xf]
    %v8025 = vpack.c.bf16 %v8004, %v8003
    %v8026 = vpack.c.bf16 %v8006, %v8005
    %v8027 = vpack.c.bf16 %v8008, %v8007
    %v8028 = vpack.c.bf16 %v8010, %v8009
    %v8029 = vpack.c.bf16 %v8012, %v8011
    %v8030 = vpack.c.bf16 %v8014, %v8013
    %v8031 = vpack.c.bf16 %v8016, %v8015
    %v8032 = vpack.c.bf16 %v8018, %v8017
    %v8033 = vld [vmem:[%s1 + $0xd] sm:$0x1]
    %v8034 = vperm.slane %v8033, 0
    %v8041 = vunpack.c.l.b16 %v8019
    %v8042 = vunpack.c.l.b16 %v8020
    %v8043 = vunpack.c.l.b16 %v8021
    %v8044 = vunpack.c.l.b16 %v8022
    %v8045 = vunpack.c.l.b16 %v8023
    %v8046 = vunpack.c.l.b16 %v8024
    %v8047 = vpack.c.b16 %v8042, %v8041
    %v8048 = vpack.c.b16 %v8044, %v8043
    %v8049 = vpack.c.b16 %v8046, %v8045
    %v8054 = vsel %vm2610, %v8025, 0
    %v8057 = vsel %vm2610, %v8026, 0
    %v8060 = vsel %vm2610, %v8027, 0
    %v8063 = vsel %vm2610, %v8028, 0
    %v8066 = vsel %vm2610, %v8029, 0
    %v8069 = vsel %vm2610, %v8030, 0
    %v8072 = vsel %vm2610, %v8031, 0
    %v8075 = vsel %vm2610, %v8032, 0
    %8077 = vmatpush.bf16.msra.mxu0 0
    %8078 = vmatpush.bf16.msra.mxu0 0
    %8079 = vmatpush.bf16.msra.mxu0 0
    %8080 = vmatpush.bf16.msra.mxu0 0
    %8081 = vmatpush.bf16.msra.mxu0 0
    %8082 = vmatpush.bf16.msra.mxu0 %v8049
    %8083 = vmatpush.bf16.msra.mxu0 %v8048
    %8084 = vmatpush.bf16.msra.mxu0 %v8047
    %8085 = vmatmul.bf16.gmra.mxu0 %v8054
    %v8086 = vpop.f32.mrf.mxu0
    %v8087 = vadd.f32 %v8034, %v8086
    %v8088 = vpop.f32.mrf.mxu0
    %v8089 = vadd.f32 %v8034, %v8088
    %8090 = vmatmul.bf16.gmra.mxu0 %v8057
    %v8091 = vpop.f32.mrf.mxu0
    %v8092 = vadd.f32 %v8034, %v8091
    %v8093 = vpop.f32.mrf.mxu0
    %v8094 = vadd.f32 %v8034, %v8093
    %8095 = vmatmul.bf16.gmra.mxu0 %v8060
    %v8096 = vpop.f32.mrf.mxu0
    %v8097 = vadd.f32 %v8034, %v8096
    %v8098 = vpop.f32.mrf.mxu0
    %v8099 = vadd.f32 %v8034, %v8098
    %8100 = vmatmul.bf16.gmra.mxu0 %v8063
    %v8101 = vpop.f32.mrf.mxu0
    %v8102 = vadd.f32 %v8034, %v8101
    %v8103 = vpop.f32.mrf.mxu0
    %v8104 = vadd.f32 %v8034, %v8103
    %8105 = vmatmul.bf16.gmra.mxu0 %v8066
    %v8106 = vpop.f32.mrf.mxu0
    %v8107 = vadd.f32 %v8034, %v8106
    %v8108 = vpop.f32.mrf.mxu0
    %v8109 = vadd.f32 %v8034, %v8108
    %8110 = vmatmul.bf16.gmra.mxu0 %v8069
    %v8111 = vpop.f32.mrf.mxu0
    %v8112 = vadd.f32 %v8034, %v8111
    %v8113 = vpop.f32.mrf.mxu0
    %v8114 = vadd.f32 %v8034, %v8113
    %8115 = vmatmul.bf16.gmra.mxu0 %v8072
    %v8116 = vpop.f32.mrf.mxu0
    %v8117 = vadd.f32 %v8034, %v8116
    %v8118 = vpop.f32.mrf.mxu0
    %v8119 = vadd.f32 %v8034, %v8118
    %8120 = vmatmul.bf16.gmra.mxu0 %v8075
    %v8121 = vpop.f32.mrf.mxu0
    %v8122 = vadd.f32 %v8034, %v8121
    %v8123 = vpop.f32.mrf.mxu0
    %v8124 = vadd.f32 %v8034, %v8123
    %8125 = vdwg.mxu0
    %v8126 = vrot.slane %v8087, 7
    %v8127 = vrot.slane %v8089, 7
    %v8128 = vrot.slane %v8092, 7
    %v8129 = vrot.slane %v8094, 7
    %v8130 = vrot.slane %v8097, 7
    %v8131 = vrot.slane %v8099, 7
    %v8132 = vrot.slane %v8102, 7
    %v8133 = vrot.slane %v8104, 7
    %v8134 = vrot.slane %v8107, 7
    %v8135 = vrot.slane %v8109, 7
    %v8136 = vrot.slane %v8112, 7
    %v8137 = vrot.slane %v8114, 7
    %v8138 = vrot.slane %v8117, 7
    %v8139 = vrot.slane %v8119, 7
    %v8140 = vrot.slane %v8122, 7
    %v8141 = vrot.slane %v8124, 7
    %v8142 = vsel %vm196, %v8140, %v8141
    %v8143 = vsel %vm196, %v8139, %v8140
    %v8144 = vsel %vm196, %v8138, %v8139
    %v8145 = vsel %vm196, %v8137, %v8138
    %v8146 = vsel %vm196, %v8136, %v8137
    %v8147 = vsel %vm196, %v8135, %v8136
    %v8148 = vsel %vm196, %v8134, %v8135
    %v8149 = vsel %vm196, %v8133, %v8134
    %v8150 = vsel %vm196, %v8132, %v8133
    %v8151 = vsel %vm196, %v8131, %v8132
    %v8152 = vsel %vm196, %v8130, %v8131
    %v8153 = vsel %vm196, %v8129, %v8130
    %v8154 = vsel %vm196, %v8128, %v8129
    %v8155 = vsel %vm196, %v8127, %v8128
    %v8156 = vsel %vm196, %v8126, %v8127
    %v8157 = vsel %vm196, %v8141, %v8126
    %v8158 = vrot.slane %v8087, 1
    %v8159 = vrot.slane %v8089, 1
    %v8160 = vrot.slane %v8092, 1
    %v8161 = vrot.slane %v8094, 1
    %v8162 = vrot.slane %v8097, 1
    %v8163 = vrot.slane %v8099, 1
    %v8164 = vrot.slane %v8102, 1
    %v8165 = vrot.slane %v8104, 1
    %v8166 = vrot.slane %v8107, 1
    %v8167 = vrot.slane %v8109, 1
    %v8168 = vrot.slane %v8112, 1
    %v8169 = vrot.slane %v8114, 1
    %v8170 = vrot.slane %v8117, 1
    %v8171 = vrot.slane %v8119, 1
    %v8172 = vrot.slane %v8122, 1
    %v8173 = vrot.slane %v8124, 1
    %v8174 = vsel %vm229, %v8172, %v8173
    %v8175 = vsel %vm229, %v8171, %v8172
    %v8176 = vsel %vm229, %v8170, %v8171
    %v8177 = vsel %vm229, %v8169, %v8170
    %v8178 = vsel %vm229, %v8168, %v8169
    %v8179 = vsel %vm229, %v8167, %v8168
    %v8180 = vsel %vm229, %v8166, %v8167
    %v8181 = vsel %vm229, %v8165, %v8166
    %v8182 = vsel %vm229, %v8164, %v8165
    %v8183 = vsel %vm229, %v8163, %v8164
    %v8184 = vsel %vm229, %v8162, %v8163
    %v8185 = vsel %vm229, %v8161, %v8162
    %v8186 = vsel %vm229, %v8160, %v8161
    %v8187 = vsel %vm229, %v8159, %v8160
    %v8188 = vsel %vm229, %v8158, %v8159
    %v8189 = vsel %vm229, %v8173, %v8158
    %8206 = vrot.lane.b32.xlu0 %v8124, 16
    %v8207 = vpop.permute.xlu0 %8206
    %8208 = vrot.lane.b32.xlu0 %v8087, 16
    %v8209 = vpop.permute.xlu0 %8208
    %8210 = vrot.lane.b32.xlu0 %v8089, 16
    %v8211 = vpop.permute.xlu0 %8210
    %8212 = vrot.lane.b32.xlu0 %v8092, 16
    %v8213 = vpop.permute.xlu0 %8212
    %8214 = vrot.lane.b32.xlu0 %v8094, 16
    %v8215 = vpop.permute.xlu0 %8214
    %8216 = vrot.lane.b32.xlu0 %v8097, 16
    %v8217 = vpop.permute.xlu0 %8216
    %8218 = vrot.lane.b32.xlu0 %v8099, 16
    %v8219 = vpop.permute.xlu0 %8218
    %8220 = vrot.lane.b32.xlu0 %v8102, 16
    %v8221 = vpop.permute.xlu0 %8220
    %8222 = vrot.lane.b32.xlu0 %v8104, 16
    %v8223 = vpop.permute.xlu0 %8222
    %8224 = vrot.lane.b32.xlu0 %v8107, 16
    %v8225 = vpop.permute.xlu0 %8224
    %8226 = vrot.lane.b32.xlu0 %v8109, 16
    %v8227 = vpop.permute.xlu0 %8226
    %8228 = vrot.lane.b32.xlu0 %v8112, 16
    %v8229 = vpop.permute.xlu0 %8228
    %8230 = vrot.lane.b32.xlu0 %v8114, 16
    %v8231 = vpop.permute.xlu0 %8230
    %8232 = vrot.lane.b32.xlu0 %v8117, 16
    %v8233 = vpop.permute.xlu0 %8232
    %8234 = vrot.lane.b32.xlu0 %v8119, 16
    %v8235 = vpop.permute.xlu0 %8234
    %8236 = vrot.lane.b32.xlu0 %v8122, 16
    %v8237 = vpop.permute.xlu0 %8236
    %8270 = vrot.lane.b32.xlu0 %v8189, 32
    %v8271 = vpop.permute.xlu0 %8270
    %8272 = vrot.lane.b32.xlu0 %v8188, 32
    %v8273 = vpop.permute.xlu0 %8272
    %8274 = vrot.lane.b32.xlu0 %v8187, 32
    %v8275 = vpop.permute.xlu0 %8274
    %8276 = vrot.lane.b32.xlu0 %v8186, 32
    %v8277 = vpop.permute.xlu0 %8276
    %8278 = vrot.lane.b32.xlu0 %v8185, 32
    %v8279 = vpop.permute.xlu0 %8278
    %8280 = vrot.lane.b32.xlu0 %v8184, 32
    %v8281 = vpop.permute.xlu0 %8280
    %8282 = vrot.lane.b32.xlu0 %v8183, 32
    %v8283 = vpop.permute.xlu0 %8282
    %8284 = vrot.lane.b32.xlu0 %v8182, 32
    %v8285 = vpop.permute.xlu0 %8284
    %8286 = vrot.lane.b32.xlu0 %v8181, 32
    %v8287 = vpop.permute.xlu0 %8286
    %8288 = vrot.lane.b32.xlu0 %v8180, 32
    %v8289 = vpop.permute.xlu0 %8288
    %8290 = vrot.lane.b32.xlu0 %v8179, 32
    %v8291 = vpop.permute.xlu0 %8290
    %8292 = vrot.lane.b32.xlu0 %v8178, 32
    %v8293 = vpop.permute.xlu0 %8292
    %8294 = vrot.lane.b32.xlu0 %v8177, 32
    %v8295 = vpop.permute.xlu0 %8294
    %8296 = vrot.lane.b32.xlu0 %v8176, 32
    %v8297 = vpop.permute.xlu0 %8296
    %8298 = vrot.lane.b32.xlu0 %v8175, 32
    %v8299 = vpop.permute.xlu0 %8298
    %8300 = vrot.lane.b32.xlu0 %v8174, 32
    %v8301 = vpop.permute.xlu0 %8300
    %8334 = vrot.lane.b32.xlu0 %v8157, 48
    %v8335 = vpop.permute.xlu0 %8334
    %8336 = vrot.lane.b32.xlu0 %v8156, 48
    %v8337 = vpop.permute.xlu0 %8336
    %8338 = vrot.lane.b32.xlu0 %v8155, 48
    %v8339 = vpop.permute.xlu0 %8338
    %8340 = vrot.lane.b32.xlu0 %v8154, 48
    %v8341 = vpop.permute.xlu0 %8340
    %8342 = vrot.lane.b32.xlu0 %v8153, 48
    %v8343 = vpop.permute.xlu0 %8342
    %8344 = vrot.lane.b32.xlu0 %v8152, 48
    %v8345 = vpop.permute.xlu0 %8344
    %8346 = vrot.lane.b32.xlu0 %v8151, 48
    %v8347 = vpop.permute.xlu0 %8346
    %8348 = vrot.lane.b32.xlu0 %v8150, 48
    %v8349 = vpop.permute.xlu0 %8348
    %8350 = vrot.lane.b32.xlu0 %v8149, 48
    %v8351 = vpop.permute.xlu0 %8350
    %8352 = vrot.lane.b32.xlu0 %v8148, 48
    %v8353 = vpop.permute.xlu0 %8352
    %8354 = vrot.lane.b32.xlu0 %v8147, 48
    %v8355 = vpop.permute.xlu0 %8354
    %8356 = vrot.lane.b32.xlu0 %v8146, 48
    %v8357 = vpop.permute.xlu0 %8356
    %8358 = vrot.lane.b32.xlu0 %v8145, 48
    %v8359 = vpop.permute.xlu0 %8358
    %8360 = vrot.lane.b32.xlu0 %v8144, 48
    %v8361 = vpop.permute.xlu0 %8360
    %8362 = vrot.lane.b32.xlu0 %v8143, 48
    %v8363 = vpop.permute.xlu0 %8362
    %8364 = vrot.lane.b32.xlu0 %v8142, 48
    %v8365 = vpop.permute.xlu0 %8364
    %8382 = vrot.lane.b32.xlu0 %v8087, 64
    %v8383 = vpop.permute.xlu0 %8382
    %8384 = vrot.lane.b32.xlu0 %v8089, 64
    %v8385 = vpop.permute.xlu0 %8384
    %8386 = vrot.lane.b32.xlu0 %v8092, 64
    %v8387 = vpop.permute.xlu0 %8386
    %8388 = vrot.lane.b32.xlu0 %v8094, 64
    %v8389 = vpop.permute.xlu0 %8388
    %8390 = vrot.lane.b32.xlu0 %v8097, 64
    %v8391 = vpop.permute.xlu0 %8390
    %8392 = vrot.lane.b32.xlu0 %v8099, 64
    %v8393 = vpop.permute.xlu0 %8392
    %8394 = vrot.lane.b32.xlu0 %v8102, 64
    %v8395 = vpop.permute.xlu0 %8394
    %8396 = vrot.lane.b32.xlu0 %v8104, 64
    %v8397 = vpop.permute.xlu0 %8396
    %8398 = vrot.lane.b32.xlu0 %v8107, 64
    %v8399 = vpop.permute.xlu0 %8398
    %8400 = vrot.lane.b32.xlu0 %v8109, 64
    %v8401 = vpop.permute.xlu0 %8400
    %8402 = vrot.lane.b32.xlu0 %v8112, 64
    %v8403 = vpop.permute.xlu0 %8402
    %8404 = vrot.lane.b32.xlu0 %v8114, 64
    %v8405 = vpop.permute.xlu0 %8404
    %8406 = vrot.lane.b32.xlu0 %v8117, 64
    %v8407 = vpop.permute.xlu0 %8406
    %8408 = vrot.lane.b32.xlu0 %v8119, 64
    %v8409 = vpop.permute.xlu0 %8408
    %8410 = vrot.lane.b32.xlu0 %v8122, 64
    %v8411 = vpop.permute.xlu0 %8410
    %8412 = vrot.lane.b32.xlu0 %v8124, 64
    %v8413 = vpop.permute.xlu0 %8412
    %8430 = vrot.lane.b32.xlu0 %v8188, 80
    %v8431 = vpop.permute.xlu0 %8430
    %8432 = vrot.lane.b32.xlu0 %v8187, 80
    %v8433 = vpop.permute.xlu0 %8432
    %8434 = vrot.lane.b32.xlu0 %v8186, 80
    %v8435 = vpop.permute.xlu0 %8434
    %8436 = vrot.lane.b32.xlu0 %v8185, 80
    %v8437 = vpop.permute.xlu0 %8436
    %8438 = vrot.lane.b32.xlu0 %v8184, 80
    %v8439 = vpop.permute.xlu0 %8438
    %8440 = vrot.lane.b32.xlu0 %v8183, 80
    %v8441 = vpop.permute.xlu0 %8440
    %8442 = vrot.lane.b32.xlu0 %v8182, 80
    %v8443 = vpop.permute.xlu0 %8442
    %8444 = vrot.lane.b32.xlu0 %v8181, 80
    %v8445 = vpop.permute.xlu0 %8444
    %8446 = vrot.lane.b32.xlu0 %v8180, 80
    %v8447 = vpop.permute.xlu0 %8446
    %8448 = vrot.lane.b32.xlu0 %v8179, 80
    %v8449 = vpop.permute.xlu0 %8448
    %8450 = vrot.lane.b32.xlu0 %v8178, 80
    %v8451 = vpop.permute.xlu0 %8450
    %8452 = vrot.lane.b32.xlu0 %v8177, 80
    %v8453 = vpop.permute.xlu0 %8452
    %8454 = vrot.lane.b32.xlu0 %v8176, 80
    %v8455 = vpop.permute.xlu0 %8454
    %8456 = vrot.lane.b32.xlu0 %v8175, 80
    %v8457 = vpop.permute.xlu0 %8456
    %8458 = vrot.lane.b32.xlu0 %v8174, 80
    %v8459 = vpop.permute.xlu0 %8458
    %8460 = vrot.lane.b32.xlu0 %v8189, 80
    %v8461 = vpop.permute.xlu0 %8460
    %8478 = vrot.lane.b32.xlu0 %v8156, 96
    %v8479 = vpop.permute.xlu0 %8478
    %8480 = vrot.lane.b32.xlu0 %v8155, 96
    %v8481 = vpop.permute.xlu0 %8480
    %8482 = vrot.lane.b32.xlu0 %v8154, 96
    %v8483 = vpop.permute.xlu0 %8482
    %8484 = vrot.lane.b32.xlu0 %v8153, 96
    %v8485 = vpop.permute.xlu0 %8484
    %8486 = vrot.lane.b32.xlu0 %v8152, 96
    %v8487 = vpop.permute.xlu0 %8486
    %8488 = vrot.lane.b32.xlu0 %v8151, 96
    %v8489 = vpop.permute.xlu0 %8488
    %8490 = vrot.lane.b32.xlu0 %v8150, 96
    %v8491 = vpop.permute.xlu0 %8490
    %8492 = vrot.lane.b32.xlu0 %v8149, 96
    %v8493 = vpop.permute.xlu0 %8492
    %8494 = vrot.lane.b32.xlu0 %v8148, 96
    %v8495 = vpop.permute.xlu0 %8494
    %8496 = vrot.lane.b32.xlu0 %v8147, 96
    %v8497 = vpop.permute.xlu0 %8496
    %8498 = vrot.lane.b32.xlu0 %v8146, 96
    %v8499 = vpop.permute.xlu0 %8498
    %8500 = vrot.lane.b32.xlu0 %v8145, 96
    %v8501 = vpop.permute.xlu0 %8500
    %8502 = vrot.lane.b32.xlu0 %v8144, 96
    %v8503 = vpop.permute.xlu0 %8502
    %8504 = vrot.lane.b32.xlu0 %v8143, 96
    %v8505 = vpop.permute.xlu0 %8504
    %8506 = vrot.lane.b32.xlu0 %v8142, 96
    %v8507 = vpop.permute.xlu0 %8506
    %8508 = vrot.lane.b32.xlu0 %v8157, 96
    %v8509 = vpop.permute.xlu0 %8508
    %8526 = vrot.lane.b32.xlu0 %v8089, 112
    %v8527 = vpop.permute.xlu0 %8526
    %8528 = vrot.lane.b32.xlu0 %v8092, 112
    %v8529 = vpop.permute.xlu0 %8528
    %8530 = vrot.lane.b32.xlu0 %v8094, 112
    %v8531 = vpop.permute.xlu0 %8530
    %8532 = vrot.lane.b32.xlu0 %v8097, 112
    %v8533 = vpop.permute.xlu0 %8532
    %8534 = vrot.lane.b32.xlu0 %v8099, 112
    %v8535 = vpop.permute.xlu0 %8534
    %8536 = vrot.lane.b32.xlu0 %v8102, 112
    %v8537 = vpop.permute.xlu0 %8536
    %8538 = vrot.lane.b32.xlu0 %v8104, 112
    %v8539 = vpop.permute.xlu0 %8538
    %8540 = vrot.lane.b32.xlu0 %v8107, 112
    %v8541 = vpop.permute.xlu0 %8540
    %8542 = vrot.lane.b32.xlu0 %v8109, 112
    %v8543 = vpop.permute.xlu0 %8542
    %8544 = vrot.lane.b32.xlu0 %v8112, 112
    %v8545 = vpop.permute.xlu0 %8544
    %8546 = vrot.lane.b32.xlu0 %v8114, 112
    %v8547 = vpop.permute.xlu0 %8546
    %8548 = vrot.lane.b32.xlu0 %v8117, 112
    %v8549 = vpop.permute.xlu0 %8548
    %8550 = vrot.lane.b32.xlu0 %v8119, 112
    %v8551 = vpop.permute.xlu0 %8550
    %8552 = vrot.lane.b32.xlu0 %v8122, 112
    %v8553 = vpop.permute.xlu0 %8552
    %8554 = vrot.lane.b32.xlu0 %v8124, 112
    %v8555 = vpop.permute.xlu0 %8554
    %8556 = vrot.lane.b32.xlu0 %v8087, 112
    %v8557 = vpop.permute.xlu0 %8556
    %v8574 = vsel %vm104, %v8142, %v8207
    %v8575 = vsel %vm104, %v8157, %v8209
    %v8576 = vsel %vm104, %v8156, %v8211
    %v8577 = vsel %vm104, %v8155, %v8213
    %v8578 = vsel %vm104, %v8154, %v8215
    %v8579 = vsel %vm104, %v8153, %v8217
    %v8580 = vsel %vm104, %v8152, %v8219
    %v8581 = vsel %vm104, %v8151, %v8221
    %v8582 = vsel %vm104, %v8150, %v8223
    %v8583 = vsel %vm104, %v8149, %v8225
    %v8584 = vsel %vm104, %v8148, %v8227
    %v8585 = vsel %vm104, %v8147, %v8229
    %v8586 = vsel %vm104, %v8146, %v8231
    %v8587 = vsel %vm104, %v8145, %v8233
    %v8588 = vsel %vm104, %v8144, %v8235
    %v8589 = vsel %vm104, %v8143, %v8237
    %v8590 = vsel %vm796, %v8574, %v8271
    %v8591 = vsel %vm796, %v8575, %v8273
    %v8592 = vsel %vm796, %v8576, %v8275
    %v8593 = vsel %vm796, %v8577, %v8277
    %v8594 = vsel %vm796, %v8578, %v8279
    %v8595 = vsel %vm796, %v8579, %v8281
    %v8596 = vsel %vm796, %v8580, %v8283
    %v8597 = vsel %vm796, %v8581, %v8285
    %v8598 = vsel %vm796, %v8582, %v8287
    %v8599 = vsel %vm796, %v8583, %v8289
    %v8600 = vsel %vm796, %v8584, %v8291
    %v8601 = vsel %vm796, %v8585, %v8293
    %v8602 = vsel %vm796, %v8586, %v8295
    %v8603 = vsel %vm796, %v8587, %v8297
    %v8604 = vsel %vm796, %v8588, %v8299
    %v8605 = vsel %vm796, %v8589, %v8301
    %v8606 = vsel %vm2610, %v8590, %v8335
    %v8607 = vsel %vm2610, %v8591, %v8337
    %v8608 = vsel %vm2610, %v8592, %v8339
    %v8609 = vsel %vm2610, %v8593, %v8341
    %v8610 = vsel %vm2610, %v8594, %v8343
    %v8611 = vsel %vm2610, %v8595, %v8345
    %v8612 = vsel %vm2610, %v8596, %v8347
    %v8613 = vsel %vm2610, %v8597, %v8349
    %v8614 = vsel %vm2610, %v8598, %v8351
    %v8615 = vsel %vm2610, %v8599, %v8353
    %v8616 = vsel %vm2610, %v8600, %v8355
    %v8617 = vsel %vm2610, %v8601, %v8357
    %v8618 = vsel %vm2610, %v8602, %v8359
    %v8619 = vsel %vm2610, %v8603, %v8361
    %v8620 = vsel %vm2610, %v8604, %v8363
    %v8621 = vsel %vm2610, %v8605, %v8365
    %v8622 = vsel %vm2644, %v8606, %v8383
    %v8623 = vsel %vm2644, %v8607, %v8385
    %v8624 = vsel %vm2644, %v8608, %v8387
    %v8625 = vsel %vm2644, %v8609, %v8389
    %v8626 = vsel %vm2644, %v8610, %v8391
    %v8627 = vsel %vm2644, %v8611, %v8393
    %v8628 = vsel %vm2644, %v8612, %v8395
    %v8629 = vsel %vm2644, %v8613, %v8397
    %v8630 = vsel %vm2644, %v8614, %v8399
    %v8631 = vsel %vm2644, %v8615, %v8401
    %v8632 = vsel %vm2644, %v8616, %v8403
    %v8633 = vsel %vm2644, %v8617, %v8405
    %v8634 = vsel %vm2644, %v8618, %v8407
    %v8635 = vsel %vm2644, %v8619, %v8409
    %v8636 = vsel %vm2644, %v8620, %v8411
    %v8637 = vsel %vm2644, %v8621, %v8413
    %v8638 = vsel %vm6335, %v8622, %v8431
    %v8639 = vsel %vm6335, %v8623, %v8433
    %v8640 = vsel %vm6335, %v8624, %v8435
    %v8641 = vsel %vm6335, %v8625, %v8437
    %v8642 = vsel %vm6335, %v8626, %v8439
    %v8643 = vsel %vm6335, %v8627, %v8441
    %v8644 = vsel %vm6335, %v8628, %v8443
    %v8645 = vsel %vm6335, %v8629, %v8445
    %v8646 = vsel %vm6335, %v8630, %v8447
    %v8647 = vsel %vm6335, %v8631, %v8449
    %v8648 = vsel %vm6335, %v8632, %v8451
    %v8649 = vsel %vm6335, %v8633, %v8453
    %v8650 = vsel %vm6335, %v8634, %v8455
    %v8651 = vsel %vm6335, %v8635, %v8457
    %v8652 = vsel %vm6335, %v8636, %v8459
    %v8653 = vsel %vm6335, %v8637, %v8461
    %v8654 = vsel %vm4517, %v8638, %v8479
    %v8655 = vsel %vm4517, %v8639, %v8481
    %v8656 = vsel %vm4517, %v8640, %v8483
    %v8657 = vsel %vm4517, %v8641, %v8485
    %v8658 = vsel %vm4517, %v8642, %v8487
    %v8659 = vsel %vm4517, %v8643, %v8489
    %v8660 = vsel %vm4517, %v8644, %v8491
    %v8661 = vsel %vm4517, %v8645, %v8493
    %v8662 = vsel %vm4517, %v8646, %v8495
    %v8663 = vsel %vm4517, %v8647, %v8497
    %v8664 = vsel %vm4517, %v8648, %v8499
    %v8665 = vsel %vm4517, %v8649, %v8501
    %v8666 = vsel %vm4517, %v8650, %v8503
    %v8667 = vsel %vm4517, %v8651, %v8505
    %v8668 = vsel %vm4517, %v8652, %v8507
    %v8669 = vsel %vm4517, %v8653, %v8509
    %v8670 = vsel %vm6368, %v8654, %v8527
    %v8671 = vsel %vm6368, %v8655, %v8529
    %v8672 = vsel %vm6368, %v8656, %v8531
    %v8673 = vsel %vm6368, %v8657, %v8533
    %v8674 = vsel %vm6368, %v8658, %v8535
    %v8675 = vsel %vm6368, %v8659, %v8537
    %v8676 = vsel %vm6368, %v8660, %v8539
    %v8677 = vsel %vm6368, %v8661, %v8541
    %v8678 = vsel %vm6368, %v8662, %v8543
    %v8679 = vsel %vm6368, %v8663, %v8545
    %v8680 = vsel %vm6368, %v8664, %v8547
    %v8681 = vsel %vm6368, %v8665, %v8549
    %v8682 = vsel %vm6368, %v8666, %v8551
    %v8683 = vsel %vm6368, %v8667, %v8553
    %v8684 = vsel %vm6368, %v8668, %v8555
    %v8685 = vsel %vm6368, %v8669, %v8557
    %v8686 = vmul.f32 %v8670, %v6385
    %v8687 = vmul.f32 %v8187, %v6386
    %v8688 = vmul.f32 %v8671, %v6387
    %v8689 = vmul.f32 %v8186, %v6388
    %v8690 = vmul.f32 %v8672, %v6389
    %v8691 = vmul.f32 %v8185, %v6390
    %v8692 = vmul.f32 %v8673, %v6391
    %v8693 = vmul.f32 %v8184, %v6392
    %v8694 = vmul.f32 %v8674, %v6393
    %v8695 = vmul.f32 %v8183, %v6394
    %v8696 = vmul.f32 %v8675, %v6395
    %v8697 = vmul.f32 %v8182, %v6396
    %v8698 = vmul.f32 %v8676, %v6397
    %v8699 = vmul.f32 %v8181, %v6398
    %v8700 = vmul.f32 %v8677, %v6399
    %v8701 = vmul.f32 %v8180, %v6400
    %v8702 = vmul.f32 %v8678, %v6401
    %v8703 = vmul.f32 %v8179, %v6402
    %v8704 = vmul.f32 %v8679, %v6403
    %v8705 = vmul.f32 %v8178, %v6404
    %v8706 = vmul.f32 %v8680, %v6405
    %v8707 = vmul.f32 %v8177, %v6406
    %v8708 = vmul.f32 %v8681, %v6407
    %v8709 = vmul.f32 %v8176, %v6408
    %v8710 = vmul.f32 %v8682, %v6409
    %v8711 = vmul.f32 %v8175, %v6410
    %v8712 = vmul.f32 %v8683, %v6411
    %v8713 = vmul.f32 %v8174, %v6412
    %v8714 = vmul.f32 %v8684, %v6413
    %v8715 = vmul.f32 %v8189, %v6414
    %v8716 = vmul.f32 %v8685, %v6415
    %v8717 = vmul.f32 %v8188, %v6416
    %v8718 = vpack.c.bf16 %v8688, %v8686
    %v8719 = vpack.c.bf16 %v8689, %v8687
    %v8720 = vpack.c.bf16 %v8692, %v8690
    %v8721 = vpack.c.bf16 %v8693, %v8691
    %v8722 = vpack.c.bf16 %v8696, %v8694
    %v8723 = vpack.c.bf16 %v8697, %v8695
    %v8724 = vpack.c.bf16 %v8700, %v8698
    %v8725 = vpack.c.bf16 %v8701, %v8699
    %v8726 = vpack.c.bf16 %v8704, %v8702
    %v8727 = vpack.c.bf16 %v8705, %v8703
    %v8728 = vpack.c.bf16 %v8708, %v8706
    %v8729 = vpack.c.bf16 %v8709, %v8707
    %v8730 = vpack.c.bf16 %v8712, %v8710
    %v8731 = vpack.c.bf16 %v8713, %v8711
    %v8732 = vpack.c.bf16 %v8716, %v8714
    %v8733 = vpack.c.bf16 %v8717, %v8715
    %v8734 = vld [vmem:[%s20] sm:$0xf]
    %v8735 = vld [vmem:[%s20 + $0x4] sm:$0xf]
    %v8736 = vld [vmem:[%s20 + $0x8] sm:$0xf]
    %v8737 = vld [vmem:[%s20 + $0xc] sm:$0xf]
    %v8738 = vld [vmem:[%s20 + $0x10] sm:$0xf]
    %v8739 = vld [vmem:[%s20 + $0x14] sm:$0xf]
    %v8740 = vld [vmem:[%s20 + $0x18] sm:$0xf]
    %v8741 = vld [vmem:[%s20 + $0x1c] sm:$0xf]
    %v8742 = vld [vmem:[%s20 + $0x20] sm:$0xf]
    %v8743 = vld [vmem:[%s20 + $0x24] sm:$0xf]
    %v8744 = vld [vmem:[%s20 + $0x28] sm:$0xf]
    %v8745 = vld [vmem:[%s20 + $0x2c] sm:$0xf]
    %v8746 = vld [vmem:[%s20 + $0x30] sm:$0xf]
    %v8747 = vld [vmem:[%s20 + $0x34] sm:$0xf]
    %v8748 = vld [vmem:[%s20 + $0x38] sm:$0xf]
    %v8749 = vld [vmem:[%s20 + $0x3c] sm:$0xf]
    %v8750 = vld [vmem:[%s20 + $0x40] sm:$0xf]
    %v8751 = vld [vmem:[%s20 + $0x44] sm:$0xf]
    %v8752 = vld [vmem:[%s1 + $0xe] sm:$0x1]
    %v8753 = vperm.slane %v8752, 0
    %v8772 = vunpack.c.l.b16 %v8734
    %v8773 = vunpack.c.l.b16 %v8735
    %v8774 = vunpack.c.l.b16 %v8736
    %v8775 = vunpack.c.l.b16 %v8737
    %v8776 = vunpack.c.l.b16 %v8738
    %v8777 = vunpack.c.l.b16 %v8739
    %v8778 = vunpack.c.l.b16 %v8740
    %v8779 = vunpack.c.l.b16 %v8741
    %v8780 = vunpack.c.l.b16 %v8742
    %v8781 = vunpack.c.l.b16 %v8743
    %v8782 = vunpack.c.l.b16 %v8744
    %v8783 = vunpack.c.l.b16 %v8745
    %v8784 = vunpack.c.l.b16 %v8746
    %v8785 = vunpack.c.l.b16 %v8747
    %v8786 = vunpack.c.l.b16 %v8748
    %v8787 = vunpack.c.l.b16 %v8749
    %v8788 = vunpack.c.l.b16 %v8750
    %v8789 = vunpack.c.l.b16 %v8751
    %v8790 = vpack.c.b16 %v8773, %v8772
    %v8791 = vpack.c.b16 %v8775, %v8774
    %v8792 = vpack.c.b16 %v8777, %v8776
    %v8793 = vpack.c.b16 %v8779, %v8778
    %v8794 = vpack.c.b16 %v8781, %v8780
    %v8795 = vpack.c.b16 %v8783, %v8782
    %v8796 = vpack.c.b16 %v8785, %v8784
    %v8797 = vpack.c.b16 %v8787, %v8786
    %v8798 = vpack.c.b16 %v8789, %v8788
    %v8809 = vsel %vm104, %v8719, 0
    %v8812 = vsel %vm104, %v8721, 0
    %v8815 = vsel %vm104, %v8723, 0
    %v8818 = vsel %vm104, %v8725, 0
    %v8821 = vsel %vm104, %v8727, 0
    %v8824 = vsel %vm104, %v8729, 0
    %v8827 = vsel %vm104, %v8731, 0
    %v8830 = vsel %vm104, %v8733, 0
    %8832 = vmatpush.bf16.msra.mxu0 %v8797
    %8833 = vmatpush.bf16.msra.mxu0 %v8796
    %8834 = vmatpush.bf16.msra.mxu0 %v8795
    %8835 = vmatpush.bf16.msra.mxu0 %v8794
    %8836 = vmatpush.bf16.msra.mxu0 %v8793
    %8837 = vmatpush.bf16.msra.mxu0 %v8792
    %8838 = vmatpush.bf16.msra.mxu0 %v8791
    %8839 = vmatpush.bf16.msra.mxu0 %v8790
    %8840 = vmatmul.bf16.gmra.mxu0 %v8718
    %v8841 = vpop.f32.mrf.mxu0
    %v8842 = vadd.f32 %v8753, %v8841
    %v8843 = vpop.f32.mrf.mxu0
    %v8844 = vadd.f32 %v8753, %v8843
    %8845 = vmatmul.bf16.gmra.mxu0 %v8720
    %v8846 = vpop.f32.mrf.mxu0
    %v8847 = vadd.f32 %v8753, %v8846
    %v8848 = vpop.f32.mrf.mxu0
    %v8849 = vadd.f32 %v8753, %v8848
    %8850 = vmatmul.bf16.gmra.mxu0 %v8722
    %v8851 = vpop.f32.mrf.mxu0
    %v8852 = vadd.f32 %v8753, %v8851
    %v8853 = vpop.f32.mrf.mxu0
    %v8854 = vadd.f32 %v8753, %v8853
    %8855 = vmatmul.bf16.gmra.mxu0 %v8724
    %v8856 = vpop.f32.mrf.mxu0
    %v8857 = vadd.f32 %v8753, %v8856
    %v8858 = vpop.f32.mrf.mxu0
    %v8859 = vadd.f32 %v8753, %v8858
    %8860 = vmatmul.bf16.gmra.mxu0 %v8726
    %v8861 = vpop.f32.mrf.mxu0
    %v8862 = vadd.f32 %v8753, %v8861
    %v8863 = vpop.f32.mrf.mxu0
    %v8864 = vadd.f32 %v8753, %v8863
    %8865 = vmatmul.bf16.gmra.mxu0 %v8728
    %v8866 = vpop.f32.mrf.mxu0
    %v8867 = vadd.f32 %v8753, %v8866
    %v8868 = vpop.f32.mrf.mxu0
    %v8869 = vadd.f32 %v8753, %v8868
    %8870 = vmatmul.bf16.gmra.mxu0 %v8730
    %v8871 = vpop.f32.mrf.mxu0
    %v8872 = vadd.f32 %v8753, %v8871
    %v8873 = vpop.f32.mrf.mxu0
    %v8874 = vadd.f32 %v8753, %v8873
    %8875 = vmatmul.bf16.gmra.mxu0 %v8732
    %v8876 = vpop.f32.mrf.mxu0
    %v8877 = vadd.f32 %v8753, %v8876
    %v8878 = vpop.f32.mrf.mxu0
    %v8879 = vadd.f32 %v8753, %v8878
    %8880 = vdwg.mxu0
    %8881 = vmatpush.bf16.msra.mxu0 0
    %8882 = vmatpush.bf16.msra.mxu0 0
    %8883 = vmatpush.bf16.msra.mxu0 0
    %8884 = vmatpush.bf16.msra.mxu0 0
    %8885 = vmatpush.bf16.msra.mxu0 0
    %8886 = vmatpush.bf16.msra.mxu0 0
    %8887 = vmatpush.bf16.msra.mxu0 0
    %8888 = vmatpush.bf16.msra.mxu0 %v8798
    %8889 = vmatmul.bf16.gmra.mxu0 %v8809
    %v8890 = vpop.f32.mrf.mxu0
    %v8891 = vadd.f32 %v8842, %v8890
    %v8892 = vpop.f32.mrf.mxu0
    %v8893 = vadd.f32 %v8844, %v8892
    %8894 = vmatmul.bf16.gmra.mxu0 %v8812
    %v8895 = vpop.f32.mrf.mxu0
    %v8896 = vadd.f32 %v8847, %v8895
    %v8897 = vpop.f32.mrf.mxu0
    %v8898 = vadd.f32 %v8849, %v8897
    %8899 = vmatmul.bf16.gmra.mxu0 %v8815
    %v8900 = vpop.f32.mrf.mxu0
    %v8901 = vadd.f32 %v8852, %v8900
    %v8902 = vpop.f32.mrf.mxu0
    %v8903 = vadd.f32 %v8854, %v8902
    %8904 = vmatmul.bf16.gmra.mxu0 %v8818
    %v8905 = vpop.f32.mrf.mxu0
    %v8906 = vadd.f32 %v8857, %v8905
    %v8907 = vpop.f32.mrf.mxu0
    %v8908 = vadd.f32 %v8859, %v8907
    %8909 = vmatmul.bf16.gmra.mxu0 %v8821
    %v8910 = vpop.f32.mrf.mxu0
    %v8911 = vadd.f32 %v8862, %v8910
    %v8912 = vpop.f32.mrf.mxu0
    %v8913 = vadd.f32 %v8864, %v8912
    %8914 = vmatmul.bf16.gmra.mxu0 %v8824
    %v8915 = vpop.f32.mrf.mxu0
    %v8916 = vadd.f32 %v8867, %v8915
    %v8917 = vpop.f32.mrf.mxu0
    %v8918 = vadd.f32 %v8869, %v8917
    %8919 = vmatmul.bf16.gmra.mxu0 %v8827
    %v8920 = vpop.f32.mrf.mxu0
    %v8921 = vadd.f32 %v8872, %v8920
    %v8922 = vpop.f32.mrf.mxu0
    %v8923 = vadd.f32 %v8874, %v8922
    %8924 = vmatmul.bf16.gmra.mxu0 %v8830
    %v8925 = vpop.f32.mrf.mxu0
    %v8926 = vadd.f32 %v8877, %v8925
    %v8927 = vpop.f32.mrf.mxu0
    %v8928 = vadd.f32 %v8879, %v8927
    %8929 = vdwg.mxu0
    %v8930 = vmax.f32 %v8891, 0.0
    %v8931 = vmax.f32 %v8893, 0.0
    %v8932 = vmax.f32 %v8896, 0.0
    %v8933 = vmax.f32 %v8898, 0.0
    %v8934 = vmax.f32 %v8901, 0.0
    %v8935 = vmax.f32 %v8903, 0.0
    %v8936 = vmax.f32 %v8906, 0.0
    %v8937 = vmax.f32 %v8908, 0.0
    %v8938 = vmax.f32 %v8911, 0.0
    %v8939 = vmax.f32 %v8913, 0.0
    %v8940 = vmax.f32 %v8916, 0.0
    %v8941 = vmax.f32 %v8918, 0.0
    %v8942 = vmax.f32 %v8921, 0.0
    %v8943 = vmax.f32 %v8923, 0.0
    %v8944 = vmax.f32 %v8926, 0.0
    %v8945 = vmax.f32 %v8928, 0.0
    %v8946 = vsel %vm104, %v8930, 0.0
    %v8947 = vsel %vm104, %v8931, 0.0
    %v8948 = vadd.f32 %v8946, %v8947
    %v8949 = vsel %vm104, %v8932, 0.0
    %v8950 = vadd.f32 %v8948, %v8949
    %v8951 = vsel %vm104, %v8933, 0.0
    %v8952 = vadd.f32 %v8950, %v8951
    %v8953 = vsel %vm104, %v8934, 0.0
    %v8954 = vadd.f32 %v8952, %v8953
    %v8955 = vsel %vm104, %v8935, 0.0
    %v8956 = vadd.f32 %v8954, %v8955
    %v8957 = vsel %vm104, %v8936, 0.0
    %v8958 = vadd.f32 %v8956, %v8957
    %v8959 = vsel %vm104, %v8937, 0.0
    %v8960 = vadd.f32 %v8958, %v8959
    %v8961 = vrot.slane %v8960, 4
    %v8962 = vadd.f32 %v8960, %v8961
    %v8963 = vrot.slane %v8962, 2
    %v8964 = vadd.f32 %v8962, %v8963
    %v8965 = vrot.slane %v8964, 1
    %v8966 = vadd.f32 %v8964, %v8965
    %v8967 = vsel %vm104, %v8938, 0.0
    %v8968 = vsel %vm104, %v8939, 0.0
    %v8969 = vadd.f32 %v8967, %v8968
    %v8970 = vsel %vm104, %v8940, 0.0
    %v8971 = vadd.f32 %v8969, %v8970
    %v8972 = vsel %vm104, %v8941, 0.0
    %v8973 = vadd.f32 %v8971, %v8972
    %v8974 = vsel %vm104, %v8942, 0.0
    %v8975 = vadd.f32 %v8973, %v8974
    %v8976 = vsel %vm104, %v8943, 0.0
    %v8977 = vadd.f32 %v8975, %v8976
    %v8978 = vsel %vm104, %v8944, 0.0
    %v8979 = vadd.f32 %v8977, %v8978
    %v8980 = vsel %vm104, %v8945, 0.0
    %v8981 = vadd.f32 %v8979, %v8980
    %v8982 = vrot.slane %v8981, 4
    %v8983 = vadd.f32 %v8981, %v8982
    %v8984 = vrot.slane %v8983, 2
    %v8985 = vadd.f32 %v8983, %v8984
    %v8986 = vrot.slane %v8985, 1
    %v8987 = vadd.f32 %v8985, %v8986
    %v8988 = vmul.f32 %v8966, 0.015625
    %v8989 = vmul.f32 %v8987, 0.015625
    %v8990 = vsub.f32 %v8930, %v8988
    %v8991 = vsub.f32 %v8931, %v8988
    %v8992 = vsub.f32 %v8932, %v8988
    %v8993 = vsub.f32 %v8933, %v8988
    %v8994 = vsub.f32 %v8934, %v8988
    %v8995 = vsub.f32 %v8935, %v8988
    %v8996 = vsub.f32 %v8936, %v8988
    %v8997 = vsub.f32 %v8937, %v8988
    %v8998 = vsub.f32 %v8938, %v8989
    %v8999 = vsub.f32 %v8939, %v8989
    %v9000 = vsub.f32 %v8940, %v8989
    %v9001 = vsub.f32 %v8941, %v8989
    %v9002 = vsub.f32 %v8942, %v8989
    %v9003 = vsub.f32 %v8943, %v8989
    %v9004 = vsub.f32 %v8944, %v8989
    %v9005 = vsub.f32 %v8945, %v8989
    %v9006 = vmul.f32 %v8990, %v8990
    %v9007 = vmul.f32 %v8991, %v8991
    %v9008 = vmul.f32 %v8992, %v8992
    %v9009 = vmul.f32 %v8993, %v8993
    %v9010 = vmul.f32 %v8994, %v8994
    %v9011 = vmul.f32 %v8995, %v8995
    %v9012 = vmul.f32 %v8996, %v8996
    %v9013 = vmul.f32 %v8997, %v8997
    %v9014 = vmul.f32 %v8998, %v8998
    %v9015 = vmul.f32 %v8999, %v8999
    %v9016 = vmul.f32 %v9000, %v9000
    %v9017 = vmul.f32 %v9001, %v9001
    %v9018 = vmul.f32 %v9002, %v9002
    %v9019 = vmul.f32 %v9003, %v9003
    %v9020 = vmul.f32 %v9004, %v9004
    %v9021 = vmul.f32 %v9005, %v9005
    %v9022 = vsel %vm104, %v9006, 0.0
    %v9023 = vsel %vm104, %v9007, 0.0
    %v9024 = vadd.f32 %v9022, %v9023
    %v9025 = vsel %vm104, %v9008, 0.0
    %v9026 = vadd.f32 %v9024, %v9025
    %v9027 = vsel %vm104, %v9009, 0.0
    %v9028 = vadd.f32 %v9026, %v9027
    %v9029 = vsel %vm104, %v9010, 0.0
    %v9030 = vadd.f32 %v9028, %v9029
    %v9031 = vsel %vm104, %v9011, 0.0
    %v9032 = vadd.f32 %v9030, %v9031
    %v9033 = vsel %vm104, %v9012, 0.0
    %v9034 = vadd.f32 %v9032, %v9033
    %v9035 = vsel %vm104, %v9013, 0.0
    %v9036 = vadd.f32 %v9034, %v9035
    %v9037 = vrot.slane %v9036, 4
    %v9038 = vadd.f32 %v9036, %v9037
    %v9039 = vrot.slane %v9038, 2
    %v9040 = vadd.f32 %v9038, %v9039
    %v9041 = vrot.slane %v9040, 1
    %v9042 = vadd.f32 %v9040, %v9041
    %v9043 = vsel %vm104, %v9014, 0.0
    %v9044 = vsel %vm104, %v9015, 0.0
    %v9045 = vadd.f32 %v9043, %v9044
    %v9046 = vsel %vm104, %v9016, 0.0
    %v9047 = vadd.f32 %v9045, %v9046
    %v9048 = vsel %vm104, %v9017, 0.0
    %v9049 = vadd.f32 %v9047, %v9048
    %v9050 = vsel %vm104, %v9018, 0.0
    %v9051 = vadd.f32 %v9049, %v9050
    %v9052 = vsel %vm104, %v9019, 0.0
    %v9053 = vadd.f32 %v9051, %v9052
    %v9054 = vsel %vm104, %v9020, 0.0
    %v9055 = vadd.f32 %v9053, %v9054
    %v9056 = vsel %vm104, %v9021, 0.0
    %v9057 = vadd.f32 %v9055, %v9056
    %v9058 = vrot.slane %v9057, 4
    %v9059 = vadd.f32 %v9057, %v9058
    %v9060 = vrot.slane %v9059, 2
    %v9061 = vadd.f32 %v9059, %v9060
    %v9062 = vrot.slane %v9061, 1
    %v9063 = vadd.f32 %v9061, %v9062
    %v9064 = vmul.f32 %v9042, 0.015625
    %v9065 = vmul.f32 %v9063, 0.015625
    %v9066 = vrsqrt.pop %v9064
    %v9067 = vmul.f32 %v9066, %v9064
    %v9068 = vmul.f32 %v9067, %v9066
    %v9069 = vmul.f32 0.5, %v9068
    %v9070 = vsub.f32 1.5, %v9069
    %v9071 = vmul.f32 %v9066, %v9070
    %v9072 = vmul.f32 %v9064, %v9071
    %vm9073 = vcmp.eq.f32.partialorder %v9064, inf
    %v9074 = vsel %vm9073, %v9064, %v9072
    %vm9075 = vcmp.eq.f32.partialorder %v9064, 0.0
    %v9076 = vand.u32 %v9064, 2147483648
    %v9077 = vsel %vm9075, %v9076, %v9074
    %v9078 = vrsqrt.pop %v9065
    %v9079 = vmul.f32 %v9078, %v9065
    %v9080 = vmul.f32 %v9079, %v9078
    %v9081 = vmul.f32 0.5, %v9080
    %v9082 = vsub.f32 1.5, %v9081
    %v9083 = vmul.f32 %v9078, %v9082
    %v9084 = vmul.f32 %v9065, %v9083
    %vm9085 = vcmp.eq.f32.partialorder %v9065, inf
    %v9086 = vsel %vm9085, %v9065, %v9084
    %vm9087 = vcmp.eq.f32.partialorder %v9065, 0.0
    %v9088 = vand.u32 %v9065, 2147483648
    %v9089 = vsel %vm9087, %v9088, %v9086
    %v9090 = vadd.f32 %v9077, %v8988
    %v9091 = vadd.f32 %v9089, %v8989
    %v9094 = vsel %vm1882, %v9091, %v9090
    %v9095 = vsel %vm104, %v9094, 0
    %9097 = vmatpush.msra.mxu0 0.0
    %9098 = vmatpush.msra.mxu0 0.0
    %9099 = vmatpush.msra.mxu0 0.0
    %9100 = vmatpush.msra.mxu0 0.0
    %9101 = vmatpush.msra.mxu0 0.0
    %9102 = vmatpush.msra.mxu0 0.0
    %9103 = vmatpush.msra.mxu0 0.0
    %9104 = vmatpush.msra.mxu0 0.0
    %9105 = vmatpush.msra.mxu0 0.0
    %9106 = vmatpush.msra.mxu0 0.0
    %9107 = vmatpush.msra.mxu0 0.0
    %9108 = vmatpush.msra.mxu0 0.0
    %9109 = vmatpush.msra.mxu0 0.0
    %9110 = vmatpush.msra.mxu0 0.0
    %9111 = vmatpush.msra.mxu0 %v7644
    %9112 = vmatpush.msra.mxu0 %v7643
    %9113 = vmatmul.f32.gmra.mxu0 %v9095
    %v9114 = vpop.f32.mrf.mxu0
    %v9115 = vadd.f32 %v7646, %v9114
    %9116 = vdwg.mxu0
    %v9117 = vsub.f32 0.0, %v9115
    %v9118 = vmul.f32 %v9117, 1.442695
    %v9119 = vpow.pop %v9118
    %v9120 = vadd.f32 %v9119, 1.0
    %v9121 = vrcp.pop %v9120
    %v9123 = vrot.slane %v9121, 1
    %v9124 = vperm.slane %v9121, 0
    %v9125 = vperm.slane %v9123, 0
    %v9128 = vmul.f32 %v8930, %v9124
    %v9129 = vmul.f32 %v8931, %v9124
    %v9130 = vmul.f32 %v8932, %v9124
    %v9131 = vmul.f32 %v8933, %v9124
    %v9132 = vmul.f32 %v8934, %v9124
    %v9133 = vmul.f32 %v8935, %v9124
    %v9134 = vmul.f32 %v8936, %v9124
    %v9135 = vmul.f32 %v8937, %v9124
    %v9136 = vmul.f32 %v8938, %v9125
    %v9137 = vmul.f32 %v8939, %v9125
    %v9138 = vmul.f32 %v8940, %v9125
    %v9139 = vmul.f32 %v8941, %v9125
    %v9140 = vmul.f32 %v8942, %v9125
    %v9141 = vmul.f32 %v8943, %v9125
    %v9142 = vmul.f32 %v8944, %v9125
    %v9143 = vmul.f32 %v8945, %v9125
    %v9144 = vadd.f32 %v9128, %v8930
    %v9145 = vadd.f32 %v9129, %v8931
    %v9146 = vadd.f32 %v9130, %v8932
    %v9147 = vadd.f32 %v9131, %v8933
    %v9148 = vadd.f32 %v9132, %v8934
    %v9149 = vadd.f32 %v9133, %v8935
    %v9150 = vadd.f32 %v9134, %v8936
    %v9151 = vadd.f32 %v9135, %v8937
    %v9152 = vadd.f32 %v9136, %v8938
    %v9153 = vadd.f32 %v9137, %v8939
    %v9154 = vadd.f32 %v9138, %v8940
    %v9155 = vadd.f32 %v9139, %v8941
    %v9156 = vadd.f32 %v9140, %v8942
    %v9157 = vadd.f32 %v9141, %v8943
    %v9158 = vadd.f32 %v9142, %v8944
    %v9159 = vadd.f32 %v9143, %v8945
    %v9160 = vadd.f32 %v9144, %v70
    %v9161 = vadd.f32 %v9145, %v71
    %v9162 = vadd.f32 %v9146, %v72
    %v9163 = vadd.f32 %v9147, %v73
    %v9164 = vadd.f32 %v9148, %v74
    %v9165 = vadd.f32 %v9149, %v75
    %v9166 = vadd.f32 %v9150, %v76
    %v9167 = vadd.f32 %v9151, %v77
    %v9168 = vadd.f32 %v9152, %v78
    %v9169 = vadd.f32 %v9153, %v79
    %v9170 = vadd.f32 %v9154, %v80
    %v9171 = vadd.f32 %v9155, %v81
    %v9172 = vadd.f32 %v9156, %v82
    %v9173 = vadd.f32 %v9157, %v83
    %v9174 = vadd.f32 %v9158, %v84
    %v9175 = vadd.f32 %v9159, %v85
    %9176 = vst.msk [vmem:[#allocation2] sm:$0xff] %vm104, %v9160
    %9177 = vst.msk [vmem:[#allocation2 + $0x8] sm:$0xff] %vm104, %v9161
    %9178 = vst.msk [vmem:[#allocation2 + $0x10] sm:$0xff] %vm104, %v9162
    %9179 = vst.msk [vmem:[#allocation2 + $0x18] sm:$0xff] %vm104, %v9163
    %9180 = vst.msk [vmem:[#allocation2 + $0x20] sm:$0xff] %vm104, %v9164
    %9181 = vst.msk [vmem:[#allocation2 + $0x28] sm:$0xff] %vm104, %v9165
    %9182 = vst.msk [vmem:[#allocation2 + $0x30] sm:$0xff] %vm104, %v9166
    %9183 = vst.msk [vmem:[#allocation2 + $0x38] sm:$0xff] %vm104, %v9167
    %9184 = vst.msk [vmem:[#allocation2 + $0x40] sm:$0xff] %vm104, %v9168
    %9185 = vst.msk [vmem:[#allocation2 + $0x48] sm:$0xff] %vm104, %v9169
    %9186 = vst.msk [vmem:[#allocation2 + $0x50] sm:$0xff] %vm104, %v9170
    %9187 = vst.msk [vmem:[#allocation2 + $0x58] sm:$0xff] %vm104, %v9171
    %9188 = vst.msk [vmem:[#allocation2 + $0x60] sm:$0xff] %vm104, %v9172
    %9189 = vst.msk [vmem:[#allocation2 + $0x68] sm:$0xff] %vm104, %v9173
    %9190 = vst.msk [vmem:[#allocation2 + $0x70] sm:$0xff] %vm104, %v9174
    %9191 = vst.msk [vmem:[#allocation2 + $0x78] sm:$0xff] %vm104, %v9175
    // Predicated region
    $region86: #{imd_forward.1} parent=1 // pred_check
      _
    $region87: #{imd_forward.1} parent=1 // pred_check_branch
      %9193 = sbr.rel (0) target = $region89
    $region88: #{imd_forward.1} parent=1 // pred_region
      %9195 = vsyncadd [#allocation3], 0
      %s9196 = sshll.u32 [#allocation2], 4
      %s9197 = int_to_ptr.vmem [resolvable:$true] %s9196
      %s9198 = sshll.u32 %s21, 4
      %s9199 = int_to_ptr.hbm [resolvable:$true] %s9198
      %9204 = dma.vmem_to_hbm [thread:$0]  %s9197, 2048, %s9199, [#allocation3], 128, 128, 8
    $region89: #{imd_forward.1} parent=1 // pred_fallthru
      _
    // Predicated region
    $region90: #{imd_forward.1} parent=1 // pred_check
      _
    $region91: #{imd_forward.1} parent=1 // pred_check_branch
      %9206 = sbr.rel (0) target = $region93
    $region92: #{imd_forward.1} parent=1 // pred_region
      %9208 = dma.done [#allocation3], 2048
    $region93: #{imd_forward.1} parent=1 // pred_fallthru
      _
    %9209 = vsyncpa [#allocation3], 1

</llo_original>
